<compile_context>
chip_gen: v5e
topology: v5e:2x2
jax: 0.10.0
libtpu: 0.0.40
codegen_flags: <defaults>
</compile_context>

<pallas_src>
import jax
import jax.numpy as jnp
from jax.experimental import pallas as pl
from jax.experimental.pallas import tpu as pltpu


# ----------------------------- fused kernel ---------------------------------

def _make_rdb_ds_kernel(H, W, C, G, L):
    """Fused RDB + conv5x5/stride-2 down-sampling kernel (one batch element)."""
    C_final = C + L * G
    Ho, Wo = H // 2, W // 2

    def kernel(x_ref, wd_ref, bd_ref, w1_ref, b1_ref, w5_ref, b5_ref,
               o_ref, feat_ref, patch_ref, pad5_ref, patch5_ref):
        # Zero the padded scratches: the never-written halo rows/cols act as the
        # convolutions' zero 'same' padding.
        feat_ref[...] = jnp.zeros((H + 2, W + 2, C_final), jnp.float32)
        pad5_ref[...] = jnp.zeros((H + 4, W + 4, C), jnp.float32)

        x = x_ref[0].astype(jnp.float32)                        # (H, W, C)
        feat_ref[1:H + 1, 1:W + 1, 0:C] = x

        # ---- RDB dense layers: conv3x3 + ReLU, concat kept resident in VMEM ----
        for l in range(L):
            feat = feat_ref[...]                                # (H+2, W+2, C_final)
            # im2col: 9 shifted taps side by side -> one (H*W, 9*C_final) matmul.
            # Channels not yet written are still zero (and their weight rows are
            # zero-padded), so reading the full C_final channels is exact.
            for t in range(9):
                dy, dx = t // 3, t % 3
                patch_ref[:, :, t * C_final:(t + 1) * C_final] = \
                    feat[dy:dy + H, dx:dx + W, :]
            patches = patch_ref[...].reshape(H * W, 9 * C_final)
            y = jnp.dot(patches, wd_ref[l], preferred_element_type=jnp.float32)
            y = jnp.maximum(y + bd_ref[l], 0.0)                 # bias epilogue + ReLU
            c0 = C + l * G
            feat_ref[1:H + 1, 1:W + 1, c0:c0 + G] = y.reshape(H, W, G)

        # ---- conv1x1 + residual (still in VMEM / f32) ----
        feat_full = feat_ref[1:H + 1, 1:W + 1, :].reshape(H * W, C_final)
        rdb = jnp.dot(feat_full, w1_ref[...], preferred_element_type=jnp.float32)
        rdb = rdb + b1_ref[...] + x.reshape(H * W, C)

        # ---- conv5x5 stride-2 (padding=2): even/odd phases via strided loads ----
        pad5_ref[2:H + 2, 2:W + 2, :] = rdb.reshape(H, W, C)
        for t in range(25):
            dy, dx = t // 5, t % 5
            tap = pad5_ref[pl.ds(dy, Ho, stride=2), pl.ds(dx, Wo, stride=2), :]
            patch5_ref[:, :, t * C:(t + 1) * C] = tap
        p5 = patch5_ref[...].reshape(Ho * Wo, 25 * C)
        out = jnp.dot(p5, w5_ref[...], preferred_element_type=jnp.float32)
        out = out + b5_ref[...]
        o_ref[0] = out.reshape(Ho, Wo, 2 * C).astype(o_ref.dtype)

    return kernel


# ----------------------------- wrapper ---------------------------------------

def _flatten_params(params, C, G, L):
    """Pre-flatten conv weights to im2col layout (once, outside the kernel)."""
    C_final = C + L * G
    wd, bd = [], []
    for (w, b) in params["dense"]:                  # w: (3,3,cin,G), b: (G,)
        cin = w.shape[2]
        w = jnp.pad(w, ((0, 0), (0, 0), (0, C_final - cin), (0, 0)))
        wd.append(w.reshape(9 * C_final, G))        # rows ordered (dy, dx, cin)
        bd.append(b.reshape(1, G))
    wd_flat = jnp.stack(wd, axis=0)                 # (L, 9*C_final, G)
    bd_flat = jnp.stack(bd, axis=0)                 # (L, 1, G)
    w1 = params["w1x1"]                             # (C_final, C)
    b1 = params["b1x1"].reshape(1, C)
    w5 = params["w5"].reshape(25 * C, 2 * C)        # rows ordered (dy, dx, cin)
    b5 = params["b5"].reshape(1, 2 * C)
    return wd_flat, bd_flat, w1, b1, w5, b5


def rdb_ds_forward(x_nhwc, params):
    """RDB_DS forward. x_nhwc: (N, H, W, C) float32 -> (N, H//2, W//2, 2C)."""
    N, H, W, C = x_nhwc.shape
    L = len(params["dense"])
    G = params["dense"][0][0].shape[-1]
    C_final = C + L * G
    assert H % 2 == 0 and W % 2 == 0, "conv5x5/stride-2 path assumes even H, W"
    Ho, Wo = H // 2, W // 2

    wd_flat, bd_flat, w1, b1, w5f, b5 = _flatten_params(params, C, G, L)
    kernel = _make_rdb_ds_kernel(H, W, C, G, L)

    return pl.pallas_call(
        kernel,
        out_shape=jax.ShapeDtypeStruct((N, Ho, Wo, 2 * C), x_nhwc.dtype),
        grid=(N,),
        in_specs=[
            pl.BlockSpec((1, H, W, C), lambda n: (n, 0, 0, 0)),
            pl.BlockSpec((L, 9 * C_final, G), lambda n: (0, 0, 0)),
            pl.BlockSpec((L, 1, G), lambda n: (0, 0, 0)),
            pl.BlockSpec((C_final, C), lambda n: (0, 0)),
            pl.BlockSpec((1, C), lambda n: (0, 0)),
            pl.BlockSpec((25 * C, 2 * C), lambda n: (0, 0)),
            pl.BlockSpec((1, 2 * C), lambda n: (0, 0)),
        ],
        out_specs=pl.BlockSpec((1, Ho, Wo, 2 * C), lambda n: (n, 0, 0, 0)),
        scratch_shapes=[
            pltpu.VMEM((H + 2, W + 2, C_final), jnp.float32),   # padded dense features
            pltpu.VMEM((H, W, 9 * C_final), jnp.float32),       # 3x3 im2col patches
            pltpu.VMEM((H + 4, W + 4, C), jnp.float32),         # padded RDB output
            pltpu.VMEM((Ho, Wo, 25 * C), jnp.float32),          # 5x5 im2col patches
        ],
        compiler_params=pltpu.CompilerParams(
            dimension_semantics=("parallel",),   # batch >= 2 -> both v7x TCs
            vmem_limit_bytes=48 * 1024 * 1024,
        ),
    )(x_nhwc, wd_flat, bd_flat, w1, b1, w5f, b5)


# ----------------------------- reference (pure JAX) ---------------------------

def _conv_ref(x, w, b, stride, pad):
    y = jax.lax.conv_general_dilated(
        x, w, window_strides=(stride, stride),
        padding=((pad, pad), (pad, pad)),
        dimension_numbers=("NHWC", "HWIO", "NHWC"))
    return y + b


def rdb_ds_ref(x, params):
    feat = x
    for (w, b) in params["dense"]:
        y = jax.nn.relu(_conv_ref(feat, w, b, 1, 1))
        feat = jnp.concatenate([feat, y], axis=-1)
    out = _conv_ref(feat, params["w1x1"][None, None], params["b1x1"], 1, 0) + x
    out = _conv_ref(out, params["w5"], params["b5"], 2, 2)
    return out


# ----------------------------- params ----------------------------------------

def init_params(key, in_channels, growth_rate, num_layer):
    params = {"dense": []}
    c = in_channels
    for _ in range(num_layer):
        key, k1, k2 = jax.random.split(key, 3)
        w = 0.1 * jax.random.normal(k1, (3, 3, c, growth_rate), jnp.float32)
        b = 0.1 * jax.random.normal(k2, (growth_rate,), jnp.float32)
        params["dense"].append((w, b))
        c += growth_rate
    key, k1, k2, k3, k4 = jax.random.split(key, 5)
    params["w1x1"] = 0.1 * jax.random.normal(k1, (c, in_channels), jnp.float32)
    params["b1x1"] = 0.1 * jax.random.normal(k2, (in_channels,), jnp.float32)
    params["w5"] = 0.1 * jax.random.normal(k3, (5, 5, in_channels, 2 * in_channels), jnp.float32)
    params["b5"] = 0.1 * jax.random.normal(k4, (2 * in_channels,), jnp.float32)
    return params


# ----------------------------- main -------------------------------------------

if __name__ == "__main__":
    N, C, H, W = 2, 4, 16, 16            # NCHW like the PyTorch module
    growth_rate, num_layer = 4, 3

    key = jax.random.PRNGKey(0)
    key, kx = jax.random.split(key)
    x_nchw = jax.random.normal(kx, (N, C, H, W), jnp.float32)
    x_nhwc = jnp.transpose(x_nchw, (0, 2, 3, 1))

    params = init_params(key, C, growth_rate, num_layer)

    fwd = jax.jit(rdb_ds_forward)
    out = jax.block_until_ready(fwd(x_nhwc, params))
    ref = jax.block_until_ready(rdb_ds_ref(x_nhwc, params))

    assert out.shape == (N, H // 2, W // 2, 2 * C), out.shape
    max_err = float(jnp.max(jnp.abs(out - ref)))
    assert jnp.allclose(out, ref, atol=1e-4, rtol=1e-4), max_err

    print("KERNEL_OK")
</pallas_src>

<mosaic_0001>
module attributes {stable_mosaic.version = 11 : i64} {
  func.func @kernel(%arg0: i32, %arg1: memref<1x16x16x4xf32, #tpu.memory_space<vmem>>, %arg2: memref<3x144x4xf32, #tpu.memory_space<vmem>>, %arg3: memref<3x1x4xf32, #tpu.memory_space<vmem>>, %arg4: memref<16x4xf32, #tpu.memory_space<vmem>>, %arg5: memref<1x4xf32, #tpu.memory_space<vmem>>, %arg6: memref<100x8xf32, #tpu.memory_space<vmem>>, %arg7: memref<1x8xf32, #tpu.memory_space<vmem>>, %arg8: memref<1x8x8x8xf32, #tpu.memory_space<vmem>>, %arg9: memref<18x18x16xf32, #tpu.memory_space<vmem>>, %arg10: memref<16x16x144xf32, #tpu.memory_space<vmem>>, %arg11: memref<20x20x4xf32, #tpu.memory_space<vmem>>, %arg12: memref<8x8x100xf32, #tpu.memory_space<vmem>>) attributes {dimension_semantics = [#tpu.dimension_semantics<parallel>], iteration_bounds = array<i64: 2>, scalar_prefetch = 0 : i64, scratch_operands = 4 : i64, tpu.core_type = #tpu.core_type<tc>, window_params = [{transform_indices = @transform_0, window_bounds = array<i64: 1, 16, 16, 4>}, {pipeline_mode = #tpu.pipeline_mode<synchronous>, transform_indices = @transform_1, window_bounds = array<i64: 3, 144, 4>}, {pipeline_mode = #tpu.pipeline_mode<synchronous>, transform_indices = @transform_2, window_bounds = array<i64: 3, 1, 4>}, {pipeline_mode = #tpu.pipeline_mode<synchronous>, transform_indices = @transform_3, window_bounds = array<i64: 16, 4>}, {pipeline_mode = #tpu.pipeline_mode<synchronous>, transform_indices = @transform_4, window_bounds = array<i64: 1, 4>}, {pipeline_mode = #tpu.pipeline_mode<synchronous>, transform_indices = @transform_5, window_bounds = array<i64: 100, 8>}, {pipeline_mode = #tpu.pipeline_mode<synchronous>, transform_indices = @transform_6, window_bounds = array<i64: 1, 8>}, {transform_indices = @transform_7, window_bounds = array<i64: 1, 8, 8, 8>}]} {
    %cst = arith.constant 0.000000e+00 : f32
    %0 = vector.broadcast %cst : f32 to vector<18x18x16xf32>
    %c0 = arith.constant 0 : index
    %c0_0 = arith.constant 0 : index
    %c0_1 = arith.constant 0 : index
    %1 = vector.load %arg9[%c0, %c0_0, %c0_1] : memref<18x18x16xf32, #tpu.memory_space<vmem>>, vector<18x18x16xf32>
    tpu.vector_store %arg9[%c0, %c0_0, %c0_1], %0 {strides = array<i32>} : memref<18x18x16xf32, #tpu.memory_space<vmem>>, vector<18x18x16xf32>,
    %cst_2 = arith.constant 0.000000e+00 : f32
    %2 = vector.broadcast %cst_2 : f32 to vector<20x20x4xf32>
    %c0_3 = arith.constant 0 : index
    %c0_4 = arith.constant 0 : index
    %c0_5 = arith.constant 0 : index
    %3 = vector.load %arg11[%c0_3, %c0_4, %c0_5] : memref<20x20x4xf32, #tpu.memory_space<vmem>>, vector<20x20x4xf32>
    tpu.vector_store %arg11[%c0_3, %c0_4, %c0_5], %2 {strides = array<i32>} : memref<20x20x4xf32, #tpu.memory_space<vmem>>, vector<20x20x4xf32>,
    %c0_6 = arith.constant 0 : index
    %c0_7 = arith.constant 0 : index
    %c0_8 = arith.constant 0 : index
    %c0_9 = arith.constant 0 : index
    %4 = vector.load %arg1[%c0_6, %c0_7, %c0_8, %c0_9] : memref<1x16x16x4xf32, #tpu.memory_space<vmem>>, vector<1x16x16x4xf32>
    %5 = vector.shape_cast %4 : vector<1x16x16x4xf32> to vector<16x16x4xf32>
    %c1 = arith.constant 1 : index
    %c1_10 = arith.constant 1 : index
    %c0_11 = arith.constant 0 : index
    %6 = vector.load %arg9[%c1, %c1_10, %c0_11] : memref<18x18x16xf32, #tpu.memory_space<vmem>>, vector<16x16x4xf32>
    tpu.vector_store %arg9[%c1, %c1_10, %c0_11], %5 {strides = array<i32>} : memref<18x18x16xf32, #tpu.memory_space<vmem>>, vector<16x16x4xf32>,
    %c0_12 = arith.constant 0 : index
    %c0_13 = arith.constant 0 : index
    %c0_14 = arith.constant 0 : index
    %7 = vector.load %arg9[%c0_12, %c0_13, %c0_14] : memref<18x18x16xf32, #tpu.memory_space<vmem>>, vector<18x18x16xf32>
    %8 = vector.extract_strided_slice %7 {offsets = [0, 0, 0], sizes = [16, 16, 16], strides = [1, 1, 1]} : vector<18x18x16xf32> to vector<16x16x16xf32>
    %c0_15 = arith.constant 0 : index
    %c0_16 = arith.constant 0 : index
    %c0_17 = arith.constant 0 : index
    %9 = vector.load %arg10[%c0_15, %c0_16, %c0_17] : memref<16x16x144xf32, #tpu.memory_space<vmem>>, vector<16x16x16xf32>
    tpu.vector_store %arg10[%c0_15, %c0_16, %c0_17], %8 {strides = array<i32>} : memref<16x16x144xf32, #tpu.memory_space<vmem>>, vector<16x16x16xf32>,
    %10 = vector.extract_strided_slice %7 {offsets = [0, 1, 0], sizes = [16, 16, 16], strides = [1, 1, 1]} : vector<18x18x16xf32> to vector<16x16x16xf32>
    %c0_18 = arith.constant 0 : index
    %c0_19 = arith.constant 0 : index
    %c16 = arith.constant 16 : index
    %11 = vector.load %arg10[%c0_18, %c0_19, %c16] : memref<16x16x144xf32, #tpu.memory_space<vmem>>, vector<16x16x16xf32>
    tpu.vector_store %arg10[%c0_18, %c0_19, %c16], %10 {strides = array<i32>} : memref<16x16x144xf32, #tpu.memory_space<vmem>>, vector<16x16x16xf32>,
    %12 = vector.extract_strided_slice %7 {offsets = [0, 2, 0], sizes = [16, 16, 16], strides = [1, 1, 1]} : vector<18x18x16xf32> to vector<16x16x16xf32>
    %c0_20 = arith.constant 0 : index
    %c0_21 = arith.constant 0 : index
    %c32 = arith.constant 32 : index
    %13 = vector.load %arg10[%c0_20, %c0_21, %c32] : memref<16x16x144xf32, #tpu.memory_space<vmem>>, vector<16x16x16xf32>
    tpu.vector_store %arg10[%c0_20, %c0_21, %c32], %12 {strides = array<i32>} : memref<16x16x144xf32, #tpu.memory_space<vmem>>, vector<16x16x16xf32>,
    %14 = vector.extract_strided_slice %7 {offsets = [1, 0, 0], sizes = [16, 16, 16], strides = [1, 1, 1]} : vector<18x18x16xf32> to vector<16x16x16xf32>
    %c0_22 = arith.constant 0 : index
    %c0_23 = arith.constant 0 : index
    %c48 = arith.constant 48 : index
    %15 = vector.load %arg10[%c0_22, %c0_23, %c48] : memref<16x16x144xf32, #tpu.memory_space<vmem>>, vector<16x16x16xf32>
    tpu.vector_store %arg10[%c0_22, %c0_23, %c48], %14 {strides = array<i32>} : memref<16x16x144xf32, #tpu.memory_space<vmem>>, vector<16x16x16xf32>,
    %16 = vector.extract_strided_slice %7 {offsets = [1, 1, 0], sizes = [16, 16, 16], strides = [1, 1, 1]} : vector<18x18x16xf32> to vector<16x16x16xf32>
    %c0_24 = arith.constant 0 : index
    %c0_25 = arith.constant 0 : index
    %c64 = arith.constant 64 : index
    %17 = vector.load %arg10[%c0_24, %c0_25, %c64] : memref<16x16x144xf32, #tpu.memory_space<vmem>>, vector<16x16x16xf32>
    tpu.vector_store %arg10[%c0_24, %c0_25, %c64], %16 {strides = array<i32>} : memref<16x16x144xf32, #tpu.memory_space<vmem>>, vector<16x16x16xf32>,
    %18 = vector.extract_strided_slice %7 {offsets = [1, 2, 0], sizes = [16, 16, 16], strides = [1, 1, 1]} : vector<18x18x16xf32> to vector<16x16x16xf32>
    %c0_26 = arith.constant 0 : index
    %c0_27 = arith.constant 0 : index
    %c80 = arith.constant 80 : index
    %19 = vector.load %arg10[%c0_26, %c0_27, %c80] : memref<16x16x144xf32, #tpu.memory_space<vmem>>, vector<16x16x16xf32>
    tpu.vector_store %arg10[%c0_26, %c0_27, %c80], %18 {strides = array<i32>} : memref<16x16x144xf32, #tpu.memory_space<vmem>>, vector<16x16x16xf32>,
    %20 = vector.extract_strided_slice %7 {offsets = [2, 0, 0], sizes = [16, 16, 16], strides = [1, 1, 1]} : vector<18x18x16xf32> to vector<16x16x16xf32>
    %c0_28 = arith.constant 0 : index
    %c0_29 = arith.constant 0 : index
    %c96 = arith.constant 96 : index
    %21 = vector.load %arg10[%c0_28, %c0_29, %c96] : memref<16x16x144xf32, #tpu.memory_space<vmem>>, vector<16x16x16xf32>
    tpu.vector_store %arg10[%c0_28, %c0_29, %c96], %20 {strides = array<i32>} : memref<16x16x144xf32, #tpu.memory_space<vmem>>, vector<16x16x16xf32>,
    %22 = vector.extract_strided_slice %7 {offsets = [2, 1, 0], sizes = [16, 16, 16], strides = [1, 1, 1]} : vector<18x18x16xf32> to vector<16x16x16xf32>
    %c0_30 = arith.constant 0 : index
    %c0_31 = arith.constant 0 : index
    %c112 = arith.constant 112 : index
    %23 = vector.load %arg10[%c0_30, %c0_31, %c112] : memref<16x16x144xf32, #tpu.memory_space<vmem>>, vector<16x16x16xf32>
    tpu.vector_store %arg10[%c0_30, %c0_31, %c112], %22 {strides = array<i32>} : memref<16x16x144xf32, #tpu.memory_space<vmem>>, vector<16x16x16xf32>,
    %24 = vector.extract_strided_slice %7 {offsets = [2, 2, 0], sizes = [16, 16, 16], strides = [1, 1, 1]} : vector<18x18x16xf32> to vector<16x16x16xf32>
    %c0_32 = arith.constant 0 : index
    %c0_33 = arith.constant 0 : index
    %c128 = arith.constant 128 : index
    %25 = vector.load %arg10[%c0_32, %c0_33, %c128] : memref<16x16x144xf32, #tpu.memory_space<vmem>>, vector<16x16x16xf32>
    tpu.vector_store %arg10[%c0_32, %c0_33, %c128], %24 {strides = array<i32>} : memref<16x16x144xf32, #tpu.memory_space<vmem>>, vector<16x16x16xf32>,
    %c0_34 = arith.constant 0 : index
    %c0_35 = arith.constant 0 : index
    %c0_36 = arith.constant 0 : index
    %26 = vector.load %arg10[%c0_34, %c0_35, %c0_36] : memref<16x16x144xf32, #tpu.memory_space<vmem>>, vector<16x16x144xf32>
    %27 = vector.shape_cast %26 : vector<16x16x144xf32> to vector<256x144xf32>
    %c0_37 = arith.constant 0 : index
    %c0_38 = arith.constant 0 : index
    %c0_39 = arith.constant 0 : index
    %28 = vector.load %arg2[%c0_37, %c0_38, %c0_39] : memref<3x144x4xf32, #tpu.memory_space<vmem>>, vector<1x144x4xf32>
    %29 = vector.shape_cast %28 : vector<1x144x4xf32> to vector<144x4xf32>
    %cst_40 = arith.constant dense<0.000000e+00> : vector<256x4xf32>
    %30 = tpu.matmul %27, %29, %cst_40 {dimension_numbers = #tpu.dot_dimension_numbers<[1], [0], [0], [1], [0, 0, 1, 1], [], []>} : vector<256x144xf32>, vector<144x4xf32>, vector<256x4xf32> -> vector<256x4xf32>
    %c0_41 = arith.constant 0 : index
    %c0_42 = arith.constant 0 : index
    %c0_43 = arith.constant 0 : index
    %31 = vector.load %arg3[%c0_41, %c0_42, %c0_43] : memref<3x1x4xf32, #tpu.memory_space<vmem>>, vector<1x1x4xf32>
    %32 = vector.shape_cast %31 : vector<1x1x4xf32> to vector<1x4xf32>
    %33 = vector.broadcast %32 : vector<1x4xf32> to vector<256x4xf32>
    %34 = arith.addf %30, %33 : vector<256x4xf32>
    %cst_44 = arith.constant 0.000000e+00 : f32
    %35 = vector.broadcast %cst_44 : f32 to vector<256x4xf32>
    %36 = arith.maximumf %34, %35 : vector<256x4xf32>
    %37 = vector.shape_cast %36 : vector<256x4xf32> to vector<16x16x4xf32>
    %c1_45 = arith.constant 1 : index
    %c1_46 = arith.constant 1 : index
    %c4 = arith.constant 4 : index
    %38 = vector.load %arg9[%c1_45, %c1_46, %c4] : memref<18x18x16xf32, #tpu.memory_space<vmem>>, vector<16x16x4xf32>
    tpu.vector_store %arg9[%c1_45, %c1_46, %c4], %37 {strides = array<i32>} : memref<18x18x16xf32, #tpu.memory_space<vmem>>, vector<16x16x4xf32>,
    %c0_47 = arith.constant 0 : index
    %c0_48 = arith.constant 0 : index
    %c0_49 = arith.constant 0 : index
    %39 = vector.load %arg9[%c0_47, %c0_48, %c0_49] : memref<18x18x16xf32, #tpu.memory_space<vmem>>, vector<18x18x16xf32>
    %40 = vector.extract_strided_slice %39 {offsets = [0, 0, 0], sizes = [16, 16, 16], strides = [1, 1, 1]} : vector<18x18x16xf32> to vector<16x16x16xf32>
    %c0_50 = arith.constant 0 : index
    %c0_51 = arith.constant 0 : index
    %c0_52 = arith.constant 0 : index
    %41 = vector.load %arg10[%c0_50, %c0_51, %c0_52] : memref<16x16x144xf32, #tpu.memory_space<vmem>>, vector<16x16x16xf32>
    tpu.vector_store %arg10[%c0_50, %c0_51, %c0_52], %40 {strides = array<i32>} : memref<16x16x144xf32, #tpu.memory_space<vmem>>, vector<16x16x16xf32>,
    %42 = vector.extract_strided_slice %39 {offsets = [0, 1, 0], sizes = [16, 16, 16], strides = [1, 1, 1]} : vector<18x18x16xf32> to vector<16x16x16xf32>
    %c0_53 = arith.constant 0 : index
    %c0_54 = arith.constant 0 : index
    %c16_55 = arith.constant 16 : index
    %43 = vector.load %arg10[%c0_53, %c0_54, %c16_55] : memref<16x16x144xf32, #tpu.memory_space<vmem>>, vector<16x16x16xf32>
    tpu.vector_store %arg10[%c0_53, %c0_54, %c16_55], %42 {strides = array<i32>} : memref<16x16x144xf32, #tpu.memory_space<vmem>>, vector<16x16x16xf32>,
    %44 = vector.extract_strided_slice %39 {offsets = [0, 2, 0], sizes = [16, 16, 16], strides = [1, 1, 1]} : vector<18x18x16xf32> to vector<16x16x16xf32>
    %c0_56 = arith.constant 0 : index
    %c0_57 = arith.constant 0 : index
    %c32_58 = arith.constant 32 : index
    %45 = vector.load %arg10[%c0_56, %c0_57, %c32_58] : memref<16x16x144xf32, #tpu.memory_space<vmem>>, vector<16x16x16xf32>
    tpu.vector_store %arg10[%c0_56, %c0_57, %c32_58], %44 {strides = array<i32>} : memref<16x16x144xf32, #tpu.memory_space<vmem>>, vector<16x16x16xf32>,
    %46 = vector.extract_strided_slice %39 {offsets = [1, 0, 0], sizes = [16, 16, 16], strides = [1, 1, 1]} : vector<18x18x16xf32> to vector<16x16x16xf32>
    %c0_59 = arith.constant 0 : index
    %c0_60 = arith.constant 0 : index
    %c48_61 = arith.constant 48 : index
    %47 = vector.load %arg10[%c0_59, %c0_60, %c48_61] : memref<16x16x144xf32, #tpu.memory_space<vmem>>, vector<16x16x16xf32>
    tpu.vector_store %arg10[%c0_59, %c0_60, %c48_61], %46 {strides = array<i32>} : memref<16x16x144xf32, #tpu.memory_space<vmem>>, vector<16x16x16xf32>,
    %48 = vector.extract_strided_slice %39 {offsets = [1, 1, 0], sizes = [16, 16, 16], strides = [1, 1, 1]} : vector<18x18x16xf32> to vector<16x16x16xf32>
    %c0_62 = arith.constant 0 : index
    %c0_63 = arith.constant 0 : index
    %c64_64 = arith.constant 64 : index
    %49 = vector.load %arg10[%c0_62, %c0_63, %c64_64] : memref<16x16x144xf32, #tpu.memory_space<vmem>>, vector<16x16x16xf32>
    tpu.vector_store %arg10[%c0_62, %c0_63, %c64_64], %48 {strides = array<i32>} : memref<16x16x144xf32, #tpu.memory_space<vmem>>, vector<16x16x16xf32>,
    %50 = vector.extract_strided_slice %39 {offsets = [1, 2, 0], sizes = [16, 16, 16], strides = [1, 1, 1]} : vector<18x18x16xf32> to vector<16x16x16xf32>
    %c0_65 = arith.constant 0 : index
    %c0_66 = arith.constant 0 : index
    %c80_67 = arith.constant 80 : index
    %51 = vector.load %arg10[%c0_65, %c0_66, %c80_67] : memref<16x16x144xf32, #tpu.memory_space<vmem>>, vector<16x16x16xf32>
    tpu.vector_store %arg10[%c0_65, %c0_66, %c80_67], %50 {strides = array<i32>} : memref<16x16x144xf32, #tpu.memory_space<vmem>>, vector<16x16x16xf32>,
    %52 = vector.extract_strided_slice %39 {offsets = [2, 0, 0], sizes = [16, 16, 16], strides = [1, 1, 1]} : vector<18x18x16xf32> to vector<16x16x16xf32>
    %c0_68 = arith.constant 0 : index
    %c0_69 = arith.constant 0 : index
    %c96_70 = arith.constant 96 : index
    %53 = vector.load %arg10[%c0_68, %c0_69, %c96_70] : memref<16x16x144xf32, #tpu.memory_space<vmem>>, vector<16x16x16xf32>
    tpu.vector_store %arg10[%c0_68, %c0_69, %c96_70], %52 {strides = array<i32>} : memref<16x16x144xf32, #tpu.memory_space<vmem>>, vector<16x16x16xf32>,
    %54 = vector.extract_strided_slice %39 {offsets = [2, 1, 0], sizes = [16, 16, 16], strides = [1, 1, 1]} : vector<18x18x16xf32> to vector<16x16x16xf32>
    %c0_71 = arith.constant 0 : index
    %c0_72 = arith.constant 0 : index
    %c112_73 = arith.constant 112 : index
    %55 = vector.load %arg10[%c0_71, %c0_72, %c112_73] : memref<16x16x144xf32, #tpu.memory_space<vmem>>, vector<16x16x16xf32>
    tpu.vector_store %arg10[%c0_71, %c0_72, %c112_73], %54 {strides = array<i32>} : memref<16x16x144xf32, #tpu.memory_space<vmem>>, vector<16x16x16xf32>,
    %56 = vector.extract_strided_slice %39 {offsets = [2, 2, 0], sizes = [16, 16, 16], strides = [1, 1, 1]} : vector<18x18x16xf32> to vector<16x16x16xf32>
    %c0_74 = arith.constant 0 : index
    %c0_75 = arith.constant 0 : index
    %c128_76 = arith.constant 128 : index
    %57 = vector.load %arg10[%c0_74, %c0_75, %c128_76] : memref<16x16x144xf32, #tpu.memory_space<vmem>>, vector<16x16x16xf32>
    tpu.vector_store %arg10[%c0_74, %c0_75, %c128_76], %56 {strides = array<i32>} : memref<16x16x144xf32, #tpu.memory_space<vmem>>, vector<16x16x16xf32>,
    %c0_77 = arith.constant 0 : index
    %c0_78 = arith.constant 0 : index
    %c0_79 = arith.constant 0 : index
    %58 = vector.load %arg10[%c0_77, %c0_78, %c0_79] : memref<16x16x144xf32, #tpu.memory_space<vmem>>, vector<16x16x144xf32>
    %59 = vector.shape_cast %58 : vector<16x16x144xf32> to vector<256x144xf32>
    %c1_80 = arith.constant 1 : index
    %c0_81 = arith.constant 0 : index
    %c0_82 = arith.constant 0 : index
    %60 = vector.load %arg2[%c1_80, %c0_81, %c0_82] : memref<3x144x4xf32, #tpu.memory_space<vmem>>, vector<1x144x4xf32>
    %61 = vector.shape_cast %60 : vector<1x144x4xf32> to vector<144x4xf32>
    %cst_83 = arith.constant dense<0.000000e+00> : vector<256x4xf32>
    %62 = tpu.matmul %59, %61, %cst_83 {dimension_numbers = #tpu.dot_dimension_numbers<[1], [0], [0], [1], [0, 0, 1, 1], [], []>} : vector<256x144xf32>, vector<144x4xf32>, vector<256x4xf32> -> vector<256x4xf32>
    %c1_84 = arith.constant 1 : index
    %c0_85 = arith.constant 0 : index
    %c0_86 = arith.constant 0 : index
    %63 = vector.load %arg3[%c1_84, %c0_85, %c0_86] : memref<3x1x4xf32, #tpu.memory_space<vmem>>, vector<1x1x4xf32>
    %64 = vector.shape_cast %63 : vector<1x1x4xf32> to vector<1x4xf32>
    %65 = vector.broadcast %64 : vector<1x4xf32> to vector<256x4xf32>
    %66 = arith.addf %62, %65 : vector<256x4xf32>
    %cst_87 = arith.constant 0.000000e+00 : f32
    %67 = vector.broadcast %cst_87 : f32 to vector<256x4xf32>
    %68 = arith.maximumf %66, %67 : vector<256x4xf32>
    %69 = vector.shape_cast %68 : vector<256x4xf32> to vector<16x16x4xf32>
    %c1_88 = arith.constant 1 : index
    %c1_89 = arith.constant 1 : index
    %c8 = arith.constant 8 : index
    %70 = vector.load %arg9[%c1_88, %c1_89, %c8] : memref<18x18x16xf32, #tpu.memory_space<vmem>>, vector<16x16x4xf32>
    tpu.vector_store %arg9[%c1_88, %c1_89, %c8], %69 {strides = array<i32>} : memref<18x18x16xf32, #tpu.memory_space<vmem>>, vector<16x16x4xf32>,
    %c0_90 = arith.constant 0 : index
    %c0_91 = arith.constant 0 : index
    %c0_92 = arith.constant 0 : index
    %71 = vector.load %arg9[%c0_90, %c0_91, %c0_92] : memref<18x18x16xf32, #tpu.memory_space<vmem>>, vector<18x18x16xf32>
    %72 = vector.extract_strided_slice %71 {offsets = [0, 0, 0], sizes = [16, 16, 16], strides = [1, 1, 1]} : vector<18x18x16xf32> to vector<16x16x16xf32>
    %c0_93 = arith.constant 0 : index
    %c0_94 = arith.constant 0 : index
    %c0_95 = arith.constant 0 : index
    %73 = vector.load %arg10[%c0_93, %c0_94, %c0_95] : memref<16x16x144xf32, #tpu.memory_space<vmem>>, vector<16x16x16xf32>
    tpu.vector_store %arg10[%c0_93, %c0_94, %c0_95], %72 {strides = array<i32>} : memref<16x16x144xf32, #tpu.memory_space<vmem>>, vector<16x16x16xf32>,
    %74 = vector.extract_strided_slice %71 {offsets = [0, 1, 0], sizes = [16, 16, 16], strides = [1, 1, 1]} : vector<18x18x16xf32> to vector<16x16x16xf32>
    %c0_96 = arith.constant 0 : index
    %c0_97 = arith.constant 0 : index
    %c16_98 = arith.constant 16 : index
    %75 = vector.load %arg10[%c0_96, %c0_97, %c16_98] : memref<16x16x144xf32, #tpu.memory_space<vmem>>, vector<16x16x16xf32>
    tpu.vector_store %arg10[%c0_96, %c0_97, %c16_98], %74 {strides = array<i32>} : memref<16x16x144xf32, #tpu.memory_space<vmem>>, vector<16x16x16xf32>,
    %76 = vector.extract_strided_slice %71 {offsets = [0, 2, 0], sizes = [16, 16, 16], strides = [1, 1, 1]} : vector<18x18x16xf32> to vector<16x16x16xf32>
    %c0_99 = arith.constant 0 : index
    %c0_100 = arith.constant 0 : index
    %c32_101 = arith.constant 32 : index
    %77 = vector.load %arg10[%c0_99, %c0_100, %c32_101] : memref<16x16x144xf32, #tpu.memory_space<vmem>>, vector<16x16x16xf32>
    tpu.vector_store %arg10[%c0_99, %c0_100, %c32_101], %76 {strides = array<i32>} : memref<16x16x144xf32, #tpu.memory_space<vmem>>, vector<16x16x16xf32>,
    %78 = vector.extract_strided_slice %71 {offsets = [1, 0, 0], sizes = [16, 16, 16], strides = [1, 1, 1]} : vector<18x18x16xf32> to vector<16x16x16xf32>
    %c0_102 = arith.constant 0 : index
    %c0_103 = arith.constant 0 : index
    %c48_104 = arith.constant 48 : index
    %79 = vector.load %arg10[%c0_102, %c0_103, %c48_104] : memref<16x16x144xf32, #tpu.memory_space<vmem>>, vector<16x16x16xf32>
    tpu.vector_store %arg10[%c0_102, %c0_103, %c48_104], %78 {strides = array<i32>} : memref<16x16x144xf32, #tpu.memory_space<vmem>>, vector<16x16x16xf32>,
    %80 = vector.extract_strided_slice %71 {offsets = [1, 1, 0], sizes = [16, 16, 16], strides = [1, 1, 1]} : vector<18x18x16xf32> to vector<16x16x16xf32>
    %c0_105 = arith.constant 0 : index
    %c0_106 = arith.constant 0 : index
    %c64_107 = arith.constant 64 : index
    %81 = vector.load %arg10[%c0_105, %c0_106, %c64_107] : memref<16x16x144xf32, #tpu.memory_space<vmem>>, vector<16x16x16xf32>
    tpu.vector_store %arg10[%c0_105, %c0_106, %c64_107], %80 {strides = array<i32>} : memref<16x16x144xf32, #tpu.memory_space<vmem>>, vector<16x16x16xf32>,
    %82 = vector.extract_strided_slice %71 {offsets = [1, 2, 0], sizes = [16, 16, 16], strides = [1, 1, 1]} : vector<18x18x16xf32> to vector<16x16x16xf32>
    %c0_108 = arith.constant 0 : index
    %c0_109 = arith.constant 0 : index
    %c80_110 = arith.constant 80 : index
    %83 = vector.load %arg10[%c0_108, %c0_109, %c80_110] : memref<16x16x144xf32, #tpu.memory_space<vmem>>, vector<16x16x16xf32>
    tpu.vector_store %arg10[%c0_108, %c0_109, %c80_110], %82 {strides = array<i32>} : memref<16x16x144xf32, #tpu.memory_space<vmem>>, vector<16x16x16xf32>,
    %84 = vector.extract_strided_slice %71 {offsets = [2, 0, 0], sizes = [16, 16, 16], strides = [1, 1, 1]} : vector<18x18x16xf32> to vector<16x16x16xf32>
    %c0_111 = arith.constant 0 : index
    %c0_112 = arith.constant 0 : index
    %c96_113 = arith.constant 96 : index
    %85 = vector.load %arg10[%c0_111, %c0_112, %c96_113] : memref<16x16x144xf32, #tpu.memory_space<vmem>>, vector<16x16x16xf32>
    tpu.vector_store %arg10[%c0_111, %c0_112, %c96_113], %84 {strides = array<i32>} : memref<16x16x144xf32, #tpu.memory_space<vmem>>, vector<16x16x16xf32>,
    %86 = vector.extract_strided_slice %71 {offsets = [2, 1, 0], sizes = [16, 16, 16], strides = [1, 1, 1]} : vector<18x18x16xf32> to vector<16x16x16xf32>
    %c0_114 = arith.constant 0 : index
    %c0_115 = arith.constant 0 : index
    %c112_116 = arith.constant 112 : index
    %87 = vector.load %arg10[%c0_114, %c0_115, %c112_116] : memref<16x16x144xf32, #tpu.memory_space<vmem>>, vector<16x16x16xf32>
    tpu.vector_store %arg10[%c0_114, %c0_115, %c112_116], %86 {strides = array<i32>} : memref<16x16x144xf32, #tpu.memory_space<vmem>>, vector<16x16x16xf32>,
    %88 = vector.extract_strided_slice %71 {offsets = [2, 2, 0], sizes = [16, 16, 16], strides = [1, 1, 1]} : vector<18x18x16xf32> to vector<16x16x16xf32>
    %c0_117 = arith.constant 0 : index
    %c0_118 = arith.constant 0 : index
    %c128_119 = arith.constant 128 : index
    %89 = vector.load %arg10[%c0_117, %c0_118, %c128_119] : memref<16x16x144xf32, #tpu.memory_space<vmem>>, vector<16x16x16xf32>
    tpu.vector_store %arg10[%c0_117, %c0_118, %c128_119], %88 {strides = array<i32>} : memref<16x16x144xf32, #tpu.memory_space<vmem>>, vector<16x16x16xf32>,
    %c0_120 = arith.constant 0 : index
    %c0_121 = arith.constant 0 : index
    %c0_122 = arith.constant 0 : index
    %90 = vector.load %arg10[%c0_120, %c0_121, %c0_122] : memref<16x16x144xf32, #tpu.memory_space<vmem>>, vector<16x16x144xf32>
    %91 = vector.shape_cast %90 : vector<16x16x144xf32> to vector<256x144xf32>
    %c2 = arith.constant 2 : index
    %c0_123 = arith.constant 0 : index
    %c0_124 = arith.constant 0 : index
    %92 = vector.load %arg2[%c2, %c0_123, %c0_124] : memref<3x144x4xf32, #tpu.memory_space<vmem>>, vector<1x144x4xf32>
    %93 = vector.shape_cast %92 : vector<1x144x4xf32> to vector<144x4xf32>
    %cst_125 = arith.constant dense<0.000000e+00> : vector<256x4xf32>
    %94 = tpu.matmul %91, %93, %cst_125 {dimension_numbers = #tpu.dot_dimension_numbers<[1], [0], [0], [1], [0, 0, 1, 1], [], []>} : vector<256x144xf32>, vector<144x4xf32>, vector<256x4xf32> -> vector<256x4xf32>
    %c2_126 = arith.constant 2 : index
    %c0_127 = arith.constant 0 : index
    %c0_128 = arith.constant 0 : index
    %95 = vector.load %arg3[%c2_126, %c0_127, %c0_128] : memref<3x1x4xf32, #tpu.memory_space<vmem>>, vector<1x1x4xf32>
    %96 = vector.shape_cast %95 : vector<1x1x4xf32> to vector<1x4xf32>
    %97 = vector.broadcast %96 : vector<1x4xf32> to vector<256x4xf32>
    %98 = arith.addf %94, %97 : vector<256x4xf32>
    %cst_129 = arith.constant 0.000000e+00 : f32
    %99 = vector.broadcast %cst_129 : f32 to vector<256x4xf32>
    %100 = arith.maximumf %98, %99 : vector<256x4xf32>
    %101 = vector.shape_cast %100 : vector<256x4xf32> to vector<16x16x4xf32>
    %c1_130 = arith.constant 1 : index
    %c1_131 = arith.constant 1 : index
    %c12 = arith.constant 12 : index
    %102 = vector.load %arg9[%c1_130, %c1_131, %c12] : memref<18x18x16xf32, #tpu.memory_space<vmem>>, vector<16x16x4xf32>
    tpu.vector_store %arg9[%c1_130, %c1_131, %c12], %101 {strides = array<i32>} : memref<18x18x16xf32, #tpu.memory_space<vmem>>, vector<16x16x4xf32>,
    %c1_132 = arith.constant 1 : index
    %c1_133 = arith.constant 1 : index
    %c0_134 = arith.constant 0 : index
    %103 = vector.load %arg9[%c1_132, %c1_133, %c0_134] : memref<18x18x16xf32, #tpu.memory_space<vmem>>, vector<16x16x16xf32>
    %104 = vector.shape_cast %103 : vector<16x16x16xf32> to vector<256x16xf32>
    %c0_135 = arith.constant 0 : index
    %c0_136 = arith.constant 0 : index
    %105 = vector.load %arg4[%c0_135, %c0_136] : memref<16x4xf32, #tpu.memory_space<vmem>>, vector<16x4xf32>
    %cst_137 = arith.constant dense<0.000000e+00> : vector<256x4xf32>
    %106 = tpu.matmul %104, %105, %cst_137 {dimension_numbers = #tpu.dot_dimension_numbers<[1], [0], [0], [1], [0, 0, 1, 1], [], []>} : vector<256x16xf32>, vector<16x4xf32>, vector<256x4xf32> -> vector<256x4xf32>
    %c0_138 = arith.constant 0 : index
    %c0_139 = arith.constant 0 : index
    %107 = vector.load %arg5[%c0_138, %c0_139] : memref<1x4xf32, #tpu.memory_space<vmem>>, vector<1x4xf32>
    %108 = vector.broadcast %107 : vector<1x4xf32> to vector<256x4xf32>
    %109 = arith.addf %106, %108 : vector<256x4xf32>
    %110 = vector.shape_cast %5 : vector<16x16x4xf32> to vector<256x4xf32>
    %111 = arith.addf %109, %110 : vector<256x4xf32>
    %112 = vector.shape_cast %111 : vector<256x4xf32> to vector<16x16x4xf32>
    %c2_140 = arith.constant 2 : index
    %c2_141 = arith.constant 2 : index
    %c0_142 = arith.constant 0 : index
    %113 = vector.load %arg11[%c2_140, %c2_141, %c0_142] : memref<20x20x4xf32, #tpu.memory_space<vmem>>, vector<16x16x4xf32>
    tpu.vector_store %arg11[%c2_140, %c2_141, %c0_142], %112 {strides = array<i32>} : memref<20x20x4xf32, #tpu.memory_space<vmem>>, vector<16x16x4xf32>,
    %c0_143 = arith.constant 0 : index
    %c0_144 = arith.constant 0 : index
    %c0_145 = arith.constant 0 : index
    %114 = tpu.strided_load %arg11[%c0_143, %c0_144, %c0_145] {strides = array<i32: 2, 2, 1>} : memref<20x20x4xf32, #tpu.memory_space<vmem>>, vector<8x8x4xf32>
    %c0_146 = arith.constant 0 : index
    %c0_147 = arith.constant 0 : index
    %c0_148 = arith.constant 0 : index
    %115 = vector.load %arg12[%c0_146, %c0_147, %c0_148] : memref<8x8x100xf32, #tpu.memory_space<vmem>>, vector<8x8x4xf32>
    tpu.vector_store %arg12[%c0_146, %c0_147, %c0_148], %114 {strides = array<i32>} : memref<8x8x100xf32, #tpu.memory_space<vmem>>, vector<8x8x4xf32>,
    %c0_149 = arith.constant 0 : index
    %c1_150 = arith.constant 1 : index
    %c0_151 = arith.constant 0 : index
    %116 = tpu.strided_load %arg11[%c0_149, %c1_150, %c0_151] {strides = array<i32: 2, 2, 1>} : memref<20x20x4xf32, #tpu.memory_space<vmem>>, vector<8x8x4xf32>
    %c0_152 = arith.constant 0 : index
    %c0_153 = arith.constant 0 : index
    %c4_154 = arith.constant 4 : index
    %117 = vector.load %arg12[%c0_152, %c0_153, %c4_154] : memref<8x8x100xf32, #tpu.memory_space<vmem>>, vector<8x8x4xf32>
    tpu.vector_store %arg12[%c0_152, %c0_153, %c4_154], %116 {strides = array<i32>} : memref<8x8x100xf32, #tpu.memory_space<vmem>>, vector<8x8x4xf32>,
    %c0_155 = arith.constant 0 : index
    %c2_156 = arith.constant 2 : index
    %c0_157 = arith.constant 0 : index
    %118 = tpu.strided_load %arg11[%c0_155, %c2_156, %c0_157] {strides = array<i32: 2, 2, 1>} : memref<20x20x4xf32, #tpu.memory_space<vmem>>, vector<8x8x4xf32>
    %c0_158 = arith.constant 0 : index
    %c0_159 = arith.constant 0 : index
    %c8_160 = arith.constant 8 : index
    %119 = vector.load %arg12[%c0_158, %c0_159, %c8_160] : memref<8x8x100xf32, #tpu.memory_space<vmem>>, vector<8x8x4xf32>
    tpu.vector_store %arg12[%c0_158, %c0_159, %c8_160], %118 {strides = array<i32>} : memref<8x8x100xf32, #tpu.memory_space<vmem>>, vector<8x8x4xf32>,
    %c0_161 = arith.constant 0 : index
    %c3 = arith.constant 3 : index
    %c0_162 = arith.constant 0 : index
    %120 = tpu.strided_load %arg11[%c0_161, %c3, %c0_162] {strides = array<i32: 2, 2, 1>} : memref<20x20x4xf32, #tpu.memory_space<vmem>>, vector<8x8x4xf32>
    %c0_163 = arith.constant 0 : index
    %c0_164 = arith.constant 0 : index
    %c12_165 = arith.constant 12 : index
    %121 = vector.load %arg12[%c0_163, %c0_164, %c12_165] : memref<8x8x100xf32, #tpu.memory_space<vmem>>, vector<8x8x4xf32>
    tpu.vector_store %arg12[%c0_163, %c0_164, %c12_165], %120 {strides = array<i32>} : memref<8x8x100xf32, #tpu.memory_space<vmem>>, vector<8x8x4xf32>,
    %c0_166 = arith.constant 0 : index
    %c4_167 = arith.constant 4 : index
    %c0_168 = arith.constant 0 : index
    %122 = tpu.strided_load %arg11[%c0_166, %c4_167, %c0_168] {strides = array<i32: 2, 2, 1>} : memref<20x20x4xf32, #tpu.memory_space<vmem>>, vector<8x8x4xf32>
    %c0_169 = arith.constant 0 : index
    %c0_170 = arith.constant 0 : index
    %c16_171 = arith.constant 16 : index
    %123 = vector.load %arg12[%c0_169, %c0_170, %c16_171] : memref<8x8x100xf32, #tpu.memory_space<vmem>>, vector<8x8x4xf32>
    tpu.vector_store %arg12[%c0_169, %c0_170, %c16_171], %122 {strides = array<i32>} : memref<8x8x100xf32, #tpu.memory_space<vmem>>, vector<8x8x4xf32>,
    %c1_172 = arith.constant 1 : index
    %c0_173 = arith.constant 0 : index
    %c0_174 = arith.constant 0 : index
    %124 = tpu.strided_load %arg11[%c1_172, %c0_173, %c0_174] {strides = array<i32: 2, 2, 1>} : memref<20x20x4xf32, #tpu.memory_space<vmem>>, vector<8x8x4xf32>
    %c0_175 = arith.constant 0 : index
    %c0_176 = arith.constant 0 : index
    %c20 = arith.constant 20 : index
    %125 = vector.load %arg12[%c0_175, %c0_176, %c20] : memref<8x8x100xf32, #tpu.memory_space<vmem>>, vector<8x8x4xf32>
    tpu.vector_store %arg12[%c0_175, %c0_176, %c20], %124 {strides = array<i32>} : memref<8x8x100xf32, #tpu.memory_space<vmem>>, vector<8x8x4xf32>,
    %c1_177 = arith.constant 1 : index
    %c1_178 = arith.constant 1 : index
    %c0_179 = arith.constant 0 : index
    %126 = tpu.strided_load %arg11[%c1_177, %c1_178, %c0_179] {strides = array<i32: 2, 2, 1>} : memref<20x20x4xf32, #tpu.memory_space<vmem>>, vector<8x8x4xf32>
    %c0_180 = arith.constant 0 : index
    %c0_181 = arith.constant 0 : index
    %c24 = arith.constant 24 : index
    %127 = vector.load %arg12[%c0_180, %c0_181, %c24] : memref<8x8x100xf32, #tpu.memory_space<vmem>>, vector<8x8x4xf32>
    tpu.vector_store %arg12[%c0_180, %c0_181, %c24], %126 {strides = array<i32>} : memref<8x8x100xf32, #tpu.memory_space<vmem>>, vector<8x8x4xf32>,
    %c1_182 = arith.constant 1 : index
    %c2_183 = arith.constant 2 : index
    %c0_184 = arith.constant 0 : index
    %128 = tpu.strided_load %arg11[%c1_182, %c2_183, %c0_184] {strides = array<i32: 2, 2, 1>} : memref<20x20x4xf32, #tpu.memory_space<vmem>>, vector<8x8x4xf32>
    %c0_185 = arith.constant 0 : index
    %c0_186 = arith.constant 0 : index
    %c28 = arith.constant 28 : index
    %129 = vector.load %arg12[%c0_185, %c0_186, %c28] : memref<8x8x100xf32, #tpu.memory_space<vmem>>, vector<8x8x4xf32>
    tpu.vector_store %arg12[%c0_185, %c0_186, %c28], %128 {strides = array<i32>} : memref<8x8x100xf32, #tpu.memory_space<vmem>>, vector<8x8x4xf32>,
    %c1_187 = arith.constant 1 : index
    %c3_188 = arith.constant 3 : index
    %c0_189 = arith.constant 0 : index
    %130 = tpu.strided_load %arg11[%c1_187, %c3_188, %c0_189] {strides = array<i32: 2, 2, 1>} : memref<20x20x4xf32, #tpu.memory_space<vmem>>, vector<8x8x4xf32>
    %c0_190 = arith.constant 0 : index
    %c0_191 = arith.constant 0 : index
    %c32_192 = arith.constant 32 : index
    %131 = vector.load %arg12[%c0_190, %c0_191, %c32_192] : memref<8x8x100xf32, #tpu.memory_space<vmem>>, vector<8x8x4xf32>
    tpu.vector_store %arg12[%c0_190, %c0_191, %c32_192], %130 {strides = array<i32>} : memref<8x8x100xf32, #tpu.memory_space<vmem>>, vector<8x8x4xf32>,
    %c1_193 = arith.constant 1 : index
    %c4_194 = arith.constant 4 : index
    %c0_195 = arith.constant 0 : index
    %132 = tpu.strided_load %arg11[%c1_193, %c4_194, %c0_195] {strides = array<i32: 2, 2, 1>} : memref<20x20x4xf32, #tpu.memory_space<vmem>>, vector<8x8x4xf32>
    %c0_196 = arith.constant 0 : index
    %c0_197 = arith.constant 0 : index
    %c36 = arith.constant 36 : index
    %133 = vector.load %arg12[%c0_196, %c0_197, %c36] : memref<8x8x100xf32, #tpu.memory_space<vmem>>, vector<8x8x4xf32>
    tpu.vector_store %arg12[%c0_196, %c0_197, %c36], %132 {strides = array<i32>} : memref<8x8x100xf32, #tpu.memory_space<vmem>>, vector<8x8x4xf32>,
    %c2_198 = arith.constant 2 : index
    %c0_199 = arith.constant 0 : index
    %c0_200 = arith.constant 0 : index
    %134 = tpu.strided_load %arg11[%c2_198, %c0_199, %c0_200] {strides = array<i32: 2, 2, 1>} : memref<20x20x4xf32, #tpu.memory_space<vmem>>, vector<8x8x4xf32>
    %c0_201 = arith.constant 0 : index
    %c0_202 = arith.constant 0 : index
    %c40 = arith.constant 40 : index
    %135 = vector.load %arg12[%c0_201, %c0_202, %c40] : memref<8x8x100xf32, #tpu.memory_space<vmem>>, vector<8x8x4xf32>
    tpu.vector_store %arg12[%c0_201, %c0_202, %c40], %134 {strides = array<i32>} : memref<8x8x100xf32, #tpu.memory_space<vmem>>, vector<8x8x4xf32>,
    %c2_203 = arith.constant 2 : index
    %c1_204 = arith.constant 1 : index
    %c0_205 = arith.constant 0 : index
    %136 = tpu.strided_load %arg11[%c2_203, %c1_204, %c0_205] {strides = array<i32: 2, 2, 1>} : memref<20x20x4xf32, #tpu.memory_space<vmem>>, vector<8x8x4xf32>
    %c0_206 = arith.constant 0 : index
    %c0_207 = arith.constant 0 : index
    %c44 = arith.constant 44 : index
    %137 = vector.load %arg12[%c0_206, %c0_207, %c44] : memref<8x8x100xf32, #tpu.memory_space<vmem>>, vector<8x8x4xf32>
    tpu.vector_store %arg12[%c0_206, %c0_207, %c44], %136 {strides = array<i32>} : memref<8x8x100xf32, #tpu.memory_space<vmem>>, vector<8x8x4xf32>,
    %c2_208 = arith.constant 2 : index
    %c2_209 = arith.constant 2 : index
    %c0_210 = arith.constant 0 : index
    %138 = tpu.strided_load %arg11[%c2_208, %c2_209, %c0_210] {strides = array<i32: 2, 2, 1>} : memref<20x20x4xf32, #tpu.memory_space<vmem>>, vector<8x8x4xf32>
    %c0_211 = arith.constant 0 : index
    %c0_212 = arith.constant 0 : index
    %c48_213 = arith.constant 48 : index
    %139 = vector.load %arg12[%c0_211, %c0_212, %c48_213] : memref<8x8x100xf32, #tpu.memory_space<vmem>>, vector<8x8x4xf32>
    tpu.vector_store %arg12[%c0_211, %c0_212, %c48_213], %138 {strides = array<i32>} : memref<8x8x100xf32, #tpu.memory_space<vmem>>, vector<8x8x4xf32>,
    %c2_214 = arith.constant 2 : index
    %c3_215 = arith.constant 3 : index
    %c0_216 = arith.constant 0 : index
    %140 = tpu.strided_load %arg11[%c2_214, %c3_215, %c0_216] {strides = array<i32: 2, 2, 1>} : memref<20x20x4xf32, #tpu.memory_space<vmem>>, vector<8x8x4xf32>
    %c0_217 = arith.constant 0 : index
    %c0_218 = arith.constant 0 : index
    %c52 = arith.constant 52 : index
    %141 = vector.load %arg12[%c0_217, %c0_218, %c52] : memref<8x8x100xf32, #tpu.memory_space<vmem>>, vector<8x8x4xf32>
    tpu.vector_store %arg12[%c0_217, %c0_218, %c52], %140 {strides = array<i32>} : memref<8x8x100xf32, #tpu.memory_space<vmem>>, vector<8x8x4xf32>,
    %c2_219 = arith.constant 2 : index
    %c4_220 = arith.constant 4 : index
    %c0_221 = arith.constant 0 : index
    %142 = tpu.strided_load %arg11[%c2_219, %c4_220, %c0_221] {strides = array<i32: 2, 2, 1>} : memref<20x20x4xf32, #tpu.memory_space<vmem>>, vector<8x8x4xf32>
    %c0_222 = arith.constant 0 : index
    %c0_223 = arith.constant 0 : index
    %c56 = arith.constant 56 : index
    %143 = vector.load %arg12[%c0_222, %c0_223, %c56] : memref<8x8x100xf32, #tpu.memory_space<vmem>>, vector<8x8x4xf32>
    tpu.vector_store %arg12[%c0_222, %c0_223, %c56], %142 {strides = array<i32>} : memref<8x8x100xf32, #tpu.memory_space<vmem>>, vector<8x8x4xf32>,
    %c3_224 = arith.constant 3 : index
    %c0_225 = arith.constant 0 : index
    %c0_226 = arith.constant 0 : index
    %144 = tpu.strided_load %arg11[%c3_224, %c0_225, %c0_226] {strides = array<i32: 2, 2, 1>} : memref<20x20x4xf32, #tpu.memory_space<vmem>>, vector<8x8x4xf32>
    %c0_227 = arith.constant 0 : index
    %c0_228 = arith.constant 0 : index
    %c60 = arith.constant 60 : index
    %145 = vector.load %arg12[%c0_227, %c0_228, %c60] : memref<8x8x100xf32, #tpu.memory_space<vmem>>, vector<8x8x4xf32>
    tpu.vector_store %arg12[%c0_227, %c0_228, %c60], %144 {strides = array<i32>} : memref<8x8x100xf32, #tpu.memory_space<vmem>>, vector<8x8x4xf32>,
    %c3_229 = arith.constant 3 : index
    %c1_230 = arith.constant 1 : index
    %c0_231 = arith.constant 0 : index
    %146 = tpu.strided_load %arg11[%c3_229, %c1_230, %c0_231] {strides = array<i32: 2, 2, 1>} : memref<20x20x4xf32, #tpu.memory_space<vmem>>, vector<8x8x4xf32>
    %c0_232 = arith.constant 0 : index
    %c0_233 = arith.constant 0 : index
    %c64_234 = arith.constant 64 : index
    %147 = vector.load %arg12[%c0_232, %c0_233, %c64_234] : memref<8x8x100xf32, #tpu.memory_space<vmem>>, vector<8x8x4xf32>
    tpu.vector_store %arg12[%c0_232, %c0_233, %c64_234], %146 {strides = array<i32>} : memref<8x8x100xf32, #tpu.memory_space<vmem>>, vector<8x8x4xf32>,
    %c3_235 = arith.constant 3 : index
    %c2_236 = arith.constant 2 : index
    %c0_237 = arith.constant 0 : index
    %148 = tpu.strided_load %arg11[%c3_235, %c2_236, %c0_237] {strides = array<i32: 2, 2, 1>} : memref<20x20x4xf32, #tpu.memory_space<vmem>>, vector<8x8x4xf32>
    %c0_238 = arith.constant 0 : index
    %c0_239 = arith.constant 0 : index
    %c68 = arith.constant 68 : index
    %149 = vector.load %arg12[%c0_238, %c0_239, %c68] : memref<8x8x100xf32, #tpu.memory_space<vmem>>, vector<8x8x4xf32>
    tpu.vector_store %arg12[%c0_238, %c0_239, %c68], %148 {strides = array<i32>} : memref<8x8x100xf32, #tpu.memory_space<vmem>>, vector<8x8x4xf32>,
    %c3_240 = arith.constant 3 : index
    %c3_241 = arith.constant 3 : index
    %c0_242 = arith.constant 0 : index
    %150 = tpu.strided_load %arg11[%c3_240, %c3_241, %c0_242] {strides = array<i32: 2, 2, 1>} : memref<20x20x4xf32, #tpu.memory_space<vmem>>, vector<8x8x4xf32>
    %c0_243 = arith.constant 0 : index
    %c0_244 = arith.constant 0 : index
    %c72 = arith.constant 72 : index
    %151 = vector.load %arg12[%c0_243, %c0_244, %c72] : memref<8x8x100xf32, #tpu.memory_space<vmem>>, vector<8x8x4xf32>
    tpu.vector_store %arg12[%c0_243, %c0_244, %c72], %150 {strides = array<i32>} : memref<8x8x100xf32, #tpu.memory_space<vmem>>, vector<8x8x4xf32>,
    %c3_245 = arith.constant 3 : index
    %c4_246 = arith.constant 4 : index
    %c0_247 = arith.constant 0 : index
    %152 = tpu.strided_load %arg11[%c3_245, %c4_246, %c0_247] {strides = array<i32: 2, 2, 1>} : memref<20x20x4xf32, #tpu.memory_space<vmem>>, vector<8x8x4xf32>
    %c0_248 = arith.constant 0 : index
    %c0_249 = arith.constant 0 : index
    %c76 = arith.constant 76 : index
    %153 = vector.load %arg12[%c0_248, %c0_249, %c76] : memref<8x8x100xf32, #tpu.memory_space<vmem>>, vector<8x8x4xf32>
    tpu.vector_store %arg12[%c0_248, %c0_249, %c76], %152 {strides = array<i32>} : memref<8x8x100xf32, #tpu.memory_space<vmem>>, vector<8x8x4xf32>,
    %c4_250 = arith.constant 4 : index
    %c0_251 = arith.constant 0 : index
    %c0_252 = arith.constant 0 : index
    %154 = tpu.strided_load %arg11[%c4_250, %c0_251, %c0_252] {strides = array<i32: 2, 2, 1>} : memref<20x20x4xf32, #tpu.memory_space<vmem>>, vector<8x8x4xf32>
    %c0_253 = arith.constant 0 : index
    %c0_254 = arith.constant 0 : index
    %c80_255 = arith.constant 80 : index
    %155 = vector.load %arg12[%c0_253, %c0_254, %c80_255] : memref<8x8x100xf32, #tpu.memory_space<vmem>>, vector<8x8x4xf32>
    tpu.vector_store %arg12[%c0_253, %c0_254, %c80_255], %154 {strides = array<i32>} : memref<8x8x100xf32, #tpu.memory_space<vmem>>, vector<8x8x4xf32>,
    %c4_256 = arith.constant 4 : index
    %c1_257 = arith.constant 1 : index
    %c0_258 = arith.constant 0 : index
    %156 = tpu.strided_load %arg11[%c4_256, %c1_257, %c0_258] {strides = array<i32: 2, 2, 1>} : memref<20x20x4xf32, #tpu.memory_space<vmem>>, vector<8x8x4xf32>
    %c0_259 = arith.constant 0 : index
    %c0_260 = arith.constant 0 : index
    %c84 = arith.constant 84 : index
    %157 = vector.load %arg12[%c0_259, %c0_260, %c84] : memref<8x8x100xf32, #tpu.memory_space<vmem>>, vector<8x8x4xf32>
    tpu.vector_store %arg12[%c0_259, %c0_260, %c84], %156 {strides = array<i32>} : memref<8x8x100xf32, #tpu.memory_space<vmem>>, vector<8x8x4xf32>,
    %c4_261 = arith.constant 4 : index
    %c2_262 = arith.constant 2 : index
    %c0_263 = arith.constant 0 : index
    %158 = tpu.strided_load %arg11[%c4_261, %c2_262, %c0_263] {strides = array<i32: 2, 2, 1>} : memref<20x20x4xf32, #tpu.memory_space<vmem>>, vector<8x8x4xf32>
    %c0_264 = arith.constant 0 : index
    %c0_265 = arith.constant 0 : index
    %c88 = arith.constant 88 : index
    %159 = vector.load %arg12[%c0_264, %c0_265, %c88] : memref<8x8x100xf32, #tpu.memory_space<vmem>>, vector<8x8x4xf32>
    tpu.vector_store %arg12[%c0_264, %c0_265, %c88], %158 {strides = array<i32>} : memref<8x8x100xf32, #tpu.memory_space<vmem>>, vector<8x8x4xf32>,
    %c4_266 = arith.constant 4 : index
    %c3_267 = arith.constant 3 : index
    %c0_268 = arith.constant 0 : index
    %160 = tpu.strided_load %arg11[%c4_266, %c3_267, %c0_268] {strides = array<i32: 2, 2, 1>} : memref<20x20x4xf32, #tpu.memory_space<vmem>>, vector<8x8x4xf32>
    %c0_269 = arith.constant 0 : index
    %c0_270 = arith.constant 0 : index
    %c92 = arith.constant 92 : index
    %161 = vector.load %arg12[%c0_269, %c0_270, %c92] : memref<8x8x100xf32, #tpu.memory_space<vmem>>, vector<8x8x4xf32>
    tpu.vector_store %arg12[%c0_269, %c0_270, %c92], %160 {strides = array<i32>} : memref<8x8x100xf32, #tpu.memory_space<vmem>>, vector<8x8x4xf32>,
    %c4_271 = arith.constant 4 : index
    %c4_272 = arith.constant 4 : index
    %c0_273 = arith.constant 0 : index
    %162 = tpu.strided_load %arg11[%c4_271, %c4_272, %c0_273] {strides = array<i32: 2, 2, 1>} : memref<20x20x4xf32, #tpu.memory_space<vmem>>, vector<8x8x4xf32>
    %c0_274 = arith.constant 0 : index
    %c0_275 = arith.constant 0 : index
    %c96_276 = arith.constant 96 : index
    %163 = vector.load %arg12[%c0_274, %c0_275, %c96_276] : memref<8x8x100xf32, #tpu.memory_space<vmem>>, vector<8x8x4xf32>
    tpu.vector_store %arg12[%c0_274, %c0_275, %c96_276], %162 {strides = array<i32>} : memref<8x8x100xf32, #tpu.memory_space<vmem>>, vector<8x8x4xf32>,
    %c0_277 = arith.constant 0 : index
    %c0_278 = arith.constant 0 : index
    %c0_279 = arith.constant 0 : index
    %164 = vector.load %arg12[%c0_277, %c0_278, %c0_279] : memref<8x8x100xf32, #tpu.memory_space<vmem>>, vector<8x8x100xf32>
    %165 = vector.shape_cast %164 : vector<8x8x100xf32> to vector<64x100xf32>
    %c0_280 = arith.constant 0 : index
    %c0_281 = arith.constant 0 : index
    %166 = vector.load %arg6[%c0_280, %c0_281] : memref<100x8xf32, #tpu.memory_space<vmem>>, vector<100x8xf32>
    %cst_282 = arith.constant dense<0.000000e+00> : vector<64x8xf32>
    %167 = tpu.matmul %165, %166, %cst_282 {dimension_numbers = #tpu.dot_dimension_numbers<[1], [0], [0], [1], [0, 0, 1, 1], [], []>} : vector<64x100xf32>, vector<100x8xf32>, vector<64x8xf32> -> vector<64x8xf32>
    %c0_283 = arith.constant 0 : index
    %c0_284 = arith.constant 0 : index
    %168 = vector.load %arg7[%c0_283, %c0_284] : memref<1x8xf32, #tpu.memory_space<vmem>>, vector<1x8xf32>
    %169 = vector.broadcast %168 : vector<1x8xf32> to vector<64x8xf32>
    %170 = arith.addf %167, %169 : vector<64x8xf32>
    %171 = vector.shape_cast %170 : vector<64x8xf32> to vector<8x8x8xf32>
    %c0_285 = arith.constant 0 : index
    %c0_286 = arith.constant 0 : index
    %c0_287 = arith.constant 0 : index
    %c0_288 = arith.constant 0 : index
    %172 = vector.load %arg8[%c0_285, %c0_286, %c0_287, %c0_288] : memref<1x8x8x8xf32, #tpu.memory_space<vmem>>, vector<1x8x8x8xf32>
    %173 = vector.shape_cast %172 : vector<1x8x8x8xf32> to vector<8x8x8xf32>
    %174 = vector.shape_cast %171 : vector<8x8x8xf32> to vector<1x8x8x8xf32>
    tpu.vector_store %arg8[%c0_285, %c0_286, %c0_287, %c0_288], %174 {strides = array<i32>} : memref<1x8x8x8xf32, #tpu.memory_space<vmem>>, vector<1x8x8x8xf32>,
    return
  }
  func.func @transform_0(%arg0: i32) -> (i32, i32, i32, i32) {
    %c0_i32 = arith.constant 0 : i32
    %c0_i32_0 = arith.constant 0 : i32
    %c0_i32_1 = arith.constant 0 : i32
    %c0_i32_2 = arith.constant 0 : i32
    return %arg0, %c0_i32, %c0_i32_0, %c0_i32_1 : i32, i32, i32, i32
  }
  func.func @transform_1(%arg0: i32) -> (i32, i32, i32) {
    %c0_i32 = arith.constant 0 : i32
    %c0_i32_0 = arith.constant 0 : i32
    %c0_i32_1 = arith.constant 0 : i32
    %c0_i32_2 = arith.constant 0 : i32
    return %c0_i32, %c0_i32_0, %c0_i32_1 : i32, i32, i32
  }
  func.func @transform_2(%arg0: i32) -> (i32, i32, i32) {
    %c0_i32 = arith.constant 0 : i32
    %c0_i32_0 = arith.constant 0 : i32
    %c0_i32_1 = arith.constant 0 : i32
    %c0_i32_2 = arith.constant 0 : i32
    return %c0_i32, %c0_i32_0, %c0_i32_1 : i32, i32, i32
  }
  func.func @transform_3(%arg0: i32) -> (i32, i32) {
    %c0_i32 = arith.constant 0 : i32
    %c0_i32_0 = arith.constant 0 : i32
    %c0_i32_1 = arith.constant 0 : i32
    return %c0_i32, %c0_i32_0 : i32, i32
  }
  func.func @transform_4(%arg0: i32) -> (i32, i32) {
    %c0_i32 = arith.constant 0 : i32
    %c0_i32_0 = arith.constant 0 : i32
    %c0_i32_1 = arith.constant 0 : i32
    return %c0_i32, %c0_i32_0 : i32, i32
  }
  func.func @transform_5(%arg0: i32) -> (i32, i32) {
    %c0_i32 = arith.constant 0 : i32
    %c0_i32_0 = arith.constant 0 : i32
    %c0_i32_1 = arith.constant 0 : i32
    return %c0_i32, %c0_i32_0 : i32, i32
  }
  func.func @transform_6(%arg0: i32) -> (i32, i32) {
    %c0_i32 = arith.constant 0 : i32
    %c0_i32_0 = arith.constant 0 : i32
    %c0_i32_1 = arith.constant 0 : i32
    return %c0_i32, %c0_i32_0 : i32, i32
  }
  func.func @transform_7(%arg0: i32) -> (i32, i32, i32, i32) {
    %c0_i32 = arith.constant 0 : i32
    %c0_i32_0 = arith.constant 0 : i32
    %c0_i32_1 = arith.constant 0 : i32
    %c0_i32_2 = arith.constant 0 : i32
    return %arg0, %c0_i32, %c0_i32_0, %c0_i32_1 : i32, i32, i32, i32
  }
}

</mosaic_0001>

<llo_original>
// kernel: rdb_ds_forward.1
$region0: #{rdb_ds_forward.1}
  #allocation0 [shape = 'u32[]', space=smem, size = 0x4, offset = 0x4, fixed_abs, tag = 'smem constant byte address 0x4 - core index']
  #allocation1 [shape = 'u32[72,128]{1,0:T(1,128)}', space=vmem, size = 0x9000, scoped, tag = 'internal scratch']
  #allocation2 [shape = 'f32[18,18,16]{2,1,0:T(8,128)}', space=vmem, size = 0x36000, scoped, tag = 'scratch operand']
  #allocation3 [shape = 'f32[16,16,144]{2,1,0:T(8,128)}', space=vmem, size = 0x40000, scoped, tag = 'scratch operand']
  #allocation4 [shape = 'f32[20,20,4]{2,1,0:T(8,128)}', space=vmem, size = 0x3c000, scoped, tag = 'scratch operand']
  #allocation5 [shape = 'f32[8,8,100]{2,1,0:T(8,128)}', space=vmem, size = 0x8000, scoped, tag = 'scratch operand']
  %s0 = inlined_call_operand.vmem [shape: f32[2,16,16,4], index: 0, kind: input, shape index: {}]
  %s1 = inlined_call_operand.vmem [shape: f32[3,144,4], index: 1, kind: input, shape index: {}]
  %s2 = inlined_call_operand.vmem [shape: f32[3,1,4], index: 2, kind: input, shape index: {}]
  %s3 = inlined_call_operand.vmem [shape: f32[16,4], index: 3, kind: input, shape index: {}]
  %s4 = inlined_call_operand.vmem [shape: f32[1,4], index: 4, kind: input, shape index: {}]
  %s5 = inlined_call_operand.vmem [shape: f32[100,8], index: 5, kind: input, shape index: {}]
  %s6 = inlined_call_operand.vmem [shape: f32[1,8], index: 6, kind: input, shape index: {}]
  %s7 = inlined_call_operand.hbm [shape: f32[2,8,8,8], index: 7, kind: output, shape index: {}]
  %s8 = sld [smem:[#allocation0]]
  $region61: #{rdb_ds_forward.1} parent=0
    _
  %s10 = ssub.s32 1, %s8
  %s11 = scalar_select 0, %s10, %s8
  $region1: #{rdb_ds_forward.1} parent=0
    #allocation6 [shape = 'u8[65536]{0}', space=vmem, size = 0x10000, scoped, tag = 'output window, operand 0']
    #allocation7 [shape = 's32[2]{0}', space=sflag, size = 0x8, scoped, tag = 'scoped memory for rdb_ds_forward.1']
    %12 = vsyncpa [#allocation7], 0
    %s13 = scalar_lea.sflag [#allocation7], 1
    %14 = vsyncpa %s13, 0
    loop: start=0, step=1, limit=4
    $region2: #{rdb_ds_forward.1} parent=1 // loop_pre_header
      _
    $region3: #{rdb_ds_forward.1} parent=1 // loop_header
      %s16 = sphi 0, %s20
      %p17 = scmp.ge.s32.totalorder %s16, 4
      %s26 = sphi 0, %s28
      %s29 = sphi 0, %s26
      %s30 = sphi 0, %s29
      %s46 = sphi 0, %s30
      %s50 = sphi 0, %s50
      %s52 = sphi 0, %s50
      %s53 = sphi 0, %s52
      %s67 = sphi 0, %s53
      %s71 = sphi 0, %s71
      %s73 = sphi 0, %s71
      %s74 = sphi 0, %s73
      %s88 = sphi 0, %s74
      %s92 = sphi 0, %s92
      %s94 = sphi 0, %s92
      %s95 = sphi 0, %s94
      %s109 = sphi 0, %s95
      %s113 = sphi 0, %s113
      %s115 = sphi 0, %s113
      %s116 = sphi 0, %s115
      %s130 = sphi 0, %s116
      %s134 = sphi 0, %s134
      %s136 = sphi 0, %s134
      %s137 = sphi 0, %s136
      %s151 = sphi 0, %s137
      %s155 = sphi 0, %s155
      %s157 = sphi 0, %s155
      %s158 = sphi 0, %s157
      %s172 = sphi 0, %s158
      %s178 = sphi 0, %s180
      %s181 = sphi 0, %s178
      %s182 = sphi 0, %s181
      %s198 = sphi 0, %s182
    $region4: #{rdb_ds_forward.1} parent=1 // loop_header_branch
      %19 = sbr.rel (%p17) target = $region8
    $region5: #{rdb_ds_forward.1} parent=1 // loop_body
      %s21 = ssub.s32 %s16, 1
      %s22 = ssub.s32 %s16, 2
      %s23 = sadd.s32 %s16, 1
      %s24 = ssub.s32 %s16, %s23
      %p25 = scmp.eq.s32.totalorder %s24, 0
      %s27 = sadd.s32 %s26, 1
      %s28 = scalar_select %p25, %s26, %s27
      %p31 = pneg %p25
      %p32 = scmp.eq.s32.totalorder %s16, 1
      %p33 = por %p31, %p32
      %p34 = scmp.ne.s32.totalorder %s26, %s29
      %p35 = scmp.eq.s32.totalorder %s16, 0
      %p36 = por %p34, %p35
      %p37 = scmp.ne.s32.totalorder %s26, %s29
      %p38 = scmp.eq.s32.totalorder %s21, 1
      %p39 = por %p37, %p38
      %p40 = scmp.ne.s32.totalorder %s29, %s30
      %p41 = scmp.eq.s32.totalorder %s21, 0
      %p42 = por %p40, %p41
      %p43 = scmp.ne.s32.totalorder %s29, %s30
      %p44 = scmp.eq.s32.totalorder %s22, 1
      %p45 = por %p43, %p44
      %p47 = scmp.ne.s32.totalorder %s30, %s46
      %p48 = scmp.eq.s32.totalorder %s22, 0
      %p49 = por %p47, %p48
      %s51 = sadd.s32 %s50, 1
      %p54 = scmp.eq.s32.totalorder %s16, 1
      %p55 = scmp.ne.s32.totalorder %s50, %s52
      %p56 = scmp.eq.s32.totalorder %s16, 0
      %p57 = por %p55, %p56
      %p58 = scmp.ne.s32.totalorder %s50, %s52
      %p59 = scmp.eq.s32.totalorder %s21, 1
      %p60 = por %p58, %p59
      %p61 = scmp.ne.s32.totalorder %s52, %s53
      %p62 = scmp.eq.s32.totalorder %s21, 0
      %p63 = por %p61, %p62
      %p64 = scmp.ne.s32.totalorder %s52, %s53
      %p65 = scmp.eq.s32.totalorder %s22, 1
      %p66 = por %p64, %p65
      %p68 = scmp.ne.s32.totalorder %s53, %s67
      %p69 = scmp.eq.s32.totalorder %s22, 0
      %p70 = por %p68, %p69
      %s72 = sadd.s32 %s71, 1
      %p75 = scmp.eq.s32.totalorder %s16, 1
      %p76 = scmp.ne.s32.totalorder %s71, %s73
      %p77 = scmp.eq.s32.totalorder %s16, 0
      %p78 = por %p76, %p77
      %p79 = scmp.ne.s32.totalorder %s71, %s73
      %p80 = scmp.eq.s32.totalorder %s21, 1
      %p81 = por %p79, %p80
      %p82 = scmp.ne.s32.totalorder %s73, %s74
      %p83 = scmp.eq.s32.totalorder %s21, 0
      %p84 = por %p82, %p83
      %p85 = scmp.ne.s32.totalorder %s73, %s74
      %p86 = scmp.eq.s32.totalorder %s22, 1
      %p87 = por %p85, %p86
      %p89 = scmp.ne.s32.totalorder %s74, %s88
      %p90 = scmp.eq.s32.totalorder %s22, 0
      %p91 = por %p89, %p90
      %s93 = sadd.s32 %s92, 1
      %p96 = scmp.eq.s32.totalorder %s16, 1
      %p97 = scmp.ne.s32.totalorder %s92, %s94
      %p98 = scmp.eq.s32.totalorder %s16, 0
      %p99 = por %p97, %p98
      %p100 = scmp.ne.s32.totalorder %s92, %s94
      %p101 = scmp.eq.s32.totalorder %s21, 1
      %p102 = por %p100, %p101
      %p103 = scmp.ne.s32.totalorder %s94, %s95
      %p104 = scmp.eq.s32.totalorder %s21, 0
      %p105 = por %p103, %p104
      %p106 = scmp.ne.s32.totalorder %s94, %s95
      %p107 = scmp.eq.s32.totalorder %s22, 1
      %p108 = por %p106, %p107
      %p110 = scmp.ne.s32.totalorder %s95, %s109
      %p111 = scmp.eq.s32.totalorder %s22, 0
      %p112 = por %p110, %p111
      %s114 = sadd.s32 %s113, 1
      %p117 = scmp.eq.s32.totalorder %s16, 1
      %p118 = scmp.ne.s32.totalorder %s113, %s115
      %p119 = scmp.eq.s32.totalorder %s16, 0
      %p120 = por %p118, %p119
      %p121 = scmp.ne.s32.totalorder %s113, %s115
      %p122 = scmp.eq.s32.totalorder %s21, 1
      %p123 = por %p121, %p122
      %p124 = scmp.ne.s32.totalorder %s115, %s116
      %p125 = scmp.eq.s32.totalorder %s21, 0
      %p126 = por %p124, %p125
      %p127 = scmp.ne.s32.totalorder %s115, %s116
      %p128 = scmp.eq.s32.totalorder %s22, 1
      %p129 = por %p127, %p128
      %p131 = scmp.ne.s32.totalorder %s116, %s130
      %p132 = scmp.eq.s32.totalorder %s22, 0
      %p133 = por %p131, %p132
      %s135 = sadd.s32 %s134, 1
      %p138 = scmp.eq.s32.totalorder %s16, 1
      %p139 = scmp.ne.s32.totalorder %s134, %s136
      %p140 = scmp.eq.s32.totalorder %s16, 0
      %p141 = por %p139, %p140
      %p142 = scmp.ne.s32.totalorder %s134, %s136
      %p143 = scmp.eq.s32.totalorder %s21, 1
      %p144 = por %p142, %p143
      %p145 = scmp.ne.s32.totalorder %s136, %s137
      %p146 = scmp.eq.s32.totalorder %s21, 0
      %p147 = por %p145, %p146
      %p148 = scmp.ne.s32.totalorder %s136, %s137
      %p149 = scmp.eq.s32.totalorder %s22, 1
      %p150 = por %p148, %p149
      %p152 = scmp.ne.s32.totalorder %s137, %s151
      %p153 = scmp.eq.s32.totalorder %s22, 0
      %p154 = por %p152, %p153
      %s156 = sadd.s32 %s155, 1
      %p159 = scmp.eq.s32.totalorder %s16, 1
      %p160 = scmp.ne.s32.totalorder %s155, %s157
      %p161 = scmp.eq.s32.totalorder %s16, 0
      %p162 = por %p160, %p161
      %p163 = scmp.ne.s32.totalorder %s155, %s157
      %p164 = scmp.eq.s32.totalorder %s21, 1
      %p165 = por %p163, %p164
      %p166 = scmp.ne.s32.totalorder %s157, %s158
      %p167 = scmp.eq.s32.totalorder %s21, 0
      %p168 = por %p166, %p167
      %p169 = scmp.ne.s32.totalorder %s157, %s158
      %p170 = scmp.eq.s32.totalorder %s22, 1
      %p171 = por %p169, %p170
      %p173 = scmp.ne.s32.totalorder %s158, %s172
      %p174 = scmp.eq.s32.totalorder %s22, 0
      %p175 = por %p173, %p174
      %s176 = ssub.s32 %s16, %s23
      %p177 = scmp.eq.s32.totalorder %s176, 0
      %s179 = sadd.s32 %s178, 1
      %s180 = scalar_select %p177, %s178, %s179
      %p183 = pneg %p177
      %p184 = scmp.eq.s32.totalorder %s16, 1
      %p185 = por %p183, %p184
      %p186 = scmp.ne.s32.totalorder %s178, %s181
      %p187 = scmp.eq.s32.totalorder %s16, 0
      %p188 = por %p186, %p187
      %p189 = scmp.ne.s32.totalorder %s178, %s181
      %p190 = scmp.eq.s32.totalorder %s21, 1
      %p191 = por %p189, %p190
      %p192 = scmp.ne.s32.totalorder %s181, %s182
      %p193 = scmp.eq.s32.totalorder %s21, 0
      %p194 = por %p192, %p193
      %p195 = scmp.ne.s32.totalorder %s181, %s182
      %p196 = scmp.eq.s32.totalorder %s22, 1
      %p197 = por %p195, %p196
      %p199 = scmp.ne.s32.totalorder %s182, %s198
      %p200 = scmp.eq.s32.totalorder %s22, 0
      %p201 = por %p199, %p200
      %p202 = scmp.le.s32.totalorder 1, %s16
      %p203 = scmp.lt.s32.totalorder %s16, 3
      %p204 = pnand %p202, %p203
      %p205 = pneg %p204
      // Predicated region
      $region9: #{rdb_ds_forward.1} parent=5 // pred_check
        _
      $region10: #{rdb_ds_forward.1} parent=5 // pred_check_branch
        %207 = sbr.rel (%p204) target = $region12
      $region11: #{rdb_ds_forward.1} parent=5 // pred_region
        %s208 = ssub.s32 %s16, 1
        // Predicated region
        $region13: #{rdb_ds_forward.1} parent=11 // pred_check
          %p209 = pneg %p63
        $region14: #{rdb_ds_forward.1} parent=11 // pred_check_branch
          %211 = sbr.rel (%p209) target = $region16
        $region15: #{rdb_ds_forward.1} parent=11 // pred_region
          _
        $region16: #{rdb_ds_forward.1} parent=11 // pred_fallthru
          _
        // Predicated region
        $region17: #{rdb_ds_forward.1} parent=11 // pred_check
          %p212 = pneg %p84
        $region18: #{rdb_ds_forward.1} parent=11 // pred_check_branch
          %214 = sbr.rel (%p212) target = $region20
        $region19: #{rdb_ds_forward.1} parent=11 // pred_region
          _
        $region20: #{rdb_ds_forward.1} parent=11 // pred_fallthru
          _
        // Predicated region
        $region21: #{rdb_ds_forward.1} parent=11 // pred_check
          %p215 = pneg %p105
        $region22: #{rdb_ds_forward.1} parent=11 // pred_check_branch
          %217 = sbr.rel (%p215) target = $region24
        $region23: #{rdb_ds_forward.1} parent=11 // pred_region
          _
        $region24: #{rdb_ds_forward.1} parent=11 // pred_fallthru
          _
        // Predicated region
        $region25: #{rdb_ds_forward.1} parent=11 // pred_check
          %p218 = pneg %p126
        $region26: #{rdb_ds_forward.1} parent=11 // pred_check_branch
          %220 = sbr.rel (%p218) target = $region28
        $region27: #{rdb_ds_forward.1} parent=11 // pred_region
          _
        $region28: #{rdb_ds_forward.1} parent=11 // pred_fallthru
          _
        // Predicated region
        $region29: #{rdb_ds_forward.1} parent=11 // pred_check
          %p221 = pneg %p147
        $region30: #{rdb_ds_forward.1} parent=11 // pred_check_branch
          %223 = sbr.rel (%p221) target = $region32
        $region31: #{rdb_ds_forward.1} parent=11 // pred_region
          _
        $region32: #{rdb_ds_forward.1} parent=11 // pred_fallthru
          _
        // Predicated region
        $region33: #{rdb_ds_forward.1} parent=11 // pred_check
          %p224 = pneg %p168
        $region34: #{rdb_ds_forward.1} parent=11 // pred_check_branch
          %226 = sbr.rel (%p224) target = $region36
        $region35: #{rdb_ds_forward.1} parent=11 // pred_region
          _
        $region36: #{rdb_ds_forward.1} parent=11 // pred_fallthru
          _
      $region12: #{rdb_ds_forward.1} parent=5 // pred_fallthru
        _
      %p227 = scmp.lt.s32.totalorder %s16, 2
      // Predicated region
      $region37: #{rdb_ds_forward.1} parent=5 // pred_check
        %p228 = pneg %p227
      $region38: #{rdb_ds_forward.1} parent=5 // pred_check_branch
        %230 = sbr.rel (%p228) target = $region40
      $region39: #{rdb_ds_forward.1} parent=5 // pred_region
        // Predicated region
        $region41: #{rdb_ds_forward.1} parent=39 // pred_check
          %p231 = pneg %p36
        $region42: #{rdb_ds_forward.1} parent=39 // pred_check_branch
          %233 = sbr.rel (%p231) target = $region44
        $region43: #{rdb_ds_forward.1} parent=39 // pred_region
          %p234 = scmp.lt.s32.totalorder %s16, 1
          %s235 = scalar_select %p234, %s16, 1
          %s236 = smul.addr %s235, 32
          %s237 = smul.addr %s236, 8
          %s238 = scalar_lea.vmem %s0, %s237
        $region44: #{rdb_ds_forward.1} parent=39 // pred_fallthru
          _
      $region40: #{rdb_ds_forward.1} parent=5 // pred_fallthru
        _
      %p239 = scmp.le.s32.totalorder 1, %s16
      %p240 = scmp.lt.s32.totalorder %s16, 3
      %p241 = pnand %p239, %p240
      %p242 = pneg %p241
      // Predicated region
      $region45: #{rdb_ds_forward.1} parent=5 // pred_check
        _
      $region46: #{rdb_ds_forward.1} parent=5 // pred_check_branch
        %244 = sbr.rel (%p241) target = $region48
      $region47: #{rdb_ds_forward.1} parent=5 // pred_region
        %s245 = ssub.s32 %s16, 1
        %p246 = scmp.lt.s32.totalorder %s21, 1
        %s247 = scalar_select %p246, %s21, 1
        %s248 = smul.addr %s247, 32
        %s249 = smul.addr %s248, 8
        %s250 = scalar_lea.vmem %s0, %s249
        %p251 = pneg %p42
        %p252 = pneg %p39
        %p253 = pneg %p63
        %p254 = pneg %p60
        %p255 = pneg %p84
        %p256 = pneg %p81
        %p257 = pneg %p105
        %p258 = pneg %p102
        %p259 = pneg %p126
        %p260 = pneg %p123
        %p261 = pneg %p147
        %p262 = pneg %p144
        %p263 = pneg %p168
        %p264 = pneg %p165
        %p265 = pneg %p194
        %p266 = pneg %p191
        %s267 = sand.u32 %s181, 1
        %s268 = scalar_lea.sflag [#allocation7], %s267
        %s269 = sand.u32 %s181, 1
        %s270 = smul.addr %s269, 64
        %s271 = scalar_lea.vmem [#allocation6], %s270
        %p272 = scmp.lt.s32.totalorder %s21, 1
        %s273 = scalar_select %p272, %s21, 1
        %s274 = smul.addr %s273, 32
        %s275 = smul.addr %s274, 8
        %s276 = scalar_lea.vmem %s0, %s275
        %vm277 = vcmask 130048
        %278 = vst.msk [vmem:[#allocation2] sm:$0xff] %vm277, 0.0
        %279 = vst.msk [vmem:[#allocation2 + $0x8] sm:$0xff] %vm277, 0.0
        %vm280 = vcmask 123904
        %281 = vst.msk [vmem:[#allocation2 + $0x10] sm:$0x3] %vm280, 0.0
        %282 = vst.msk [vmem:[#allocation2 + $0x18] sm:$0xff] %vm277, 0.0
        %283 = vst.msk [vmem:[#allocation2 + $0x20] sm:$0xff] %vm277, 0.0
        %284 = vst.msk [vmem:[#allocation2 + $0x28] sm:$0x3] %vm280, 0.0
        %285 = vst.msk [vmem:[#allocation2 + $0x30] sm:$0xff] %vm277, 0.0
        %286 = vst.msk [vmem:[#allocation2 + $0x38] sm:$0xff] %vm277, 0.0
        %287 = vst.msk [vmem:[#allocation2 + $0x40] sm:$0x3] %vm280, 0.0
        %288 = vst.msk [vmem:[#allocation2 + $0x48] sm:$0xff] %vm277, 0.0
        %289 = vst.msk [vmem:[#allocation2 + $0x50] sm:$0xff] %vm277, 0.0
        %290 = vst.msk [vmem:[#allocation2 + $0x58] sm:$0x3] %vm280, 0.0
        %291 = vst.msk [vmem:[#allocation2 + $0x60] sm:$0xff] %vm277, 0.0
        %292 = vst.msk [vmem:[#allocation2 + $0x68] sm:$0xff] %vm277, 0.0
        %293 = vst.msk [vmem:[#allocation2 + $0x70] sm:$0x3] %vm280, 0.0
        %294 = vst.msk [vmem:[#allocation2 + $0x78] sm:$0xff] %vm277, 0.0
        %295 = vst.msk [vmem:[#allocation2 + $0x80] sm:$0xff] %vm277, 0.0
        %296 = vst.msk [vmem:[#allocation2 + $0x88] sm:$0x3] %vm280, 0.0
        %297 = vst.msk [vmem:[#allocation2 + $0x90] sm:$0xff] %vm277, 0.0
        %298 = vst.msk [vmem:[#allocation2 + $0x98] sm:$0xff] %vm277, 0.0
        %299 = vst.msk [vmem:[#allocation2 + $0xa0] sm:$0x3] %vm280, 0.0
        %300 = vst.msk [vmem:[#allocation2 + $0xa8] sm:$0xff] %vm277, 0.0
        %301 = vst.msk [vmem:[#allocation2 + $0xb0] sm:$0xff] %vm277, 0.0
        %302 = vst.msk [vmem:[#allocation2 + $0xb8] sm:$0x3] %vm280, 0.0
        %303 = vst.msk [vmem:[#allocation2 + $0xc0] sm:$0xff] %vm277, 0.0
        %304 = vst.msk [vmem:[#allocation2 + $0xc8] sm:$0xff] %vm277, 0.0
        %305 = vst.msk [vmem:[#allocation2 + $0xd0] sm:$0x3] %vm280, 0.0
        %306 = vst.msk [vmem:[#allocation2 + $0xd8] sm:$0xff] %vm277, 0.0
        %307 = vst.msk [vmem:[#allocation2 + $0xe0] sm:$0xff] %vm277, 0.0
        %308 = vst.msk [vmem:[#allocation2 + $0xe8] sm:$0x3] %vm280, 0.0
        %309 = vst.msk [vmem:[#allocation2 + $0xf0] sm:$0xff] %vm277, 0.0
        %310 = vst.msk [vmem:[#allocation2 + $0xf8] sm:$0xff] %vm277, 0.0
        %311 = vst.msk [vmem:[#allocation2 + $0x100] sm:$0x3] %vm280, 0.0
        %312 = vst.msk [vmem:[#allocation2 + $0x108] sm:$0xff] %vm277, 0.0
        %313 = vst.msk [vmem:[#allocation2 + $0x110] sm:$0xff] %vm277, 0.0
        %314 = vst.msk [vmem:[#allocation2 + $0x118] sm:$0x3] %vm280, 0.0
        %315 = vst.msk [vmem:[#allocation2 + $0x120] sm:$0xff] %vm277, 0.0
        %316 = vst.msk [vmem:[#allocation2 + $0x128] sm:$0xff] %vm277, 0.0
        %317 = vst.msk [vmem:[#allocation2 + $0x130] sm:$0x3] %vm280, 0.0
        %318 = vst.msk [vmem:[#allocation2 + $0x138] sm:$0xff] %vm277, 0.0
        %319 = vst.msk [vmem:[#allocation2 + $0x140] sm:$0xff] %vm277, 0.0
        %320 = vst.msk [vmem:[#allocation2 + $0x148] sm:$0x3] %vm280, 0.0
        %321 = vst.msk [vmem:[#allocation2 + $0x150] sm:$0xff] %vm277, 0.0
        %322 = vst.msk [vmem:[#allocation2 + $0x158] sm:$0xff] %vm277, 0.0
        %323 = vst.msk [vmem:[#allocation2 + $0x160] sm:$0x3] %vm280, 0.0
        %324 = vst.msk [vmem:[#allocation2 + $0x168] sm:$0xff] %vm277, 0.0
        %325 = vst.msk [vmem:[#allocation2 + $0x170] sm:$0xff] %vm277, 0.0
        %326 = vst.msk [vmem:[#allocation2 + $0x178] sm:$0x3] %vm280, 0.0
        %327 = vst.msk [vmem:[#allocation2 + $0x180] sm:$0xff] %vm277, 0.0
        %328 = vst.msk [vmem:[#allocation2 + $0x188] sm:$0xff] %vm277, 0.0
        %329 = vst.msk [vmem:[#allocation2 + $0x190] sm:$0x3] %vm280, 0.0
        %330 = vst.msk [vmem:[#allocation2 + $0x198] sm:$0xff] %vm277, 0.0
        %331 = vst.msk [vmem:[#allocation2 + $0x1a0] sm:$0xff] %vm277, 0.0
        %332 = vst.msk [vmem:[#allocation2 + $0x1a8] sm:$0x3] %vm280, 0.0
        %vm333 = vcmask 31744
        %334 = vst.msk [vmem:[#allocation4] sm:$0xff] %vm333, 0.0
        %335 = vst.msk [vmem:[#allocation4 + $0x8] sm:$0xff] %vm333, 0.0
        %vm336 = vcmask 27648
        %337 = vst.msk [vmem:[#allocation4 + $0x10] sm:$0xf] %vm336, 0.0
        %338 = vst.msk [vmem:[#allocation4 + $0x18] sm:$0xff] %vm333, 0.0
        %339 = vst.msk [vmem:[#allocation4 + $0x20] sm:$0xff] %vm333, 0.0
        %340 = vst.msk [vmem:[#allocation4 + $0x28] sm:$0xf] %vm336, 0.0
        %341 = vst.msk [vmem:[#allocation4 + $0x30] sm:$0xff] %vm333, 0.0
        %342 = vst.msk [vmem:[#allocation4 + $0x38] sm:$0xff] %vm333, 0.0
        %343 = vst.msk [vmem:[#allocation4 + $0x40] sm:$0xf] %vm336, 0.0
        %344 = vst.msk [vmem:[#allocation4 + $0x48] sm:$0xff] %vm333, 0.0
        %345 = vst.msk [vmem:[#allocation4 + $0x50] sm:$0xff] %vm333, 0.0
        %346 = vst.msk [vmem:[#allocation4 + $0x58] sm:$0xf] %vm336, 0.0
        %347 = vst.msk [vmem:[#allocation4 + $0x60] sm:$0xff] %vm333, 0.0
        %348 = vst.msk [vmem:[#allocation4 + $0x68] sm:$0xff] %vm333, 0.0
        %349 = vst.msk [vmem:[#allocation4 + $0x70] sm:$0xf] %vm336, 0.0
        %350 = vst.msk [vmem:[#allocation4 + $0x78] sm:$0xff] %vm333, 0.0
        %351 = vst.msk [vmem:[#allocation4 + $0x80] sm:$0xff] %vm333, 0.0
        %352 = vst.msk [vmem:[#allocation4 + $0x88] sm:$0xf] %vm336, 0.0
        %353 = vst.msk [vmem:[#allocation4 + $0x90] sm:$0xff] %vm333, 0.0
        %354 = vst.msk [vmem:[#allocation4 + $0x98] sm:$0xff] %vm333, 0.0
        %355 = vst.msk [vmem:[#allocation4 + $0xa0] sm:$0xf] %vm336, 0.0
        %356 = vst.msk [vmem:[#allocation4 + $0xa8] sm:$0xff] %vm333, 0.0
        %357 = vst.msk [vmem:[#allocation4 + $0xb0] sm:$0xff] %vm333, 0.0
        %358 = vst.msk [vmem:[#allocation4 + $0xb8] sm:$0xf] %vm336, 0.0
        %359 = vst.msk [vmem:[#allocation4 + $0xc0] sm:$0xff] %vm333, 0.0
        %360 = vst.msk [vmem:[#allocation4 + $0xc8] sm:$0xff] %vm333, 0.0
        %361 = vst.msk [vmem:[#allocation4 + $0xd0] sm:$0xf] %vm336, 0.0
        %362 = vst.msk [vmem:[#allocation4 + $0xd8] sm:$0xff] %vm333, 0.0
        %363 = vst.msk [vmem:[#allocation4 + $0xe0] sm:$0xff] %vm333, 0.0
        %364 = vst.msk [vmem:[#allocation4 + $0xe8] sm:$0xf] %vm336, 0.0
        %365 = vst.msk [vmem:[#allocation4 + $0xf0] sm:$0xff] %vm333, 0.0
        %366 = vst.msk [vmem:[#allocation4 + $0xf8] sm:$0xff] %vm333, 0.0
        %367 = vst.msk [vmem:[#allocation4 + $0x100] sm:$0xf] %vm336, 0.0
        %368 = vst.msk [vmem:[#allocation4 + $0x108] sm:$0xff] %vm333, 0.0
        %369 = vst.msk [vmem:[#allocation4 + $0x110] sm:$0xff] %vm333, 0.0
        %370 = vst.msk [vmem:[#allocation4 + $0x118] sm:$0xf] %vm336, 0.0
        %371 = vst.msk [vmem:[#allocation4 + $0x120] sm:$0xff] %vm333, 0.0
        %372 = vst.msk [vmem:[#allocation4 + $0x128] sm:$0xff] %vm333, 0.0
        %373 = vst.msk [vmem:[#allocation4 + $0x130] sm:$0xf] %vm336, 0.0
        %374 = vst.msk [vmem:[#allocation4 + $0x138] sm:$0xff] %vm333, 0.0
        %375 = vst.msk [vmem:[#allocation4 + $0x140] sm:$0xff] %vm333, 0.0
        %376 = vst.msk [vmem:[#allocation4 + $0x148] sm:$0xf] %vm336, 0.0
        %377 = vst.msk [vmem:[#allocation4 + $0x150] sm:$0xff] %vm333, 0.0
        %378 = vst.msk [vmem:[#allocation4 + $0x158] sm:$0xff] %vm333, 0.0
        %379 = vst.msk [vmem:[#allocation4 + $0x160] sm:$0xf] %vm336, 0.0
        %380 = vst.msk [vmem:[#allocation4 + $0x168] sm:$0xff] %vm333, 0.0
        %381 = vst.msk [vmem:[#allocation4 + $0x170] sm:$0xff] %vm333, 0.0
        %382 = vst.msk [vmem:[#allocation4 + $0x178] sm:$0xf] %vm336, 0.0
        %383 = vst.msk [vmem:[#allocation4 + $0x180] sm:$0xff] %vm333, 0.0
        %384 = vst.msk [vmem:[#allocation4 + $0x188] sm:$0xff] %vm333, 0.0
        %385 = vst.msk [vmem:[#allocation4 + $0x190] sm:$0xf] %vm336, 0.0
        %386 = vst.msk [vmem:[#allocation4 + $0x198] sm:$0xff] %vm333, 0.0
        %387 = vst.msk [vmem:[#allocation4 + $0x1a0] sm:$0xff] %vm333, 0.0
        %388 = vst.msk [vmem:[#allocation4 + $0x1a8] sm:$0xf] %vm336, 0.0
        %389 = vst.msk [vmem:[#allocation4 + $0x1b0] sm:$0xff] %vm333, 0.0
        %390 = vst.msk [vmem:[#allocation4 + $0x1b8] sm:$0xff] %vm333, 0.0
        %391 = vst.msk [vmem:[#allocation4 + $0x1c0] sm:$0xf] %vm336, 0.0
        %392 = vst.msk [vmem:[#allocation4 + $0x1c8] sm:$0xff] %vm333, 0.0
        %393 = vst.msk [vmem:[#allocation4 + $0x1d0] sm:$0xff] %vm333, 0.0
        %394 = vst.msk [vmem:[#allocation4 + $0x1d8] sm:$0xf] %vm336, 0.0
        %v395 = vld [vmem:[%s276] sm:$0xff]
        %v396 = vld [vmem:[%s276 + $0x8] sm:$0xff]
        %v397 = vld [vmem:[%s276 + $0x10] sm:$0xff]
        %v398 = vld [vmem:[%s276 + $0x18] sm:$0xff]
        %v399 = vld [vmem:[%s276 + $0x20] sm:$0xff]
        %v400 = vld [vmem:[%s276 + $0x28] sm:$0xff]
        %v401 = vld [vmem:[%s276 + $0x30] sm:$0xff]
        %v402 = vld [vmem:[%s276 + $0x38] sm:$0xff]
        %v403 = vld [vmem:[%s276 + $0x40] sm:$0xff]
        %v404 = vld [vmem:[%s276 + $0x48] sm:$0xff]
        %v405 = vld [vmem:[%s276 + $0x50] sm:$0xff]
        %v406 = vld [vmem:[%s276 + $0x58] sm:$0xff]
        %v407 = vld [vmem:[%s276 + $0x60] sm:$0xff]
        %v408 = vld [vmem:[%s276 + $0x68] sm:$0xff]
        %v409 = vld [vmem:[%s276 + $0x70] sm:$0xff]
        %v410 = vld [vmem:[%s276 + $0x78] sm:$0xff]
        %v411 = vld [vmem:[%s276 + $0x80] sm:$0xff]
        %v412 = vld [vmem:[%s276 + $0x88] sm:$0xff]
        %v413 = vld [vmem:[%s276 + $0x90] sm:$0xff]
        %v414 = vld [vmem:[%s276 + $0x98] sm:$0xff]
        %v415 = vld [vmem:[%s276 + $0xa0] sm:$0xff]
        %v416 = vld [vmem:[%s276 + $0xa8] sm:$0xff]
        %v417 = vld [vmem:[%s276 + $0xb0] sm:$0xff]
        %v418 = vld [vmem:[%s276 + $0xb8] sm:$0xff]
        %v419 = vld [vmem:[%s276 + $0xc0] sm:$0xff]
        %v420 = vld [vmem:[%s276 + $0xc8] sm:$0xff]
        %v421 = vld [vmem:[%s276 + $0xd0] sm:$0xff]
        %v422 = vld [vmem:[%s276 + $0xd8] sm:$0xff]
        %v423 = vld [vmem:[%s276 + $0xe0] sm:$0xff]
        %v424 = vld [vmem:[%s276 + $0xe8] sm:$0xff]
        %v425 = vld [vmem:[%s276 + $0xf0] sm:$0xff]
        %v426 = vld [vmem:[%s276 + $0xf8] sm:$0xff]
        %s427 = scalar_lea.vmem [#allocation2], 24
        %428 = vst.msk [vmem:[%s427 + $0x1] sm:$0xff] %vm333, %v395
        %429 = vst.msk [vmem:[%s427 + $0x9] sm:$0xff] %vm333, %v396
        %430 = vst.msk [vmem:[%s427 + $0x19] sm:$0xff] %vm333, %v397
        %431 = vst.msk [vmem:[%s427 + $0x21] sm:$0xff] %vm333, %v398
        %432 = vst.msk [vmem:[%s427 + $0x31] sm:$0xff] %vm333, %v399
        %433 = vst.msk [vmem:[%s427 + $0x39] sm:$0xff] %vm333, %v400
        %434 = vst.msk [vmem:[%s427 + $0x49] sm:$0xff] %vm333, %v401
        %435 = vst.msk [vmem:[%s427 + $0x51] sm:$0xff] %vm333, %v402
        %436 = vst.msk [vmem:[%s427 + $0x61] sm:$0xff] %vm333, %v403
        %437 = vst.msk [vmem:[%s427 + $0x69] sm:$0xff] %vm333, %v404
        %438 = vst.msk [vmem:[%s427 + $0x79] sm:$0xff] %vm333, %v405
        %439 = vst.msk [vmem:[%s427 + $0x81] sm:$0xff] %vm333, %v406
        %440 = vst.msk [vmem:[%s427 + $0x91] sm:$0xff] %vm333, %v407
        %441 = vst.msk [vmem:[%s427 + $0x99] sm:$0xff] %vm333, %v408
        %442 = vst.msk [vmem:[%s427 + $0xa9] sm:$0xff] %vm333, %v409
        %443 = vst.msk [vmem:[%s427 + $0xb1] sm:$0xff] %vm333, %v410
        %444 = vst.msk [vmem:[%s427 + $0xc1] sm:$0xff] %vm333, %v411
        %445 = vst.msk [vmem:[%s427 + $0xc9] sm:$0xff] %vm333, %v412
        %446 = vst.msk [vmem:[%s427 + $0xd9] sm:$0xff] %vm333, %v413
        %447 = vst.msk [vmem:[%s427 + $0xe1] sm:$0xff] %vm333, %v414
        %448 = vst.msk [vmem:[%s427 + $0xf1] sm:$0xff] %vm333, %v415
        %449 = vst.msk [vmem:[%s427 + $0xf9] sm:$0xff] %vm333, %v416
        %450 = vst.msk [vmem:[%s427 + $0x109] sm:$0xff] %vm333, %v417
        %451 = vst.msk [vmem:[%s427 + $0x111] sm:$0xff] %vm333, %v418
        %452 = vst.msk [vmem:[%s427 + $0x121] sm:$0xff] %vm333, %v419
        %453 = vst.msk [vmem:[%s427 + $0x129] sm:$0xff] %vm333, %v420
        %454 = vst.msk [vmem:[%s427 + $0x139] sm:$0xff] %vm333, %v421
        %455 = vst.msk [vmem:[%s427 + $0x141] sm:$0xff] %vm333, %v422
        %456 = vst.msk [vmem:[%s427 + $0x151] sm:$0xff] %vm333, %v423
        %457 = vst.msk [vmem:[%s427 + $0x159] sm:$0xff] %vm333, %v424
        %458 = vst.msk [vmem:[%s427 + $0x169] sm:$0xff] %vm333, %v425
        %459 = vst.msk [vmem:[%s427 + $0x171] sm:$0xff] %vm333, %v426
        %v460 = vld [vmem:[#allocation2] sm:$0xff]
        %v461 = vld [vmem:[#allocation2 + $0x8] sm:$0xff]
        %v462 = vld [vmem:[#allocation2 + $0x10] sm:$0x3]
        %v463 = vld [vmem:[#allocation2 + $0x18] sm:$0xff]
        %v464 = vld [vmem:[#allocation2 + $0x20] sm:$0xff]
        %v465 = vld [vmem:[#allocation2 + $0x28] sm:$0x3]
        %v466 = vld [vmem:[#allocation2 + $0x30] sm:$0xff]
        %v467 = vld [vmem:[#allocation2 + $0x38] sm:$0xff]
        %v468 = vld [vmem:[#allocation2 + $0x40] sm:$0x3]
        %v469 = vld [vmem:[#allocation2 + $0x48] sm:$0xff]
        %v470 = vld [vmem:[#allocation2 + $0x50] sm:$0xff]
        %v471 = vld [vmem:[#allocation2 + $0x58] sm:$0x3]
        %v472 = vld [vmem:[#allocation2 + $0x60] sm:$0xff]
        %v473 = vld [vmem:[#allocation2 + $0x68] sm:$0xff]
        %v474 = vld [vmem:[#allocation2 + $0x70] sm:$0x3]
        %v475 = vld [vmem:[#allocation2 + $0x78] sm:$0xff]
        %v476 = vld [vmem:[#allocation2 + $0x80] sm:$0xff]
        %v477 = vld [vmem:[#allocation2 + $0x88] sm:$0x3]
        %v478 = vld [vmem:[#allocation2 + $0x90] sm:$0xff]
        %v479 = vld [vmem:[#allocation2 + $0x98] sm:$0xff]
        %v480 = vld [vmem:[#allocation2 + $0xa0] sm:$0x3]
        %v481 = vld [vmem:[#allocation2 + $0xa8] sm:$0xff]
        %v482 = vld [vmem:[#allocation2 + $0xb0] sm:$0xff]
        %v483 = vld [vmem:[#allocation2 + $0xb8] sm:$0x3]
        %v484 = vld [vmem:[#allocation2 + $0xc0] sm:$0xff]
        %v485 = vld [vmem:[#allocation2 + $0xc8] sm:$0xff]
        %v486 = vld [vmem:[#allocation2 + $0xd0] sm:$0x3]
        %v487 = vld [vmem:[#allocation2 + $0xd8] sm:$0xff]
        %v488 = vld [vmem:[#allocation2 + $0xe0] sm:$0xff]
        %v489 = vld [vmem:[#allocation2 + $0xe8] sm:$0x3]
        %v490 = vld [vmem:[#allocation2 + $0xf0] sm:$0xff]
        %v491 = vld [vmem:[#allocation2 + $0xf8] sm:$0xff]
        %v492 = vld [vmem:[#allocation2 + $0x100] sm:$0x3]
        %v493 = vld [vmem:[#allocation2 + $0x108] sm:$0xff]
        %v494 = vld [vmem:[#allocation2 + $0x110] sm:$0xff]
        %v495 = vld [vmem:[#allocation2 + $0x118] sm:$0x3]
        %v496 = vld [vmem:[#allocation2 + $0x120] sm:$0xff]
        %v497 = vld [vmem:[#allocation2 + $0x128] sm:$0xff]
        %v498 = vld [vmem:[#allocation2 + $0x130] sm:$0x3]
        %v499 = vld [vmem:[#allocation2 + $0x138] sm:$0xff]
        %v500 = vld [vmem:[#allocation2 + $0x140] sm:$0xff]
        %v501 = vld [vmem:[#allocation2 + $0x148] sm:$0x3]
        %v502 = vld [vmem:[#allocation2 + $0x150] sm:$0xff]
        %v503 = vld [vmem:[#allocation2 + $0x158] sm:$0xff]
        %v504 = vld [vmem:[#allocation2 + $0x160] sm:$0x3]
        %v505 = vld [vmem:[#allocation2 + $0x168] sm:$0xff]
        %v506 = vld [vmem:[#allocation2 + $0x170] sm:$0xff]
        %v507 = vld [vmem:[#allocation2 + $0x178] sm:$0x3]
        %v508 = vld [vmem:[#allocation2 + $0x180] sm:$0xff]
        %v509 = vld [vmem:[#allocation2 + $0x188] sm:$0xff]
        %v510 = vld [vmem:[#allocation2 + $0x190] sm:$0x3]
        %v511 = vld [vmem:[#allocation2 + $0x198] sm:$0xff]
        %v512 = vld [vmem:[#allocation2 + $0x1a0] sm:$0xff]
        %v513 = vld [vmem:[#allocation2 + $0x1a8] sm:$0x3]
        %514 = vst.msk [vmem:[#allocation3] sm:$0xff] %vm277, %v460
        %515 = vst.msk [vmem:[#allocation3 + $0x10] sm:$0xff] %vm277, %v461
        %516 = vst.msk [vmem:[#allocation3 + $0x20] sm:$0xff] %vm277, %v463
        %517 = vst.msk [vmem:[#allocation3 + $0x30] sm:$0xff] %vm277, %v464
        %518 = vst.msk [vmem:[#allocation3 + $0x40] sm:$0xff] %vm277, %v466
        %519 = vst.msk [vmem:[#allocation3 + $0x50] sm:$0xff] %vm277, %v467
        %520 = vst.msk [vmem:[#allocation3 + $0x60] sm:$0xff] %vm277, %v469
        %521 = vst.msk [vmem:[#allocation3 + $0x70] sm:$0xff] %vm277, %v470
        %522 = vst.msk [vmem:[#allocation3 + $0x80] sm:$0xff] %vm277, %v472
        %523 = vst.msk [vmem:[#allocation3 + $0x90] sm:$0xff] %vm277, %v473
        %524 = vst.msk [vmem:[#allocation3 + $0xa0] sm:$0xff] %vm277, %v475
        %525 = vst.msk [vmem:[#allocation3 + $0xb0] sm:$0xff] %vm277, %v476
        %526 = vst.msk [vmem:[#allocation3 + $0xc0] sm:$0xff] %vm277, %v478
        %527 = vst.msk [vmem:[#allocation3 + $0xd0] sm:$0xff] %vm277, %v479
        %528 = vst.msk [vmem:[#allocation3 + $0xe0] sm:$0xff] %vm277, %v481
        %529 = vst.msk [vmem:[#allocation3 + $0xf0] sm:$0xff] %vm277, %v482
        %530 = vst.msk [vmem:[#allocation3 + $0x100] sm:$0xff] %vm277, %v484
        %531 = vst.msk [vmem:[#allocation3 + $0x110] sm:$0xff] %vm277, %v485
        %532 = vst.msk [vmem:[#allocation3 + $0x120] sm:$0xff] %vm277, %v487
        %533 = vst.msk [vmem:[#allocation3 + $0x130] sm:$0xff] %vm277, %v488
        %534 = vst.msk [vmem:[#allocation3 + $0x140] sm:$0xff] %vm277, %v490
        %535 = vst.msk [vmem:[#allocation3 + $0x150] sm:$0xff] %vm277, %v491
        %536 = vst.msk [vmem:[#allocation3 + $0x160] sm:$0xff] %vm277, %v493
        %537 = vst.msk [vmem:[#allocation3 + $0x170] sm:$0xff] %vm277, %v494
        %538 = vst.msk [vmem:[#allocation3 + $0x180] sm:$0xff] %vm277, %v496
        %539 = vst.msk [vmem:[#allocation3 + $0x190] sm:$0xff] %vm277, %v497
        %540 = vst.msk [vmem:[#allocation3 + $0x1a0] sm:$0xff] %vm277, %v499
        %541 = vst.msk [vmem:[#allocation3 + $0x1b0] sm:$0xff] %vm277, %v500
        %542 = vst.msk [vmem:[#allocation3 + $0x1c0] sm:$0xff] %vm277, %v502
        %543 = vst.msk [vmem:[#allocation3 + $0x1d0] sm:$0xff] %vm277, %v503
        %544 = vst.msk [vmem:[#allocation3 + $0x1e0] sm:$0xff] %vm277, %v505
        %545 = vst.msk [vmem:[#allocation3 + $0x1f0] sm:$0xff] %vm277, %v506
        %vm594 = vcmask 1046528
        %v595 = vrot.slane %v460, 1
        %v596 = vrot.slane %v461, 1
        %v597 = vsel %vm594, %v595, %v596
        %v598 = vrot.slane %v462, 1
        %v599 = vsel %vm594, %v596, %v598
        %v600 = vrot.slane %v463, 1
        %v601 = vrot.slane %v464, 1
        %v602 = vsel %vm594, %v600, %v601
        %v603 = vrot.slane %v465, 1
        %v604 = vsel %vm594, %v601, %v603
        %v605 = vrot.slane %v466, 1
        %v606 = vrot.slane %v467, 1
        %v607 = vsel %vm594, %v605, %v606
        %v608 = vrot.slane %v468, 1
        %v609 = vsel %vm594, %v606, %v608
        %v610 = vrot.slane %v469, 1
        %v611 = vrot.slane %v470, 1
        %v612 = vsel %vm594, %v610, %v611
        %v613 = vrot.slane %v471, 1
        %v614 = vsel %vm594, %v611, %v613
        %v615 = vrot.slane %v472, 1
        %v616 = vrot.slane %v473, 1
        %v617 = vsel %vm594, %v615, %v616
        %v618 = vrot.slane %v474, 1
        %v619 = vsel %vm594, %v616, %v618
        %v620 = vrot.slane %v475, 1
        %v621 = vrot.slane %v476, 1
        %v622 = vsel %vm594, %v620, %v621
        %v623 = vrot.slane %v477, 1
        %v624 = vsel %vm594, %v621, %v623
        %v625 = vrot.slane %v478, 1
        %v626 = vrot.slane %v479, 1
        %v627 = vsel %vm594, %v625, %v626
        %v628 = vrot.slane %v480, 1
        %v629 = vsel %vm594, %v626, %v628
        %v630 = vrot.slane %v481, 1
        %v631 = vrot.slane %v482, 1
        %v632 = vsel %vm594, %v630, %v631
        %v633 = vrot.slane %v483, 1
        %v634 = vsel %vm594, %v631, %v633
        %v635 = vrot.slane %v484, 1
        %v636 = vrot.slane %v485, 1
        %v637 = vsel %vm594, %v635, %v636
        %v638 = vrot.slane %v486, 1
        %v639 = vsel %vm594, %v636, %v638
        %v640 = vrot.slane %v487, 1
        %v641 = vrot.slane %v488, 1
        %v642 = vsel %vm594, %v640, %v641
        %v643 = vrot.slane %v489, 1
        %v644 = vsel %vm594, %v641, %v643
        %v645 = vrot.slane %v490, 1
        %v646 = vrot.slane %v491, 1
        %v647 = vsel %vm594, %v645, %v646
        %v648 = vrot.slane %v492, 1
        %v649 = vsel %vm594, %v646, %v648
        %v650 = vrot.slane %v493, 1
        %v651 = vrot.slane %v494, 1
        %v652 = vsel %vm594, %v650, %v651
        %v653 = vrot.slane %v495, 1
        %v654 = vsel %vm594, %v651, %v653
        %v655 = vrot.slane %v496, 1
        %v656 = vrot.slane %v497, 1
        %v657 = vsel %vm594, %v655, %v656
        %v658 = vrot.slane %v498, 1
        %v659 = vsel %vm594, %v656, %v658
        %v660 = vrot.slane %v499, 1
        %v661 = vrot.slane %v500, 1
        %v662 = vsel %vm594, %v660, %v661
        %v663 = vrot.slane %v501, 1
        %v664 = vsel %vm594, %v661, %v663
        %v665 = vrot.slane %v502, 1
        %v666 = vrot.slane %v503, 1
        %v667 = vsel %vm594, %v665, %v666
        %v668 = vrot.slane %v504, 1
        %v669 = vsel %vm594, %v666, %v668
        %v670 = vrot.slane %v505, 1
        %v671 = vrot.slane %v506, 1
        %v672 = vsel %vm594, %v670, %v671
        %v673 = vrot.slane %v507, 1
        %v674 = vsel %vm594, %v671, %v673
        %675 = vrot.lane.b32.xlu0 %v597, 16
        %v676 = vpop.permute.xlu0 %675
        %677 = vrot.lane.b32.xlu0 %v599, 16
        %v678 = vpop.permute.xlu0 %677
        %679 = vrot.lane.b32.xlu0 %v602, 16
        %v680 = vpop.permute.xlu0 %679
        %681 = vrot.lane.b32.xlu0 %v604, 16
        %v682 = vpop.permute.xlu0 %681
        %683 = vrot.lane.b32.xlu0 %v607, 16
        %v684 = vpop.permute.xlu0 %683
        %685 = vrot.lane.b32.xlu0 %v609, 16
        %v686 = vpop.permute.xlu0 %685
        %687 = vrot.lane.b32.xlu0 %v612, 16
        %v688 = vpop.permute.xlu0 %687
        %689 = vrot.lane.b32.xlu0 %v614, 16
        %v690 = vpop.permute.xlu0 %689
        %691 = vrot.lane.b32.xlu0 %v617, 16
        %v692 = vpop.permute.xlu0 %691
        %693 = vrot.lane.b32.xlu0 %v619, 16
        %v694 = vpop.permute.xlu0 %693
        %695 = vrot.lane.b32.xlu0 %v622, 16
        %v696 = vpop.permute.xlu0 %695
        %697 = vrot.lane.b32.xlu0 %v624, 16
        %v698 = vpop.permute.xlu0 %697
        %699 = vrot.lane.b32.xlu0 %v627, 16
        %v700 = vpop.permute.xlu0 %699
        %701 = vrot.lane.b32.xlu0 %v629, 16
        %v702 = vpop.permute.xlu0 %701
        %703 = vrot.lane.b32.xlu0 %v632, 16
        %v704 = vpop.permute.xlu0 %703
        %705 = vrot.lane.b32.xlu0 %v634, 16
        %v706 = vpop.permute.xlu0 %705
        %707 = vrot.lane.b32.xlu0 %v637, 16
        %v708 = vpop.permute.xlu0 %707
        %709 = vrot.lane.b32.xlu0 %v639, 16
        %v710 = vpop.permute.xlu0 %709
        %711 = vrot.lane.b32.xlu0 %v642, 16
        %v712 = vpop.permute.xlu0 %711
        %713 = vrot.lane.b32.xlu0 %v644, 16
        %v714 = vpop.permute.xlu0 %713
        %715 = vrot.lane.b32.xlu0 %v647, 16
        %v716 = vpop.permute.xlu0 %715
        %717 = vrot.lane.b32.xlu0 %v649, 16
        %v718 = vpop.permute.xlu0 %717
        %719 = vrot.lane.b32.xlu0 %v652, 16
        %v720 = vpop.permute.xlu0 %719
        %721 = vrot.lane.b32.xlu0 %v654, 16
        %v722 = vpop.permute.xlu0 %721
        %723 = vrot.lane.b32.xlu0 %v657, 16
        %v724 = vpop.permute.xlu0 %723
        %725 = vrot.lane.b32.xlu0 %v659, 16
        %v726 = vpop.permute.xlu0 %725
        %727 = vrot.lane.b32.xlu0 %v662, 16
        %v728 = vpop.permute.xlu0 %727
        %729 = vrot.lane.b32.xlu0 %v664, 16
        %v730 = vpop.permute.xlu0 %729
        %731 = vrot.lane.b32.xlu0 %v667, 16
        %v732 = vpop.permute.xlu0 %731
        %733 = vrot.lane.b32.xlu0 %v669, 16
        %v734 = vpop.permute.xlu0 %733
        %735 = vrot.lane.b32.xlu0 %v672, 16
        %v736 = vpop.permute.xlu0 %735
        %737 = vrot.lane.b32.xlu0 %v674, 16
        %v738 = vpop.permute.xlu0 %737
        %vm771 = vcmask 261248
        %772 = vst.msk [vmem:[#allocation3] sm:$0xff] %vm771, %v676
        %773 = vst.msk [vmem:[#allocation3 + $0x10] sm:$0xff] %vm771, %v678
        %774 = vst.msk [vmem:[#allocation3 + $0x20] sm:$0xff] %vm771, %v680
        %775 = vst.msk [vmem:[#allocation3 + $0x30] sm:$0xff] %vm771, %v682
        %776 = vst.msk [vmem:[#allocation3 + $0x40] sm:$0xff] %vm771, %v684
        %777 = vst.msk [vmem:[#allocation3 + $0x50] sm:$0xff] %vm771, %v686
        %778 = vst.msk [vmem:[#allocation3 + $0x60] sm:$0xff] %vm771, %v688
        %779 = vst.msk [vmem:[#allocation3 + $0x70] sm:$0xff] %vm771, %v690
        %780 = vst.msk [vmem:[#allocation3 + $0x80] sm:$0xff] %vm771, %v692
        %781 = vst.msk [vmem:[#allocation3 + $0x90] sm:$0xff] %vm771, %v694
        %782 = vst.msk [vmem:[#allocation3 + $0xa0] sm:$0xff] %vm771, %v696
        %783 = vst.msk [vmem:[#allocation3 + $0xb0] sm:$0xff] %vm771, %v698
        %784 = vst.msk [vmem:[#allocation3 + $0xc0] sm:$0xff] %vm771, %v700
        %785 = vst.msk [vmem:[#allocation3 + $0xd0] sm:$0xff] %vm771, %v702
        %786 = vst.msk [vmem:[#allocation3 + $0xe0] sm:$0xff] %vm771, %v704
        %787 = vst.msk [vmem:[#allocation3 + $0xf0] sm:$0xff] %vm771, %v706
        %788 = vst.msk [vmem:[#allocation3 + $0x100] sm:$0xff] %vm771, %v708
        %789 = vst.msk [vmem:[#allocation3 + $0x110] sm:$0xff] %vm771, %v710
        %790 = vst.msk [vmem:[#allocation3 + $0x120] sm:$0xff] %vm771, %v712
        %791 = vst.msk [vmem:[#allocation3 + $0x130] sm:$0xff] %vm771, %v714
        %792 = vst.msk [vmem:[#allocation3 + $0x140] sm:$0xff] %vm771, %v716
        %793 = vst.msk [vmem:[#allocation3 + $0x150] sm:$0xff] %vm771, %v718
        %794 = vst.msk [vmem:[#allocation3 + $0x160] sm:$0xff] %vm771, %v720
        %795 = vst.msk [vmem:[#allocation3 + $0x170] sm:$0xff] %vm771, %v722
        %796 = vst.msk [vmem:[#allocation3 + $0x180] sm:$0xff] %vm771, %v724
        %797 = vst.msk [vmem:[#allocation3 + $0x190] sm:$0xff] %vm771, %v726
        %798 = vst.msk [vmem:[#allocation3 + $0x1a0] sm:$0xff] %vm771, %v728
        %799 = vst.msk [vmem:[#allocation3 + $0x1b0] sm:$0xff] %vm771, %v730
        %800 = vst.msk [vmem:[#allocation3 + $0x1c0] sm:$0xff] %vm771, %v732
        %801 = vst.msk [vmem:[#allocation3 + $0x1d0] sm:$0xff] %vm771, %v734
        %802 = vst.msk [vmem:[#allocation3 + $0x1e0] sm:$0xff] %vm771, %v736
        %803 = vst.msk [vmem:[#allocation3 + $0x1f0] sm:$0xff] %vm771, %v738
        %vm804 = vcmask 1045504
        %v805 = vrot.slane %v460, 2
        %v806 = vrot.slane %v461, 2
        %v807 = vsel %vm804, %v805, %v806
        %v808 = vrot.slane %v462, 2
        %v809 = vsel %vm804, %v806, %v808
        %v810 = vrot.slane %v463, 2
        %v811 = vrot.slane %v464, 2
        %v812 = vsel %vm804, %v810, %v811
        %v813 = vrot.slane %v465, 2
        %v814 = vsel %vm804, %v811, %v813
        %v815 = vrot.slane %v466, 2
        %v816 = vrot.slane %v467, 2
        %v817 = vsel %vm804, %v815, %v816
        %v818 = vrot.slane %v468, 2
        %v819 = vsel %vm804, %v816, %v818
        %v820 = vrot.slane %v469, 2
        %v821 = vrot.slane %v470, 2
        %v822 = vsel %vm804, %v820, %v821
        %v823 = vrot.slane %v471, 2
        %v824 = vsel %vm804, %v821, %v823
        %v825 = vrot.slane %v472, 2
        %v826 = vrot.slane %v473, 2
        %v827 = vsel %vm804, %v825, %v826
        %v828 = vrot.slane %v474, 2
        %v829 = vsel %vm804, %v826, %v828
        %v830 = vrot.slane %v475, 2
        %v831 = vrot.slane %v476, 2
        %v832 = vsel %vm804, %v830, %v831
        %v833 = vrot.slane %v477, 2
        %v834 = vsel %vm804, %v831, %v833
        %v835 = vrot.slane %v478, 2
        %v836 = vrot.slane %v479, 2
        %v837 = vsel %vm804, %v835, %v836
        %v838 = vrot.slane %v480, 2
        %v839 = vsel %vm804, %v836, %v838
        %v840 = vrot.slane %v481, 2
        %v841 = vrot.slane %v482, 2
        %v842 = vsel %vm804, %v840, %v841
        %v843 = vrot.slane %v483, 2
        %v844 = vsel %vm804, %v841, %v843
        %v845 = vrot.slane %v484, 2
        %v846 = vrot.slane %v485, 2
        %v847 = vsel %vm804, %v845, %v846
        %v848 = vrot.slane %v486, 2
        %v849 = vsel %vm804, %v846, %v848
        %v850 = vrot.slane %v487, 2
        %v851 = vrot.slane %v488, 2
        %v852 = vsel %vm804, %v850, %v851
        %v853 = vrot.slane %v489, 2
        %v854 = vsel %vm804, %v851, %v853
        %v855 = vrot.slane %v490, 2
        %v856 = vrot.slane %v491, 2
        %v857 = vsel %vm804, %v855, %v856
        %v858 = vrot.slane %v492, 2
        %v859 = vsel %vm804, %v856, %v858
        %v860 = vrot.slane %v493, 2
        %v861 = vrot.slane %v494, 2
        %v862 = vsel %vm804, %v860, %v861
        %v863 = vrot.slane %v495, 2
        %v864 = vsel %vm804, %v861, %v863
        %v865 = vrot.slane %v496, 2
        %v866 = vrot.slane %v497, 2
        %v867 = vsel %vm804, %v865, %v866
        %v868 = vrot.slane %v498, 2
        %v869 = vsel %vm804, %v866, %v868
        %v870 = vrot.slane %v499, 2
        %v871 = vrot.slane %v500, 2
        %v872 = vsel %vm804, %v870, %v871
        %v873 = vrot.slane %v501, 2
        %v874 = vsel %vm804, %v871, %v873
        %v875 = vrot.slane %v502, 2
        %v876 = vrot.slane %v503, 2
        %v877 = vsel %vm804, %v875, %v876
        %v878 = vrot.slane %v504, 2
        %v879 = vsel %vm804, %v876, %v878
        %v880 = vrot.slane %v505, 2
        %v881 = vrot.slane %v506, 2
        %v882 = vsel %vm804, %v880, %v881
        %v883 = vrot.slane %v507, 2
        %v884 = vsel %vm804, %v881, %v883
        %885 = vrot.lane.b32.xlu0 %v807, 32
        %v886 = vpop.permute.xlu0 %885
        %887 = vrot.lane.b32.xlu0 %v809, 32
        %v888 = vpop.permute.xlu0 %887
        %889 = vrot.lane.b32.xlu0 %v812, 32
        %v890 = vpop.permute.xlu0 %889
        %891 = vrot.lane.b32.xlu0 %v814, 32
        %v892 = vpop.permute.xlu0 %891
        %893 = vrot.lane.b32.xlu0 %v817, 32
        %v894 = vpop.permute.xlu0 %893
        %895 = vrot.lane.b32.xlu0 %v819, 32
        %v896 = vpop.permute.xlu0 %895
        %897 = vrot.lane.b32.xlu0 %v822, 32
        %v898 = vpop.permute.xlu0 %897
        %899 = vrot.lane.b32.xlu0 %v824, 32
        %v900 = vpop.permute.xlu0 %899
        %901 = vrot.lane.b32.xlu0 %v827, 32
        %v902 = vpop.permute.xlu0 %901
        %903 = vrot.lane.b32.xlu0 %v829, 32
        %v904 = vpop.permute.xlu0 %903
        %905 = vrot.lane.b32.xlu0 %v832, 32
        %v906 = vpop.permute.xlu0 %905
        %907 = vrot.lane.b32.xlu0 %v834, 32
        %v908 = vpop.permute.xlu0 %907
        %909 = vrot.lane.b32.xlu0 %v837, 32
        %v910 = vpop.permute.xlu0 %909
        %911 = vrot.lane.b32.xlu0 %v839, 32
        %v912 = vpop.permute.xlu0 %911
        %913 = vrot.lane.b32.xlu0 %v842, 32
        %v914 = vpop.permute.xlu0 %913
        %915 = vrot.lane.b32.xlu0 %v844, 32
        %v916 = vpop.permute.xlu0 %915
        %917 = vrot.lane.b32.xlu0 %v847, 32
        %v918 = vpop.permute.xlu0 %917
        %919 = vrot.lane.b32.xlu0 %v849, 32
        %v920 = vpop.permute.xlu0 %919
        %921 = vrot.lane.b32.xlu0 %v852, 32
        %v922 = vpop.permute.xlu0 %921
        %923 = vrot.lane.b32.xlu0 %v854, 32
        %v924 = vpop.permute.xlu0 %923
        %925 = vrot.lane.b32.xlu0 %v857, 32
        %v926 = vpop.permute.xlu0 %925
        %927 = vrot.lane.b32.xlu0 %v859, 32
        %v928 = vpop.permute.xlu0 %927
        %929 = vrot.lane.b32.xlu0 %v862, 32
        %v930 = vpop.permute.xlu0 %929
        %931 = vrot.lane.b32.xlu0 %v864, 32
        %v932 = vpop.permute.xlu0 %931
        %933 = vrot.lane.b32.xlu0 %v867, 32
        %v934 = vpop.permute.xlu0 %933
        %935 = vrot.lane.b32.xlu0 %v869, 32
        %v936 = vpop.permute.xlu0 %935
        %937 = vrot.lane.b32.xlu0 %v872, 32
        %v938 = vpop.permute.xlu0 %937
        %939 = vrot.lane.b32.xlu0 %v874, 32
        %v940 = vpop.permute.xlu0 %939
        %941 = vrot.lane.b32.xlu0 %v877, 32
        %v942 = vpop.permute.xlu0 %941
        %943 = vrot.lane.b32.xlu0 %v879, 32
        %v944 = vpop.permute.xlu0 %943
        %945 = vrot.lane.b32.xlu0 %v882, 32
        %v946 = vpop.permute.xlu0 %945
        %947 = vrot.lane.b32.xlu0 %v884, 32
        %v948 = vpop.permute.xlu0 %947
        %vm981 = vcmask 392448
        %982 = vst.msk [vmem:[#allocation3] sm:$0xff] %vm981, %v886
        %983 = vst.msk [vmem:[#allocation3 + $0x10] sm:$0xff] %vm981, %v888
        %984 = vst.msk [vmem:[#allocation3 + $0x20] sm:$0xff] %vm981, %v890
        %985 = vst.msk [vmem:[#allocation3 + $0x30] sm:$0xff] %vm981, %v892
        %986 = vst.msk [vmem:[#allocation3 + $0x40] sm:$0xff] %vm981, %v894
        %987 = vst.msk [vmem:[#allocation3 + $0x50] sm:$0xff] %vm981, %v896
        %988 = vst.msk [vmem:[#allocation3 + $0x60] sm:$0xff] %vm981, %v898
        %989 = vst.msk [vmem:[#allocation3 + $0x70] sm:$0xff] %vm981, %v900
        %990 = vst.msk [vmem:[#allocation3 + $0x80] sm:$0xff] %vm981, %v902
        %991 = vst.msk [vmem:[#allocation3 + $0x90] sm:$0xff] %vm981, %v904
        %992 = vst.msk [vmem:[#allocation3 + $0xa0] sm:$0xff] %vm981, %v906
        %993 = vst.msk [vmem:[#allocation3 + $0xb0] sm:$0xff] %vm981, %v908
        %994 = vst.msk [vmem:[#allocation3 + $0xc0] sm:$0xff] %vm981, %v910
        %995 = vst.msk [vmem:[#allocation3 + $0xd0] sm:$0xff] %vm981, %v912
        %996 = vst.msk [vmem:[#allocation3 + $0xe0] sm:$0xff] %vm981, %v914
        %997 = vst.msk [vmem:[#allocation3 + $0xf0] sm:$0xff] %vm981, %v916
        %998 = vst.msk [vmem:[#allocation3 + $0x100] sm:$0xff] %vm981, %v918
        %999 = vst.msk [vmem:[#allocation3 + $0x110] sm:$0xff] %vm981, %v920
        %1000 = vst.msk [vmem:[#allocation3 + $0x120] sm:$0xff] %vm981, %v922
        %1001 = vst.msk [vmem:[#allocation3 + $0x130] sm:$0xff] %vm981, %v924
        %1002 = vst.msk [vmem:[#allocation3 + $0x140] sm:$0xff] %vm981, %v926
        %1003 = vst.msk [vmem:[#allocation3 + $0x150] sm:$0xff] %vm981, %v928
        %1004 = vst.msk [vmem:[#allocation3 + $0x160] sm:$0xff] %vm981, %v930
        %1005 = vst.msk [vmem:[#allocation3 + $0x170] sm:$0xff] %vm981, %v932
        %1006 = vst.msk [vmem:[#allocation3 + $0x180] sm:$0xff] %vm981, %v934
        %1007 = vst.msk [vmem:[#allocation3 + $0x190] sm:$0xff] %vm981, %v936
        %1008 = vst.msk [vmem:[#allocation3 + $0x1a0] sm:$0xff] %vm981, %v938
        %1009 = vst.msk [vmem:[#allocation3 + $0x1b0] sm:$0xff] %vm981, %v940
        %1010 = vst.msk [vmem:[#allocation3 + $0x1c0] sm:$0xff] %vm981, %v942
        %1011 = vst.msk [vmem:[#allocation3 + $0x1d0] sm:$0xff] %vm981, %v944
        %1012 = vst.msk [vmem:[#allocation3 + $0x1e0] sm:$0xff] %vm981, %v946
        %1013 = vst.msk [vmem:[#allocation3 + $0x1f0] sm:$0xff] %vm981, %v948
        %1016 = vrot.lane.b32.xlu0 %v463, 48
        %v1017 = vpop.permute.xlu0 %1016
        %1018 = vrot.lane.b32.xlu0 %v464, 48
        %v1019 = vpop.permute.xlu0 %1018
        %1020 = vrot.lane.b32.xlu0 %v466, 48
        %v1021 = vpop.permute.xlu0 %1020
        %1022 = vrot.lane.b32.xlu0 %v467, 48
        %v1023 = vpop.permute.xlu0 %1022
        %1024 = vrot.lane.b32.xlu0 %v469, 48
        %v1025 = vpop.permute.xlu0 %1024
        %1026 = vrot.lane.b32.xlu0 %v470, 48
        %v1027 = vpop.permute.xlu0 %1026
        %1028 = vrot.lane.b32.xlu0 %v472, 48
        %v1029 = vpop.permute.xlu0 %1028
        %1030 = vrot.lane.b32.xlu0 %v473, 48
        %v1031 = vpop.permute.xlu0 %1030
        %1032 = vrot.lane.b32.xlu0 %v475, 48
        %v1033 = vpop.permute.xlu0 %1032
        %1034 = vrot.lane.b32.xlu0 %v476, 48
        %v1035 = vpop.permute.xlu0 %1034
        %1036 = vrot.lane.b32.xlu0 %v478, 48
        %v1037 = vpop.permute.xlu0 %1036
        %1038 = vrot.lane.b32.xlu0 %v479, 48
        %v1039 = vpop.permute.xlu0 %1038
        %1040 = vrot.lane.b32.xlu0 %v481, 48
        %v1041 = vpop.permute.xlu0 %1040
        %1042 = vrot.lane.b32.xlu0 %v482, 48
        %v1043 = vpop.permute.xlu0 %1042
        %1044 = vrot.lane.b32.xlu0 %v484, 48
        %v1045 = vpop.permute.xlu0 %1044
        %1046 = vrot.lane.b32.xlu0 %v485, 48
        %v1047 = vpop.permute.xlu0 %1046
        %1048 = vrot.lane.b32.xlu0 %v487, 48
        %v1049 = vpop.permute.xlu0 %1048
        %1050 = vrot.lane.b32.xlu0 %v488, 48
        %v1051 = vpop.permute.xlu0 %1050
        %1052 = vrot.lane.b32.xlu0 %v490, 48
        %v1053 = vpop.permute.xlu0 %1052
        %1054 = vrot.lane.b32.xlu0 %v491, 48
        %v1055 = vpop.permute.xlu0 %1054
        %1056 = vrot.lane.b32.xlu0 %v493, 48
        %v1057 = vpop.permute.xlu0 %1056
        %1058 = vrot.lane.b32.xlu0 %v494, 48
        %v1059 = vpop.permute.xlu0 %1058
        %1060 = vrot.lane.b32.xlu0 %v496, 48
        %v1061 = vpop.permute.xlu0 %1060
        %1062 = vrot.lane.b32.xlu0 %v497, 48
        %v1063 = vpop.permute.xlu0 %1062
        %1064 = vrot.lane.b32.xlu0 %v499, 48
        %v1065 = vpop.permute.xlu0 %1064
        %1066 = vrot.lane.b32.xlu0 %v500, 48
        %v1067 = vpop.permute.xlu0 %1066
        %1068 = vrot.lane.b32.xlu0 %v502, 48
        %v1069 = vpop.permute.xlu0 %1068
        %1070 = vrot.lane.b32.xlu0 %v503, 48
        %v1071 = vpop.permute.xlu0 %1070
        %1072 = vrot.lane.b32.xlu0 %v505, 48
        %v1073 = vpop.permute.xlu0 %1072
        %1074 = vrot.lane.b32.xlu0 %v506, 48
        %v1075 = vpop.permute.xlu0 %1074
        %1076 = vrot.lane.b32.xlu0 %v508, 48
        %v1077 = vpop.permute.xlu0 %1076
        %1078 = vrot.lane.b32.xlu0 %v509, 48
        %v1079 = vpop.permute.xlu0 %1078
        %vm1112 = vcmask 523648
        %1113 = vst.msk [vmem:[#allocation3] sm:$0xff] %vm1112, %v1017
        %1114 = vst.msk [vmem:[#allocation3 + $0x10] sm:$0xff] %vm1112, %v1019
        %1115 = vst.msk [vmem:[#allocation3 + $0x20] sm:$0xff] %vm1112, %v1021
        %1116 = vst.msk [vmem:[#allocation3 + $0x30] sm:$0xff] %vm1112, %v1023
        %1117 = vst.msk [vmem:[#allocation3 + $0x40] sm:$0xff] %vm1112, %v1025
        %1118 = vst.msk [vmem:[#allocation3 + $0x50] sm:$0xff] %vm1112, %v1027
        %1119 = vst.msk [vmem:[#allocation3 + $0x60] sm:$0xff] %vm1112, %v1029
        %1120 = vst.msk [vmem:[#allocation3 + $0x70] sm:$0xff] %vm1112, %v1031
        %1121 = vst.msk [vmem:[#allocation3 + $0x80] sm:$0xff] %vm1112, %v1033
        %1122 = vst.msk [vmem:[#allocation3 + $0x90] sm:$0xff] %vm1112, %v1035
        %1123 = vst.msk [vmem:[#allocation3 + $0xa0] sm:$0xff] %vm1112, %v1037
        %1124 = vst.msk [vmem:[#allocation3 + $0xb0] sm:$0xff] %vm1112, %v1039
        %1125 = vst.msk [vmem:[#allocation3 + $0xc0] sm:$0xff] %vm1112, %v1041
        %1126 = vst.msk [vmem:[#allocation3 + $0xd0] sm:$0xff] %vm1112, %v1043
        %1127 = vst.msk [vmem:[#allocation3 + $0xe0] sm:$0xff] %vm1112, %v1045
        %1128 = vst.msk [vmem:[#allocation3 + $0xf0] sm:$0xff] %vm1112, %v1047
        %1129 = vst.msk [vmem:[#allocation3 + $0x100] sm:$0xff] %vm1112, %v1049
        %1130 = vst.msk [vmem:[#allocation3 + $0x110] sm:$0xff] %vm1112, %v1051
        %1131 = vst.msk [vmem:[#allocation3 + $0x120] sm:$0xff] %vm1112, %v1053
        %1132 = vst.msk [vmem:[#allocation3 + $0x130] sm:$0xff] %vm1112, %v1055
        %1133 = vst.msk [vmem:[#allocation3 + $0x140] sm:$0xff] %vm1112, %v1057
        %1134 = vst.msk [vmem:[#allocation3 + $0x150] sm:$0xff] %vm1112, %v1059
        %1135 = vst.msk [vmem:[#allocation3 + $0x160] sm:$0xff] %vm1112, %v1061
        %1136 = vst.msk [vmem:[#allocation3 + $0x170] sm:$0xff] %vm1112, %v1063
        %1137 = vst.msk [vmem:[#allocation3 + $0x180] sm:$0xff] %vm1112, %v1065
        %1138 = vst.msk [vmem:[#allocation3 + $0x190] sm:$0xff] %vm1112, %v1067
        %1139 = vst.msk [vmem:[#allocation3 + $0x1a0] sm:$0xff] %vm1112, %v1069
        %1140 = vst.msk [vmem:[#allocation3 + $0x1b0] sm:$0xff] %vm1112, %v1071
        %1141 = vst.msk [vmem:[#allocation3 + $0x1c0] sm:$0xff] %vm1112, %v1073
        %1142 = vst.msk [vmem:[#allocation3 + $0x1d0] sm:$0xff] %vm1112, %v1075
        %1143 = vst.msk [vmem:[#allocation3 + $0x1e0] sm:$0xff] %vm1112, %v1077
        %1144 = vst.msk [vmem:[#allocation3 + $0x1f0] sm:$0xff] %vm1112, %v1079
        %v1146 = vrot.slane %v508, 1
        %v1147 = vrot.slane %v509, 1
        %v1148 = vsel %vm594, %v1146, %v1147
        %v1149 = vrot.slane %v510, 1
        %v1150 = vsel %vm594, %v1147, %v1149
        %1151 = vrot.lane.b32.xlu0 %v602, 64
        %v1152 = vpop.permute.xlu0 %1151
        %1153 = vrot.lane.b32.xlu0 %v604, 64
        %v1154 = vpop.permute.xlu0 %1153
        %1155 = vrot.lane.b32.xlu0 %v607, 64
        %v1156 = vpop.permute.xlu0 %1155
        %1157 = vrot.lane.b32.xlu0 %v609, 64
        %v1158 = vpop.permute.xlu0 %1157
        %1159 = vrot.lane.b32.xlu0 %v612, 64
        %v1160 = vpop.permute.xlu0 %1159
        %1161 = vrot.lane.b32.xlu0 %v614, 64
        %v1162 = vpop.permute.xlu0 %1161
        %1163 = vrot.lane.b32.xlu0 %v617, 64
        %v1164 = vpop.permute.xlu0 %1163
        %1165 = vrot.lane.b32.xlu0 %v619, 64
        %v1166 = vpop.permute.xlu0 %1165
        %1167 = vrot.lane.b32.xlu0 %v622, 64
        %v1168 = vpop.permute.xlu0 %1167
        %1169 = vrot.lane.b32.xlu0 %v624, 64
        %v1170 = vpop.permute.xlu0 %1169
        %1171 = vrot.lane.b32.xlu0 %v627, 64
        %v1172 = vpop.permute.xlu0 %1171
        %1173 = vrot.lane.b32.xlu0 %v629, 64
        %v1174 = vpop.permute.xlu0 %1173
        %1175 = vrot.lane.b32.xlu0 %v632, 64
        %v1176 = vpop.permute.xlu0 %1175
        %1177 = vrot.lane.b32.xlu0 %v634, 64
        %v1178 = vpop.permute.xlu0 %1177
        %1179 = vrot.lane.b32.xlu0 %v637, 64
        %v1180 = vpop.permute.xlu0 %1179
        %1181 = vrot.lane.b32.xlu0 %v639, 64
        %v1182 = vpop.permute.xlu0 %1181
        %1183 = vrot.lane.b32.xlu0 %v642, 64
        %v1184 = vpop.permute.xlu0 %1183
        %1185 = vrot.lane.b32.xlu0 %v644, 64
        %v1186 = vpop.permute.xlu0 %1185
        %1187 = vrot.lane.b32.xlu0 %v647, 64
        %v1188 = vpop.permute.xlu0 %1187
        %1189 = vrot.lane.b32.xlu0 %v649, 64
        %v1190 = vpop.permute.xlu0 %1189
        %1191 = vrot.lane.b32.xlu0 %v652, 64
        %v1192 = vpop.permute.xlu0 %1191
        %1193 = vrot.lane.b32.xlu0 %v654, 64
        %v1194 = vpop.permute.xlu0 %1193
        %1195 = vrot.lane.b32.xlu0 %v657, 64
        %v1196 = vpop.permute.xlu0 %1195
        %1197 = vrot.lane.b32.xlu0 %v659, 64
        %v1198 = vpop.permute.xlu0 %1197
        %1199 = vrot.lane.b32.xlu0 %v662, 64
        %v1200 = vpop.permute.xlu0 %1199
        %1201 = vrot.lane.b32.xlu0 %v664, 64
        %v1202 = vpop.permute.xlu0 %1201
        %1203 = vrot.lane.b32.xlu0 %v667, 64
        %v1204 = vpop.permute.xlu0 %1203
        %1205 = vrot.lane.b32.xlu0 %v669, 64
        %v1206 = vpop.permute.xlu0 %1205
        %1207 = vrot.lane.b32.xlu0 %v672, 64
        %v1208 = vpop.permute.xlu0 %1207
        %1209 = vrot.lane.b32.xlu0 %v674, 64
        %v1210 = vpop.permute.xlu0 %1209
        %1211 = vrot.lane.b32.xlu0 %v1148, 64
        %v1212 = vpop.permute.xlu0 %1211
        %1213 = vrot.lane.b32.xlu0 %v1150, 64
        %v1214 = vpop.permute.xlu0 %1213
        %vm1247 = vcmask 654848
        %1248 = vst.msk [vmem:[#allocation3] sm:$0xff] %vm1247, %v1152
        %1249 = vst.msk [vmem:[#allocation3 + $0x10] sm:$0xff] %vm1247, %v1154
        %1250 = vst.msk [vmem:[#allocation3 + $0x20] sm:$0xff] %vm1247, %v1156
        %1251 = vst.msk [vmem:[#allocation3 + $0x30] sm:$0xff] %vm1247, %v1158
        %1252 = vst.msk [vmem:[#allocation3 + $0x40] sm:$0xff] %vm1247, %v1160
        %1253 = vst.msk [vmem:[#allocation3 + $0x50] sm:$0xff] %vm1247, %v1162
        %1254 = vst.msk [vmem:[#allocation3 + $0x60] sm:$0xff] %vm1247, %v1164
        %1255 = vst.msk [vmem:[#allocation3 + $0x70] sm:$0xff] %vm1247, %v1166
        %1256 = vst.msk [vmem:[#allocation3 + $0x80] sm:$0xff] %vm1247, %v1168
        %1257 = vst.msk [vmem:[#allocation3 + $0x90] sm:$0xff] %vm1247, %v1170
        %1258 = vst.msk [vmem:[#allocation3 + $0xa0] sm:$0xff] %vm1247, %v1172
        %1259 = vst.msk [vmem:[#allocation3 + $0xb0] sm:$0xff] %vm1247, %v1174
        %1260 = vst.msk [vmem:[#allocation3 + $0xc0] sm:$0xff] %vm1247, %v1176
        %1261 = vst.msk [vmem:[#allocation3 + $0xd0] sm:$0xff] %vm1247, %v1178
        %1262 = vst.msk [vmem:[#allocation3 + $0xe0] sm:$0xff] %vm1247, %v1180
        %1263 = vst.msk [vmem:[#allocation3 + $0xf0] sm:$0xff] %vm1247, %v1182
        %1264 = vst.msk [vmem:[#allocation3 + $0x100] sm:$0xff] %vm1247, %v1184
        %1265 = vst.msk [vmem:[#allocation3 + $0x110] sm:$0xff] %vm1247, %v1186
        %1266 = vst.msk [vmem:[#allocation3 + $0x120] sm:$0xff] %vm1247, %v1188
        %1267 = vst.msk [vmem:[#allocation3 + $0x130] sm:$0xff] %vm1247, %v1190
        %1268 = vst.msk [vmem:[#allocation3 + $0x140] sm:$0xff] %vm1247, %v1192
        %1269 = vst.msk [vmem:[#allocation3 + $0x150] sm:$0xff] %vm1247, %v1194
        %1270 = vst.msk [vmem:[#allocation3 + $0x160] sm:$0xff] %vm1247, %v1196
        %1271 = vst.msk [vmem:[#allocation3 + $0x170] sm:$0xff] %vm1247, %v1198
        %1272 = vst.msk [vmem:[#allocation3 + $0x180] sm:$0xff] %vm1247, %v1200
        %1273 = vst.msk [vmem:[#allocation3 + $0x190] sm:$0xff] %vm1247, %v1202
        %1274 = vst.msk [vmem:[#allocation3 + $0x1a0] sm:$0xff] %vm1247, %v1204
        %1275 = vst.msk [vmem:[#allocation3 + $0x1b0] sm:$0xff] %vm1247, %v1206
        %1276 = vst.msk [vmem:[#allocation3 + $0x1c0] sm:$0xff] %vm1247, %v1208
        %1277 = vst.msk [vmem:[#allocation3 + $0x1d0] sm:$0xff] %vm1247, %v1210
        %1278 = vst.msk [vmem:[#allocation3 + $0x1e0] sm:$0xff] %vm1247, %v1212
        %1279 = vst.msk [vmem:[#allocation3 + $0x1f0] sm:$0xff] %vm1247, %v1214
        %v1280 = vrot.slane %v508, 2
        %v1281 = vrot.slane %v509, 2
        %v1282 = vsel %vm804, %v1280, %v1281
        %v1283 = vrot.slane %v510, 2
        %v1284 = vsel %vm804, %v1281, %v1283
        %1285 = vrot.lane.b32.xlu0 %v812, 80
        %v1286 = vpop.permute.xlu0 %1285
        %1287 = vrot.lane.b32.xlu0 %v814, 80
        %v1288 = vpop.permute.xlu0 %1287
        %1289 = vrot.lane.b32.xlu0 %v817, 80
        %v1290 = vpop.permute.xlu0 %1289
        %1291 = vrot.lane.b32.xlu0 %v819, 80
        %v1292 = vpop.permute.xlu0 %1291
        %1293 = vrot.lane.b32.xlu0 %v822, 80
        %v1294 = vpop.permute.xlu0 %1293
        %1295 = vrot.lane.b32.xlu0 %v824, 80
        %v1296 = vpop.permute.xlu0 %1295
        %1297 = vrot.lane.b32.xlu0 %v827, 80
        %v1298 = vpop.permute.xlu0 %1297
        %1299 = vrot.lane.b32.xlu0 %v829, 80
        %v1300 = vpop.permute.xlu0 %1299
        %1301 = vrot.lane.b32.xlu0 %v832, 80
        %v1302 = vpop.permute.xlu0 %1301
        %1303 = vrot.lane.b32.xlu0 %v834, 80
        %v1304 = vpop.permute.xlu0 %1303
        %1305 = vrot.lane.b32.xlu0 %v837, 80
        %v1306 = vpop.permute.xlu0 %1305
        %1307 = vrot.lane.b32.xlu0 %v839, 80
        %v1308 = vpop.permute.xlu0 %1307
        %1309 = vrot.lane.b32.xlu0 %v842, 80
        %v1310 = vpop.permute.xlu0 %1309
        %1311 = vrot.lane.b32.xlu0 %v844, 80
        %v1312 = vpop.permute.xlu0 %1311
        %1313 = vrot.lane.b32.xlu0 %v847, 80
        %v1314 = vpop.permute.xlu0 %1313
        %1315 = vrot.lane.b32.xlu0 %v849, 80
        %v1316 = vpop.permute.xlu0 %1315
        %1317 = vrot.lane.b32.xlu0 %v852, 80
        %v1318 = vpop.permute.xlu0 %1317
        %1319 = vrot.lane.b32.xlu0 %v854, 80
        %v1320 = vpop.permute.xlu0 %1319
        %1321 = vrot.lane.b32.xlu0 %v857, 80
        %v1322 = vpop.permute.xlu0 %1321
        %1323 = vrot.lane.b32.xlu0 %v859, 80
        %v1324 = vpop.permute.xlu0 %1323
        %1325 = vrot.lane.b32.xlu0 %v862, 80
        %v1326 = vpop.permute.xlu0 %1325
        %1327 = vrot.lane.b32.xlu0 %v864, 80
        %v1328 = vpop.permute.xlu0 %1327
        %1329 = vrot.lane.b32.xlu0 %v867, 80
        %v1330 = vpop.permute.xlu0 %1329
        %1331 = vrot.lane.b32.xlu0 %v869, 80
        %v1332 = vpop.permute.xlu0 %1331
        %1333 = vrot.lane.b32.xlu0 %v872, 80
        %v1334 = vpop.permute.xlu0 %1333
        %1335 = vrot.lane.b32.xlu0 %v874, 80
        %v1336 = vpop.permute.xlu0 %1335
        %1337 = vrot.lane.b32.xlu0 %v877, 80
        %v1338 = vpop.permute.xlu0 %1337
        %1339 = vrot.lane.b32.xlu0 %v879, 80
        %v1340 = vpop.permute.xlu0 %1339
        %1341 = vrot.lane.b32.xlu0 %v882, 80
        %v1342 = vpop.permute.xlu0 %1341
        %1343 = vrot.lane.b32.xlu0 %v884, 80
        %v1344 = vpop.permute.xlu0 %1343
        %1345 = vrot.lane.b32.xlu0 %v1282, 80
        %v1346 = vpop.permute.xlu0 %1345
        %1347 = vrot.lane.b32.xlu0 %v1284, 80
        %v1348 = vpop.permute.xlu0 %1347
        %vm1381 = vcmask 786048
        %1382 = vst.msk [vmem:[#allocation3] sm:$0xff] %vm1381, %v1286
        %1383 = vst.msk [vmem:[#allocation3 + $0x10] sm:$0xff] %vm1381, %v1288
        %1384 = vst.msk [vmem:[#allocation3 + $0x20] sm:$0xff] %vm1381, %v1290
        %1385 = vst.msk [vmem:[#allocation3 + $0x30] sm:$0xff] %vm1381, %v1292
        %1386 = vst.msk [vmem:[#allocation3 + $0x40] sm:$0xff] %vm1381, %v1294
        %1387 = vst.msk [vmem:[#allocation3 + $0x50] sm:$0xff] %vm1381, %v1296
        %1388 = vst.msk [vmem:[#allocation3 + $0x60] sm:$0xff] %vm1381, %v1298
        %1389 = vst.msk [vmem:[#allocation3 + $0x70] sm:$0xff] %vm1381, %v1300
        %1390 = vst.msk [vmem:[#allocation3 + $0x80] sm:$0xff] %vm1381, %v1302
        %1391 = vst.msk [vmem:[#allocation3 + $0x90] sm:$0xff] %vm1381, %v1304
        %1392 = vst.msk [vmem:[#allocation3 + $0xa0] sm:$0xff] %vm1381, %v1306
        %1393 = vst.msk [vmem:[#allocation3 + $0xb0] sm:$0xff] %vm1381, %v1308
        %1394 = vst.msk [vmem:[#allocation3 + $0xc0] sm:$0xff] %vm1381, %v1310
        %1395 = vst.msk [vmem:[#allocation3 + $0xd0] sm:$0xff] %vm1381, %v1312
        %1396 = vst.msk [vmem:[#allocation3 + $0xe0] sm:$0xff] %vm1381, %v1314
        %1397 = vst.msk [vmem:[#allocation3 + $0xf0] sm:$0xff] %vm1381, %v1316
        %1398 = vst.msk [vmem:[#allocation3 + $0x100] sm:$0xff] %vm1381, %v1318
        %1399 = vst.msk [vmem:[#allocation3 + $0x110] sm:$0xff] %vm1381, %v1320
        %1400 = vst.msk [vmem:[#allocation3 + $0x120] sm:$0xff] %vm1381, %v1322
        %1401 = vst.msk [vmem:[#allocation3 + $0x130] sm:$0xff] %vm1381, %v1324
        %1402 = vst.msk [vmem:[#allocation3 + $0x140] sm:$0xff] %vm1381, %v1326
        %1403 = vst.msk [vmem:[#allocation3 + $0x150] sm:$0xff] %vm1381, %v1328
        %1404 = vst.msk [vmem:[#allocation3 + $0x160] sm:$0xff] %vm1381, %v1330
        %1405 = vst.msk [vmem:[#allocation3 + $0x170] sm:$0xff] %vm1381, %v1332
        %1406 = vst.msk [vmem:[#allocation3 + $0x180] sm:$0xff] %vm1381, %v1334
        %1407 = vst.msk [vmem:[#allocation3 + $0x190] sm:$0xff] %vm1381, %v1336
        %1408 = vst.msk [vmem:[#allocation3 + $0x1a0] sm:$0xff] %vm1381, %v1338
        %1409 = vst.msk [vmem:[#allocation3 + $0x1b0] sm:$0xff] %vm1381, %v1340
        %1410 = vst.msk [vmem:[#allocation3 + $0x1c0] sm:$0xff] %vm1381, %v1342
        %1411 = vst.msk [vmem:[#allocation3 + $0x1d0] sm:$0xff] %vm1381, %v1344
        %1412 = vst.msk [vmem:[#allocation3 + $0x1e0] sm:$0xff] %vm1381, %v1346
        %1413 = vst.msk [vmem:[#allocation3 + $0x1f0] sm:$0xff] %vm1381, %v1348
        %1416 = vrot.lane.b32.xlu0 %v466, 96
        %v1417 = vpop.permute.xlu0 %1416
        %1418 = vrot.lane.b32.xlu0 %v467, 96
        %v1419 = vpop.permute.xlu0 %1418
        %1420 = vrot.lane.b32.xlu0 %v469, 96
        %v1421 = vpop.permute.xlu0 %1420
        %1422 = vrot.lane.b32.xlu0 %v470, 96
        %v1423 = vpop.permute.xlu0 %1422
        %1424 = vrot.lane.b32.xlu0 %v472, 96
        %v1425 = vpop.permute.xlu0 %1424
        %1426 = vrot.lane.b32.xlu0 %v473, 96
        %v1427 = vpop.permute.xlu0 %1426
        %1428 = vrot.lane.b32.xlu0 %v475, 96
        %v1429 = vpop.permute.xlu0 %1428
        %1430 = vrot.lane.b32.xlu0 %v476, 96
        %v1431 = vpop.permute.xlu0 %1430
        %1432 = vrot.lane.b32.xlu0 %v478, 96
        %v1433 = vpop.permute.xlu0 %1432
        %1434 = vrot.lane.b32.xlu0 %v479, 96
        %v1435 = vpop.permute.xlu0 %1434
        %1436 = vrot.lane.b32.xlu0 %v481, 96
        %v1437 = vpop.permute.xlu0 %1436
        %1438 = vrot.lane.b32.xlu0 %v482, 96
        %v1439 = vpop.permute.xlu0 %1438
        %1440 = vrot.lane.b32.xlu0 %v484, 96
        %v1441 = vpop.permute.xlu0 %1440
        %1442 = vrot.lane.b32.xlu0 %v485, 96
        %v1443 = vpop.permute.xlu0 %1442
        %1444 = vrot.lane.b32.xlu0 %v487, 96
        %v1445 = vpop.permute.xlu0 %1444
        %1446 = vrot.lane.b32.xlu0 %v488, 96
        %v1447 = vpop.permute.xlu0 %1446
        %1448 = vrot.lane.b32.xlu0 %v490, 96
        %v1449 = vpop.permute.xlu0 %1448
        %1450 = vrot.lane.b32.xlu0 %v491, 96
        %v1451 = vpop.permute.xlu0 %1450
        %1452 = vrot.lane.b32.xlu0 %v493, 96
        %v1453 = vpop.permute.xlu0 %1452
        %1454 = vrot.lane.b32.xlu0 %v494, 96
        %v1455 = vpop.permute.xlu0 %1454
        %1456 = vrot.lane.b32.xlu0 %v496, 96
        %v1457 = vpop.permute.xlu0 %1456
        %1458 = vrot.lane.b32.xlu0 %v497, 96
        %v1459 = vpop.permute.xlu0 %1458
        %1460 = vrot.lane.b32.xlu0 %v499, 96
        %v1461 = vpop.permute.xlu0 %1460
        %1462 = vrot.lane.b32.xlu0 %v500, 96
        %v1463 = vpop.permute.xlu0 %1462
        %1464 = vrot.lane.b32.xlu0 %v502, 96
        %v1465 = vpop.permute.xlu0 %1464
        %1466 = vrot.lane.b32.xlu0 %v503, 96
        %v1467 = vpop.permute.xlu0 %1466
        %1468 = vrot.lane.b32.xlu0 %v505, 96
        %v1469 = vpop.permute.xlu0 %1468
        %1470 = vrot.lane.b32.xlu0 %v506, 96
        %v1471 = vpop.permute.xlu0 %1470
        %1472 = vrot.lane.b32.xlu0 %v508, 96
        %v1473 = vpop.permute.xlu0 %1472
        %1474 = vrot.lane.b32.xlu0 %v509, 96
        %v1475 = vpop.permute.xlu0 %1474
        %1476 = vrot.lane.b32.xlu0 %v511, 96
        %v1477 = vpop.permute.xlu0 %1476
        %1478 = vrot.lane.b32.xlu0 %v512, 96
        %v1479 = vpop.permute.xlu0 %1478
        %vm1512 = vcmask 917248
        %1513 = vst.msk [vmem:[#allocation3] sm:$0xff] %vm1512, %v1417
        %1514 = vst.msk [vmem:[#allocation3 + $0x10] sm:$0xff] %vm1512, %v1419
        %1515 = vst.msk [vmem:[#allocation3 + $0x20] sm:$0xff] %vm1512, %v1421
        %1516 = vst.msk [vmem:[#allocation3 + $0x30] sm:$0xff] %vm1512, %v1423
        %1517 = vst.msk [vmem:[#allocation3 + $0x40] sm:$0xff] %vm1512, %v1425
        %1518 = vst.msk [vmem:[#allocation3 + $0x50] sm:$0xff] %vm1512, %v1427
        %1519 = vst.msk [vmem:[#allocation3 + $0x60] sm:$0xff] %vm1512, %v1429
        %1520 = vst.msk [vmem:[#allocation3 + $0x70] sm:$0xff] %vm1512, %v1431
        %1521 = vst.msk [vmem:[#allocation3 + $0x80] sm:$0xff] %vm1512, %v1433
        %1522 = vst.msk [vmem:[#allocation3 + $0x90] sm:$0xff] %vm1512, %v1435
        %1523 = vst.msk [vmem:[#allocation3 + $0xa0] sm:$0xff] %vm1512, %v1437
        %1524 = vst.msk [vmem:[#allocation3 + $0xb0] sm:$0xff] %vm1512, %v1439
        %1525 = vst.msk [vmem:[#allocation3 + $0xc0] sm:$0xff] %vm1512, %v1441
        %1526 = vst.msk [vmem:[#allocation3 + $0xd0] sm:$0xff] %vm1512, %v1443
        %1527 = vst.msk [vmem:[#allocation3 + $0xe0] sm:$0xff] %vm1512, %v1445
        %1528 = vst.msk [vmem:[#allocation3 + $0xf0] sm:$0xff] %vm1512, %v1447
        %1529 = vst.msk [vmem:[#allocation3 + $0x100] sm:$0xff] %vm1512, %v1449
        %1530 = vst.msk [vmem:[#allocation3 + $0x110] sm:$0xff] %vm1512, %v1451
        %1531 = vst.msk [vmem:[#allocation3 + $0x120] sm:$0xff] %vm1512, %v1453
        %1532 = vst.msk [vmem:[#allocation3 + $0x130] sm:$0xff] %vm1512, %v1455
        %1533 = vst.msk [vmem:[#allocation3 + $0x140] sm:$0xff] %vm1512, %v1457
        %1534 = vst.msk [vmem:[#allocation3 + $0x150] sm:$0xff] %vm1512, %v1459
        %1535 = vst.msk [vmem:[#allocation3 + $0x160] sm:$0xff] %vm1512, %v1461
        %1536 = vst.msk [vmem:[#allocation3 + $0x170] sm:$0xff] %vm1512, %v1463
        %1537 = vst.msk [vmem:[#allocation3 + $0x180] sm:$0xff] %vm1512, %v1465
        %1538 = vst.msk [vmem:[#allocation3 + $0x190] sm:$0xff] %vm1512, %v1467
        %1539 = vst.msk [vmem:[#allocation3 + $0x1a0] sm:$0xff] %vm1512, %v1469
        %1540 = vst.msk [vmem:[#allocation3 + $0x1b0] sm:$0xff] %vm1512, %v1471
        %1541 = vst.msk [vmem:[#allocation3 + $0x1c0] sm:$0xff] %vm1512, %v1473
        %1542 = vst.msk [vmem:[#allocation3 + $0x1d0] sm:$0xff] %vm1512, %v1475
        %1543 = vst.msk [vmem:[#allocation3 + $0x1e0] sm:$0xff] %vm1512, %v1477
        %1544 = vst.msk [vmem:[#allocation3 + $0x1f0] sm:$0xff] %vm1512, %v1479
        %v1546 = vrot.slane %v511, 1
        %v1547 = vrot.slane %v512, 1
        %v1548 = vsel %vm594, %v1546, %v1547
        %v1549 = vrot.slane %v513, 1
        %v1550 = vsel %vm594, %v1547, %v1549
        %1551 = vrot.lane.b32.xlu0 %v607, 112
        %v1552 = vpop.permute.xlu0 %1551
        %1553 = vrot.lane.b32.xlu0 %v609, 112
        %v1554 = vpop.permute.xlu0 %1553
        %1555 = vrot.lane.b32.xlu0 %v612, 112
        %v1556 = vpop.permute.xlu0 %1555
        %1557 = vrot.lane.b32.xlu0 %v614, 112
        %v1558 = vpop.permute.xlu0 %1557
        %1559 = vrot.lane.b32.xlu0 %v617, 112
        %v1560 = vpop.permute.xlu0 %1559
        %1561 = vrot.lane.b32.xlu0 %v619, 112
        %v1562 = vpop.permute.xlu0 %1561
        %1563 = vrot.lane.b32.xlu0 %v622, 112
        %v1564 = vpop.permute.xlu0 %1563
        %1565 = vrot.lane.b32.xlu0 %v624, 112
        %v1566 = vpop.permute.xlu0 %1565
        %1567 = vrot.lane.b32.xlu0 %v627, 112
        %v1568 = vpop.permute.xlu0 %1567
        %1569 = vrot.lane.b32.xlu0 %v629, 112
        %v1570 = vpop.permute.xlu0 %1569
        %1571 = vrot.lane.b32.xlu0 %v632, 112
        %v1572 = vpop.permute.xlu0 %1571
        %1573 = vrot.lane.b32.xlu0 %v634, 112
        %v1574 = vpop.permute.xlu0 %1573
        %1575 = vrot.lane.b32.xlu0 %v637, 112
        %v1576 = vpop.permute.xlu0 %1575
        %1577 = vrot.lane.b32.xlu0 %v639, 112
        %v1578 = vpop.permute.xlu0 %1577
        %1579 = vrot.lane.b32.xlu0 %v642, 112
        %v1580 = vpop.permute.xlu0 %1579
        %1581 = vrot.lane.b32.xlu0 %v644, 112
        %v1582 = vpop.permute.xlu0 %1581
        %1583 = vrot.lane.b32.xlu0 %v647, 112
        %v1584 = vpop.permute.xlu0 %1583
        %1585 = vrot.lane.b32.xlu0 %v649, 112
        %v1586 = vpop.permute.xlu0 %1585
        %1587 = vrot.lane.b32.xlu0 %v652, 112
        %v1588 = vpop.permute.xlu0 %1587
        %1589 = vrot.lane.b32.xlu0 %v654, 112
        %v1590 = vpop.permute.xlu0 %1589
        %1591 = vrot.lane.b32.xlu0 %v657, 112
        %v1592 = vpop.permute.xlu0 %1591
        %1593 = vrot.lane.b32.xlu0 %v659, 112
        %v1594 = vpop.permute.xlu0 %1593
        %1595 = vrot.lane.b32.xlu0 %v662, 112
        %v1596 = vpop.permute.xlu0 %1595
        %1597 = vrot.lane.b32.xlu0 %v664, 112
        %v1598 = vpop.permute.xlu0 %1597
        %1599 = vrot.lane.b32.xlu0 %v667, 112
        %v1600 = vpop.permute.xlu0 %1599
        %1601 = vrot.lane.b32.xlu0 %v669, 112
        %v1602 = vpop.permute.xlu0 %1601
        %1603 = vrot.lane.b32.xlu0 %v672, 112
        %v1604 = vpop.permute.xlu0 %1603
        %1605 = vrot.lane.b32.xlu0 %v674, 112
        %v1606 = vpop.permute.xlu0 %1605
        %1607 = vrot.lane.b32.xlu0 %v1148, 112
        %v1608 = vpop.permute.xlu0 %1607
        %1609 = vrot.lane.b32.xlu0 %v1150, 112
        %v1610 = vpop.permute.xlu0 %1609
        %1611 = vrot.lane.b32.xlu0 %v1548, 112
        %v1612 = vpop.permute.xlu0 %1611
        %1613 = vrot.lane.b32.xlu0 %v1550, 112
        %v1614 = vpop.permute.xlu0 %1613
        %vm1647 = vcmask 1048448
        %1648 = vst.msk [vmem:[#allocation3] sm:$0xff] %vm1647, %v1552
        %1649 = vst.msk [vmem:[#allocation3 + $0x10] sm:$0xff] %vm1647, %v1554
        %1650 = vst.msk [vmem:[#allocation3 + $0x20] sm:$0xff] %vm1647, %v1556
        %1651 = vst.msk [vmem:[#allocation3 + $0x30] sm:$0xff] %vm1647, %v1558
        %1652 = vst.msk [vmem:[#allocation3 + $0x40] sm:$0xff] %vm1647, %v1560
        %1653 = vst.msk [vmem:[#allocation3 + $0x50] sm:$0xff] %vm1647, %v1562
        %1654 = vst.msk [vmem:[#allocation3 + $0x60] sm:$0xff] %vm1647, %v1564
        %1655 = vst.msk [vmem:[#allocation3 + $0x70] sm:$0xff] %vm1647, %v1566
        %1656 = vst.msk [vmem:[#allocation3 + $0x80] sm:$0xff] %vm1647, %v1568
        %1657 = vst.msk [vmem:[#allocation3 + $0x90] sm:$0xff] %vm1647, %v1570
        %1658 = vst.msk [vmem:[#allocation3 + $0xa0] sm:$0xff] %vm1647, %v1572
        %1659 = vst.msk [vmem:[#allocation3 + $0xb0] sm:$0xff] %vm1647, %v1574
        %1660 = vst.msk [vmem:[#allocation3 + $0xc0] sm:$0xff] %vm1647, %v1576
        %1661 = vst.msk [vmem:[#allocation3 + $0xd0] sm:$0xff] %vm1647, %v1578
        %1662 = vst.msk [vmem:[#allocation3 + $0xe0] sm:$0xff] %vm1647, %v1580
        %1663 = vst.msk [vmem:[#allocation3 + $0xf0] sm:$0xff] %vm1647, %v1582
        %1664 = vst.msk [vmem:[#allocation3 + $0x100] sm:$0xff] %vm1647, %v1584
        %1665 = vst.msk [vmem:[#allocation3 + $0x110] sm:$0xff] %vm1647, %v1586
        %1666 = vst.msk [vmem:[#allocation3 + $0x120] sm:$0xff] %vm1647, %v1588
        %1667 = vst.msk [vmem:[#allocation3 + $0x130] sm:$0xff] %vm1647, %v1590
        %1668 = vst.msk [vmem:[#allocation3 + $0x140] sm:$0xff] %vm1647, %v1592
        %1669 = vst.msk [vmem:[#allocation3 + $0x150] sm:$0xff] %vm1647, %v1594
        %1670 = vst.msk [vmem:[#allocation3 + $0x160] sm:$0xff] %vm1647, %v1596
        %1671 = vst.msk [vmem:[#allocation3 + $0x170] sm:$0xff] %vm1647, %v1598
        %1672 = vst.msk [vmem:[#allocation3 + $0x180] sm:$0xff] %vm1647, %v1600
        %1673 = vst.msk [vmem:[#allocation3 + $0x190] sm:$0xff] %vm1647, %v1602
        %1674 = vst.msk [vmem:[#allocation3 + $0x1a0] sm:$0xff] %vm1647, %v1604
        %1675 = vst.msk [vmem:[#allocation3 + $0x1b0] sm:$0xff] %vm1647, %v1606
        %1676 = vst.msk [vmem:[#allocation3 + $0x1c0] sm:$0xff] %vm1647, %v1608
        %1677 = vst.msk [vmem:[#allocation3 + $0x1d0] sm:$0xff] %vm1647, %v1610
        %1678 = vst.msk [vmem:[#allocation3 + $0x1e0] sm:$0xff] %vm1647, %v1612
        %1679 = vst.msk [vmem:[#allocation3 + $0x1f0] sm:$0xff] %vm1647, %v1614
        %v1680 = vrot.slane %v511, 2
        %v1681 = vrot.slane %v512, 2
        %v1682 = vsel %vm804, %v1680, %v1681
        %v1683 = vrot.slane %v513, 2
        %v1684 = vsel %vm804, %v1681, %v1683
        %1717 = vst.msk [vmem:[#allocation3 + $0x8] sm:$0xff] %vm277, %v817
        %1718 = vst.msk [vmem:[#allocation3 + $0x18] sm:$0xff] %vm277, %v819
        %1719 = vst.msk [vmem:[#allocation3 + $0x28] sm:$0xff] %vm277, %v822
        %1720 = vst.msk [vmem:[#allocation3 + $0x38] sm:$0xff] %vm277, %v824
        %1721 = vst.msk [vmem:[#allocation3 + $0x48] sm:$0xff] %vm277, %v827
        %1722 = vst.msk [vmem:[#allocation3 + $0x58] sm:$0xff] %vm277, %v829
        %1723 = vst.msk [vmem:[#allocation3 + $0x68] sm:$0xff] %vm277, %v832
        %1724 = vst.msk [vmem:[#allocation3 + $0x78] sm:$0xff] %vm277, %v834
        %1725 = vst.msk [vmem:[#allocation3 + $0x88] sm:$0xff] %vm277, %v837
        %1726 = vst.msk [vmem:[#allocation3 + $0x98] sm:$0xff] %vm277, %v839
        %1727 = vst.msk [vmem:[#allocation3 + $0xa8] sm:$0xff] %vm277, %v842
        %1728 = vst.msk [vmem:[#allocation3 + $0xb8] sm:$0xff] %vm277, %v844
        %1729 = vst.msk [vmem:[#allocation3 + $0xc8] sm:$0xff] %vm277, %v847
        %1730 = vst.msk [vmem:[#allocation3 + $0xd8] sm:$0xff] %vm277, %v849
        %1731 = vst.msk [vmem:[#allocation3 + $0xe8] sm:$0xff] %vm277, %v852
        %1732 = vst.msk [vmem:[#allocation3 + $0xf8] sm:$0xff] %vm277, %v854
        %1733 = vst.msk [vmem:[#allocation3 + $0x108] sm:$0xff] %vm277, %v857
        %1734 = vst.msk [vmem:[#allocation3 + $0x118] sm:$0xff] %vm277, %v859
        %1735 = vst.msk [vmem:[#allocation3 + $0x128] sm:$0xff] %vm277, %v862
        %1736 = vst.msk [vmem:[#allocation3 + $0x138] sm:$0xff] %vm277, %v864
        %1737 = vst.msk [vmem:[#allocation3 + $0x148] sm:$0xff] %vm277, %v867
        %1738 = vst.msk [vmem:[#allocation3 + $0x158] sm:$0xff] %vm277, %v869
        %1739 = vst.msk [vmem:[#allocation3 + $0x168] sm:$0xff] %vm277, %v872
        %1740 = vst.msk [vmem:[#allocation3 + $0x178] sm:$0xff] %vm277, %v874
        %1741 = vst.msk [vmem:[#allocation3 + $0x188] sm:$0xff] %vm277, %v877
        %1742 = vst.msk [vmem:[#allocation3 + $0x198] sm:$0xff] %vm277, %v879
        %1743 = vst.msk [vmem:[#allocation3 + $0x1a8] sm:$0xff] %vm277, %v882
        %1744 = vst.msk [vmem:[#allocation3 + $0x1b8] sm:$0xff] %vm277, %v884
        %1745 = vst.msk [vmem:[#allocation3 + $0x1c8] sm:$0xff] %vm277, %v1282
        %1746 = vst.msk [vmem:[#allocation3 + $0x1d8] sm:$0xff] %vm277, %v1284
        %1747 = vst.msk [vmem:[#allocation3 + $0x1e8] sm:$0xff] %vm277, %v1682
        %1748 = vst.msk [vmem:[#allocation3 + $0x1f8] sm:$0xff] %vm277, %v1684
        %v1749 = vld [vmem:[#allocation3] sm:$0xff]
        %v1750 = vld [vmem:[#allocation3 + $0x8] sm:$0xff]
        %v1751 = vld [vmem:[#allocation3 + $0x10] sm:$0xff]
        %v1752 = vld [vmem:[#allocation3 + $0x18] sm:$0xff]
        %v1753 = vld [vmem:[#allocation3 + $0x20] sm:$0xff]
        %v1754 = vld [vmem:[#allocation3 + $0x28] sm:$0xff]
        %v1755 = vld [vmem:[#allocation3 + $0x30] sm:$0xff]
        %v1756 = vld [vmem:[#allocation3 + $0x38] sm:$0xff]
        %v1757 = vld [vmem:[#allocation3 + $0x40] sm:$0xff]
        %v1758 = vld [vmem:[#allocation3 + $0x48] sm:$0xff]
        %v1759 = vld [vmem:[#allocation3 + $0x50] sm:$0xff]
        %v1760 = vld [vmem:[#allocation3 + $0x58] sm:$0xff]
        %v1761 = vld [vmem:[#allocation3 + $0x60] sm:$0xff]
        %v1762 = vld [vmem:[#allocation3 + $0x68] sm:$0xff]
        %v1763 = vld [vmem:[#allocation3 + $0x70] sm:$0xff]
        %v1764 = vld [vmem:[#allocation3 + $0x78] sm:$0xff]
        %v1765 = vld [vmem:[#allocation3 + $0x80] sm:$0xff]
        %v1766 = vld [vmem:[#allocation3 + $0x88] sm:$0xff]
        %v1767 = vld [vmem:[#allocation3 + $0x90] sm:$0xff]
        %v1768 = vld [vmem:[#allocation3 + $0x98] sm:$0xff]
        %v1769 = vld [vmem:[#allocation3 + $0xa0] sm:$0xff]
        %v1770 = vld [vmem:[#allocation3 + $0xa8] sm:$0xff]
        %v1771 = vld [vmem:[#allocation3 + $0xb0] sm:$0xff]
        %v1772 = vld [vmem:[#allocation3 + $0xb8] sm:$0xff]
        %v1773 = vld [vmem:[#allocation3 + $0xc0] sm:$0xff]
        %v1774 = vld [vmem:[#allocation3 + $0xc8] sm:$0xff]
        %v1775 = vld [vmem:[#allocation3 + $0xd0] sm:$0xff]
        %v1776 = vld [vmem:[#allocation3 + $0xd8] sm:$0xff]
        %v1777 = vld [vmem:[#allocation3 + $0xe0] sm:$0xff]
        %v1778 = vld [vmem:[#allocation3 + $0xe8] sm:$0xff]
        %v1779 = vld [vmem:[#allocation3 + $0xf0] sm:$0xff]
        %v1780 = vld [vmem:[#allocation3 + $0xf8] sm:$0xff]
        %v1781 = vld [vmem:[#allocation3 + $0x100] sm:$0xff]
        %v1782 = vld [vmem:[#allocation3 + $0x108] sm:$0xff]
        %v1783 = vld [vmem:[#allocation3 + $0x110] sm:$0xff]
        %v1784 = vld [vmem:[#allocation3 + $0x118] sm:$0xff]
        %v1785 = vld [vmem:[#allocation3 + $0x120] sm:$0xff]
        %v1786 = vld [vmem:[#allocation3 + $0x128] sm:$0xff]
        %v1787 = vld [vmem:[#allocation3 + $0x130] sm:$0xff]
        %v1788 = vld [vmem:[#allocation3 + $0x138] sm:$0xff]
        %v1789 = vld [vmem:[#allocation3 + $0x140] sm:$0xff]
        %v1790 = vld [vmem:[#allocation3 + $0x148] sm:$0xff]
        %v1791 = vld [vmem:[#allocation3 + $0x150] sm:$0xff]
        %v1792 = vld [vmem:[#allocation3 + $0x158] sm:$0xff]
        %v1793 = vld [vmem:[#allocation3 + $0x160] sm:$0xff]
        %v1794 = vld [vmem:[#allocation3 + $0x168] sm:$0xff]
        %v1795 = vld [vmem:[#allocation3 + $0x170] sm:$0xff]
        %v1796 = vld [vmem:[#allocation3 + $0x178] sm:$0xff]
        %v1797 = vld [vmem:[#allocation3 + $0x180] sm:$0xff]
        %v1798 = vld [vmem:[#allocation3 + $0x188] sm:$0xff]
        %v1799 = vld [vmem:[#allocation3 + $0x190] sm:$0xff]
        %v1800 = vld [vmem:[#allocation3 + $0x198] sm:$0xff]
        %v1801 = vld [vmem:[#allocation3 + $0x1a0] sm:$0xff]
        %v1802 = vld [vmem:[#allocation3 + $0x1a8] sm:$0xff]
        %v1803 = vld [vmem:[#allocation3 + $0x1b0] sm:$0xff]
        %v1804 = vld [vmem:[#allocation3 + $0x1b8] sm:$0xff]
        %v1805 = vld [vmem:[#allocation3 + $0x1c0] sm:$0xff]
        %v1806 = vld [vmem:[#allocation3 + $0x1c8] sm:$0xff]
        %v1807 = vld [vmem:[#allocation3 + $0x1d0] sm:$0xff]
        %v1808 = vld [vmem:[#allocation3 + $0x1d8] sm:$0xff]
        %v1809 = vld [vmem:[#allocation3 + $0x1e0] sm:$0xff]
        %v1810 = vld [vmem:[#allocation3 + $0x1e8] sm:$0xff]
        %v1811 = vld [vmem:[#allocation3 + $0x1f0] sm:$0xff]
        %v1812 = vld [vmem:[#allocation3 + $0x1f8] sm:$0xff]
        %v1813 = vld [vmem:[%s1] sm:$0xff]
        %v1814 = vld [vmem:[%s1 + $0x8] sm:$0xff]
        %v1815 = vld [vmem:[%s1 + $0x10] sm:$0xff]
        %v1816 = vld [vmem:[%s1 + $0x18] sm:$0xff]
        %v1817 = vld [vmem:[%s1 + $0x20] sm:$0xff]
        %v1818 = vld [vmem:[%s1 + $0x28] sm:$0xff]
        %v1819 = vld [vmem:[%s1 + $0x30] sm:$0xff]
        %v1820 = vld [vmem:[%s1 + $0x38] sm:$0xff]
        %v1821 = vld [vmem:[%s1 + $0x40] sm:$0xff]
        %v1822 = vld [vmem:[%s1 + $0x48] sm:$0xff]
        %v1823 = vld [vmem:[%s1 + $0x50] sm:$0xff]
        %v1824 = vld [vmem:[%s1 + $0x58] sm:$0xff]
        %v1825 = vld [vmem:[%s1 + $0x60] sm:$0xff]
        %v1826 = vld [vmem:[%s1 + $0x68] sm:$0xff]
        %v1827 = vld [vmem:[%s1 + $0x70] sm:$0xff]
        %v1828 = vld [vmem:[%s1 + $0x78] sm:$0xff]
        %v1829 = vld [vmem:[%s1 + $0x80] sm:$0xff]
        %v1830 = vld [vmem:[%s1 + $0x88] sm:$0xff]
        %v1831 = vld [vmem:[%s2] sm:$0x1]
        %v1833 = vperm.slane %v1831, 0
        %v1836 = vsel %vm277, %v1750, 0
        %v1839 = vsel %vm277, %v1752, 0
        %v1842 = vsel %vm277, %v1754, 0
        %v1845 = vsel %vm277, %v1756, 0
        %v1848 = vsel %vm277, %v1758, 0
        %v1851 = vsel %vm277, %v1760, 0
        %v1854 = vsel %vm277, %v1762, 0
        %v1857 = vsel %vm277, %v1764, 0
        %v1860 = vsel %vm277, %v1766, 0
        %v1863 = vsel %vm277, %v1768, 0
        %v1866 = vsel %vm277, %v1770, 0
        %v1869 = vsel %vm277, %v1772, 0
        %v1872 = vsel %vm277, %v1774, 0
        %v1875 = vsel %vm277, %v1776, 0
        %v1878 = vsel %vm277, %v1778, 0
        %v1881 = vsel %vm277, %v1780, 0
        %v1884 = vsel %vm277, %v1782, 0
        %v1887 = vsel %vm277, %v1784, 0
        %v1890 = vsel %vm277, %v1786, 0
        %v1893 = vsel %vm277, %v1788, 0
        %v1896 = vsel %vm277, %v1790, 0
        %v1899 = vsel %vm277, %v1792, 0
        %v1902 = vsel %vm277, %v1794, 0
        %v1905 = vsel %vm277, %v1796, 0
        %v1908 = vsel %vm277, %v1798, 0
        %v1911 = vsel %vm277, %v1800, 0
        %v1914 = vsel %vm277, %v1802, 0
        %v1917 = vsel %vm277, %v1804, 0
        %v1920 = vsel %vm277, %v1806, 0
        %v1923 = vsel %vm277, %v1808, 0
        %v1926 = vsel %vm277, %v1810, 0
        %v1929 = vsel %vm277, %v1812, 0
        %1931 = vmatpush.msra.mxu0 %v1828
        %1932 = vmatpush.msra.mxu0 %v1827
        %1933 = vmatpush.msra.mxu0 %v1826
        %1934 = vmatpush.msra.mxu0 %v1825
        %1935 = vmatpush.msra.mxu0 %v1824
        %1936 = vmatpush.msra.mxu0 %v1823
        %1937 = vmatpush.msra.mxu0 %v1822
        %1938 = vmatpush.msra.mxu0 %v1821
        %1939 = vmatpush.msra.mxu0 %v1820
        %1940 = vmatpush.msra.mxu0 %v1819
        %1941 = vmatpush.msra.mxu0 %v1818
        %1942 = vmatpush.msra.mxu0 %v1817
        %1943 = vmatpush.msra.mxu0 %v1816
        %1944 = vmatpush.msra.mxu0 %v1815
        %1945 = vmatpush.msra.mxu0 %v1814
        %1946 = vmatpush.msra.mxu0 %v1813
        %1947 = vmatmul.f32.gmra.mxu0 %v1749
        %v1948 = vpop.f32.mrf.mxu0
        %v1949 = vadd.f32 %v1833, %v1948
        %1950 = vmatmul.f32.gmra.mxu0 %v1751
        %v1951 = vpop.f32.mrf.mxu0
        %v1952 = vadd.f32 %v1833, %v1951
        %1953 = vmatmul.f32.gmra.mxu0 %v1753
        %v1954 = vpop.f32.mrf.mxu0
        %v1955 = vadd.f32 %v1833, %v1954
        %1956 = vmatmul.f32.gmra.mxu0 %v1755
        %v1957 = vpop.f32.mrf.mxu0
        %v1958 = vadd.f32 %v1833, %v1957
        %1959 = vmatmul.f32.gmra.mxu0 %v1757
        %v1960 = vpop.f32.mrf.mxu0
        %v1961 = vadd.f32 %v1833, %v1960
        %1962 = vmatmul.f32.gmra.mxu0 %v1759
        %v1963 = vpop.f32.mrf.mxu0
        %v1964 = vadd.f32 %v1833, %v1963
        %1965 = vmatmul.f32.gmra.mxu0 %v1761
        %v1966 = vpop.f32.mrf.mxu0
        %v1967 = vadd.f32 %v1833, %v1966
        %1968 = vmatmul.f32.gmra.mxu0 %v1763
        %v1969 = vpop.f32.mrf.mxu0
        %v1970 = vadd.f32 %v1833, %v1969
        %1971 = vmatmul.f32.gmra.mxu0 %v1765
        %v1972 = vpop.f32.mrf.mxu0
        %v1973 = vadd.f32 %v1833, %v1972
        %1974 = vmatmul.f32.gmra.mxu0 %v1767
        %v1975 = vpop.f32.mrf.mxu0
        %v1976 = vadd.f32 %v1833, %v1975
        %1977 = vmatmul.f32.gmra.mxu0 %v1769
        %v1978 = vpop.f32.mrf.mxu0
        %v1979 = vadd.f32 %v1833, %v1978
        %1980 = vmatmul.f32.gmra.mxu0 %v1771
        %v1981 = vpop.f32.mrf.mxu0
        %v1982 = vadd.f32 %v1833, %v1981
        %1983 = vmatmul.f32.gmra.mxu0 %v1773
        %v1984 = vpop.f32.mrf.mxu0
        %v1985 = vadd.f32 %v1833, %v1984
        %1986 = vmatmul.f32.gmra.mxu0 %v1775
        %v1987 = vpop.f32.mrf.mxu0
        %v1988 = vadd.f32 %v1833, %v1987
        %1989 = vmatmul.f32.gmra.mxu0 %v1777
        %v1990 = vpop.f32.mrf.mxu0
        %v1991 = vadd.f32 %v1833, %v1990
        %1992 = vmatmul.f32.gmra.mxu0 %v1779
        %v1993 = vpop.f32.mrf.mxu0
        %v1994 = vadd.f32 %v1833, %v1993
        %1995 = vmatmul.f32.gmra.mxu0 %v1781
        %v1996 = vpop.f32.mrf.mxu0
        %v1997 = vadd.f32 %v1833, %v1996
        %1998 = vmatmul.f32.gmra.mxu0 %v1783
        %v1999 = vpop.f32.mrf.mxu0
        %v2000 = vadd.f32 %v1833, %v1999
        %2001 = vmatmul.f32.gmra.mxu0 %v1785
        %v2002 = vpop.f32.mrf.mxu0
        %v2003 = vadd.f32 %v1833, %v2002
        %2004 = vmatmul.f32.gmra.mxu0 %v1787
        %v2005 = vpop.f32.mrf.mxu0
        %v2006 = vadd.f32 %v1833, %v2005
        %2007 = vmatmul.f32.gmra.mxu0 %v1789
        %v2008 = vpop.f32.mrf.mxu0
        %v2009 = vadd.f32 %v1833, %v2008
        %2010 = vmatmul.f32.gmra.mxu0 %v1791
        %v2011 = vpop.f32.mrf.mxu0
        %v2012 = vadd.f32 %v1833, %v2011
        %2013 = vmatmul.f32.gmra.mxu0 %v1793
        %v2014 = vpop.f32.mrf.mxu0
        %v2015 = vadd.f32 %v1833, %v2014
        %2016 = vmatmul.f32.gmra.mxu0 %v1795
        %v2017 = vpop.f32.mrf.mxu0
        %v2018 = vadd.f32 %v1833, %v2017
        %2019 = vmatmul.f32.gmra.mxu0 %v1797
        %v2020 = vpop.f32.mrf.mxu0
        %v2021 = vadd.f32 %v1833, %v2020
        %2022 = vmatmul.f32.gmra.mxu0 %v1799
        %v2023 = vpop.f32.mrf.mxu0
        %v2024 = vadd.f32 %v1833, %v2023
        %2025 = vmatmul.f32.gmra.mxu0 %v1801
        %v2026 = vpop.f32.mrf.mxu0
        %v2027 = vadd.f32 %v1833, %v2026
        %2028 = vmatmul.f32.gmra.mxu0 %v1803
        %v2029 = vpop.f32.mrf.mxu0
        %v2030 = vadd.f32 %v1833, %v2029
        %2031 = vmatmul.f32.gmra.mxu0 %v1805
        %v2032 = vpop.f32.mrf.mxu0
        %v2033 = vadd.f32 %v1833, %v2032
        %2034 = vmatmul.f32.gmra.mxu0 %v1807
        %v2035 = vpop.f32.mrf.mxu0
        %v2036 = vadd.f32 %v1833, %v2035
        %2037 = vmatmul.f32.gmra.mxu0 %v1809
        %v2038 = vpop.f32.mrf.mxu0
        %v2039 = vadd.f32 %v1833, %v2038
        %2040 = vmatmul.f32.gmra.mxu0 %v1811
        %v2041 = vpop.f32.mrf.mxu0
        %v2042 = vadd.f32 %v1833, %v2041
        %2043 = vdwg.mxu0
        %2044 = vmatpush.msra.mxu0 0.0
        %2045 = vmatpush.msra.mxu0 0.0
        %2046 = vmatpush.msra.mxu0 0.0
        %2047 = vmatpush.msra.mxu0 0.0
        %2048 = vmatpush.msra.mxu0 0.0
        %2049 = vmatpush.msra.mxu0 0.0
        %2050 = vmatpush.msra.mxu0 0.0
        %2051 = vmatpush.msra.mxu0 0.0
        %2052 = vmatpush.msra.mxu0 0.0
        %2053 = vmatpush.msra.mxu0 0.0
        %2054 = vmatpush.msra.mxu0 0.0
        %2055 = vmatpush.msra.mxu0 0.0
        %2056 = vmatpush.msra.mxu0 0.0
        %2057 = vmatpush.msra.mxu0 0.0
        %2058 = vmatpush.msra.mxu0 %v1830
        %2059 = vmatpush.msra.mxu0 %v1829
        %2060 = vmatmul.f32.gmra.mxu0 %v1836
        %v2061 = vpop.f32.mrf.mxu0
        %v2062 = vadd.f32 %v1949, %v2061
        %2063 = vmatmul.f32.gmra.mxu0 %v1839
        %v2064 = vpop.f32.mrf.mxu0
        %v2065 = vadd.f32 %v1952, %v2064
        %2066 = vmatmul.f32.gmra.mxu0 %v1842
        %v2067 = vpop.f32.mrf.mxu0
        %v2068 = vadd.f32 %v1955, %v2067
        %2069 = vmatmul.f32.gmra.mxu0 %v1845
        %v2070 = vpop.f32.mrf.mxu0
        %v2071 = vadd.f32 %v1958, %v2070
        %2072 = vmatmul.f32.gmra.mxu0 %v1848
        %v2073 = vpop.f32.mrf.mxu0
        %v2074 = vadd.f32 %v1961, %v2073
        %2075 = vmatmul.f32.gmra.mxu0 %v1851
        %v2076 = vpop.f32.mrf.mxu0
        %v2077 = vadd.f32 %v1964, %v2076
        %2078 = vmatmul.f32.gmra.mxu0 %v1854
        %v2079 = vpop.f32.mrf.mxu0
        %v2080 = vadd.f32 %v1967, %v2079
        %2081 = vmatmul.f32.gmra.mxu0 %v1857
        %v2082 = vpop.f32.mrf.mxu0
        %v2083 = vadd.f32 %v1970, %v2082
        %2084 = vmatmul.f32.gmra.mxu0 %v1860
        %v2085 = vpop.f32.mrf.mxu0
        %v2086 = vadd.f32 %v1973, %v2085
        %2087 = vmatmul.f32.gmra.mxu0 %v1863
        %v2088 = vpop.f32.mrf.mxu0
        %v2089 = vadd.f32 %v1976, %v2088
        %2090 = vmatmul.f32.gmra.mxu0 %v1866
        %v2091 = vpop.f32.mrf.mxu0
        %v2092 = vadd.f32 %v1979, %v2091
        %2093 = vmatmul.f32.gmra.mxu0 %v1869
        %v2094 = vpop.f32.mrf.mxu0
        %v2095 = vadd.f32 %v1982, %v2094
        %2096 = vmatmul.f32.gmra.mxu0 %v1872
        %v2097 = vpop.f32.mrf.mxu0
        %v2098 = vadd.f32 %v1985, %v2097
        %2099 = vmatmul.f32.gmra.mxu0 %v1875
        %v2100 = vpop.f32.mrf.mxu0
        %v2101 = vadd.f32 %v1988, %v2100
        %2102 = vmatmul.f32.gmra.mxu0 %v1878
        %v2103 = vpop.f32.mrf.mxu0
        %v2104 = vadd.f32 %v1991, %v2103
        %2105 = vmatmul.f32.gmra.mxu0 %v1881
        %v2106 = vpop.f32.mrf.mxu0
        %v2107 = vadd.f32 %v1994, %v2106
        %2108 = vmatmul.f32.gmra.mxu0 %v1884
        %v2109 = vpop.f32.mrf.mxu0
        %v2110 = vadd.f32 %v1997, %v2109
        %2111 = vmatmul.f32.gmra.mxu0 %v1887
        %v2112 = vpop.f32.mrf.mxu0
        %v2113 = vadd.f32 %v2000, %v2112
        %2114 = vmatmul.f32.gmra.mxu0 %v1890
        %v2115 = vpop.f32.mrf.mxu0
        %v2116 = vadd.f32 %v2003, %v2115
        %2117 = vmatmul.f32.gmra.mxu0 %v1893
        %v2118 = vpop.f32.mrf.mxu0
        %v2119 = vadd.f32 %v2006, %v2118
        %2120 = vmatmul.f32.gmra.mxu0 %v1896
        %v2121 = vpop.f32.mrf.mxu0
        %v2122 = vadd.f32 %v2009, %v2121
        %2123 = vmatmul.f32.gmra.mxu0 %v1899
        %v2124 = vpop.f32.mrf.mxu0
        %v2125 = vadd.f32 %v2012, %v2124
        %2126 = vmatmul.f32.gmra.mxu0 %v1902
        %v2127 = vpop.f32.mrf.mxu0
        %v2128 = vadd.f32 %v2015, %v2127
        %2129 = vmatmul.f32.gmra.mxu0 %v1905
        %v2130 = vpop.f32.mrf.mxu0
        %v2131 = vadd.f32 %v2018, %v2130
        %2132 = vmatmul.f32.gmra.mxu0 %v1908
        %v2133 = vpop.f32.mrf.mxu0
        %v2134 = vadd.f32 %v2021, %v2133
        %2135 = vmatmul.f32.gmra.mxu0 %v1911
        %v2136 = vpop.f32.mrf.mxu0
        %v2137 = vadd.f32 %v2024, %v2136
        %2138 = vmatmul.f32.gmra.mxu0 %v1914
        %v2139 = vpop.f32.mrf.mxu0
        %v2140 = vadd.f32 %v2027, %v2139
        %2141 = vmatmul.f32.gmra.mxu0 %v1917
        %v2142 = vpop.f32.mrf.mxu0
        %v2143 = vadd.f32 %v2030, %v2142
        %2144 = vmatmul.f32.gmra.mxu0 %v1920
        %v2145 = vpop.f32.mrf.mxu0
        %v2146 = vadd.f32 %v2033, %v2145
        %2147 = vmatmul.f32.gmra.mxu0 %v1923
        %v2148 = vpop.f32.mrf.mxu0
        %v2149 = vadd.f32 %v2036, %v2148
        %2150 = vmatmul.f32.gmra.mxu0 %v1926
        %v2151 = vpop.f32.mrf.mxu0
        %v2152 = vadd.f32 %v2039, %v2151
        %2153 = vmatmul.f32.gmra.mxu0 %v1929
        %v2154 = vpop.f32.mrf.mxu0
        %v2155 = vadd.f32 %v2042, %v2154
        %2156 = vdwg.mxu0
        %v2157 = vmax.f32 %v2062, 0.0
        %v2158 = vmax.f32 %v2065, 0.0
        %v2159 = vmax.f32 %v2068, 0.0
        %v2160 = vmax.f32 %v2071, 0.0
        %v2161 = vmax.f32 %v2074, 0.0
        %v2162 = vmax.f32 %v2077, 0.0
        %v2163 = vmax.f32 %v2080, 0.0
        %v2164 = vmax.f32 %v2083, 0.0
        %v2165 = vmax.f32 %v2086, 0.0
        %v2166 = vmax.f32 %v2089, 0.0
        %v2167 = vmax.f32 %v2092, 0.0
        %v2168 = vmax.f32 %v2095, 0.0
        %v2169 = vmax.f32 %v2098, 0.0
        %v2170 = vmax.f32 %v2101, 0.0
        %v2171 = vmax.f32 %v2104, 0.0
        %v2172 = vmax.f32 %v2107, 0.0
        %v2173 = vmax.f32 %v2110, 0.0
        %v2174 = vmax.f32 %v2113, 0.0
        %v2175 = vmax.f32 %v2116, 0.0
        %v2176 = vmax.f32 %v2119, 0.0
        %v2177 = vmax.f32 %v2122, 0.0
        %v2178 = vmax.f32 %v2125, 0.0
        %v2179 = vmax.f32 %v2128, 0.0
        %v2180 = vmax.f32 %v2131, 0.0
        %v2181 = vmax.f32 %v2134, 0.0
        %v2182 = vmax.f32 %v2137, 0.0
        %v2183 = vmax.f32 %v2140, 0.0
        %v2184 = vmax.f32 %v2143, 0.0
        %v2185 = vmax.f32 %v2146, 0.0
        %v2186 = vmax.f32 %v2149, 0.0
        %v2187 = vmax.f32 %v2152, 0.0
        %v2188 = vmax.f32 %v2155, 0.0
        %2221 = vrot.lane.b32.xlu0 %v2157, 4
        %v2222 = vpop.permute.xlu0 %2221
        %2223 = vrot.lane.b32.xlu0 %v2158, 4
        %v2224 = vpop.permute.xlu0 %2223
        %2225 = vrot.lane.b32.xlu0 %v2159, 4
        %v2226 = vpop.permute.xlu0 %2225
        %2227 = vrot.lane.b32.xlu0 %v2160, 4
        %v2228 = vpop.permute.xlu0 %2227
        %2229 = vrot.lane.b32.xlu0 %v2161, 4
        %v2230 = vpop.permute.xlu0 %2229
        %2231 = vrot.lane.b32.xlu0 %v2162, 4
        %v2232 = vpop.permute.xlu0 %2231
        %2233 = vrot.lane.b32.xlu0 %v2163, 4
        %v2234 = vpop.permute.xlu0 %2233
        %2235 = vrot.lane.b32.xlu0 %v2164, 4
        %v2236 = vpop.permute.xlu0 %2235
        %2237 = vrot.lane.b32.xlu0 %v2165, 4
        %v2238 = vpop.permute.xlu0 %2237
        %2239 = vrot.lane.b32.xlu0 %v2166, 4
        %v2240 = vpop.permute.xlu0 %2239
        %2241 = vrot.lane.b32.xlu0 %v2167, 4
        %v2242 = vpop.permute.xlu0 %2241
        %2243 = vrot.lane.b32.xlu0 %v2168, 4
        %v2244 = vpop.permute.xlu0 %2243
        %2245 = vrot.lane.b32.xlu0 %v2169, 4
        %v2246 = vpop.permute.xlu0 %2245
        %2247 = vrot.lane.b32.xlu0 %v2170, 4
        %v2248 = vpop.permute.xlu0 %2247
        %2249 = vrot.lane.b32.xlu0 %v2171, 4
        %v2250 = vpop.permute.xlu0 %2249
        %2251 = vrot.lane.b32.xlu0 %v2172, 4
        %v2252 = vpop.permute.xlu0 %2251
        %2253 = vrot.lane.b32.xlu0 %v2173, 4
        %v2254 = vpop.permute.xlu0 %2253
        %2255 = vrot.lane.b32.xlu0 %v2174, 4
        %v2256 = vpop.permute.xlu0 %2255
        %2257 = vrot.lane.b32.xlu0 %v2175, 4
        %v2258 = vpop.permute.xlu0 %2257
        %2259 = vrot.lane.b32.xlu0 %v2176, 4
        %v2260 = vpop.permute.xlu0 %2259
        %2261 = vrot.lane.b32.xlu0 %v2177, 4
        %v2262 = vpop.permute.xlu0 %2261
        %2263 = vrot.lane.b32.xlu0 %v2178, 4
        %v2264 = vpop.permute.xlu0 %2263
        %2265 = vrot.lane.b32.xlu0 %v2179, 4
        %v2266 = vpop.permute.xlu0 %2265
        %2267 = vrot.lane.b32.xlu0 %v2180, 4
        %v2268 = vpop.permute.xlu0 %2267
        %2269 = vrot.lane.b32.xlu0 %v2181, 4
        %v2270 = vpop.permute.xlu0 %2269
        %2271 = vrot.lane.b32.xlu0 %v2182, 4
        %v2272 = vpop.permute.xlu0 %2271
        %2273 = vrot.lane.b32.xlu0 %v2183, 4
        %v2274 = vpop.permute.xlu0 %2273
        %2275 = vrot.lane.b32.xlu0 %v2184, 4
        %v2276 = vpop.permute.xlu0 %2275
        %2277 = vrot.lane.b32.xlu0 %v2185, 4
        %v2278 = vpop.permute.xlu0 %2277
        %2279 = vrot.lane.b32.xlu0 %v2186, 4
        %v2280 = vpop.permute.xlu0 %2279
        %2281 = vrot.lane.b32.xlu0 %v2187, 4
        %v2282 = vpop.permute.xlu0 %2281
        %2283 = vrot.lane.b32.xlu0 %v2188, 4
        %v2284 = vpop.permute.xlu0 %2283
        %vm2317 = vcmask 64544
        %2318 = vst.msk [vmem:[%s427 + $0x1] sm:$0xff] %vm2317, %v2222
        %2319 = vst.msk [vmem:[%s427 + $0x9] sm:$0xff] %vm2317, %v2224
        %2320 = vst.msk [vmem:[%s427 + $0x19] sm:$0xff] %vm2317, %v2226
        %2321 = vst.msk [vmem:[%s427 + $0x21] sm:$0xff] %vm2317, %v2228
        %2322 = vst.msk [vmem:[%s427 + $0x31] sm:$0xff] %vm2317, %v2230
        %2323 = vst.msk [vmem:[%s427 + $0x39] sm:$0xff] %vm2317, %v2232
        %2324 = vst.msk [vmem:[%s427 + $0x49] sm:$0xff] %vm2317, %v2234
        %2325 = vst.msk [vmem:[%s427 + $0x51] sm:$0xff] %vm2317, %v2236
        %2326 = vst.msk [vmem:[%s427 + $0x61] sm:$0xff] %vm2317, %v2238
        %2327 = vst.msk [vmem:[%s427 + $0x69] sm:$0xff] %vm2317, %v2240
        %2328 = vst.msk [vmem:[%s427 + $0x79] sm:$0xff] %vm2317, %v2242
        %2329 = vst.msk [vmem:[%s427 + $0x81] sm:$0xff] %vm2317, %v2244
        %2330 = vst.msk [vmem:[%s427 + $0x91] sm:$0xff] %vm2317, %v2246
        %2331 = vst.msk [vmem:[%s427 + $0x99] sm:$0xff] %vm2317, %v2248
        %2332 = vst.msk [vmem:[%s427 + $0xa9] sm:$0xff] %vm2317, %v2250
        %2333 = vst.msk [vmem:[%s427 + $0xb1] sm:$0xff] %vm2317, %v2252
        %2334 = vst.msk [vmem:[%s427 + $0xc1] sm:$0xff] %vm2317, %v2254
        %2335 = vst.msk [vmem:[%s427 + $0xc9] sm:$0xff] %vm2317, %v2256
        %2336 = vst.msk [vmem:[%s427 + $0xd9] sm:$0xff] %vm2317, %v2258
        %2337 = vst.msk [vmem:[%s427 + $0xe1] sm:$0xff] %vm2317, %v2260
        %2338 = vst.msk [vmem:[%s427 + $0xf1] sm:$0xff] %vm2317, %v2262
        %2339 = vst.msk [vmem:[%s427 + $0xf9] sm:$0xff] %vm2317, %v2264
        %2340 = vst.msk [vmem:[%s427 + $0x109] sm:$0xff] %vm2317, %v2266
        %2341 = vst.msk [vmem:[%s427 + $0x111] sm:$0xff] %vm2317, %v2268
        %2342 = vst.msk [vmem:[%s427 + $0x121] sm:$0xff] %vm2317, %v2270
        %2343 = vst.msk [vmem:[%s427 + $0x129] sm:$0xff] %vm2317, %v2272
        %2344 = vst.msk [vmem:[%s427 + $0x139] sm:$0xff] %vm2317, %v2274
        %2345 = vst.msk [vmem:[%s427 + $0x141] sm:$0xff] %vm2317, %v2276
        %2346 = vst.msk [vmem:[%s427 + $0x151] sm:$0xff] %vm2317, %v2278
        %2347 = vst.msk [vmem:[%s427 + $0x159] sm:$0xff] %vm2317, %v2280
        %2348 = vst.msk [vmem:[%s427 + $0x169] sm:$0xff] %vm2317, %v2282
        %2349 = vst.msk [vmem:[%s427 + $0x171] sm:$0xff] %vm2317, %v2284
        %v2350 = vld [vmem:[#allocation2] sm:$0xff]
        %v2351 = vld [vmem:[#allocation2 + $0x8] sm:$0xff]
        %v2352 = vld [vmem:[#allocation2 + $0x10] sm:$0x3]
        %v2353 = vld [vmem:[#allocation2 + $0x18] sm:$0xff]
        %v2354 = vld [vmem:[#allocation2 + $0x20] sm:$0xff]
        %v2355 = vld [vmem:[#allocation2 + $0x28] sm:$0x3]
        %v2356 = vld [vmem:[#allocation2 + $0x30] sm:$0xff]
        %v2357 = vld [vmem:[#allocation2 + $0x38] sm:$0xff]
        %v2358 = vld [vmem:[#allocation2 + $0x40] sm:$0x3]
        %v2359 = vld [vmem:[#allocation2 + $0x48] sm:$0xff]
        %v2360 = vld [vmem:[#allocation2 + $0x50] sm:$0xff]
        %v2361 = vld [vmem:[#allocation2 + $0x58] sm:$0x3]
        %v2362 = vld [vmem:[#allocation2 + $0x60] sm:$0xff]
        %v2363 = vld [vmem:[#allocation2 + $0x68] sm:$0xff]
        %v2364 = vld [vmem:[#allocation2 + $0x70] sm:$0x3]
        %v2365 = vld [vmem:[#allocation2 + $0x78] sm:$0xff]
        %v2366 = vld [vmem:[#allocation2 + $0x80] sm:$0xff]
        %v2367 = vld [vmem:[#allocation2 + $0x88] sm:$0x3]
        %v2368 = vld [vmem:[#allocation2 + $0x90] sm:$0xff]
        %v2369 = vld [vmem:[#allocation2 + $0x98] sm:$0xff]
        %v2370 = vld [vmem:[#allocation2 + $0xa0] sm:$0x3]
        %v2371 = vld [vmem:[#allocation2 + $0xa8] sm:$0xff]
        %v2372 = vld [vmem:[#allocation2 + $0xb0] sm:$0xff]
        %v2373 = vld [vmem:[#allocation2 + $0xb8] sm:$0x3]
        %v2374 = vld [vmem:[#allocation2 + $0xc0] sm:$0xff]
        %v2375 = vld [vmem:[#allocation2 + $0xc8] sm:$0xff]
        %v2376 = vld [vmem:[#allocation2 + $0xd0] sm:$0x3]
        %v2377 = vld [vmem:[#allocation2 + $0xd8] sm:$0xff]
        %v2378 = vld [vmem:[#allocation2 + $0xe0] sm:$0xff]
        %v2379 = vld [vmem:[#allocation2 + $0xe8] sm:$0x3]
        %v2380 = vld [vmem:[#allocation2 + $0xf0] sm:$0xff]
        %v2381 = vld [vmem:[#allocation2 + $0xf8] sm:$0xff]
        %v2382 = vld [vmem:[#allocation2 + $0x100] sm:$0x3]
        %v2383 = vld [vmem:[#allocation2 + $0x108] sm:$0xff]
        %v2384 = vld [vmem:[#allocation2 + $0x110] sm:$0xff]
        %v2385 = vld [vmem:[#allocation2 + $0x118] sm:$0x3]
        %v2386 = vld [vmem:[#allocation2 + $0x120] sm:$0xff]
        %v2387 = vld [vmem:[#allocation2 + $0x128] sm:$0xff]
        %v2388 = vld [vmem:[#allocation2 + $0x130] sm:$0x3]
        %v2389 = vld [vmem:[#allocation2 + $0x138] sm:$0xff]
        %v2390 = vld [vmem:[#allocation2 + $0x140] sm:$0xff]
        %v2391 = vld [vmem:[#allocation2 + $0x148] sm:$0x3]
        %v2392 = vld [vmem:[#allocation2 + $0x150] sm:$0xff]
        %v2393 = vld [vmem:[#allocation2 + $0x158] sm:$0xff]
        %v2394 = vld [vmem:[#allocation2 + $0x160] sm:$0x3]
        %v2395 = vld [vmem:[#allocation2 + $0x168] sm:$0xff]
        %v2396 = vld [vmem:[#allocation2 + $0x170] sm:$0xff]
        %v2397 = vld [vmem:[#allocation2 + $0x178] sm:$0x3]
        %v2398 = vld [vmem:[#allocation2 + $0x180] sm:$0xff]
        %v2399 = vld [vmem:[#allocation2 + $0x188] sm:$0xff]
        %v2400 = vld [vmem:[#allocation2 + $0x190] sm:$0x3]
        %v2401 = vld [vmem:[#allocation2 + $0x198] sm:$0xff]
        %v2402 = vld [vmem:[#allocation2 + $0x1a0] sm:$0xff]
        %v2403 = vld [vmem:[#allocation2 + $0x1a8] sm:$0x3]
        %2404 = vst.msk [vmem:[#allocation3] sm:$0xff] %vm277, %v2350
        %2405 = vst.msk [vmem:[#allocation3 + $0x10] sm:$0xff] %vm277, %v2351
        %2406 = vst.msk [vmem:[#allocation3 + $0x20] sm:$0xff] %vm277, %v2353
        %2407 = vst.msk [vmem:[#allocation3 + $0x30] sm:$0xff] %vm277, %v2354
        %2408 = vst.msk [vmem:[#allocation3 + $0x40] sm:$0xff] %vm277, %v2356
        %2409 = vst.msk [vmem:[#allocation3 + $0x50] sm:$0xff] %vm277, %v2357
        %2410 = vst.msk [vmem:[#allocation3 + $0x60] sm:$0xff] %vm277, %v2359
        %2411 = vst.msk [vmem:[#allocation3 + $0x70] sm:$0xff] %vm277, %v2360
        %2412 = vst.msk [vmem:[#allocation3 + $0x80] sm:$0xff] %vm277, %v2362
        %2413 = vst.msk [vmem:[#allocation3 + $0x90] sm:$0xff] %vm277, %v2363
        %2414 = vst.msk [vmem:[#allocation3 + $0xa0] sm:$0xff] %vm277, %v2365
        %2415 = vst.msk [vmem:[#allocation3 + $0xb0] sm:$0xff] %vm277, %v2366
        %2416 = vst.msk [vmem:[#allocation3 + $0xc0] sm:$0xff] %vm277, %v2368
        %2417 = vst.msk [vmem:[#allocation3 + $0xd0] sm:$0xff] %vm277, %v2369
        %2418 = vst.msk [vmem:[#allocation3 + $0xe0] sm:$0xff] %vm277, %v2371
        %2419 = vst.msk [vmem:[#allocation3 + $0xf0] sm:$0xff] %vm277, %v2372
        %2420 = vst.msk [vmem:[#allocation3 + $0x100] sm:$0xff] %vm277, %v2374
        %2421 = vst.msk [vmem:[#allocation3 + $0x110] sm:$0xff] %vm277, %v2375
        %2422 = vst.msk [vmem:[#allocation3 + $0x120] sm:$0xff] %vm277, %v2377
        %2423 = vst.msk [vmem:[#allocation3 + $0x130] sm:$0xff] %vm277, %v2378
        %2424 = vst.msk [vmem:[#allocation3 + $0x140] sm:$0xff] %vm277, %v2380
        %2425 = vst.msk [vmem:[#allocation3 + $0x150] sm:$0xff] %vm277, %v2381
        %2426 = vst.msk [vmem:[#allocation3 + $0x160] sm:$0xff] %vm277, %v2383
        %2427 = vst.msk [vmem:[#allocation3 + $0x170] sm:$0xff] %vm277, %v2384
        %2428 = vst.msk [vmem:[#allocation3 + $0x180] sm:$0xff] %vm277, %v2386
        %2429 = vst.msk [vmem:[#allocation3 + $0x190] sm:$0xff] %vm277, %v2387
        %2430 = vst.msk [vmem:[#allocation3 + $0x1a0] sm:$0xff] %vm277, %v2389
        %2431 = vst.msk [vmem:[#allocation3 + $0x1b0] sm:$0xff] %vm277, %v2390
        %2432 = vst.msk [vmem:[#allocation3 + $0x1c0] sm:$0xff] %vm277, %v2392
        %2433 = vst.msk [vmem:[#allocation3 + $0x1d0] sm:$0xff] %vm277, %v2393
        %2434 = vst.msk [vmem:[#allocation3 + $0x1e0] sm:$0xff] %vm277, %v2395
        %2435 = vst.msk [vmem:[#allocation3 + $0x1f0] sm:$0xff] %vm277, %v2396
        %v2484 = vrot.slane %v2350, 1
        %v2485 = vrot.slane %v2351, 1
        %v2486 = vsel %vm594, %v2484, %v2485
        %v2487 = vrot.slane %v2352, 1
        %v2488 = vsel %vm594, %v2485, %v2487
        %v2489 = vrot.slane %v2353, 1
        %v2490 = vrot.slane %v2354, 1
        %v2491 = vsel %vm594, %v2489, %v2490
        %v2492 = vrot.slane %v2355, 1
        %v2493 = vsel %vm594, %v2490, %v2492
        %v2494 = vrot.slane %v2356, 1
        %v2495 = vrot.slane %v2357, 1
        %v2496 = vsel %vm594, %v2494, %v2495
        %v2497 = vrot.slane %v2358, 1
        %v2498 = vsel %vm594, %v2495, %v2497
        %v2499 = vrot.slane %v2359, 1
        %v2500 = vrot.slane %v2360, 1
        %v2501 = vsel %vm594, %v2499, %v2500
        %v2502 = vrot.slane %v2361, 1
        %v2503 = vsel %vm594, %v2500, %v2502
        %v2504 = vrot.slane %v2362, 1
        %v2505 = vrot.slane %v2363, 1
        %v2506 = vsel %vm594, %v2504, %v2505
        %v2507 = vrot.slane %v2364, 1
        %v2508 = vsel %vm594, %v2505, %v2507
        %v2509 = vrot.slane %v2365, 1
        %v2510 = vrot.slane %v2366, 1
        %v2511 = vsel %vm594, %v2509, %v2510
        %v2512 = vrot.slane %v2367, 1
        %v2513 = vsel %vm594, %v2510, %v2512
        %v2514 = vrot.slane %v2368, 1
        %v2515 = vrot.slane %v2369, 1
        %v2516 = vsel %vm594, %v2514, %v2515
        %v2517 = vrot.slane %v2370, 1
        %v2518 = vsel %vm594, %v2515, %v2517
        %v2519 = vrot.slane %v2371, 1
        %v2520 = vrot.slane %v2372, 1
        %v2521 = vsel %vm594, %v2519, %v2520
        %v2522 = vrot.slane %v2373, 1
        %v2523 = vsel %vm594, %v2520, %v2522
        %v2524 = vrot.slane %v2374, 1
        %v2525 = vrot.slane %v2375, 1
        %v2526 = vsel %vm594, %v2524, %v2525
        %v2527 = vrot.slane %v2376, 1
        %v2528 = vsel %vm594, %v2525, %v2527
        %v2529 = vrot.slane %v2377, 1
        %v2530 = vrot.slane %v2378, 1
        %v2531 = vsel %vm594, %v2529, %v2530
        %v2532 = vrot.slane %v2379, 1
        %v2533 = vsel %vm594, %v2530, %v2532
        %v2534 = vrot.slane %v2380, 1
        %v2535 = vrot.slane %v2381, 1
        %v2536 = vsel %vm594, %v2534, %v2535
        %v2537 = vrot.slane %v2382, 1
        %v2538 = vsel %vm594, %v2535, %v2537
        %v2539 = vrot.slane %v2383, 1
        %v2540 = vrot.slane %v2384, 1
        %v2541 = vsel %vm594, %v2539, %v2540
        %v2542 = vrot.slane %v2385, 1
        %v2543 = vsel %vm594, %v2540, %v2542
        %v2544 = vrot.slane %v2386, 1
        %v2545 = vrot.slane %v2387, 1
        %v2546 = vsel %vm594, %v2544, %v2545
        %v2547 = vrot.slane %v2388, 1
        %v2548 = vsel %vm594, %v2545, %v2547
        %v2549 = vrot.slane %v2389, 1
        %v2550 = vrot.slane %v2390, 1
        %v2551 = vsel %vm594, %v2549, %v2550
        %v2552 = vrot.slane %v2391, 1
        %v2553 = vsel %vm594, %v2550, %v2552
        %v2554 = vrot.slane %v2392, 1
        %v2555 = vrot.slane %v2393, 1
        %v2556 = vsel %vm594, %v2554, %v2555
        %v2557 = vrot.slane %v2394, 1
        %v2558 = vsel %vm594, %v2555, %v2557
        %v2559 = vrot.slane %v2395, 1
        %v2560 = vrot.slane %v2396, 1
        %v2561 = vsel %vm594, %v2559, %v2560
        %v2562 = vrot.slane %v2397, 1
        %v2563 = vsel %vm594, %v2560, %v2562
        %2564 = vrot.lane.b32.xlu0 %v2486, 16
        %v2565 = vpop.permute.xlu0 %2564
        %2566 = vrot.lane.b32.xlu0 %v2488, 16
        %v2567 = vpop.permute.xlu0 %2566
        %2568 = vrot.lane.b32.xlu0 %v2491, 16
        %v2569 = vpop.permute.xlu0 %2568
        %2570 = vrot.lane.b32.xlu0 %v2493, 16
        %v2571 = vpop.permute.xlu0 %2570
        %2572 = vrot.lane.b32.xlu0 %v2496, 16
        %v2573 = vpop.permute.xlu0 %2572
        %2574 = vrot.lane.b32.xlu0 %v2498, 16
        %v2575 = vpop.permute.xlu0 %2574
        %2576 = vrot.lane.b32.xlu0 %v2501, 16
        %v2577 = vpop.permute.xlu0 %2576
        %2578 = vrot.lane.b32.xlu0 %v2503, 16
        %v2579 = vpop.permute.xlu0 %2578
        %2580 = vrot.lane.b32.xlu0 %v2506, 16
        %v2581 = vpop.permute.xlu0 %2580
        %2582 = vrot.lane.b32.xlu0 %v2508, 16
        %v2583 = vpop.permute.xlu0 %2582
        %2584 = vrot.lane.b32.xlu0 %v2511, 16
        %v2585 = vpop.permute.xlu0 %2584
        %2586 = vrot.lane.b32.xlu0 %v2513, 16
        %v2587 = vpop.permute.xlu0 %2586
        %2588 = vrot.lane.b32.xlu0 %v2516, 16
        %v2589 = vpop.permute.xlu0 %2588
        %2590 = vrot.lane.b32.xlu0 %v2518, 16
        %v2591 = vpop.permute.xlu0 %2590
        %2592 = vrot.lane.b32.xlu0 %v2521, 16
        %v2593 = vpop.permute.xlu0 %2592
        %2594 = vrot.lane.b32.xlu0 %v2523, 16
        %v2595 = vpop.permute.xlu0 %2594
        %2596 = vrot.lane.b32.xlu0 %v2526, 16
        %v2597 = vpop.permute.xlu0 %2596
        %2598 = vrot.lane.b32.xlu0 %v2528, 16
        %v2599 = vpop.permute.xlu0 %2598
        %2600 = vrot.lane.b32.xlu0 %v2531, 16
        %v2601 = vpop.permute.xlu0 %2600
        %2602 = vrot.lane.b32.xlu0 %v2533, 16
        %v2603 = vpop.permute.xlu0 %2602
        %2604 = vrot.lane.b32.xlu0 %v2536, 16
        %v2605 = vpop.permute.xlu0 %2604
        %2606 = vrot.lane.b32.xlu0 %v2538, 16
        %v2607 = vpop.permute.xlu0 %2606
        %2608 = vrot.lane.b32.xlu0 %v2541, 16
        %v2609 = vpop.permute.xlu0 %2608
        %2610 = vrot.lane.b32.xlu0 %v2543, 16
        %v2611 = vpop.permute.xlu0 %2610
        %2612 = vrot.lane.b32.xlu0 %v2546, 16
        %v2613 = vpop.permute.xlu0 %2612
        %2614 = vrot.lane.b32.xlu0 %v2548, 16
        %v2615 = vpop.permute.xlu0 %2614
        %2616 = vrot.lane.b32.xlu0 %v2551, 16
        %v2617 = vpop.permute.xlu0 %2616
        %2618 = vrot.lane.b32.xlu0 %v2553, 16
        %v2619 = vpop.permute.xlu0 %2618
        %2620 = vrot.lane.b32.xlu0 %v2556, 16
        %v2621 = vpop.permute.xlu0 %2620
        %2622 = vrot.lane.b32.xlu0 %v2558, 16
        %v2623 = vpop.permute.xlu0 %2622
        %2624 = vrot.lane.b32.xlu0 %v2561, 16
        %v2625 = vpop.permute.xlu0 %2624
        %2626 = vrot.lane.b32.xlu0 %v2563, 16
        %v2627 = vpop.permute.xlu0 %2626
        %2660 = vst.msk [vmem:[#allocation3] sm:$0xff] %vm771, %v2565
        %2661 = vst.msk [vmem:[#allocation3 + $0x10] sm:$0xff] %vm771, %v2567
        %2662 = vst.msk [vmem:[#allocation3 + $0x20] sm:$0xff] %vm771, %v2569
        %2663 = vst.msk [vmem:[#allocation3 + $0x30] sm:$0xff] %vm771, %v2571
        %2664 = vst.msk [vmem:[#allocation3 + $0x40] sm:$0xff] %vm771, %v2573
        %2665 = vst.msk [vmem:[#allocation3 + $0x50] sm:$0xff] %vm771, %v2575
        %2666 = vst.msk [vmem:[#allocation3 + $0x60] sm:$0xff] %vm771, %v2577
        %2667 = vst.msk [vmem:[#allocation3 + $0x70] sm:$0xff] %vm771, %v2579
        %2668 = vst.msk [vmem:[#allocation3 + $0x80] sm:$0xff] %vm771, %v2581
        %2669 = vst.msk [vmem:[#allocation3 + $0x90] sm:$0xff] %vm771, %v2583
        %2670 = vst.msk [vmem:[#allocation3 + $0xa0] sm:$0xff] %vm771, %v2585
        %2671 = vst.msk [vmem:[#allocation3 + $0xb0] sm:$0xff] %vm771, %v2587
        %2672 = vst.msk [vmem:[#allocation3 + $0xc0] sm:$0xff] %vm771, %v2589
        %2673 = vst.msk [vmem:[#allocation3 + $0xd0] sm:$0xff] %vm771, %v2591
        %2674 = vst.msk [vmem:[#allocation3 + $0xe0] sm:$0xff] %vm771, %v2593
        %2675 = vst.msk [vmem:[#allocation3 + $0xf0] sm:$0xff] %vm771, %v2595
        %2676 = vst.msk [vmem:[#allocation3 + $0x100] sm:$0xff] %vm771, %v2597
        %2677 = vst.msk [vmem:[#allocation3 + $0x110] sm:$0xff] %vm771, %v2599
        %2678 = vst.msk [vmem:[#allocation3 + $0x120] sm:$0xff] %vm771, %v2601
        %2679 = vst.msk [vmem:[#allocation3 + $0x130] sm:$0xff] %vm771, %v2603
        %2680 = vst.msk [vmem:[#allocation3 + $0x140] sm:$0xff] %vm771, %v2605
        %2681 = vst.msk [vmem:[#allocation3 + $0x150] sm:$0xff] %vm771, %v2607
        %2682 = vst.msk [vmem:[#allocation3 + $0x160] sm:$0xff] %vm771, %v2609
        %2683 = vst.msk [vmem:[#allocation3 + $0x170] sm:$0xff] %vm771, %v2611
        %2684 = vst.msk [vmem:[#allocation3 + $0x180] sm:$0xff] %vm771, %v2613
        %2685 = vst.msk [vmem:[#allocation3 + $0x190] sm:$0xff] %vm771, %v2615
        %2686 = vst.msk [vmem:[#allocation3 + $0x1a0] sm:$0xff] %vm771, %v2617
        %2687 = vst.msk [vmem:[#allocation3 + $0x1b0] sm:$0xff] %vm771, %v2619
        %2688 = vst.msk [vmem:[#allocation3 + $0x1c0] sm:$0xff] %vm771, %v2621
        %2689 = vst.msk [vmem:[#allocation3 + $0x1d0] sm:$0xff] %vm771, %v2623
        %2690 = vst.msk [vmem:[#allocation3 + $0x1e0] sm:$0xff] %vm771, %v2625
        %2691 = vst.msk [vmem:[#allocation3 + $0x1f0] sm:$0xff] %vm771, %v2627
        %v2692 = vrot.slane %v2350, 2
        %v2693 = vrot.slane %v2351, 2
        %v2694 = vsel %vm804, %v2692, %v2693
        %v2695 = vrot.slane %v2352, 2
        %v2696 = vsel %vm804, %v2693, %v2695
        %v2697 = vrot.slane %v2353, 2
        %v2698 = vrot.slane %v2354, 2
        %v2699 = vsel %vm804, %v2697, %v2698
        %v2700 = vrot.slane %v2355, 2
        %v2701 = vsel %vm804, %v2698, %v2700
        %v2702 = vrot.slane %v2356, 2
        %v2703 = vrot.slane %v2357, 2
        %v2704 = vsel %vm804, %v2702, %v2703
        %v2705 = vrot.slane %v2358, 2
        %v2706 = vsel %vm804, %v2703, %v2705
        %v2707 = vrot.slane %v2359, 2
        %v2708 = vrot.slane %v2360, 2
        %v2709 = vsel %vm804, %v2707, %v2708
        %v2710 = vrot.slane %v2361, 2
        %v2711 = vsel %vm804, %v2708, %v2710
        %v2712 = vrot.slane %v2362, 2
        %v2713 = vrot.slane %v2363, 2
        %v2714 = vsel %vm804, %v2712, %v2713
        %v2715 = vrot.slane %v2364, 2
        %v2716 = vsel %vm804, %v2713, %v2715
        %v2717 = vrot.slane %v2365, 2
        %v2718 = vrot.slane %v2366, 2
        %v2719 = vsel %vm804, %v2717, %v2718
        %v2720 = vrot.slane %v2367, 2
        %v2721 = vsel %vm804, %v2718, %v2720
        %v2722 = vrot.slane %v2368, 2
        %v2723 = vrot.slane %v2369, 2
        %v2724 = vsel %vm804, %v2722, %v2723
        %v2725 = vrot.slane %v2370, 2
        %v2726 = vsel %vm804, %v2723, %v2725
        %v2727 = vrot.slane %v2371, 2
        %v2728 = vrot.slane %v2372, 2
        %v2729 = vsel %vm804, %v2727, %v2728
        %v2730 = vrot.slane %v2373, 2
        %v2731 = vsel %vm804, %v2728, %v2730
        %v2732 = vrot.slane %v2374, 2
        %v2733 = vrot.slane %v2375, 2
        %v2734 = vsel %vm804, %v2732, %v2733
        %v2735 = vrot.slane %v2376, 2
        %v2736 = vsel %vm804, %v2733, %v2735
        %v2737 = vrot.slane %v2377, 2
        %v2738 = vrot.slane %v2378, 2
        %v2739 = vsel %vm804, %v2737, %v2738
        %v2740 = vrot.slane %v2379, 2
        %v2741 = vsel %vm804, %v2738, %v2740
        %v2742 = vrot.slane %v2380, 2
        %v2743 = vrot.slane %v2381, 2
        %v2744 = vsel %vm804, %v2742, %v2743
        %v2745 = vrot.slane %v2382, 2
        %v2746 = vsel %vm804, %v2743, %v2745
        %v2747 = vrot.slane %v2383, 2
        %v2748 = vrot.slane %v2384, 2
        %v2749 = vsel %vm804, %v2747, %v2748
        %v2750 = vrot.slane %v2385, 2
        %v2751 = vsel %vm804, %v2748, %v2750
        %v2752 = vrot.slane %v2386, 2
        %v2753 = vrot.slane %v2387, 2
        %v2754 = vsel %vm804, %v2752, %v2753
        %v2755 = vrot.slane %v2388, 2
        %v2756 = vsel %vm804, %v2753, %v2755
        %v2757 = vrot.slane %v2389, 2
        %v2758 = vrot.slane %v2390, 2
        %v2759 = vsel %vm804, %v2757, %v2758
        %v2760 = vrot.slane %v2391, 2
        %v2761 = vsel %vm804, %v2758, %v2760
        %v2762 = vrot.slane %v2392, 2
        %v2763 = vrot.slane %v2393, 2
        %v2764 = vsel %vm804, %v2762, %v2763
        %v2765 = vrot.slane %v2394, 2
        %v2766 = vsel %vm804, %v2763, %v2765
        %v2767 = vrot.slane %v2395, 2
        %v2768 = vrot.slane %v2396, 2
        %v2769 = vsel %vm804, %v2767, %v2768
        %v2770 = vrot.slane %v2397, 2
        %v2771 = vsel %vm804, %v2768, %v2770
        %2772 = vrot.lane.b32.xlu0 %v2694, 32
        %v2773 = vpop.permute.xlu0 %2772
        %2774 = vrot.lane.b32.xlu0 %v2696, 32
        %v2775 = vpop.permute.xlu0 %2774
        %2776 = vrot.lane.b32.xlu0 %v2699, 32
        %v2777 = vpop.permute.xlu0 %2776
        %2778 = vrot.lane.b32.xlu0 %v2701, 32
        %v2779 = vpop.permute.xlu0 %2778
        %2780 = vrot.lane.b32.xlu0 %v2704, 32
        %v2781 = vpop.permute.xlu0 %2780
        %2782 = vrot.lane.b32.xlu0 %v2706, 32
        %v2783 = vpop.permute.xlu0 %2782
        %2784 = vrot.lane.b32.xlu0 %v2709, 32
        %v2785 = vpop.permute.xlu0 %2784
        %2786 = vrot.lane.b32.xlu0 %v2711, 32
        %v2787 = vpop.permute.xlu0 %2786
        %2788 = vrot.lane.b32.xlu0 %v2714, 32
        %v2789 = vpop.permute.xlu0 %2788
        %2790 = vrot.lane.b32.xlu0 %v2716, 32
        %v2791 = vpop.permute.xlu0 %2790
        %2792 = vrot.lane.b32.xlu0 %v2719, 32
        %v2793 = vpop.permute.xlu0 %2792
        %2794 = vrot.lane.b32.xlu0 %v2721, 32
        %v2795 = vpop.permute.xlu0 %2794
        %2796 = vrot.lane.b32.xlu0 %v2724, 32
        %v2797 = vpop.permute.xlu0 %2796
        %2798 = vrot.lane.b32.xlu0 %v2726, 32
        %v2799 = vpop.permute.xlu0 %2798
        %2800 = vrot.lane.b32.xlu0 %v2729, 32
        %v2801 = vpop.permute.xlu0 %2800
        %2802 = vrot.lane.b32.xlu0 %v2731, 32
        %v2803 = vpop.permute.xlu0 %2802
        %2804 = vrot.lane.b32.xlu0 %v2734, 32
        %v2805 = vpop.permute.xlu0 %2804
        %2806 = vrot.lane.b32.xlu0 %v2736, 32
        %v2807 = vpop.permute.xlu0 %2806
        %2808 = vrot.lane.b32.xlu0 %v2739, 32
        %v2809 = vpop.permute.xlu0 %2808
        %2810 = vrot.lane.b32.xlu0 %v2741, 32
        %v2811 = vpop.permute.xlu0 %2810
        %2812 = vrot.lane.b32.xlu0 %v2744, 32
        %v2813 = vpop.permute.xlu0 %2812
        %2814 = vrot.lane.b32.xlu0 %v2746, 32
        %v2815 = vpop.permute.xlu0 %2814
        %2816 = vrot.lane.b32.xlu0 %v2749, 32
        %v2817 = vpop.permute.xlu0 %2816
        %2818 = vrot.lane.b32.xlu0 %v2751, 32
        %v2819 = vpop.permute.xlu0 %2818
        %2820 = vrot.lane.b32.xlu0 %v2754, 32
        %v2821 = vpop.permute.xlu0 %2820
        %2822 = vrot.lane.b32.xlu0 %v2756, 32
        %v2823 = vpop.permute.xlu0 %2822
        %2824 = vrot.lane.b32.xlu0 %v2759, 32
        %v2825 = vpop.permute.xlu0 %2824
        %2826 = vrot.lane.b32.xlu0 %v2761, 32
        %v2827 = vpop.permute.xlu0 %2826
        %2828 = vrot.lane.b32.xlu0 %v2764, 32
        %v2829 = vpop.permute.xlu0 %2828
        %2830 = vrot.lane.b32.xlu0 %v2766, 32
        %v2831 = vpop.permute.xlu0 %2830
        %2832 = vrot.lane.b32.xlu0 %v2769, 32
        %v2833 = vpop.permute.xlu0 %2832
        %2834 = vrot.lane.b32.xlu0 %v2771, 32
        %v2835 = vpop.permute.xlu0 %2834
        %2868 = vst.msk [vmem:[#allocation3] sm:$0xff] %vm981, %v2773
        %2869 = vst.msk [vmem:[#allocation3 + $0x10] sm:$0xff] %vm981, %v2775
        %2870 = vst.msk [vmem:[#allocation3 + $0x20] sm:$0xff] %vm981, %v2777
        %2871 = vst.msk [vmem:[#allocation3 + $0x30] sm:$0xff] %vm981, %v2779
        %2872 = vst.msk [vmem:[#allocation3 + $0x40] sm:$0xff] %vm981, %v2781
        %2873 = vst.msk [vmem:[#allocation3 + $0x50] sm:$0xff] %vm981, %v2783
        %2874 = vst.msk [vmem:[#allocation3 + $0x60] sm:$0xff] %vm981, %v2785
        %2875 = vst.msk [vmem:[#allocation3 + $0x70] sm:$0xff] %vm981, %v2787
        %2876 = vst.msk [vmem:[#allocation3 + $0x80] sm:$0xff] %vm981, %v2789
        %2877 = vst.msk [vmem:[#allocation3 + $0x90] sm:$0xff] %vm981, %v2791
        %2878 = vst.msk [vmem:[#allocation3 + $0xa0] sm:$0xff] %vm981, %v2793
        %2879 = vst.msk [vmem:[#allocation3 + $0xb0] sm:$0xff] %vm981, %v2795
        %2880 = vst.msk [vmem:[#allocation3 + $0xc0] sm:$0xff] %vm981, %v2797
        %2881 = vst.msk [vmem:[#allocation3 + $0xd0] sm:$0xff] %vm981, %v2799
        %2882 = vst.msk [vmem:[#allocation3 + $0xe0] sm:$0xff] %vm981, %v2801
        %2883 = vst.msk [vmem:[#allocation3 + $0xf0] sm:$0xff] %vm981, %v2803
        %2884 = vst.msk [vmem:[#allocation3 + $0x100] sm:$0xff] %vm981, %v2805
        %2885 = vst.msk [vmem:[#allocation3 + $0x110] sm:$0xff] %vm981, %v2807
        %2886 = vst.msk [vmem:[#allocation3 + $0x120] sm:$0xff] %vm981, %v2809
        %2887 = vst.msk [vmem:[#allocation3 + $0x130] sm:$0xff] %vm981, %v2811
        %2888 = vst.msk [vmem:[#allocation3 + $0x140] sm:$0xff] %vm981, %v2813
        %2889 = vst.msk [vmem:[#allocation3 + $0x150] sm:$0xff] %vm981, %v2815
        %2890 = vst.msk [vmem:[#allocation3 + $0x160] sm:$0xff] %vm981, %v2817
        %2891 = vst.msk [vmem:[#allocation3 + $0x170] sm:$0xff] %vm981, %v2819
        %2892 = vst.msk [vmem:[#allocation3 + $0x180] sm:$0xff] %vm981, %v2821
        %2893 = vst.msk [vmem:[#allocation3 + $0x190] sm:$0xff] %vm981, %v2823
        %2894 = vst.msk [vmem:[#allocation3 + $0x1a0] sm:$0xff] %vm981, %v2825
        %2895 = vst.msk [vmem:[#allocation3 + $0x1b0] sm:$0xff] %vm981, %v2827
        %2896 = vst.msk [vmem:[#allocation3 + $0x1c0] sm:$0xff] %vm981, %v2829
        %2897 = vst.msk [vmem:[#allocation3 + $0x1d0] sm:$0xff] %vm981, %v2831
        %2898 = vst.msk [vmem:[#allocation3 + $0x1e0] sm:$0xff] %vm981, %v2833
        %2899 = vst.msk [vmem:[#allocation3 + $0x1f0] sm:$0xff] %vm981, %v2835
        %2902 = vrot.lane.b32.xlu0 %v2353, 48
        %v2903 = vpop.permute.xlu0 %2902
        %2904 = vrot.lane.b32.xlu0 %v2354, 48
        %v2905 = vpop.permute.xlu0 %2904
        %2906 = vrot.lane.b32.xlu0 %v2356, 48
        %v2907 = vpop.permute.xlu0 %2906
        %2908 = vrot.lane.b32.xlu0 %v2357, 48
        %v2909 = vpop.permute.xlu0 %2908
        %2910 = vrot.lane.b32.xlu0 %v2359, 48
        %v2911 = vpop.permute.xlu0 %2910
        %2912 = vrot.lane.b32.xlu0 %v2360, 48
        %v2913 = vpop.permute.xlu0 %2912
        %2914 = vrot.lane.b32.xlu0 %v2362, 48
        %v2915 = vpop.permute.xlu0 %2914
        %2916 = vrot.lane.b32.xlu0 %v2363, 48
        %v2917 = vpop.permute.xlu0 %2916
        %2918 = vrot.lane.b32.xlu0 %v2365, 48
        %v2919 = vpop.permute.xlu0 %2918
        %2920 = vrot.lane.b32.xlu0 %v2366, 48
        %v2921 = vpop.permute.xlu0 %2920
        %2922 = vrot.lane.b32.xlu0 %v2368, 48
        %v2923 = vpop.permute.xlu0 %2922
        %2924 = vrot.lane.b32.xlu0 %v2369, 48
        %v2925 = vpop.permute.xlu0 %2924
        %2926 = vrot.lane.b32.xlu0 %v2371, 48
        %v2927 = vpop.permute.xlu0 %2926
        %2928 = vrot.lane.b32.xlu0 %v2372, 48
        %v2929 = vpop.permute.xlu0 %2928
        %2930 = vrot.lane.b32.xlu0 %v2374, 48
        %v2931 = vpop.permute.xlu0 %2930
        %2932 = vrot.lane.b32.xlu0 %v2375, 48
        %v2933 = vpop.permute.xlu0 %2932
        %2934 = vrot.lane.b32.xlu0 %v2377, 48
        %v2935 = vpop.permute.xlu0 %2934
        %2936 = vrot.lane.b32.xlu0 %v2378, 48
        %v2937 = vpop.permute.xlu0 %2936
        %2938 = vrot.lane.b32.xlu0 %v2380, 48
        %v2939 = vpop.permute.xlu0 %2938
        %2940 = vrot.lane.b32.xlu0 %v2381, 48
        %v2941 = vpop.permute.xlu0 %2940
        %2942 = vrot.lane.b32.xlu0 %v2383, 48
        %v2943 = vpop.permute.xlu0 %2942
        %2944 = vrot.lane.b32.xlu0 %v2384, 48
        %v2945 = vpop.permute.xlu0 %2944
        %2946 = vrot.lane.b32.xlu0 %v2386, 48
        %v2947 = vpop.permute.xlu0 %2946
        %2948 = vrot.lane.b32.xlu0 %v2387, 48
        %v2949 = vpop.permute.xlu0 %2948
        %2950 = vrot.lane.b32.xlu0 %v2389, 48
        %v2951 = vpop.permute.xlu0 %2950
        %2952 = vrot.lane.b32.xlu0 %v2390, 48
        %v2953 = vpop.permute.xlu0 %2952
        %2954 = vrot.lane.b32.xlu0 %v2392, 48
        %v2955 = vpop.permute.xlu0 %2954
        %2956 = vrot.lane.b32.xlu0 %v2393, 48
        %v2957 = vpop.permute.xlu0 %2956
        %2958 = vrot.lane.b32.xlu0 %v2395, 48
        %v2959 = vpop.permute.xlu0 %2958
        %2960 = vrot.lane.b32.xlu0 %v2396, 48
        %v2961 = vpop.permute.xlu0 %2960
        %2962 = vrot.lane.b32.xlu0 %v2398, 48
        %v2963 = vpop.permute.xlu0 %2962
        %2964 = vrot.lane.b32.xlu0 %v2399, 48
        %v2965 = vpop.permute.xlu0 %2964
        %2998 = vst.msk [vmem:[#allocation3] sm:$0xff] %vm1112, %v2903
        %2999 = vst.msk [vmem:[#allocation3 + $0x10] sm:$0xff] %vm1112, %v2905
        %3000 = vst.msk [vmem:[#allocation3 + $0x20] sm:$0xff] %vm1112, %v2907
        %3001 = vst.msk [vmem:[#allocation3 + $0x30] sm:$0xff] %vm1112, %v2909
        %3002 = vst.msk [vmem:[#allocation3 + $0x40] sm:$0xff] %vm1112, %v2911
        %3003 = vst.msk [vmem:[#allocation3 + $0x50] sm:$0xff] %vm1112, %v2913
        %3004 = vst.msk [vmem:[#allocation3 + $0x60] sm:$0xff] %vm1112, %v2915
        %3005 = vst.msk [vmem:[#allocation3 + $0x70] sm:$0xff] %vm1112, %v2917
        %3006 = vst.msk [vmem:[#allocation3 + $0x80] sm:$0xff] %vm1112, %v2919
        %3007 = vst.msk [vmem:[#allocation3 + $0x90] sm:$0xff] %vm1112, %v2921
        %3008 = vst.msk [vmem:[#allocation3 + $0xa0] sm:$0xff] %vm1112, %v2923
        %3009 = vst.msk [vmem:[#allocation3 + $0xb0] sm:$0xff] %vm1112, %v2925
        %3010 = vst.msk [vmem:[#allocation3 + $0xc0] sm:$0xff] %vm1112, %v2927
        %3011 = vst.msk [vmem:[#allocation3 + $0xd0] sm:$0xff] %vm1112, %v2929
        %3012 = vst.msk [vmem:[#allocation3 + $0xe0] sm:$0xff] %vm1112, %v2931
        %3013 = vst.msk [vmem:[#allocation3 + $0xf0] sm:$0xff] %vm1112, %v2933
        %3014 = vst.msk [vmem:[#allocation3 + $0x100] sm:$0xff] %vm1112, %v2935
        %3015 = vst.msk [vmem:[#allocation3 + $0x110] sm:$0xff] %vm1112, %v2937
        %3016 = vst.msk [vmem:[#allocation3 + $0x120] sm:$0xff] %vm1112, %v2939
        %3017 = vst.msk [vmem:[#allocation3 + $0x130] sm:$0xff] %vm1112, %v2941
        %3018 = vst.msk [vmem:[#allocation3 + $0x140] sm:$0xff] %vm1112, %v2943
        %3019 = vst.msk [vmem:[#allocation3 + $0x150] sm:$0xff] %vm1112, %v2945
        %3020 = vst.msk [vmem:[#allocation3 + $0x160] sm:$0xff] %vm1112, %v2947
        %3021 = vst.msk [vmem:[#allocation3 + $0x170] sm:$0xff] %vm1112, %v2949
        %3022 = vst.msk [vmem:[#allocation3 + $0x180] sm:$0xff] %vm1112, %v2951
        %3023 = vst.msk [vmem:[#allocation3 + $0x190] sm:$0xff] %vm1112, %v2953
        %3024 = vst.msk [vmem:[#allocation3 + $0x1a0] sm:$0xff] %vm1112, %v2955
        %3025 = vst.msk [vmem:[#allocation3 + $0x1b0] sm:$0xff] %vm1112, %v2957
        %3026 = vst.msk [vmem:[#allocation3 + $0x1c0] sm:$0xff] %vm1112, %v2959
        %3027 = vst.msk [vmem:[#allocation3 + $0x1d0] sm:$0xff] %vm1112, %v2961
        %3028 = vst.msk [vmem:[#allocation3 + $0x1e0] sm:$0xff] %vm1112, %v2963
        %3029 = vst.msk [vmem:[#allocation3 + $0x1f0] sm:$0xff] %vm1112, %v2965
        %v3031 = vrot.slane %v2398, 1
        %v3032 = vrot.slane %v2399, 1
        %v3033 = vsel %vm594, %v3031, %v3032
        %v3034 = vrot.slane %v2400, 1
        %v3035 = vsel %vm594, %v3032, %v3034
        %3036 = vrot.lane.b32.xlu0 %v2491, 64
        %v3037 = vpop.permute.xlu0 %3036
        %3038 = vrot.lane.b32.xlu0 %v2493, 64
        %v3039 = vpop.permute.xlu0 %3038
        %3040 = vrot.lane.b32.xlu0 %v2496, 64
        %v3041 = vpop.permute.xlu0 %3040
        %3042 = vrot.lane.b32.xlu0 %v2498, 64
        %v3043 = vpop.permute.xlu0 %3042
        %3044 = vrot.lane.b32.xlu0 %v2501, 64
        %v3045 = vpop.permute.xlu0 %3044
        %3046 = vrot.lane.b32.xlu0 %v2503, 64
        %v3047 = vpop.permute.xlu0 %3046
        %3048 = vrot.lane.b32.xlu0 %v2506, 64
        %v3049 = vpop.permute.xlu0 %3048
        %3050 = vrot.lane.b32.xlu0 %v2508, 64
        %v3051 = vpop.permute.xlu0 %3050
        %3052 = vrot.lane.b32.xlu0 %v2511, 64
        %v3053 = vpop.permute.xlu0 %3052
        %3054 = vrot.lane.b32.xlu0 %v2513, 64
        %v3055 = vpop.permute.xlu0 %3054
        %3056 = vrot.lane.b32.xlu0 %v2516, 64
        %v3057 = vpop.permute.xlu0 %3056
        %3058 = vrot.lane.b32.xlu0 %v2518, 64
        %v3059 = vpop.permute.xlu0 %3058
        %3060 = vrot.lane.b32.xlu0 %v2521, 64
        %v3061 = vpop.permute.xlu0 %3060
        %3062 = vrot.lane.b32.xlu0 %v2523, 64
        %v3063 = vpop.permute.xlu0 %3062
        %3064 = vrot.lane.b32.xlu0 %v2526, 64
        %v3065 = vpop.permute.xlu0 %3064
        %3066 = vrot.lane.b32.xlu0 %v2528, 64
        %v3067 = vpop.permute.xlu0 %3066
        %3068 = vrot.lane.b32.xlu0 %v2531, 64
        %v3069 = vpop.permute.xlu0 %3068
        %3070 = vrot.lane.b32.xlu0 %v2533, 64
        %v3071 = vpop.permute.xlu0 %3070
        %3072 = vrot.lane.b32.xlu0 %v2536, 64
        %v3073 = vpop.permute.xlu0 %3072
        %3074 = vrot.lane.b32.xlu0 %v2538, 64
        %v3075 = vpop.permute.xlu0 %3074
        %3076 = vrot.lane.b32.xlu0 %v2541, 64
        %v3077 = vpop.permute.xlu0 %3076
        %3078 = vrot.lane.b32.xlu0 %v2543, 64
        %v3079 = vpop.permute.xlu0 %3078
        %3080 = vrot.lane.b32.xlu0 %v2546, 64
        %v3081 = vpop.permute.xlu0 %3080
        %3082 = vrot.lane.b32.xlu0 %v2548, 64
        %v3083 = vpop.permute.xlu0 %3082
        %3084 = vrot.lane.b32.xlu0 %v2551, 64
        %v3085 = vpop.permute.xlu0 %3084
        %3086 = vrot.lane.b32.xlu0 %v2553, 64
        %v3087 = vpop.permute.xlu0 %3086
        %3088 = vrot.lane.b32.xlu0 %v2556, 64
        %v3089 = vpop.permute.xlu0 %3088
        %3090 = vrot.lane.b32.xlu0 %v2558, 64
        %v3091 = vpop.permute.xlu0 %3090
        %3092 = vrot.lane.b32.xlu0 %v2561, 64
        %v3093 = vpop.permute.xlu0 %3092
        %3094 = vrot.lane.b32.xlu0 %v2563, 64
        %v3095 = vpop.permute.xlu0 %3094
        %3096 = vrot.lane.b32.xlu0 %v3033, 64
        %v3097 = vpop.permute.xlu0 %3096
        %3098 = vrot.lane.b32.xlu0 %v3035, 64
        %v3099 = vpop.permute.xlu0 %3098
        %3132 = vst.msk [vmem:[#allocation3] sm:$0xff] %vm1247, %v3037
        %3133 = vst.msk [vmem:[#allocation3 + $0x10] sm:$0xff] %vm1247, %v3039
        %3134 = vst.msk [vmem:[#allocation3 + $0x20] sm:$0xff] %vm1247, %v3041
        %3135 = vst.msk [vmem:[#allocation3 + $0x30] sm:$0xff] %vm1247, %v3043
        %3136 = vst.msk [vmem:[#allocation3 + $0x40] sm:$0xff] %vm1247, %v3045
        %3137 = vst.msk [vmem:[#allocation3 + $0x50] sm:$0xff] %vm1247, %v3047
        %3138 = vst.msk [vmem:[#allocation3 + $0x60] sm:$0xff] %vm1247, %v3049
        %3139 = vst.msk [vmem:[#allocation3 + $0x70] sm:$0xff] %vm1247, %v3051
        %3140 = vst.msk [vmem:[#allocation3 + $0x80] sm:$0xff] %vm1247, %v3053
        %3141 = vst.msk [vmem:[#allocation3 + $0x90] sm:$0xff] %vm1247, %v3055
        %3142 = vst.msk [vmem:[#allocation3 + $0xa0] sm:$0xff] %vm1247, %v3057
        %3143 = vst.msk [vmem:[#allocation3 + $0xb0] sm:$0xff] %vm1247, %v3059
        %3144 = vst.msk [vmem:[#allocation3 + $0xc0] sm:$0xff] %vm1247, %v3061
        %3145 = vst.msk [vmem:[#allocation3 + $0xd0] sm:$0xff] %vm1247, %v3063
        %3146 = vst.msk [vmem:[#allocation3 + $0xe0] sm:$0xff] %vm1247, %v3065
        %3147 = vst.msk [vmem:[#allocation3 + $0xf0] sm:$0xff] %vm1247, %v3067
        %3148 = vst.msk [vmem:[#allocation3 + $0x100] sm:$0xff] %vm1247, %v3069
        %3149 = vst.msk [vmem:[#allocation3 + $0x110] sm:$0xff] %vm1247, %v3071
        %3150 = vst.msk [vmem:[#allocation3 + $0x120] sm:$0xff] %vm1247, %v3073
        %3151 = vst.msk [vmem:[#allocation3 + $0x130] sm:$0xff] %vm1247, %v3075
        %3152 = vst.msk [vmem:[#allocation3 + $0x140] sm:$0xff] %vm1247, %v3077
        %3153 = vst.msk [vmem:[#allocation3 + $0x150] sm:$0xff] %vm1247, %v3079
        %3154 = vst.msk [vmem:[#allocation3 + $0x160] sm:$0xff] %vm1247, %v3081
        %3155 = vst.msk [vmem:[#allocation3 + $0x170] sm:$0xff] %vm1247, %v3083
        %3156 = vst.msk [vmem:[#allocation3 + $0x180] sm:$0xff] %vm1247, %v3085
        %3157 = vst.msk [vmem:[#allocation3 + $0x190] sm:$0xff] %vm1247, %v3087
        %3158 = vst.msk [vmem:[#allocation3 + $0x1a0] sm:$0xff] %vm1247, %v3089
        %3159 = vst.msk [vmem:[#allocation3 + $0x1b0] sm:$0xff] %vm1247, %v3091
        %3160 = vst.msk [vmem:[#allocation3 + $0x1c0] sm:$0xff] %vm1247, %v3093
        %3161 = vst.msk [vmem:[#allocation3 + $0x1d0] sm:$0xff] %vm1247, %v3095
        %3162 = vst.msk [vmem:[#allocation3 + $0x1e0] sm:$0xff] %vm1247, %v3097
        %3163 = vst.msk [vmem:[#allocation3 + $0x1f0] sm:$0xff] %vm1247, %v3099
        %v3164 = vrot.slane %v2398, 2
        %v3165 = vrot.slane %v2399, 2
        %v3166 = vsel %vm804, %v3164, %v3165
        %v3167 = vrot.slane %v2400, 2
        %v3168 = vsel %vm804, %v3165, %v3167
        %3169 = vrot.lane.b32.xlu0 %v2699, 80
        %v3170 = vpop.permute.xlu0 %3169
        %3171 = vrot.lane.b32.xlu0 %v2701, 80
        %v3172 = vpop.permute.xlu0 %3171
        %3173 = vrot.lane.b32.xlu0 %v2704, 80
        %v3174 = vpop.permute.xlu0 %3173
        %3175 = vrot.lane.b32.xlu0 %v2706, 80
        %v3176 = vpop.permute.xlu0 %3175
        %3177 = vrot.lane.b32.xlu0 %v2709, 80
        %v3178 = vpop.permute.xlu0 %3177
        %3179 = vrot.lane.b32.xlu0 %v2711, 80
        %v3180 = vpop.permute.xlu0 %3179
        %3181 = vrot.lane.b32.xlu0 %v2714, 80
        %v3182 = vpop.permute.xlu0 %3181
        %3183 = vrot.lane.b32.xlu0 %v2716, 80
        %v3184 = vpop.permute.xlu0 %3183
        %3185 = vrot.lane.b32.xlu0 %v2719, 80
        %v3186 = vpop.permute.xlu0 %3185
        %3187 = vrot.lane.b32.xlu0 %v2721, 80
        %v3188 = vpop.permute.xlu0 %3187
        %3189 = vrot.lane.b32.xlu0 %v2724, 80
        %v3190 = vpop.permute.xlu0 %3189
        %3191 = vrot.lane.b32.xlu0 %v2726, 80
        %v3192 = vpop.permute.xlu0 %3191
        %3193 = vrot.lane.b32.xlu0 %v2729, 80
        %v3194 = vpop.permute.xlu0 %3193
        %3195 = vrot.lane.b32.xlu0 %v2731, 80
        %v3196 = vpop.permute.xlu0 %3195
        %3197 = vrot.lane.b32.xlu0 %v2734, 80
        %v3198 = vpop.permute.xlu0 %3197
        %3199 = vrot.lane.b32.xlu0 %v2736, 80
        %v3200 = vpop.permute.xlu0 %3199
        %3201 = vrot.lane.b32.xlu0 %v2739, 80
        %v3202 = vpop.permute.xlu0 %3201
        %3203 = vrot.lane.b32.xlu0 %v2741, 80
        %v3204 = vpop.permute.xlu0 %3203
        %3205 = vrot.lane.b32.xlu0 %v2744, 80
        %v3206 = vpop.permute.xlu0 %3205
        %3207 = vrot.lane.b32.xlu0 %v2746, 80
        %v3208 = vpop.permute.xlu0 %3207
        %3209 = vrot.lane.b32.xlu0 %v2749, 80
        %v3210 = vpop.permute.xlu0 %3209
        %3211 = vrot.lane.b32.xlu0 %v2751, 80
        %v3212 = vpop.permute.xlu0 %3211
        %3213 = vrot.lane.b32.xlu0 %v2754, 80
        %v3214 = vpop.permute.xlu0 %3213
        %3215 = vrot.lane.b32.xlu0 %v2756, 80
        %v3216 = vpop.permute.xlu0 %3215
        %3217 = vrot.lane.b32.xlu0 %v2759, 80
        %v3218 = vpop.permute.xlu0 %3217
        %3219 = vrot.lane.b32.xlu0 %v2761, 80
        %v3220 = vpop.permute.xlu0 %3219
        %3221 = vrot.lane.b32.xlu0 %v2764, 80
        %v3222 = vpop.permute.xlu0 %3221
        %3223 = vrot.lane.b32.xlu0 %v2766, 80
        %v3224 = vpop.permute.xlu0 %3223
        %3225 = vrot.lane.b32.xlu0 %v2769, 80
        %v3226 = vpop.permute.xlu0 %3225
        %3227 = vrot.lane.b32.xlu0 %v2771, 80
        %v3228 = vpop.permute.xlu0 %3227
        %3229 = vrot.lane.b32.xlu0 %v3166, 80
        %v3230 = vpop.permute.xlu0 %3229
        %3231 = vrot.lane.b32.xlu0 %v3168, 80
        %v3232 = vpop.permute.xlu0 %3231
        %3265 = vst.msk [vmem:[#allocation3] sm:$0xff] %vm1381, %v3170
        %3266 = vst.msk [vmem:[#allocation3 + $0x10] sm:$0xff] %vm1381, %v3172
        %3267 = vst.msk [vmem:[#allocation3 + $0x20] sm:$0xff] %vm1381, %v3174
        %3268 = vst.msk [vmem:[#allocation3 + $0x30] sm:$0xff] %vm1381, %v3176
        %3269 = vst.msk [vmem:[#allocation3 + $0x40] sm:$0xff] %vm1381, %v3178
        %3270 = vst.msk [vmem:[#allocation3 + $0x50] sm:$0xff] %vm1381, %v3180
        %3271 = vst.msk [vmem:[#allocation3 + $0x60] sm:$0xff] %vm1381, %v3182
        %3272 = vst.msk [vmem:[#allocation3 + $0x70] sm:$0xff] %vm1381, %v3184
        %3273 = vst.msk [vmem:[#allocation3 + $0x80] sm:$0xff] %vm1381, %v3186
        %3274 = vst.msk [vmem:[#allocation3 + $0x90] sm:$0xff] %vm1381, %v3188
        %3275 = vst.msk [vmem:[#allocation3 + $0xa0] sm:$0xff] %vm1381, %v3190
        %3276 = vst.msk [vmem:[#allocation3 + $0xb0] sm:$0xff] %vm1381, %v3192
        %3277 = vst.msk [vmem:[#allocation3 + $0xc0] sm:$0xff] %vm1381, %v3194
        %3278 = vst.msk [vmem:[#allocation3 + $0xd0] sm:$0xff] %vm1381, %v3196
        %3279 = vst.msk [vmem:[#allocation3 + $0xe0] sm:$0xff] %vm1381, %v3198
        %3280 = vst.msk [vmem:[#allocation3 + $0xf0] sm:$0xff] %vm1381, %v3200
        %3281 = vst.msk [vmem:[#allocation3 + $0x100] sm:$0xff] %vm1381, %v3202
        %3282 = vst.msk [vmem:[#allocation3 + $0x110] sm:$0xff] %vm1381, %v3204
        %3283 = vst.msk [vmem:[#allocation3 + $0x120] sm:$0xff] %vm1381, %v3206
        %3284 = vst.msk [vmem:[#allocation3 + $0x130] sm:$0xff] %vm1381, %v3208
        %3285 = vst.msk [vmem:[#allocation3 + $0x140] sm:$0xff] %vm1381, %v3210
        %3286 = vst.msk [vmem:[#allocation3 + $0x150] sm:$0xff] %vm1381, %v3212
        %3287 = vst.msk [vmem:[#allocation3 + $0x160] sm:$0xff] %vm1381, %v3214
        %3288 = vst.msk [vmem:[#allocation3 + $0x170] sm:$0xff] %vm1381, %v3216
        %3289 = vst.msk [vmem:[#allocation3 + $0x180] sm:$0xff] %vm1381, %v3218
        %3290 = vst.msk [vmem:[#allocation3 + $0x190] sm:$0xff] %vm1381, %v3220
        %3291 = vst.msk [vmem:[#allocation3 + $0x1a0] sm:$0xff] %vm1381, %v3222
        %3292 = vst.msk [vmem:[#allocation3 + $0x1b0] sm:$0xff] %vm1381, %v3224
        %3293 = vst.msk [vmem:[#allocation3 + $0x1c0] sm:$0xff] %vm1381, %v3226
        %3294 = vst.msk [vmem:[#allocation3 + $0x1d0] sm:$0xff] %vm1381, %v3228
        %3295 = vst.msk [vmem:[#allocation3 + $0x1e0] sm:$0xff] %vm1381, %v3230
        %3296 = vst.msk [vmem:[#allocation3 + $0x1f0] sm:$0xff] %vm1381, %v3232
        %3299 = vrot.lane.b32.xlu0 %v2356, 96
        %v3300 = vpop.permute.xlu0 %3299
        %3301 = vrot.lane.b32.xlu0 %v2357, 96
        %v3302 = vpop.permute.xlu0 %3301
        %3303 = vrot.lane.b32.xlu0 %v2359, 96
        %v3304 = vpop.permute.xlu0 %3303
        %3305 = vrot.lane.b32.xlu0 %v2360, 96
        %v3306 = vpop.permute.xlu0 %3305
        %3307 = vrot.lane.b32.xlu0 %v2362, 96
        %v3308 = vpop.permute.xlu0 %3307
        %3309 = vrot.lane.b32.xlu0 %v2363, 96
        %v3310 = vpop.permute.xlu0 %3309
        %3311 = vrot.lane.b32.xlu0 %v2365, 96
        %v3312 = vpop.permute.xlu0 %3311
        %3313 = vrot.lane.b32.xlu0 %v2366, 96
        %v3314 = vpop.permute.xlu0 %3313
        %3315 = vrot.lane.b32.xlu0 %v2368, 96
        %v3316 = vpop.permute.xlu0 %3315
        %3317 = vrot.lane.b32.xlu0 %v2369, 96
        %v3318 = vpop.permute.xlu0 %3317
        %3319 = vrot.lane.b32.xlu0 %v2371, 96
        %v3320 = vpop.permute.xlu0 %3319
        %3321 = vrot.lane.b32.xlu0 %v2372, 96
        %v3322 = vpop.permute.xlu0 %3321
        %3323 = vrot.lane.b32.xlu0 %v2374, 96
        %v3324 = vpop.permute.xlu0 %3323
        %3325 = vrot.lane.b32.xlu0 %v2375, 96
        %v3326 = vpop.permute.xlu0 %3325
        %3327 = vrot.lane.b32.xlu0 %v2377, 96
        %v3328 = vpop.permute.xlu0 %3327
        %3329 = vrot.lane.b32.xlu0 %v2378, 96
        %v3330 = vpop.permute.xlu0 %3329
        %3331 = vrot.lane.b32.xlu0 %v2380, 96
        %v3332 = vpop.permute.xlu0 %3331
        %3333 = vrot.lane.b32.xlu0 %v2381, 96
        %v3334 = vpop.permute.xlu0 %3333
        %3335 = vrot.lane.b32.xlu0 %v2383, 96
        %v3336 = vpop.permute.xlu0 %3335
        %3337 = vrot.lane.b32.xlu0 %v2384, 96
        %v3338 = vpop.permute.xlu0 %3337
        %3339 = vrot.lane.b32.xlu0 %v2386, 96
        %v3340 = vpop.permute.xlu0 %3339
        %3341 = vrot.lane.b32.xlu0 %v2387, 96
        %v3342 = vpop.permute.xlu0 %3341
        %3343 = vrot.lane.b32.xlu0 %v2389, 96
        %v3344 = vpop.permute.xlu0 %3343
        %3345 = vrot.lane.b32.xlu0 %v2390, 96
        %v3346 = vpop.permute.xlu0 %3345
        %3347 = vrot.lane.b32.xlu0 %v2392, 96
        %v3348 = vpop.permute.xlu0 %3347
        %3349 = vrot.lane.b32.xlu0 %v2393, 96
        %v3350 = vpop.permute.xlu0 %3349
        %3351 = vrot.lane.b32.xlu0 %v2395, 96
        %v3352 = vpop.permute.xlu0 %3351
        %3353 = vrot.lane.b32.xlu0 %v2396, 96
        %v3354 = vpop.permute.xlu0 %3353
        %3355 = vrot.lane.b32.xlu0 %v2398, 96
        %v3356 = vpop.permute.xlu0 %3355
        %3357 = vrot.lane.b32.xlu0 %v2399, 96
        %v3358 = vpop.permute.xlu0 %3357
        %3359 = vrot.lane.b32.xlu0 %v2401, 96
        %v3360 = vpop.permute.xlu0 %3359
        %3361 = vrot.lane.b32.xlu0 %v2402, 96
        %v3362 = vpop.permute.xlu0 %3361
        %3395 = vst.msk [vmem:[#allocation3] sm:$0xff] %vm1512, %v3300
        %3396 = vst.msk [vmem:[#allocation3 + $0x10] sm:$0xff] %vm1512, %v3302
        %3397 = vst.msk [vmem:[#allocation3 + $0x20] sm:$0xff] %vm1512, %v3304
        %3398 = vst.msk [vmem:[#allocation3 + $0x30] sm:$0xff] %vm1512, %v3306
        %3399 = vst.msk [vmem:[#allocation3 + $0x40] sm:$0xff] %vm1512, %v3308
        %3400 = vst.msk [vmem:[#allocation3 + $0x50] sm:$0xff] %vm1512, %v3310
        %3401 = vst.msk [vmem:[#allocation3 + $0x60] sm:$0xff] %vm1512, %v3312
        %3402 = vst.msk [vmem:[#allocation3 + $0x70] sm:$0xff] %vm1512, %v3314
        %3403 = vst.msk [vmem:[#allocation3 + $0x80] sm:$0xff] %vm1512, %v3316
        %3404 = vst.msk [vmem:[#allocation3 + $0x90] sm:$0xff] %vm1512, %v3318
        %3405 = vst.msk [vmem:[#allocation3 + $0xa0] sm:$0xff] %vm1512, %v3320
        %3406 = vst.msk [vmem:[#allocation3 + $0xb0] sm:$0xff] %vm1512, %v3322
        %3407 = vst.msk [vmem:[#allocation3 + $0xc0] sm:$0xff] %vm1512, %v3324
        %3408 = vst.msk [vmem:[#allocation3 + $0xd0] sm:$0xff] %vm1512, %v3326
        %3409 = vst.msk [vmem:[#allocation3 + $0xe0] sm:$0xff] %vm1512, %v3328
        %3410 = vst.msk [vmem:[#allocation3 + $0xf0] sm:$0xff] %vm1512, %v3330
        %3411 = vst.msk [vmem:[#allocation3 + $0x100] sm:$0xff] %vm1512, %v3332
        %3412 = vst.msk [vmem:[#allocation3 + $0x110] sm:$0xff] %vm1512, %v3334
        %3413 = vst.msk [vmem:[#allocation3 + $0x120] sm:$0xff] %vm1512, %v3336
        %3414 = vst.msk [vmem:[#allocation3 + $0x130] sm:$0xff] %vm1512, %v3338
        %3415 = vst.msk [vmem:[#allocation3 + $0x140] sm:$0xff] %vm1512, %v3340
        %3416 = vst.msk [vmem:[#allocation3 + $0x150] sm:$0xff] %vm1512, %v3342
        %3417 = vst.msk [vmem:[#allocation3 + $0x160] sm:$0xff] %vm1512, %v3344
        %3418 = vst.msk [vmem:[#allocation3 + $0x170] sm:$0xff] %vm1512, %v3346
        %3419 = vst.msk [vmem:[#allocation3 + $0x180] sm:$0xff] %vm1512, %v3348
        %3420 = vst.msk [vmem:[#allocation3 + $0x190] sm:$0xff] %vm1512, %v3350
        %3421 = vst.msk [vmem:[#allocation3 + $0x1a0] sm:$0xff] %vm1512, %v3352
        %3422 = vst.msk [vmem:[#allocation3 + $0x1b0] sm:$0xff] %vm1512, %v3354
        %3423 = vst.msk [vmem:[#allocation3 + $0x1c0] sm:$0xff] %vm1512, %v3356
        %3424 = vst.msk [vmem:[#allocation3 + $0x1d0] sm:$0xff] %vm1512, %v3358
        %3425 = vst.msk [vmem:[#allocation3 + $0x1e0] sm:$0xff] %vm1512, %v3360
        %3426 = vst.msk [vmem:[#allocation3 + $0x1f0] sm:$0xff] %vm1512, %v3362
        %v3428 = vrot.slane %v2401, 1
        %v3429 = vrot.slane %v2402, 1
        %v3430 = vsel %vm594, %v3428, %v3429
        %v3431 = vrot.slane %v2403, 1
        %v3432 = vsel %vm594, %v3429, %v3431
        %3433 = vrot.lane.b32.xlu0 %v2496, 112
        %v3434 = vpop.permute.xlu0 %3433
        %3435 = vrot.lane.b32.xlu0 %v2498, 112
        %v3436 = vpop.permute.xlu0 %3435
        %3437 = vrot.lane.b32.xlu0 %v2501, 112
        %v3438 = vpop.permute.xlu0 %3437
        %3439 = vrot.lane.b32.xlu0 %v2503, 112
        %v3440 = vpop.permute.xlu0 %3439
        %3441 = vrot.lane.b32.xlu0 %v2506, 112
        %v3442 = vpop.permute.xlu0 %3441
        %3443 = vrot.lane.b32.xlu0 %v2508, 112
        %v3444 = vpop.permute.xlu0 %3443
        %3445 = vrot.lane.b32.xlu0 %v2511, 112
        %v3446 = vpop.permute.xlu0 %3445
        %3447 = vrot.lane.b32.xlu0 %v2513, 112
        %v3448 = vpop.permute.xlu0 %3447
        %3449 = vrot.lane.b32.xlu0 %v2516, 112
        %v3450 = vpop.permute.xlu0 %3449
        %3451 = vrot.lane.b32.xlu0 %v2518, 112
        %v3452 = vpop.permute.xlu0 %3451
        %3453 = vrot.lane.b32.xlu0 %v2521, 112
        %v3454 = vpop.permute.xlu0 %3453
        %3455 = vrot.lane.b32.xlu0 %v2523, 112
        %v3456 = vpop.permute.xlu0 %3455
        %3457 = vrot.lane.b32.xlu0 %v2526, 112
        %v3458 = vpop.permute.xlu0 %3457
        %3459 = vrot.lane.b32.xlu0 %v2528, 112
        %v3460 = vpop.permute.xlu0 %3459
        %3461 = vrot.lane.b32.xlu0 %v2531, 112
        %v3462 = vpop.permute.xlu0 %3461
        %3463 = vrot.lane.b32.xlu0 %v2533, 112
        %v3464 = vpop.permute.xlu0 %3463
        %3465 = vrot.lane.b32.xlu0 %v2536, 112
        %v3466 = vpop.permute.xlu0 %3465
        %3467 = vrot.lane.b32.xlu0 %v2538, 112
        %v3468 = vpop.permute.xlu0 %3467
        %3469 = vrot.lane.b32.xlu0 %v2541, 112
        %v3470 = vpop.permute.xlu0 %3469
        %3471 = vrot.lane.b32.xlu0 %v2543, 112
        %v3472 = vpop.permute.xlu0 %3471
        %3473 = vrot.lane.b32.xlu0 %v2546, 112
        %v3474 = vpop.permute.xlu0 %3473
        %3475 = vrot.lane.b32.xlu0 %v2548, 112
        %v3476 = vpop.permute.xlu0 %3475
        %3477 = vrot.lane.b32.xlu0 %v2551, 112
        %v3478 = vpop.permute.xlu0 %3477
        %3479 = vrot.lane.b32.xlu0 %v2553, 112
        %v3480 = vpop.permute.xlu0 %3479
        %3481 = vrot.lane.b32.xlu0 %v2556, 112
        %v3482 = vpop.permute.xlu0 %3481
        %3483 = vrot.lane.b32.xlu0 %v2558, 112
        %v3484 = vpop.permute.xlu0 %3483
        %3485 = vrot.lane.b32.xlu0 %v2561, 112
        %v3486 = vpop.permute.xlu0 %3485
        %3487 = vrot.lane.b32.xlu0 %v2563, 112
        %v3488 = vpop.permute.xlu0 %3487
        %3489 = vrot.lane.b32.xlu0 %v3033, 112
        %v3490 = vpop.permute.xlu0 %3489
        %3491 = vrot.lane.b32.xlu0 %v3035, 112
        %v3492 = vpop.permute.xlu0 %3491
        %3493 = vrot.lane.b32.xlu0 %v3430, 112
        %v3494 = vpop.permute.xlu0 %3493
        %3495 = vrot.lane.b32.xlu0 %v3432, 112
        %v3496 = vpop.permute.xlu0 %3495
        %3529 = vst.msk [vmem:[#allocation3] sm:$0xff] %vm1647, %v3434
        %3530 = vst.msk [vmem:[#allocation3 + $0x10] sm:$0xff] %vm1647, %v3436
        %3531 = vst.msk [vmem:[#allocation3 + $0x20] sm:$0xff] %vm1647, %v3438
        %3532 = vst.msk [vmem:[#allocation3 + $0x30] sm:$0xff] %vm1647, %v3440
        %3533 = vst.msk [vmem:[#allocation3 + $0x40] sm:$0xff] %vm1647, %v3442
        %3534 = vst.msk [vmem:[#allocation3 + $0x50] sm:$0xff] %vm1647, %v3444
        %3535 = vst.msk [vmem:[#allocation3 + $0x60] sm:$0xff] %vm1647, %v3446
        %3536 = vst.msk [vmem:[#allocation3 + $0x70] sm:$0xff] %vm1647, %v3448
        %3537 = vst.msk [vmem:[#allocation3 + $0x80] sm:$0xff] %vm1647, %v3450
        %3538 = vst.msk [vmem:[#allocation3 + $0x90] sm:$0xff] %vm1647, %v3452
        %3539 = vst.msk [vmem:[#allocation3 + $0xa0] sm:$0xff] %vm1647, %v3454
        %3540 = vst.msk [vmem:[#allocation3 + $0xb0] sm:$0xff] %vm1647, %v3456
        %3541 = vst.msk [vmem:[#allocation3 + $0xc0] sm:$0xff] %vm1647, %v3458
        %3542 = vst.msk [vmem:[#allocation3 + $0xd0] sm:$0xff] %vm1647, %v3460
        %3543 = vst.msk [vmem:[#allocation3 + $0xe0] sm:$0xff] %vm1647, %v3462
        %3544 = vst.msk [vmem:[#allocation3 + $0xf0] sm:$0xff] %vm1647, %v3464
        %3545 = vst.msk [vmem:[#allocation3 + $0x100] sm:$0xff] %vm1647, %v3466
        %3546 = vst.msk [vmem:[#allocation3 + $0x110] sm:$0xff] %vm1647, %v3468
        %3547 = vst.msk [vmem:[#allocation3 + $0x120] sm:$0xff] %vm1647, %v3470
        %3548 = vst.msk [vmem:[#allocation3 + $0x130] sm:$0xff] %vm1647, %v3472
        %3549 = vst.msk [vmem:[#allocation3 + $0x140] sm:$0xff] %vm1647, %v3474
        %3550 = vst.msk [vmem:[#allocation3 + $0x150] sm:$0xff] %vm1647, %v3476
        %3551 = vst.msk [vmem:[#allocation3 + $0x160] sm:$0xff] %vm1647, %v3478
        %3552 = vst.msk [vmem:[#allocation3 + $0x170] sm:$0xff] %vm1647, %v3480
        %3553 = vst.msk [vmem:[#allocation3 + $0x180] sm:$0xff] %vm1647, %v3482
        %3554 = vst.msk [vmem:[#allocation3 + $0x190] sm:$0xff] %vm1647, %v3484
        %3555 = vst.msk [vmem:[#allocation3 + $0x1a0] sm:$0xff] %vm1647, %v3486
        %3556 = vst.msk [vmem:[#allocation3 + $0x1b0] sm:$0xff] %vm1647, %v3488
        %3557 = vst.msk [vmem:[#allocation3 + $0x1c0] sm:$0xff] %vm1647, %v3490
        %3558 = vst.msk [vmem:[#allocation3 + $0x1d0] sm:$0xff] %vm1647, %v3492
        %3559 = vst.msk [vmem:[#allocation3 + $0x1e0] sm:$0xff] %vm1647, %v3494
        %3560 = vst.msk [vmem:[#allocation3 + $0x1f0] sm:$0xff] %vm1647, %v3496
        %v3561 = vrot.slane %v2401, 2
        %v3562 = vrot.slane %v2402, 2
        %v3563 = vsel %vm804, %v3561, %v3562
        %v3564 = vrot.slane %v2403, 2
        %v3565 = vsel %vm804, %v3562, %v3564
        %3598 = vst.msk [vmem:[#allocation3 + $0x8] sm:$0xff] %vm277, %v2704
        %3599 = vst.msk [vmem:[#allocation3 + $0x18] sm:$0xff] %vm277, %v2706
        %3600 = vst.msk [vmem:[#allocation3 + $0x28] sm:$0xff] %vm277, %v2709
        %3601 = vst.msk [vmem:[#allocation3 + $0x38] sm:$0xff] %vm277, %v2711
        %3602 = vst.msk [vmem:[#allocation3 + $0x48] sm:$0xff] %vm277, %v2714
        %3603 = vst.msk [vmem:[#allocation3 + $0x58] sm:$0xff] %vm277, %v2716
        %3604 = vst.msk [vmem:[#allocation3 + $0x68] sm:$0xff] %vm277, %v2719
        %3605 = vst.msk [vmem:[#allocation3 + $0x78] sm:$0xff] %vm277, %v2721
        %3606 = vst.msk [vmem:[#allocation3 + $0x88] sm:$0xff] %vm277, %v2724
        %3607 = vst.msk [vmem:[#allocation3 + $0x98] sm:$0xff] %vm277, %v2726
        %3608 = vst.msk [vmem:[#allocation3 + $0xa8] sm:$0xff] %vm277, %v2729
        %3609 = vst.msk [vmem:[#allocation3 + $0xb8] sm:$0xff] %vm277, %v2731
        %3610 = vst.msk [vmem:[#allocation3 + $0xc8] sm:$0xff] %vm277, %v2734
        %3611 = vst.msk [vmem:[#allocation3 + $0xd8] sm:$0xff] %vm277, %v2736
        %3612 = vst.msk [vmem:[#allocation3 + $0xe8] sm:$0xff] %vm277, %v2739
        %3613 = vst.msk [vmem:[#allocation3 + $0xf8] sm:$0xff] %vm277, %v2741
        %3614 = vst.msk [vmem:[#allocation3 + $0x108] sm:$0xff] %vm277, %v2744
        %3615 = vst.msk [vmem:[#allocation3 + $0x118] sm:$0xff] %vm277, %v2746
        %3616 = vst.msk [vmem:[#allocation3 + $0x128] sm:$0xff] %vm277, %v2749
        %3617 = vst.msk [vmem:[#allocation3 + $0x138] sm:$0xff] %vm277, %v2751
        %3618 = vst.msk [vmem:[#allocation3 + $0x148] sm:$0xff] %vm277, %v2754
        %3619 = vst.msk [vmem:[#allocation3 + $0x158] sm:$0xff] %vm277, %v2756
        %3620 = vst.msk [vmem:[#allocation3 + $0x168] sm:$0xff] %vm277, %v2759
        %3621 = vst.msk [vmem:[#allocation3 + $0x178] sm:$0xff] %vm277, %v2761
        %3622 = vst.msk [vmem:[#allocation3 + $0x188] sm:$0xff] %vm277, %v2764
        %3623 = vst.msk [vmem:[#allocation3 + $0x198] sm:$0xff] %vm277, %v2766
        %3624 = vst.msk [vmem:[#allocation3 + $0x1a8] sm:$0xff] %vm277, %v2769
        %3625 = vst.msk [vmem:[#allocation3 + $0x1b8] sm:$0xff] %vm277, %v2771
        %3626 = vst.msk [vmem:[#allocation3 + $0x1c8] sm:$0xff] %vm277, %v3166
        %3627 = vst.msk [vmem:[#allocation3 + $0x1d8] sm:$0xff] %vm277, %v3168
        %3628 = vst.msk [vmem:[#allocation3 + $0x1e8] sm:$0xff] %vm277, %v3563
        %3629 = vst.msk [vmem:[#allocation3 + $0x1f8] sm:$0xff] %vm277, %v3565
        %v3630 = vld [vmem:[#allocation3] sm:$0xff]
        %v3631 = vld [vmem:[#allocation3 + $0x8] sm:$0xff]
        %v3632 = vld [vmem:[#allocation3 + $0x10] sm:$0xff]
        %v3633 = vld [vmem:[#allocation3 + $0x18] sm:$0xff]
        %v3634 = vld [vmem:[#allocation3 + $0x20] sm:$0xff]
        %v3635 = vld [vmem:[#allocation3 + $0x28] sm:$0xff]
        %v3636 = vld [vmem:[#allocation3 + $0x30] sm:$0xff]
        %v3637 = vld [vmem:[#allocation3 + $0x38] sm:$0xff]
        %v3638 = vld [vmem:[#allocation3 + $0x40] sm:$0xff]
        %v3639 = vld [vmem:[#allocation3 + $0x48] sm:$0xff]
        %v3640 = vld [vmem:[#allocation3 + $0x50] sm:$0xff]
        %v3641 = vld [vmem:[#allocation3 + $0x58] sm:$0xff]
        %v3642 = vld [vmem:[#allocation3 + $0x60] sm:$0xff]
        %v3643 = vld [vmem:[#allocation3 + $0x68] sm:$0xff]
        %v3644 = vld [vmem:[#allocation3 + $0x70] sm:$0xff]
        %v3645 = vld [vmem:[#allocation3 + $0x78] sm:$0xff]
        %v3646 = vld [vmem:[#allocation3 + $0x80] sm:$0xff]
        %v3647 = vld [vmem:[#allocation3 + $0x88] sm:$0xff]
        %v3648 = vld [vmem:[#allocation3 + $0x90] sm:$0xff]
        %v3649 = vld [vmem:[#allocation3 + $0x98] sm:$0xff]
        %v3650 = vld [vmem:[#allocation3 + $0xa0] sm:$0xff]
        %v3651 = vld [vmem:[#allocation3 + $0xa8] sm:$0xff]
        %v3652 = vld [vmem:[#allocation3 + $0xb0] sm:$0xff]
        %v3653 = vld [vmem:[#allocation3 + $0xb8] sm:$0xff]
        %v3654 = vld [vmem:[#allocation3 + $0xc0] sm:$0xff]
        %v3655 = vld [vmem:[#allocation3 + $0xc8] sm:$0xff]
        %v3656 = vld [vmem:[#allocation3 + $0xd0] sm:$0xff]
        %v3657 = vld [vmem:[#allocation3 + $0xd8] sm:$0xff]
        %v3658 = vld [vmem:[#allocation3 + $0xe0] sm:$0xff]
        %v3659 = vld [vmem:[#allocation3 + $0xe8] sm:$0xff]
        %v3660 = vld [vmem:[#allocation3 + $0xf0] sm:$0xff]
        %v3661 = vld [vmem:[#allocation3 + $0xf8] sm:$0xff]
        %v3662 = vld [vmem:[#allocation3 + $0x100] sm:$0xff]
        %v3663 = vld [vmem:[#allocation3 + $0x108] sm:$0xff]
        %v3664 = vld [vmem:[#allocation3 + $0x110] sm:$0xff]
        %v3665 = vld [vmem:[#allocation3 + $0x118] sm:$0xff]
        %v3666 = vld [vmem:[#allocation3 + $0x120] sm:$0xff]
        %v3667 = vld [vmem:[#allocation3 + $0x128] sm:$0xff]
        %v3668 = vld [vmem:[#allocation3 + $0x130] sm:$0xff]
        %v3669 = vld [vmem:[#allocation3 + $0x138] sm:$0xff]
        %v3670 = vld [vmem:[#allocation3 + $0x140] sm:$0xff]
        %v3671 = vld [vmem:[#allocation3 + $0x148] sm:$0xff]
        %v3672 = vld [vmem:[#allocation3 + $0x150] sm:$0xff]
        %v3673 = vld [vmem:[#allocation3 + $0x158] sm:$0xff]
        %v3674 = vld [vmem:[#allocation3 + $0x160] sm:$0xff]
        %v3675 = vld [vmem:[#allocation3 + $0x168] sm:$0xff]
        %v3676 = vld [vmem:[#allocation3 + $0x170] sm:$0xff]
        %v3677 = vld [vmem:[#allocation3 + $0x178] sm:$0xff]
        %v3678 = vld [vmem:[#allocation3 + $0x180] sm:$0xff]
        %v3679 = vld [vmem:[#allocation3 + $0x188] sm:$0xff]
        %v3680 = vld [vmem:[#allocation3 + $0x190] sm:$0xff]
        %v3681 = vld [vmem:[#allocation3 + $0x198] sm:$0xff]
        %v3682 = vld [vmem:[#allocation3 + $0x1a0] sm:$0xff]
        %v3683 = vld [vmem:[#allocation3 + $0x1a8] sm:$0xff]
        %v3684 = vld [vmem:[#allocation3 + $0x1b0] sm:$0xff]
        %v3685 = vld [vmem:[#allocation3 + $0x1b8] sm:$0xff]
        %v3686 = vld [vmem:[#allocation3 + $0x1c0] sm:$0xff]
        %v3687 = vld [vmem:[#allocation3 + $0x1c8] sm:$0xff]
        %v3688 = vld [vmem:[#allocation3 + $0x1d0] sm:$0xff]
        %v3689 = vld [vmem:[#allocation3 + $0x1d8] sm:$0xff]
        %v3690 = vld [vmem:[#allocation3 + $0x1e0] sm:$0xff]
        %v3691 = vld [vmem:[#allocation3 + $0x1e8] sm:$0xff]
        %v3692 = vld [vmem:[#allocation3 + $0x1f0] sm:$0xff]
        %v3693 = vld [vmem:[#allocation3 + $0x1f8] sm:$0xff]
        %s3694 = scalar_lea.vmem %s1, 144
        %v3695 = vld [vmem:[%s3694] sm:$0xff]
        %v3696 = vld [vmem:[%s3694 + $0x8] sm:$0xff]
        %v3697 = vld [vmem:[%s3694 + $0x10] sm:$0xff]
        %v3698 = vld [vmem:[%s3694 + $0x18] sm:$0xff]
        %v3699 = vld [vmem:[%s3694 + $0x20] sm:$0xff]
        %v3700 = vld [vmem:[%s3694 + $0x28] sm:$0xff]
        %v3701 = vld [vmem:[%s3694 + $0x30] sm:$0xff]
        %v3702 = vld [vmem:[%s3694 + $0x38] sm:$0xff]
        %v3703 = vld [vmem:[%s3694 + $0x40] sm:$0xff]
        %v3704 = vld [vmem:[%s3694 + $0x48] sm:$0xff]
        %v3705 = vld [vmem:[%s3694 + $0x50] sm:$0xff]
        %v3706 = vld [vmem:[%s3694 + $0x58] sm:$0xff]
        %v3707 = vld [vmem:[%s3694 + $0x60] sm:$0xff]
        %v3708 = vld [vmem:[%s3694 + $0x68] sm:$0xff]
        %v3709 = vld [vmem:[%s3694 + $0x70] sm:$0xff]
        %v3710 = vld [vmem:[%s3694 + $0x78] sm:$0xff]
        %v3711 = vld [vmem:[%s3694 + $0x80] sm:$0xff]
        %v3712 = vld [vmem:[%s3694 + $0x88] sm:$0xff]
        %s3713 = scalar_lea.vmem %s2, 1
        %v3714 = vld [vmem:[%s3713] sm:$0x1]
        %v3716 = vperm.slane %v3714, 0
        %v3719 = vsel %vm277, %v3631, 0
        %v3722 = vsel %vm277, %v3633, 0
        %v3725 = vsel %vm277, %v3635, 0
        %v3728 = vsel %vm277, %v3637, 0
        %v3731 = vsel %vm277, %v3639, 0
        %v3734 = vsel %vm277, %v3641, 0
        %v3737 = vsel %vm277, %v3643, 0
        %v3740 = vsel %vm277, %v3645, 0
        %v3743 = vsel %vm277, %v3647, 0
        %v3746 = vsel %vm277, %v3649, 0
        %v3749 = vsel %vm277, %v3651, 0
        %v3752 = vsel %vm277, %v3653, 0
        %v3755 = vsel %vm277, %v3655, 0
        %v3758 = vsel %vm277, %v3657, 0
        %v3761 = vsel %vm277, %v3659, 0
        %v3764 = vsel %vm277, %v3661, 0
        %v3767 = vsel %vm277, %v3663, 0
        %v3770 = vsel %vm277, %v3665, 0
        %v3773 = vsel %vm277, %v3667, 0
        %v3776 = vsel %vm277, %v3669, 0
        %v3779 = vsel %vm277, %v3671, 0
        %v3782 = vsel %vm277, %v3673, 0
        %v3785 = vsel %vm277, %v3675, 0
        %v3788 = vsel %vm277, %v3677, 0
        %v3791 = vsel %vm277, %v3679, 0
        %v3794 = vsel %vm277, %v3681, 0
        %v3797 = vsel %vm277, %v3683, 0
        %v3800 = vsel %vm277, %v3685, 0
        %v3803 = vsel %vm277, %v3687, 0
        %v3806 = vsel %vm277, %v3689, 0
        %v3809 = vsel %vm277, %v3691, 0
        %v3812 = vsel %vm277, %v3693, 0
        %3814 = vmatpush.msra.mxu0 %v3710
        %3815 = vmatpush.msra.mxu0 %v3709
        %3816 = vmatpush.msra.mxu0 %v3708
        %3817 = vmatpush.msra.mxu0 %v3707
        %3818 = vmatpush.msra.mxu0 %v3706
        %3819 = vmatpush.msra.mxu0 %v3705
        %3820 = vmatpush.msra.mxu0 %v3704
        %3821 = vmatpush.msra.mxu0 %v3703
        %3822 = vmatpush.msra.mxu0 %v3702
        %3823 = vmatpush.msra.mxu0 %v3701
        %3824 = vmatpush.msra.mxu0 %v3700
        %3825 = vmatpush.msra.mxu0 %v3699
        %3826 = vmatpush.msra.mxu0 %v3698
        %3827 = vmatpush.msra.mxu0 %v3697
        %3828 = vmatpush.msra.mxu0 %v3696
        %3829 = vmatpush.msra.mxu0 %v3695
        %3830 = vmatmul.f32.gmra.mxu0 %v3630
        %v3831 = vpop.f32.mrf.mxu0
        %v3832 = vadd.f32 %v3716, %v3831
        %3833 = vmatmul.f32.gmra.mxu0 %v3632
        %v3834 = vpop.f32.mrf.mxu0
        %v3835 = vadd.f32 %v3716, %v3834
        %3836 = vmatmul.f32.gmra.mxu0 %v3634
        %v3837 = vpop.f32.mrf.mxu0
        %v3838 = vadd.f32 %v3716, %v3837
        %3839 = vmatmul.f32.gmra.mxu0 %v3636
        %v3840 = vpop.f32.mrf.mxu0
        %v3841 = vadd.f32 %v3716, %v3840
        %3842 = vmatmul.f32.gmra.mxu0 %v3638
        %v3843 = vpop.f32.mrf.mxu0
        %v3844 = vadd.f32 %v3716, %v3843
        %3845 = vmatmul.f32.gmra.mxu0 %v3640
        %v3846 = vpop.f32.mrf.mxu0
        %v3847 = vadd.f32 %v3716, %v3846
        %3848 = vmatmul.f32.gmra.mxu0 %v3642
        %v3849 = vpop.f32.mrf.mxu0
        %v3850 = vadd.f32 %v3716, %v3849
        %3851 = vmatmul.f32.gmra.mxu0 %v3644
        %v3852 = vpop.f32.mrf.mxu0
        %v3853 = vadd.f32 %v3716, %v3852
        %3854 = vmatmul.f32.gmra.mxu0 %v3646
        %v3855 = vpop.f32.mrf.mxu0
        %v3856 = vadd.f32 %v3716, %v3855
        %3857 = vmatmul.f32.gmra.mxu0 %v3648
        %v3858 = vpop.f32.mrf.mxu0
        %v3859 = vadd.f32 %v3716, %v3858
        %3860 = vmatmul.f32.gmra.mxu0 %v3650
        %v3861 = vpop.f32.mrf.mxu0
        %v3862 = vadd.f32 %v3716, %v3861
        %3863 = vmatmul.f32.gmra.mxu0 %v3652
        %v3864 = vpop.f32.mrf.mxu0
        %v3865 = vadd.f32 %v3716, %v3864
        %3866 = vmatmul.f32.gmra.mxu0 %v3654
        %v3867 = vpop.f32.mrf.mxu0
        %v3868 = vadd.f32 %v3716, %v3867
        %3869 = vmatmul.f32.gmra.mxu0 %v3656
        %v3870 = vpop.f32.mrf.mxu0
        %v3871 = vadd.f32 %v3716, %v3870
        %3872 = vmatmul.f32.gmra.mxu0 %v3658
        %v3873 = vpop.f32.mrf.mxu0
        %v3874 = vadd.f32 %v3716, %v3873
        %3875 = vmatmul.f32.gmra.mxu0 %v3660
        %v3876 = vpop.f32.mrf.mxu0
        %v3877 = vadd.f32 %v3716, %v3876
        %3878 = vmatmul.f32.gmra.mxu0 %v3662
        %v3879 = vpop.f32.mrf.mxu0
        %v3880 = vadd.f32 %v3716, %v3879
        %3881 = vmatmul.f32.gmra.mxu0 %v3664
        %v3882 = vpop.f32.mrf.mxu0
        %v3883 = vadd.f32 %v3716, %v3882
        %3884 = vmatmul.f32.gmra.mxu0 %v3666
        %v3885 = vpop.f32.mrf.mxu0
        %v3886 = vadd.f32 %v3716, %v3885
        %3887 = vmatmul.f32.gmra.mxu0 %v3668
        %v3888 = vpop.f32.mrf.mxu0
        %v3889 = vadd.f32 %v3716, %v3888
        %3890 = vmatmul.f32.gmra.mxu0 %v3670
        %v3891 = vpop.f32.mrf.mxu0
        %v3892 = vadd.f32 %v3716, %v3891
        %3893 = vmatmul.f32.gmra.mxu0 %v3672
        %v3894 = vpop.f32.mrf.mxu0
        %v3895 = vadd.f32 %v3716, %v3894
        %3896 = vmatmul.f32.gmra.mxu0 %v3674
        %v3897 = vpop.f32.mrf.mxu0
        %v3898 = vadd.f32 %v3716, %v3897
        %3899 = vmatmul.f32.gmra.mxu0 %v3676
        %v3900 = vpop.f32.mrf.mxu0
        %v3901 = vadd.f32 %v3716, %v3900
        %3902 = vmatmul.f32.gmra.mxu0 %v3678
        %v3903 = vpop.f32.mrf.mxu0
        %v3904 = vadd.f32 %v3716, %v3903
        %3905 = vmatmul.f32.gmra.mxu0 %v3680
        %v3906 = vpop.f32.mrf.mxu0
        %v3907 = vadd.f32 %v3716, %v3906
        %3908 = vmatmul.f32.gmra.mxu0 %v3682
        %v3909 = vpop.f32.mrf.mxu0
        %v3910 = vadd.f32 %v3716, %v3909
        %3911 = vmatmul.f32.gmra.mxu0 %v3684
        %v3912 = vpop.f32.mrf.mxu0
        %v3913 = vadd.f32 %v3716, %v3912
        %3914 = vmatmul.f32.gmra.mxu0 %v3686
        %v3915 = vpop.f32.mrf.mxu0
        %v3916 = vadd.f32 %v3716, %v3915
        %3917 = vmatmul.f32.gmra.mxu0 %v3688
        %v3918 = vpop.f32.mrf.mxu0
        %v3919 = vadd.f32 %v3716, %v3918
        %3920 = vmatmul.f32.gmra.mxu0 %v3690
        %v3921 = vpop.f32.mrf.mxu0
        %v3922 = vadd.f32 %v3716, %v3921
        %3923 = vmatmul.f32.gmra.mxu0 %v3692
        %v3924 = vpop.f32.mrf.mxu0
        %v3925 = vadd.f32 %v3716, %v3924
        %3926 = vdwg.mxu0
        %3927 = vmatpush.msra.mxu0 0.0
        %3928 = vmatpush.msra.mxu0 0.0
        %3929 = vmatpush.msra.mxu0 0.0
        %3930 = vmatpush.msra.mxu0 0.0
        %3931 = vmatpush.msra.mxu0 0.0
        %3932 = vmatpush.msra.mxu0 0.0
        %3933 = vmatpush.msra.mxu0 0.0
        %3934 = vmatpush.msra.mxu0 0.0
        %3935 = vmatpush.msra.mxu0 0.0
        %3936 = vmatpush.msra.mxu0 0.0
        %3937 = vmatpush.msra.mxu0 0.0
        %3938 = vmatpush.msra.mxu0 0.0
        %3939 = vmatpush.msra.mxu0 0.0
        %3940 = vmatpush.msra.mxu0 0.0
        %3941 = vmatpush.msra.mxu0 %v3712
        %3942 = vmatpush.msra.mxu0 %v3711
        %3943 = vmatmul.f32.gmra.mxu0 %v3719
        %v3944 = vpop.f32.mrf.mxu0
        %v3945 = vadd.f32 %v3832, %v3944
        %3946 = vmatmul.f32.gmra.mxu0 %v3722
        %v3947 = vpop.f32.mrf.mxu0
        %v3948 = vadd.f32 %v3835, %v3947
        %3949 = vmatmul.f32.gmra.mxu0 %v3725
        %v3950 = vpop.f32.mrf.mxu0
        %v3951 = vadd.f32 %v3838, %v3950
        %3952 = vmatmul.f32.gmra.mxu0 %v3728
        %v3953 = vpop.f32.mrf.mxu0
        %v3954 = vadd.f32 %v3841, %v3953
        %3955 = vmatmul.f32.gmra.mxu0 %v3731
        %v3956 = vpop.f32.mrf.mxu0
        %v3957 = vadd.f32 %v3844, %v3956
        %3958 = vmatmul.f32.gmra.mxu0 %v3734
        %v3959 = vpop.f32.mrf.mxu0
        %v3960 = vadd.f32 %v3847, %v3959
        %3961 = vmatmul.f32.gmra.mxu0 %v3737
        %v3962 = vpop.f32.mrf.mxu0
        %v3963 = vadd.f32 %v3850, %v3962
        %3964 = vmatmul.f32.gmra.mxu0 %v3740
        %v3965 = vpop.f32.mrf.mxu0
        %v3966 = vadd.f32 %v3853, %v3965
        %3967 = vmatmul.f32.gmra.mxu0 %v3743
        %v3968 = vpop.f32.mrf.mxu0
        %v3969 = vadd.f32 %v3856, %v3968
        %3970 = vmatmul.f32.gmra.mxu0 %v3746
        %v3971 = vpop.f32.mrf.mxu0
        %v3972 = vadd.f32 %v3859, %v3971
        %3973 = vmatmul.f32.gmra.mxu0 %v3749
        %v3974 = vpop.f32.mrf.mxu0
        %v3975 = vadd.f32 %v3862, %v3974
        %3976 = vmatmul.f32.gmra.mxu0 %v3752
        %v3977 = vpop.f32.mrf.mxu0
        %v3978 = vadd.f32 %v3865, %v3977
        %3979 = vmatmul.f32.gmra.mxu0 %v3755
        %v3980 = vpop.f32.mrf.mxu0
        %v3981 = vadd.f32 %v3868, %v3980
        %3982 = vmatmul.f32.gmra.mxu0 %v3758
        %v3983 = vpop.f32.mrf.mxu0
        %v3984 = vadd.f32 %v3871, %v3983
        %3985 = vmatmul.f32.gmra.mxu0 %v3761
        %v3986 = vpop.f32.mrf.mxu0
        %v3987 = vadd.f32 %v3874, %v3986
        %3988 = vmatmul.f32.gmra.mxu0 %v3764
        %v3989 = vpop.f32.mrf.mxu0
        %v3990 = vadd.f32 %v3877, %v3989
        %3991 = vmatmul.f32.gmra.mxu0 %v3767
        %v3992 = vpop.f32.mrf.mxu0
        %v3993 = vadd.f32 %v3880, %v3992
        %3994 = vmatmul.f32.gmra.mxu0 %v3770
        %v3995 = vpop.f32.mrf.mxu0
        %v3996 = vadd.f32 %v3883, %v3995
        %3997 = vmatmul.f32.gmra.mxu0 %v3773
        %v3998 = vpop.f32.mrf.mxu0
        %v3999 = vadd.f32 %v3886, %v3998
        %4000 = vmatmul.f32.gmra.mxu0 %v3776
        %v4001 = vpop.f32.mrf.mxu0
        %v4002 = vadd.f32 %v3889, %v4001
        %4003 = vmatmul.f32.gmra.mxu0 %v3779
        %v4004 = vpop.f32.mrf.mxu0
        %v4005 = vadd.f32 %v3892, %v4004
        %4006 = vmatmul.f32.gmra.mxu0 %v3782
        %v4007 = vpop.f32.mrf.mxu0
        %v4008 = vadd.f32 %v3895, %v4007
        %4009 = vmatmul.f32.gmra.mxu0 %v3785
        %v4010 = vpop.f32.mrf.mxu0
        %v4011 = vadd.f32 %v3898, %v4010
        %4012 = vmatmul.f32.gmra.mxu0 %v3788
        %v4013 = vpop.f32.mrf.mxu0
        %v4014 = vadd.f32 %v3901, %v4013
        %4015 = vmatmul.f32.gmra.mxu0 %v3791
        %v4016 = vpop.f32.mrf.mxu0
        %v4017 = vadd.f32 %v3904, %v4016
        %4018 = vmatmul.f32.gmra.mxu0 %v3794
        %v4019 = vpop.f32.mrf.mxu0
        %v4020 = vadd.f32 %v3907, %v4019
        %4021 = vmatmul.f32.gmra.mxu0 %v3797
        %v4022 = vpop.f32.mrf.mxu0
        %v4023 = vadd.f32 %v3910, %v4022
        %4024 = vmatmul.f32.gmra.mxu0 %v3800
        %v4025 = vpop.f32.mrf.mxu0
        %v4026 = vadd.f32 %v3913, %v4025
        %4027 = vmatmul.f32.gmra.mxu0 %v3803
        %v4028 = vpop.f32.mrf.mxu0
        %v4029 = vadd.f32 %v3916, %v4028
        %4030 = vmatmul.f32.gmra.mxu0 %v3806
        %v4031 = vpop.f32.mrf.mxu0
        %v4032 = vadd.f32 %v3919, %v4031
        %4033 = vmatmul.f32.gmra.mxu0 %v3809
        %v4034 = vpop.f32.mrf.mxu0
        %v4035 = vadd.f32 %v3922, %v4034
        %4036 = vmatmul.f32.gmra.mxu0 %v3812
        %v4037 = vpop.f32.mrf.mxu0
        %v4038 = vadd.f32 %v3925, %v4037
        %4039 = vdwg.mxu0
        %v4040 = vmax.f32 %v3945, 0.0
        %v4041 = vmax.f32 %v3948, 0.0
        %v4042 = vmax.f32 %v3951, 0.0
        %v4043 = vmax.f32 %v3954, 0.0
        %v4044 = vmax.f32 %v3957, 0.0
        %v4045 = vmax.f32 %v3960, 0.0
        %v4046 = vmax.f32 %v3963, 0.0
        %v4047 = vmax.f32 %v3966, 0.0
        %v4048 = vmax.f32 %v3969, 0.0
        %v4049 = vmax.f32 %v3972, 0.0
        %v4050 = vmax.f32 %v3975, 0.0
        %v4051 = vmax.f32 %v3978, 0.0
        %v4052 = vmax.f32 %v3981, 0.0
        %v4053 = vmax.f32 %v3984, 0.0
        %v4054 = vmax.f32 %v3987, 0.0
        %v4055 = vmax.f32 %v3990, 0.0
        %v4056 = vmax.f32 %v3993, 0.0
        %v4057 = vmax.f32 %v3996, 0.0
        %v4058 = vmax.f32 %v3999, 0.0
        %v4059 = vmax.f32 %v4002, 0.0
        %v4060 = vmax.f32 %v4005, 0.0
        %v4061 = vmax.f32 %v4008, 0.0
        %v4062 = vmax.f32 %v4011, 0.0
        %v4063 = vmax.f32 %v4014, 0.0
        %v4064 = vmax.f32 %v4017, 0.0
        %v4065 = vmax.f32 %v4020, 0.0
        %v4066 = vmax.f32 %v4023, 0.0
        %v4067 = vmax.f32 %v4026, 0.0
        %v4068 = vmax.f32 %v4029, 0.0
        %v4069 = vmax.f32 %v4032, 0.0
        %v4070 = vmax.f32 %v4035, 0.0
        %v4071 = vmax.f32 %v4038, 0.0
        %4104 = vrot.lane.b32.xlu0 %v4040, 8
        %v4105 = vpop.permute.xlu0 %4104
        %4106 = vrot.lane.b32.xlu0 %v4041, 8
        %v4107 = vpop.permute.xlu0 %4106
        %4108 = vrot.lane.b32.xlu0 %v4042, 8
        %v4109 = vpop.permute.xlu0 %4108
        %4110 = vrot.lane.b32.xlu0 %v4043, 8
        %v4111 = vpop.permute.xlu0 %4110
        %4112 = vrot.lane.b32.xlu0 %v4044, 8
        %v4113 = vpop.permute.xlu0 %4112
        %4114 = vrot.lane.b32.xlu0 %v4045, 8
        %v4115 = vpop.permute.xlu0 %4114
        %4116 = vrot.lane.b32.xlu0 %v4046, 8
        %v4117 = vpop.permute.xlu0 %4116
        %4118 = vrot.lane.b32.xlu0 %v4047, 8
        %v4119 = vpop.permute.xlu0 %4118
        %4120 = vrot.lane.b32.xlu0 %v4048, 8
        %v4121 = vpop.permute.xlu0 %4120
        %4122 = vrot.lane.b32.xlu0 %v4049, 8
        %v4123 = vpop.permute.xlu0 %4122
        %4124 = vrot.lane.b32.xlu0 %v4050, 8
        %v4125 = vpop.permute.xlu0 %4124
        %4126 = vrot.lane.b32.xlu0 %v4051, 8
        %v4127 = vpop.permute.xlu0 %4126
        %4128 = vrot.lane.b32.xlu0 %v4052, 8
        %v4129 = vpop.permute.xlu0 %4128
        %4130 = vrot.lane.b32.xlu0 %v4053, 8
        %v4131 = vpop.permute.xlu0 %4130
        %4132 = vrot.lane.b32.xlu0 %v4054, 8
        %v4133 = vpop.permute.xlu0 %4132
        %4134 = vrot.lane.b32.xlu0 %v4055, 8
        %v4135 = vpop.permute.xlu0 %4134
        %4136 = vrot.lane.b32.xlu0 %v4056, 8
        %v4137 = vpop.permute.xlu0 %4136
        %4138 = vrot.lane.b32.xlu0 %v4057, 8
        %v4139 = vpop.permute.xlu0 %4138
        %4140 = vrot.lane.b32.xlu0 %v4058, 8
        %v4141 = vpop.permute.xlu0 %4140
        %4142 = vrot.lane.b32.xlu0 %v4059, 8
        %v4143 = vpop.permute.xlu0 %4142
        %4144 = vrot.lane.b32.xlu0 %v4060, 8
        %v4145 = vpop.permute.xlu0 %4144
        %4146 = vrot.lane.b32.xlu0 %v4061, 8
        %v4147 = vpop.permute.xlu0 %4146
        %4148 = vrot.lane.b32.xlu0 %v4062, 8
        %v4149 = vpop.permute.xlu0 %4148
        %4150 = vrot.lane.b32.xlu0 %v4063, 8
        %v4151 = vpop.permute.xlu0 %4150
        %4152 = vrot.lane.b32.xlu0 %v4064, 8
        %v4153 = vpop.permute.xlu0 %4152
        %4154 = vrot.lane.b32.xlu0 %v4065, 8
        %v4155 = vpop.permute.xlu0 %4154
        %4156 = vrot.lane.b32.xlu0 %v4066, 8
        %v4157 = vpop.permute.xlu0 %4156
        %4158 = vrot.lane.b32.xlu0 %v4067, 8
        %v4159 = vpop.permute.xlu0 %4158
        %4160 = vrot.lane.b32.xlu0 %v4068, 8
        %v4161 = vpop.permute.xlu0 %4160
        %4162 = vrot.lane.b32.xlu0 %v4069, 8
        %v4163 = vpop.permute.xlu0 %4162
        %4164 = vrot.lane.b32.xlu0 %v4070, 8
        %v4165 = vpop.permute.xlu0 %4164
        %4166 = vrot.lane.b32.xlu0 %v4071, 8
        %v4167 = vpop.permute.xlu0 %4166
        %vm4200 = vcmask 97344
        %4201 = vst.msk [vmem:[%s427 + $0x1] sm:$0xff] %vm4200, %v4105
        %4202 = vst.msk [vmem:[%s427 + $0x9] sm:$0xff] %vm4200, %v4107
        %4203 = vst.msk [vmem:[%s427 + $0x19] sm:$0xff] %vm4200, %v4109
        %4204 = vst.msk [vmem:[%s427 + $0x21] sm:$0xff] %vm4200, %v4111
        %4205 = vst.msk [vmem:[%s427 + $0x31] sm:$0xff] %vm4200, %v4113
        %4206 = vst.msk [vmem:[%s427 + $0x39] sm:$0xff] %vm4200, %v4115
        %4207 = vst.msk [vmem:[%s427 + $0x49] sm:$0xff] %vm4200, %v4117
        %4208 = vst.msk [vmem:[%s427 + $0x51] sm:$0xff] %vm4200, %v4119
        %4209 = vst.msk [vmem:[%s427 + $0x61] sm:$0xff] %vm4200, %v4121
        %4210 = vst.msk [vmem:[%s427 + $0x69] sm:$0xff] %vm4200, %v4123
        %4211 = vst.msk [vmem:[%s427 + $0x79] sm:$0xff] %vm4200, %v4125
        %4212 = vst.msk [vmem:[%s427 + $0x81] sm:$0xff] %vm4200, %v4127
        %4213 = vst.msk [vmem:[%s427 + $0x91] sm:$0xff] %vm4200, %v4129
        %4214 = vst.msk [vmem:[%s427 + $0x99] sm:$0xff] %vm4200, %v4131
        %4215 = vst.msk [vmem:[%s427 + $0xa9] sm:$0xff] %vm4200, %v4133
        %4216 = vst.msk [vmem:[%s427 + $0xb1] sm:$0xff] %vm4200, %v4135
        %4217 = vst.msk [vmem:[%s427 + $0xc1] sm:$0xff] %vm4200, %v4137
        %4218 = vst.msk [vmem:[%s427 + $0xc9] sm:$0xff] %vm4200, %v4139
        %4219 = vst.msk [vmem:[%s427 + $0xd9] sm:$0xff] %vm4200, %v4141
        %4220 = vst.msk [vmem:[%s427 + $0xe1] sm:$0xff] %vm4200, %v4143
        %4221 = vst.msk [vmem:[%s427 + $0xf1] sm:$0xff] %vm4200, %v4145
        %4222 = vst.msk [vmem:[%s427 + $0xf9] sm:$0xff] %vm4200, %v4147
        %4223 = vst.msk [vmem:[%s427 + $0x109] sm:$0xff] %vm4200, %v4149
        %4224 = vst.msk [vmem:[%s427 + $0x111] sm:$0xff] %vm4200, %v4151
        %4225 = vst.msk [vmem:[%s427 + $0x121] sm:$0xff] %vm4200, %v4153
        %4226 = vst.msk [vmem:[%s427 + $0x129] sm:$0xff] %vm4200, %v4155
        %4227 = vst.msk [vmem:[%s427 + $0x139] sm:$0xff] %vm4200, %v4157
        %4228 = vst.msk [vmem:[%s427 + $0x141] sm:$0xff] %vm4200, %v4159
        %4229 = vst.msk [vmem:[%s427 + $0x151] sm:$0xff] %vm4200, %v4161
        %4230 = vst.msk [vmem:[%s427 + $0x159] sm:$0xff] %vm4200, %v4163
        %4231 = vst.msk [vmem:[%s427 + $0x169] sm:$0xff] %vm4200, %v4165
        %4232 = vst.msk [vmem:[%s427 + $0x171] sm:$0xff] %vm4200, %v4167
        %v4233 = vld [vmem:[#allocation2] sm:$0xff]
        %v4234 = vld [vmem:[#allocation2 + $0x8] sm:$0xff]
        %v4235 = vld [vmem:[#allocation2 + $0x10] sm:$0x3]
        %v4236 = vld [vmem:[#allocation2 + $0x18] sm:$0xff]
        %v4237 = vld [vmem:[#allocation2 + $0x20] sm:$0xff]
        %v4238 = vld [vmem:[#allocation2 + $0x28] sm:$0x3]
        %v4239 = vld [vmem:[#allocation2 + $0x30] sm:$0xff]
        %v4240 = vld [vmem:[#allocation2 + $0x38] sm:$0xff]
        %v4241 = vld [vmem:[#allocation2 + $0x40] sm:$0x3]
        %v4242 = vld [vmem:[#allocation2 + $0x48] sm:$0xff]
        %v4243 = vld [vmem:[#allocation2 + $0x50] sm:$0xff]
        %v4244 = vld [vmem:[#allocation2 + $0x58] sm:$0x3]
        %v4245 = vld [vmem:[#allocation2 + $0x60] sm:$0xff]
        %v4246 = vld [vmem:[#allocation2 + $0x68] sm:$0xff]
        %v4247 = vld [vmem:[#allocation2 + $0x70] sm:$0x3]
        %v4248 = vld [vmem:[#allocation2 + $0x78] sm:$0xff]
        %v4249 = vld [vmem:[#allocation2 + $0x80] sm:$0xff]
        %v4250 = vld [vmem:[#allocation2 + $0x88] sm:$0x3]
        %v4251 = vld [vmem:[#allocation2 + $0x90] sm:$0xff]
        %v4252 = vld [vmem:[#allocation2 + $0x98] sm:$0xff]
        %v4253 = vld [vmem:[#allocation2 + $0xa0] sm:$0x3]
        %v4254 = vld [vmem:[#allocation2 + $0xa8] sm:$0xff]
        %v4255 = vld [vmem:[#allocation2 + $0xb0] sm:$0xff]
        %v4256 = vld [vmem:[#allocation2 + $0xb8] sm:$0x3]
        %v4257 = vld [vmem:[#allocation2 + $0xc0] sm:$0xff]
        %v4258 = vld [vmem:[#allocation2 + $0xc8] sm:$0xff]
        %v4259 = vld [vmem:[#allocation2 + $0xd0] sm:$0x3]
        %v4260 = vld [vmem:[#allocation2 + $0xd8] sm:$0xff]
        %v4261 = vld [vmem:[#allocation2 + $0xe0] sm:$0xff]
        %v4262 = vld [vmem:[#allocation2 + $0xe8] sm:$0x3]
        %v4263 = vld [vmem:[#allocation2 + $0xf0] sm:$0xff]
        %v4264 = vld [vmem:[#allocation2 + $0xf8] sm:$0xff]
        %v4265 = vld [vmem:[#allocation2 + $0x100] sm:$0x3]
        %v4266 = vld [vmem:[#allocation2 + $0x108] sm:$0xff]
        %v4267 = vld [vmem:[#allocation2 + $0x110] sm:$0xff]
        %v4268 = vld [vmem:[#allocation2 + $0x118] sm:$0x3]
        %v4269 = vld [vmem:[#allocation2 + $0x120] sm:$0xff]
        %v4270 = vld [vmem:[#allocation2 + $0x128] sm:$0xff]
        %v4271 = vld [vmem:[#allocation2 + $0x130] sm:$0x3]
        %v4272 = vld [vmem:[#allocation2 + $0x138] sm:$0xff]
        %v4273 = vld [vmem:[#allocation2 + $0x140] sm:$0xff]
        %v4274 = vld [vmem:[#allocation2 + $0x148] sm:$0x3]
        %v4275 = vld [vmem:[#allocation2 + $0x150] sm:$0xff]
        %v4276 = vld [vmem:[#allocation2 + $0x158] sm:$0xff]
        %v4277 = vld [vmem:[#allocation2 + $0x160] sm:$0x3]
        %v4278 = vld [vmem:[#allocation2 + $0x168] sm:$0xff]
        %v4279 = vld [vmem:[#allocation2 + $0x170] sm:$0xff]
        %v4280 = vld [vmem:[#allocation2 + $0x178] sm:$0x3]
        %v4281 = vld [vmem:[#allocation2 + $0x180] sm:$0xff]
        %v4282 = vld [vmem:[#allocation2 + $0x188] sm:$0xff]
        %v4283 = vld [vmem:[#allocation2 + $0x190] sm:$0x3]
        %v4284 = vld [vmem:[#allocation2 + $0x198] sm:$0xff]
        %v4285 = vld [vmem:[#allocation2 + $0x1a0] sm:$0xff]
        %v4286 = vld [vmem:[#allocation2 + $0x1a8] sm:$0x3]
        %4287 = vst.msk [vmem:[#allocation3] sm:$0xff] %vm277, %v4233
        %4288 = vst.msk [vmem:[#allocation3 + $0x10] sm:$0xff] %vm277, %v4234
        %4289 = vst.msk [vmem:[#allocation3 + $0x20] sm:$0xff] %vm277, %v4236
        %4290 = vst.msk [vmem:[#allocation3 + $0x30] sm:$0xff] %vm277, %v4237
        %4291 = vst.msk [vmem:[#allocation3 + $0x40] sm:$0xff] %vm277, %v4239
        %4292 = vst.msk [vmem:[#allocation3 + $0x50] sm:$0xff] %vm277, %v4240
        %4293 = vst.msk [vmem:[#allocation3 + $0x60] sm:$0xff] %vm277, %v4242
        %4294 = vst.msk [vmem:[#allocation3 + $0x70] sm:$0xff] %vm277, %v4243
        %4295 = vst.msk [vmem:[#allocation3 + $0x80] sm:$0xff] %vm277, %v4245
        %4296 = vst.msk [vmem:[#allocation3 + $0x90] sm:$0xff] %vm277, %v4246
        %4297 = vst.msk [vmem:[#allocation3 + $0xa0] sm:$0xff] %vm277, %v4248
        %4298 = vst.msk [vmem:[#allocation3 + $0xb0] sm:$0xff] %vm277, %v4249
        %4299 = vst.msk [vmem:[#allocation3 + $0xc0] sm:$0xff] %vm277, %v4251
        %4300 = vst.msk [vmem:[#allocation3 + $0xd0] sm:$0xff] %vm277, %v4252
        %4301 = vst.msk [vmem:[#allocation3 + $0xe0] sm:$0xff] %vm277, %v4254
        %4302 = vst.msk [vmem:[#allocation3 + $0xf0] sm:$0xff] %vm277, %v4255
        %4303 = vst.msk [vmem:[#allocation3 + $0x100] sm:$0xff] %vm277, %v4257
        %4304 = vst.msk [vmem:[#allocation3 + $0x110] sm:$0xff] %vm277, %v4258
        %4305 = vst.msk [vmem:[#allocation3 + $0x120] sm:$0xff] %vm277, %v4260
        %4306 = vst.msk [vmem:[#allocation3 + $0x130] sm:$0xff] %vm277, %v4261
        %4307 = vst.msk [vmem:[#allocation3 + $0x140] sm:$0xff] %vm277, %v4263
        %4308 = vst.msk [vmem:[#allocation3 + $0x150] sm:$0xff] %vm277, %v4264
        %4309 = vst.msk [vmem:[#allocation3 + $0x160] sm:$0xff] %vm277, %v4266
        %4310 = vst.msk [vmem:[#allocation3 + $0x170] sm:$0xff] %vm277, %v4267
        %4311 = vst.msk [vmem:[#allocation3 + $0x180] sm:$0xff] %vm277, %v4269
        %4312 = vst.msk [vmem:[#allocation3 + $0x190] sm:$0xff] %vm277, %v4270
        %4313 = vst.msk [vmem:[#allocation3 + $0x1a0] sm:$0xff] %vm277, %v4272
        %4314 = vst.msk [vmem:[#allocation3 + $0x1b0] sm:$0xff] %vm277, %v4273
        %4315 = vst.msk [vmem:[#allocation3 + $0x1c0] sm:$0xff] %vm277, %v4275
        %4316 = vst.msk [vmem:[#allocation3 + $0x1d0] sm:$0xff] %vm277, %v4276
        %4317 = vst.msk [vmem:[#allocation3 + $0x1e0] sm:$0xff] %vm277, %v4278
        %4318 = vst.msk [vmem:[#allocation3 + $0x1f0] sm:$0xff] %vm277, %v4279
        %v4367 = vrot.slane %v4233, 1
        %v4368 = vrot.slane %v4234, 1
        %v4369 = vsel %vm594, %v4367, %v4368
        %v4370 = vrot.slane %v4235, 1
        %v4371 = vsel %vm594, %v4368, %v4370
        %v4372 = vrot.slane %v4236, 1
        %v4373 = vrot.slane %v4237, 1
        %v4374 = vsel %vm594, %v4372, %v4373
        %v4375 = vrot.slane %v4238, 1
        %v4376 = vsel %vm594, %v4373, %v4375
        %v4377 = vrot.slane %v4239, 1
        %v4378 = vrot.slane %v4240, 1
        %v4379 = vsel %vm594, %v4377, %v4378
        %v4380 = vrot.slane %v4241, 1
        %v4381 = vsel %vm594, %v4378, %v4380
        %v4382 = vrot.slane %v4242, 1
        %v4383 = vrot.slane %v4243, 1
        %v4384 = vsel %vm594, %v4382, %v4383
        %v4385 = vrot.slane %v4244, 1
        %v4386 = vsel %vm594, %v4383, %v4385
        %v4387 = vrot.slane %v4245, 1
        %v4388 = vrot.slane %v4246, 1
        %v4389 = vsel %vm594, %v4387, %v4388
        %v4390 = vrot.slane %v4247, 1
        %v4391 = vsel %vm594, %v4388, %v4390
        %v4392 = vrot.slane %v4248, 1
        %v4393 = vrot.slane %v4249, 1
        %v4394 = vsel %vm594, %v4392, %v4393
        %v4395 = vrot.slane %v4250, 1
        %v4396 = vsel %vm594, %v4393, %v4395
        %v4397 = vrot.slane %v4251, 1
        %v4398 = vrot.slane %v4252, 1
        %v4399 = vsel %vm594, %v4397, %v4398
        %v4400 = vrot.slane %v4253, 1
        %v4401 = vsel %vm594, %v4398, %v4400
        %v4402 = vrot.slane %v4254, 1
        %v4403 = vrot.slane %v4255, 1
        %v4404 = vsel %vm594, %v4402, %v4403
        %v4405 = vrot.slane %v4256, 1
        %v4406 = vsel %vm594, %v4403, %v4405
        %v4407 = vrot.slane %v4257, 1
        %v4408 = vrot.slane %v4258, 1
        %v4409 = vsel %vm594, %v4407, %v4408
        %v4410 = vrot.slane %v4259, 1
        %v4411 = vsel %vm594, %v4408, %v4410
        %v4412 = vrot.slane %v4260, 1
        %v4413 = vrot.slane %v4261, 1
        %v4414 = vsel %vm594, %v4412, %v4413
        %v4415 = vrot.slane %v4262, 1
        %v4416 = vsel %vm594, %v4413, %v4415
        %v4417 = vrot.slane %v4263, 1
        %v4418 = vrot.slane %v4264, 1
        %v4419 = vsel %vm594, %v4417, %v4418
        %v4420 = vrot.slane %v4265, 1
        %v4421 = vsel %vm594, %v4418, %v4420
        %v4422 = vrot.slane %v4266, 1
        %v4423 = vrot.slane %v4267, 1
        %v4424 = vsel %vm594, %v4422, %v4423
        %v4425 = vrot.slane %v4268, 1
        %v4426 = vsel %vm594, %v4423, %v4425
        %v4427 = vrot.slane %v4269, 1
        %v4428 = vrot.slane %v4270, 1
        %v4429 = vsel %vm594, %v4427, %v4428
        %v4430 = vrot.slane %v4271, 1
        %v4431 = vsel %vm594, %v4428, %v4430
        %v4432 = vrot.slane %v4272, 1
        %v4433 = vrot.slane %v4273, 1
        %v4434 = vsel %vm594, %v4432, %v4433
        %v4435 = vrot.slane %v4274, 1
        %v4436 = vsel %vm594, %v4433, %v4435
        %v4437 = vrot.slane %v4275, 1
        %v4438 = vrot.slane %v4276, 1
        %v4439 = vsel %vm594, %v4437, %v4438
        %v4440 = vrot.slane %v4277, 1
        %v4441 = vsel %vm594, %v4438, %v4440
        %v4442 = vrot.slane %v4278, 1
        %v4443 = vrot.slane %v4279, 1
        %v4444 = vsel %vm594, %v4442, %v4443
        %v4445 = vrot.slane %v4280, 1
        %v4446 = vsel %vm594, %v4443, %v4445
        %4447 = vrot.lane.b32.xlu0 %v4369, 16
        %v4448 = vpop.permute.xlu0 %4447
        %4449 = vrot.lane.b32.xlu0 %v4371, 16
        %v4450 = vpop.permute.xlu0 %4449
        %4451 = vrot.lane.b32.xlu0 %v4374, 16
        %v4452 = vpop.permute.xlu0 %4451
        %4453 = vrot.lane.b32.xlu0 %v4376, 16
        %v4454 = vpop.permute.xlu0 %4453
        %4455 = vrot.lane.b32.xlu0 %v4379, 16
        %v4456 = vpop.permute.xlu0 %4455
        %4457 = vrot.lane.b32.xlu0 %v4381, 16
        %v4458 = vpop.permute.xlu0 %4457
        %4459 = vrot.lane.b32.xlu0 %v4384, 16
        %v4460 = vpop.permute.xlu0 %4459
        %4461 = vrot.lane.b32.xlu0 %v4386, 16
        %v4462 = vpop.permute.xlu0 %4461
        %4463 = vrot.lane.b32.xlu0 %v4389, 16
        %v4464 = vpop.permute.xlu0 %4463
        %4465 = vrot.lane.b32.xlu0 %v4391, 16
        %v4466 = vpop.permute.xlu0 %4465
        %4467 = vrot.lane.b32.xlu0 %v4394, 16
        %v4468 = vpop.permute.xlu0 %4467
        %4469 = vrot.lane.b32.xlu0 %v4396, 16
        %v4470 = vpop.permute.xlu0 %4469
        %4471 = vrot.lane.b32.xlu0 %v4399, 16
        %v4472 = vpop.permute.xlu0 %4471
        %4473 = vrot.lane.b32.xlu0 %v4401, 16
        %v4474 = vpop.permute.xlu0 %4473
        %4475 = vrot.lane.b32.xlu0 %v4404, 16
        %v4476 = vpop.permute.xlu0 %4475
        %4477 = vrot.lane.b32.xlu0 %v4406, 16
        %v4478 = vpop.permute.xlu0 %4477
        %4479 = vrot.lane.b32.xlu0 %v4409, 16
        %v4480 = vpop.permute.xlu0 %4479
        %4481 = vrot.lane.b32.xlu0 %v4411, 16
        %v4482 = vpop.permute.xlu0 %4481
        %4483 = vrot.lane.b32.xlu0 %v4414, 16
        %v4484 = vpop.permute.xlu0 %4483
        %4485 = vrot.lane.b32.xlu0 %v4416, 16
        %v4486 = vpop.permute.xlu0 %4485
        %4487 = vrot.lane.b32.xlu0 %v4419, 16
        %v4488 = vpop.permute.xlu0 %4487
        %4489 = vrot.lane.b32.xlu0 %v4421, 16
        %v4490 = vpop.permute.xlu0 %4489
        %4491 = vrot.lane.b32.xlu0 %v4424, 16
        %v4492 = vpop.permute.xlu0 %4491
        %4493 = vrot.lane.b32.xlu0 %v4426, 16
        %v4494 = vpop.permute.xlu0 %4493
        %4495 = vrot.lane.b32.xlu0 %v4429, 16
        %v4496 = vpop.permute.xlu0 %4495
        %4497 = vrot.lane.b32.xlu0 %v4431, 16
        %v4498 = vpop.permute.xlu0 %4497
        %4499 = vrot.lane.b32.xlu0 %v4434, 16
        %v4500 = vpop.permute.xlu0 %4499
        %4501 = vrot.lane.b32.xlu0 %v4436, 16
        %v4502 = vpop.permute.xlu0 %4501
        %4503 = vrot.lane.b32.xlu0 %v4439, 16
        %v4504 = vpop.permute.xlu0 %4503
        %4505 = vrot.lane.b32.xlu0 %v4441, 16
        %v4506 = vpop.permute.xlu0 %4505
        %4507 = vrot.lane.b32.xlu0 %v4444, 16
        %v4508 = vpop.permute.xlu0 %4507
        %4509 = vrot.lane.b32.xlu0 %v4446, 16
        %v4510 = vpop.permute.xlu0 %4509
        %4543 = vst.msk [vmem:[#allocation3] sm:$0xff] %vm771, %v4448
        %4544 = vst.msk [vmem:[#allocation3 + $0x10] sm:$0xff] %vm771, %v4450
        %4545 = vst.msk [vmem:[#allocation3 + $0x20] sm:$0xff] %vm771, %v4452
        %4546 = vst.msk [vmem:[#allocation3 + $0x30] sm:$0xff] %vm771, %v4454
        %4547 = vst.msk [vmem:[#allocation3 + $0x40] sm:$0xff] %vm771, %v4456
        %4548 = vst.msk [vmem:[#allocation3 + $0x50] sm:$0xff] %vm771, %v4458
        %4549 = vst.msk [vmem:[#allocation3 + $0x60] sm:$0xff] %vm771, %v4460
        %4550 = vst.msk [vmem:[#allocation3 + $0x70] sm:$0xff] %vm771, %v4462
        %4551 = vst.msk [vmem:[#allocation3 + $0x80] sm:$0xff] %vm771, %v4464
        %4552 = vst.msk [vmem:[#allocation3 + $0x90] sm:$0xff] %vm771, %v4466
        %4553 = vst.msk [vmem:[#allocation3 + $0xa0] sm:$0xff] %vm771, %v4468
        %4554 = vst.msk [vmem:[#allocation3 + $0xb0] sm:$0xff] %vm771, %v4470
        %4555 = vst.msk [vmem:[#allocation3 + $0xc0] sm:$0xff] %vm771, %v4472
        %4556 = vst.msk [vmem:[#allocation3 + $0xd0] sm:$0xff] %vm771, %v4474
        %4557 = vst.msk [vmem:[#allocation3 + $0xe0] sm:$0xff] %vm771, %v4476
        %4558 = vst.msk [vmem:[#allocation3 + $0xf0] sm:$0xff] %vm771, %v4478
        %4559 = vst.msk [vmem:[#allocation3 + $0x100] sm:$0xff] %vm771, %v4480
        %4560 = vst.msk [vmem:[#allocation3 + $0x110] sm:$0xff] %vm771, %v4482
        %4561 = vst.msk [vmem:[#allocation3 + $0x120] sm:$0xff] %vm771, %v4484
        %4562 = vst.msk [vmem:[#allocation3 + $0x130] sm:$0xff] %vm771, %v4486
        %4563 = vst.msk [vmem:[#allocation3 + $0x140] sm:$0xff] %vm771, %v4488
        %4564 = vst.msk [vmem:[#allocation3 + $0x150] sm:$0xff] %vm771, %v4490
        %4565 = vst.msk [vmem:[#allocation3 + $0x160] sm:$0xff] %vm771, %v4492
        %4566 = vst.msk [vmem:[#allocation3 + $0x170] sm:$0xff] %vm771, %v4494
        %4567 = vst.msk [vmem:[#allocation3 + $0x180] sm:$0xff] %vm771, %v4496
        %4568 = vst.msk [vmem:[#allocation3 + $0x190] sm:$0xff] %vm771, %v4498
        %4569 = vst.msk [vmem:[#allocation3 + $0x1a0] sm:$0xff] %vm771, %v4500
        %4570 = vst.msk [vmem:[#allocation3 + $0x1b0] sm:$0xff] %vm771, %v4502
        %4571 = vst.msk [vmem:[#allocation3 + $0x1c0] sm:$0xff] %vm771, %v4504
        %4572 = vst.msk [vmem:[#allocation3 + $0x1d0] sm:$0xff] %vm771, %v4506
        %4573 = vst.msk [vmem:[#allocation3 + $0x1e0] sm:$0xff] %vm771, %v4508
        %4574 = vst.msk [vmem:[#allocation3 + $0x1f0] sm:$0xff] %vm771, %v4510
        %v4575 = vrot.slane %v4233, 2
        %v4576 = vrot.slane %v4234, 2
        %v4577 = vsel %vm804, %v4575, %v4576
        %v4578 = vrot.slane %v4235, 2
        %v4579 = vsel %vm804, %v4576, %v4578
        %v4580 = vrot.slane %v4236, 2
        %v4581 = vrot.slane %v4237, 2
        %v4582 = vsel %vm804, %v4580, %v4581
        %v4583 = vrot.slane %v4238, 2
        %v4584 = vsel %vm804, %v4581, %v4583
        %v4585 = vrot.slane %v4239, 2
        %v4586 = vrot.slane %v4240, 2
        %v4587 = vsel %vm804, %v4585, %v4586
        %v4588 = vrot.slane %v4241, 2
        %v4589 = vsel %vm804, %v4586, %v4588
        %v4590 = vrot.slane %v4242, 2
        %v4591 = vrot.slane %v4243, 2
        %v4592 = vsel %vm804, %v4590, %v4591
        %v4593 = vrot.slane %v4244, 2
        %v4594 = vsel %vm804, %v4591, %v4593
        %v4595 = vrot.slane %v4245, 2
        %v4596 = vrot.slane %v4246, 2
        %v4597 = vsel %vm804, %v4595, %v4596
        %v4598 = vrot.slane %v4247, 2
        %v4599 = vsel %vm804, %v4596, %v4598
        %v4600 = vrot.slane %v4248, 2
        %v4601 = vrot.slane %v4249, 2
        %v4602 = vsel %vm804, %v4600, %v4601
        %v4603 = vrot.slane %v4250, 2
        %v4604 = vsel %vm804, %v4601, %v4603
        %v4605 = vrot.slane %v4251, 2
        %v4606 = vrot.slane %v4252, 2
        %v4607 = vsel %vm804, %v4605, %v4606
        %v4608 = vrot.slane %v4253, 2
        %v4609 = vsel %vm804, %v4606, %v4608
        %v4610 = vrot.slane %v4254, 2
        %v4611 = vrot.slane %v4255, 2
        %v4612 = vsel %vm804, %v4610, %v4611
        %v4613 = vrot.slane %v4256, 2
        %v4614 = vsel %vm804, %v4611, %v4613
        %v4615 = vrot.slane %v4257, 2
        %v4616 = vrot.slane %v4258, 2
        %v4617 = vsel %vm804, %v4615, %v4616
        %v4618 = vrot.slane %v4259, 2
        %v4619 = vsel %vm804, %v4616, %v4618
        %v4620 = vrot.slane %v4260, 2
        %v4621 = vrot.slane %v4261, 2
        %v4622 = vsel %vm804, %v4620, %v4621
        %v4623 = vrot.slane %v4262, 2
        %v4624 = vsel %vm804, %v4621, %v4623
        %v4625 = vrot.slane %v4263, 2
        %v4626 = vrot.slane %v4264, 2
        %v4627 = vsel %vm804, %v4625, %v4626
        %v4628 = vrot.slane %v4265, 2
        %v4629 = vsel %vm804, %v4626, %v4628
        %v4630 = vrot.slane %v4266, 2
        %v4631 = vrot.slane %v4267, 2
        %v4632 = vsel %vm804, %v4630, %v4631
        %v4633 = vrot.slane %v4268, 2
        %v4634 = vsel %vm804, %v4631, %v4633
        %v4635 = vrot.slane %v4269, 2
        %v4636 = vrot.slane %v4270, 2
        %v4637 = vsel %vm804, %v4635, %v4636
        %v4638 = vrot.slane %v4271, 2
        %v4639 = vsel %vm804, %v4636, %v4638
        %v4640 = vrot.slane %v4272, 2
        %v4641 = vrot.slane %v4273, 2
        %v4642 = vsel %vm804, %v4640, %v4641
        %v4643 = vrot.slane %v4274, 2
        %v4644 = vsel %vm804, %v4641, %v4643
        %v4645 = vrot.slane %v4275, 2
        %v4646 = vrot.slane %v4276, 2
        %v4647 = vsel %vm804, %v4645, %v4646
        %v4648 = vrot.slane %v4277, 2
        %v4649 = vsel %vm804, %v4646, %v4648
        %v4650 = vrot.slane %v4278, 2
        %v4651 = vrot.slane %v4279, 2
        %v4652 = vsel %vm804, %v4650, %v4651
        %v4653 = vrot.slane %v4280, 2
        %v4654 = vsel %vm804, %v4651, %v4653
        %4655 = vrot.lane.b32.xlu0 %v4577, 32
        %v4656 = vpop.permute.xlu0 %4655
        %4657 = vrot.lane.b32.xlu0 %v4579, 32
        %v4658 = vpop.permute.xlu0 %4657
        %4659 = vrot.lane.b32.xlu0 %v4582, 32
        %v4660 = vpop.permute.xlu0 %4659
        %4661 = vrot.lane.b32.xlu0 %v4584, 32
        %v4662 = vpop.permute.xlu0 %4661
        %4663 = vrot.lane.b32.xlu0 %v4587, 32
        %v4664 = vpop.permute.xlu0 %4663
        %4665 = vrot.lane.b32.xlu0 %v4589, 32
        %v4666 = vpop.permute.xlu0 %4665
        %4667 = vrot.lane.b32.xlu0 %v4592, 32
        %v4668 = vpop.permute.xlu0 %4667
        %4669 = vrot.lane.b32.xlu0 %v4594, 32
        %v4670 = vpop.permute.xlu0 %4669
        %4671 = vrot.lane.b32.xlu0 %v4597, 32
        %v4672 = vpop.permute.xlu0 %4671
        %4673 = vrot.lane.b32.xlu0 %v4599, 32
        %v4674 = vpop.permute.xlu0 %4673
        %4675 = vrot.lane.b32.xlu0 %v4602, 32
        %v4676 = vpop.permute.xlu0 %4675
        %4677 = vrot.lane.b32.xlu0 %v4604, 32
        %v4678 = vpop.permute.xlu0 %4677
        %4679 = vrot.lane.b32.xlu0 %v4607, 32
        %v4680 = vpop.permute.xlu0 %4679
        %4681 = vrot.lane.b32.xlu0 %v4609, 32
        %v4682 = vpop.permute.xlu0 %4681
        %4683 = vrot.lane.b32.xlu0 %v4612, 32
        %v4684 = vpop.permute.xlu0 %4683
        %4685 = vrot.lane.b32.xlu0 %v4614, 32
        %v4686 = vpop.permute.xlu0 %4685
        %4687 = vrot.lane.b32.xlu0 %v4617, 32
        %v4688 = vpop.permute.xlu0 %4687
        %4689 = vrot.lane.b32.xlu0 %v4619, 32
        %v4690 = vpop.permute.xlu0 %4689
        %4691 = vrot.lane.b32.xlu0 %v4622, 32
        %v4692 = vpop.permute.xlu0 %4691
        %4693 = vrot.lane.b32.xlu0 %v4624, 32
        %v4694 = vpop.permute.xlu0 %4693
        %4695 = vrot.lane.b32.xlu0 %v4627, 32
        %v4696 = vpop.permute.xlu0 %4695
        %4697 = vrot.lane.b32.xlu0 %v4629, 32
        %v4698 = vpop.permute.xlu0 %4697
        %4699 = vrot.lane.b32.xlu0 %v4632, 32
        %v4700 = vpop.permute.xlu0 %4699
        %4701 = vrot.lane.b32.xlu0 %v4634, 32
        %v4702 = vpop.permute.xlu0 %4701
        %4703 = vrot.lane.b32.xlu0 %v4637, 32
        %v4704 = vpop.permute.xlu0 %4703
        %4705 = vrot.lane.b32.xlu0 %v4639, 32
        %v4706 = vpop.permute.xlu0 %4705
        %4707 = vrot.lane.b32.xlu0 %v4642, 32
        %v4708 = vpop.permute.xlu0 %4707
        %4709 = vrot.lane.b32.xlu0 %v4644, 32
        %v4710 = vpop.permute.xlu0 %4709
        %4711 = vrot.lane.b32.xlu0 %v4647, 32
        %v4712 = vpop.permute.xlu0 %4711
        %4713 = vrot.lane.b32.xlu0 %v4649, 32
        %v4714 = vpop.permute.xlu0 %4713
        %4715 = vrot.lane.b32.xlu0 %v4652, 32
        %v4716 = vpop.permute.xlu0 %4715
        %4717 = vrot.lane.b32.xlu0 %v4654, 32
        %v4718 = vpop.permute.xlu0 %4717
        %4751 = vst.msk [vmem:[#allocation3] sm:$0xff] %vm981, %v4656
        %4752 = vst.msk [vmem:[#allocation3 + $0x10] sm:$0xff] %vm981, %v4658
        %4753 = vst.msk [vmem:[#allocation3 + $0x20] sm:$0xff] %vm981, %v4660
        %4754 = vst.msk [vmem:[#allocation3 + $0x30] sm:$0xff] %vm981, %v4662
        %4755 = vst.msk [vmem:[#allocation3 + $0x40] sm:$0xff] %vm981, %v4664
        %4756 = vst.msk [vmem:[#allocation3 + $0x50] sm:$0xff] %vm981, %v4666
        %4757 = vst.msk [vmem:[#allocation3 + $0x60] sm:$0xff] %vm981, %v4668
        %4758 = vst.msk [vmem:[#allocation3 + $0x70] sm:$0xff] %vm981, %v4670
        %4759 = vst.msk [vmem:[#allocation3 + $0x80] sm:$0xff] %vm981, %v4672
        %4760 = vst.msk [vmem:[#allocation3 + $0x90] sm:$0xff] %vm981, %v4674
        %4761 = vst.msk [vmem:[#allocation3 + $0xa0] sm:$0xff] %vm981, %v4676
        %4762 = vst.msk [vmem:[#allocation3 + $0xb0] sm:$0xff] %vm981, %v4678
        %4763 = vst.msk [vmem:[#allocation3 + $0xc0] sm:$0xff] %vm981, %v4680
        %4764 = vst.msk [vmem:[#allocation3 + $0xd0] sm:$0xff] %vm981, %v4682
        %4765 = vst.msk [vmem:[#allocation3 + $0xe0] sm:$0xff] %vm981, %v4684
        %4766 = vst.msk [vmem:[#allocation3 + $0xf0] sm:$0xff] %vm981, %v4686
        %4767 = vst.msk [vmem:[#allocation3 + $0x100] sm:$0xff] %vm981, %v4688
        %4768 = vst.msk [vmem:[#allocation3 + $0x110] sm:$0xff] %vm981, %v4690
        %4769 = vst.msk [vmem:[#allocation3 + $0x120] sm:$0xff] %vm981, %v4692
        %4770 = vst.msk [vmem:[#allocation3 + $0x130] sm:$0xff] %vm981, %v4694
        %4771 = vst.msk [vmem:[#allocation3 + $0x140] sm:$0xff] %vm981, %v4696
        %4772 = vst.msk [vmem:[#allocation3 + $0x150] sm:$0xff] %vm981, %v4698
        %4773 = vst.msk [vmem:[#allocation3 + $0x160] sm:$0xff] %vm981, %v4700
        %4774 = vst.msk [vmem:[#allocation3 + $0x170] sm:$0xff] %vm981, %v4702
        %4775 = vst.msk [vmem:[#allocation3 + $0x180] sm:$0xff] %vm981, %v4704
        %4776 = vst.msk [vmem:[#allocation3 + $0x190] sm:$0xff] %vm981, %v4706
        %4777 = vst.msk [vmem:[#allocation3 + $0x1a0] sm:$0xff] %vm981, %v4708
        %4778 = vst.msk [vmem:[#allocation3 + $0x1b0] sm:$0xff] %vm981, %v4710
        %4779 = vst.msk [vmem:[#allocation3 + $0x1c0] sm:$0xff] %vm981, %v4712
        %4780 = vst.msk [vmem:[#allocation3 + $0x1d0] sm:$0xff] %vm981, %v4714
        %4781 = vst.msk [vmem:[#allocation3 + $0x1e0] sm:$0xff] %vm981, %v4716
        %4782 = vst.msk [vmem:[#allocation3 + $0x1f0] sm:$0xff] %vm981, %v4718
        %4785 = vrot.lane.b32.xlu0 %v4236, 48
        %v4786 = vpop.permute.xlu0 %4785
        %4787 = vrot.lane.b32.xlu0 %v4237, 48
        %v4788 = vpop.permute.xlu0 %4787
        %4789 = vrot.lane.b32.xlu0 %v4239, 48
        %v4790 = vpop.permute.xlu0 %4789
        %4791 = vrot.lane.b32.xlu0 %v4240, 48
        %v4792 = vpop.permute.xlu0 %4791
        %4793 = vrot.lane.b32.xlu0 %v4242, 48
        %v4794 = vpop.permute.xlu0 %4793
        %4795 = vrot.lane.b32.xlu0 %v4243, 48
        %v4796 = vpop.permute.xlu0 %4795
        %4797 = vrot.lane.b32.xlu0 %v4245, 48
        %v4798 = vpop.permute.xlu0 %4797
        %4799 = vrot.lane.b32.xlu0 %v4246, 48
        %v4800 = vpop.permute.xlu0 %4799
        %4801 = vrot.lane.b32.xlu0 %v4248, 48
        %v4802 = vpop.permute.xlu0 %4801
        %4803 = vrot.lane.b32.xlu0 %v4249, 48
        %v4804 = vpop.permute.xlu0 %4803
        %4805 = vrot.lane.b32.xlu0 %v4251, 48
        %v4806 = vpop.permute.xlu0 %4805
        %4807 = vrot.lane.b32.xlu0 %v4252, 48
        %v4808 = vpop.permute.xlu0 %4807
        %4809 = vrot.lane.b32.xlu0 %v4254, 48
        %v4810 = vpop.permute.xlu0 %4809
        %4811 = vrot.lane.b32.xlu0 %v4255, 48
        %v4812 = vpop.permute.xlu0 %4811
        %4813 = vrot.lane.b32.xlu0 %v4257, 48
        %v4814 = vpop.permute.xlu0 %4813
        %4815 = vrot.lane.b32.xlu0 %v4258, 48
        %v4816 = vpop.permute.xlu0 %4815
        %4817 = vrot.lane.b32.xlu0 %v4260, 48
        %v4818 = vpop.permute.xlu0 %4817
        %4819 = vrot.lane.b32.xlu0 %v4261, 48
        %v4820 = vpop.permute.xlu0 %4819
        %4821 = vrot.lane.b32.xlu0 %v4263, 48
        %v4822 = vpop.permute.xlu0 %4821
        %4823 = vrot.lane.b32.xlu0 %v4264, 48
        %v4824 = vpop.permute.xlu0 %4823
        %4825 = vrot.lane.b32.xlu0 %v4266, 48
        %v4826 = vpop.permute.xlu0 %4825
        %4827 = vrot.lane.b32.xlu0 %v4267, 48
        %v4828 = vpop.permute.xlu0 %4827
        %4829 = vrot.lane.b32.xlu0 %v4269, 48
        %v4830 = vpop.permute.xlu0 %4829
        %4831 = vrot.lane.b32.xlu0 %v4270, 48
        %v4832 = vpop.permute.xlu0 %4831
        %4833 = vrot.lane.b32.xlu0 %v4272, 48
        %v4834 = vpop.permute.xlu0 %4833
        %4835 = vrot.lane.b32.xlu0 %v4273, 48
        %v4836 = vpop.permute.xlu0 %4835
        %4837 = vrot.lane.b32.xlu0 %v4275, 48
        %v4838 = vpop.permute.xlu0 %4837
        %4839 = vrot.lane.b32.xlu0 %v4276, 48
        %v4840 = vpop.permute.xlu0 %4839
        %4841 = vrot.lane.b32.xlu0 %v4278, 48
        %v4842 = vpop.permute.xlu0 %4841
        %4843 = vrot.lane.b32.xlu0 %v4279, 48
        %v4844 = vpop.permute.xlu0 %4843
        %4845 = vrot.lane.b32.xlu0 %v4281, 48
        %v4846 = vpop.permute.xlu0 %4845
        %4847 = vrot.lane.b32.xlu0 %v4282, 48
        %v4848 = vpop.permute.xlu0 %4847
        %4881 = vst.msk [vmem:[#allocation3] sm:$0xff] %vm1112, %v4786
        %4882 = vst.msk [vmem:[#allocation3 + $0x10] sm:$0xff] %vm1112, %v4788
        %4883 = vst.msk [vmem:[#allocation3 + $0x20] sm:$0xff] %vm1112, %v4790
        %4884 = vst.msk [vmem:[#allocation3 + $0x30] sm:$0xff] %vm1112, %v4792
        %4885 = vst.msk [vmem:[#allocation3 + $0x40] sm:$0xff] %vm1112, %v4794
        %4886 = vst.msk [vmem:[#allocation3 + $0x50] sm:$0xff] %vm1112, %v4796
        %4887 = vst.msk [vmem:[#allocation3 + $0x60] sm:$0xff] %vm1112, %v4798
        %4888 = vst.msk [vmem:[#allocation3 + $0x70] sm:$0xff] %vm1112, %v4800
        %4889 = vst.msk [vmem:[#allocation3 + $0x80] sm:$0xff] %vm1112, %v4802
        %4890 = vst.msk [vmem:[#allocation3 + $0x90] sm:$0xff] %vm1112, %v4804
        %4891 = vst.msk [vmem:[#allocation3 + $0xa0] sm:$0xff] %vm1112, %v4806
        %4892 = vst.msk [vmem:[#allocation3 + $0xb0] sm:$0xff] %vm1112, %v4808
        %4893 = vst.msk [vmem:[#allocation3 + $0xc0] sm:$0xff] %vm1112, %v4810
        %4894 = vst.msk [vmem:[#allocation3 + $0xd0] sm:$0xff] %vm1112, %v4812
        %4895 = vst.msk [vmem:[#allocation3 + $0xe0] sm:$0xff] %vm1112, %v4814
        %4896 = vst.msk [vmem:[#allocation3 + $0xf0] sm:$0xff] %vm1112, %v4816
        %4897 = vst.msk [vmem:[#allocation3 + $0x100] sm:$0xff] %vm1112, %v4818
        %4898 = vst.msk [vmem:[#allocation3 + $0x110] sm:$0xff] %vm1112, %v4820
        %4899 = vst.msk [vmem:[#allocation3 + $0x120] sm:$0xff] %vm1112, %v4822
        %4900 = vst.msk [vmem:[#allocation3 + $0x130] sm:$0xff] %vm1112, %v4824
        %4901 = vst.msk [vmem:[#allocation3 + $0x140] sm:$0xff] %vm1112, %v4826
        %4902 = vst.msk [vmem:[#allocation3 + $0x150] sm:$0xff] %vm1112, %v4828
        %4903 = vst.msk [vmem:[#allocation3 + $0x160] sm:$0xff] %vm1112, %v4830
        %4904 = vst.msk [vmem:[#allocation3 + $0x170] sm:$0xff] %vm1112, %v4832
        %4905 = vst.msk [vmem:[#allocation3 + $0x180] sm:$0xff] %vm1112, %v4834
        %4906 = vst.msk [vmem:[#allocation3 + $0x190] sm:$0xff] %vm1112, %v4836
        %4907 = vst.msk [vmem:[#allocation3 + $0x1a0] sm:$0xff] %vm1112, %v4838
        %4908 = vst.msk [vmem:[#allocation3 + $0x1b0] sm:$0xff] %vm1112, %v4840
        %4909 = vst.msk [vmem:[#allocation3 + $0x1c0] sm:$0xff] %vm1112, %v4842
        %4910 = vst.msk [vmem:[#allocation3 + $0x1d0] sm:$0xff] %vm1112, %v4844
        %4911 = vst.msk [vmem:[#allocation3 + $0x1e0] sm:$0xff] %vm1112, %v4846
        %4912 = vst.msk [vmem:[#allocation3 + $0x1f0] sm:$0xff] %vm1112, %v4848
        %v4914 = vrot.slane %v4281, 1
        %v4915 = vrot.slane %v4282, 1
        %v4916 = vsel %vm594, %v4914, %v4915
        %v4917 = vrot.slane %v4283, 1
        %v4918 = vsel %vm594, %v4915, %v4917
        %4919 = vrot.lane.b32.xlu0 %v4374, 64
        %v4920 = vpop.permute.xlu0 %4919
        %4921 = vrot.lane.b32.xlu0 %v4376, 64
        %v4922 = vpop.permute.xlu0 %4921
        %4923 = vrot.lane.b32.xlu0 %v4379, 64
        %v4924 = vpop.permute.xlu0 %4923
        %4925 = vrot.lane.b32.xlu0 %v4381, 64
        %v4926 = vpop.permute.xlu0 %4925
        %4927 = vrot.lane.b32.xlu0 %v4384, 64
        %v4928 = vpop.permute.xlu0 %4927
        %4929 = vrot.lane.b32.xlu0 %v4386, 64
        %v4930 = vpop.permute.xlu0 %4929
        %4931 = vrot.lane.b32.xlu0 %v4389, 64
        %v4932 = vpop.permute.xlu0 %4931
        %4933 = vrot.lane.b32.xlu0 %v4391, 64
        %v4934 = vpop.permute.xlu0 %4933
        %4935 = vrot.lane.b32.xlu0 %v4394, 64
        %v4936 = vpop.permute.xlu0 %4935
        %4937 = vrot.lane.b32.xlu0 %v4396, 64
        %v4938 = vpop.permute.xlu0 %4937
        %4939 = vrot.lane.b32.xlu0 %v4399, 64
        %v4940 = vpop.permute.xlu0 %4939
        %4941 = vrot.lane.b32.xlu0 %v4401, 64
        %v4942 = vpop.permute.xlu0 %4941
        %4943 = vrot.lane.b32.xlu0 %v4404, 64
        %v4944 = vpop.permute.xlu0 %4943
        %4945 = vrot.lane.b32.xlu0 %v4406, 64
        %v4946 = vpop.permute.xlu0 %4945
        %4947 = vrot.lane.b32.xlu0 %v4409, 64
        %v4948 = vpop.permute.xlu0 %4947
        %4949 = vrot.lane.b32.xlu0 %v4411, 64
        %v4950 = vpop.permute.xlu0 %4949
        %4951 = vrot.lane.b32.xlu0 %v4414, 64
        %v4952 = vpop.permute.xlu0 %4951
        %4953 = vrot.lane.b32.xlu0 %v4416, 64
        %v4954 = vpop.permute.xlu0 %4953
        %4955 = vrot.lane.b32.xlu0 %v4419, 64
        %v4956 = vpop.permute.xlu0 %4955
        %4957 = vrot.lane.b32.xlu0 %v4421, 64
        %v4958 = vpop.permute.xlu0 %4957
        %4959 = vrot.lane.b32.xlu0 %v4424, 64
        %v4960 = vpop.permute.xlu0 %4959
        %4961 = vrot.lane.b32.xlu0 %v4426, 64
        %v4962 = vpop.permute.xlu0 %4961
        %4963 = vrot.lane.b32.xlu0 %v4429, 64
        %v4964 = vpop.permute.xlu0 %4963
        %4965 = vrot.lane.b32.xlu0 %v4431, 64
        %v4966 = vpop.permute.xlu0 %4965
        %4967 = vrot.lane.b32.xlu0 %v4434, 64
        %v4968 = vpop.permute.xlu0 %4967
        %4969 = vrot.lane.b32.xlu0 %v4436, 64
        %v4970 = vpop.permute.xlu0 %4969
        %4971 = vrot.lane.b32.xlu0 %v4439, 64
        %v4972 = vpop.permute.xlu0 %4971
        %4973 = vrot.lane.b32.xlu0 %v4441, 64
        %v4974 = vpop.permute.xlu0 %4973
        %4975 = vrot.lane.b32.xlu0 %v4444, 64
        %v4976 = vpop.permute.xlu0 %4975
        %4977 = vrot.lane.b32.xlu0 %v4446, 64
        %v4978 = vpop.permute.xlu0 %4977
        %4979 = vrot.lane.b32.xlu0 %v4916, 64
        %v4980 = vpop.permute.xlu0 %4979
        %4981 = vrot.lane.b32.xlu0 %v4918, 64
        %v4982 = vpop.permute.xlu0 %4981
        %5015 = vst.msk [vmem:[#allocation3] sm:$0xff] %vm1247, %v4920
        %5016 = vst.msk [vmem:[#allocation3 + $0x10] sm:$0xff] %vm1247, %v4922
        %5017 = vst.msk [vmem:[#allocation3 + $0x20] sm:$0xff] %vm1247, %v4924
        %5018 = vst.msk [vmem:[#allocation3 + $0x30] sm:$0xff] %vm1247, %v4926
        %5019 = vst.msk [vmem:[#allocation3 + $0x40] sm:$0xff] %vm1247, %v4928
        %5020 = vst.msk [vmem:[#allocation3 + $0x50] sm:$0xff] %vm1247, %v4930
        %5021 = vst.msk [vmem:[#allocation3 + $0x60] sm:$0xff] %vm1247, %v4932
        %5022 = vst.msk [vmem:[#allocation3 + $0x70] sm:$0xff] %vm1247, %v4934
        %5023 = vst.msk [vmem:[#allocation3 + $0x80] sm:$0xff] %vm1247, %v4936
        %5024 = vst.msk [vmem:[#allocation3 + $0x90] sm:$0xff] %vm1247, %v4938
        %5025 = vst.msk [vmem:[#allocation3 + $0xa0] sm:$0xff] %vm1247, %v4940
        %5026 = vst.msk [vmem:[#allocation3 + $0xb0] sm:$0xff] %vm1247, %v4942
        %5027 = vst.msk [vmem:[#allocation3 + $0xc0] sm:$0xff] %vm1247, %v4944
        %5028 = vst.msk [vmem:[#allocation3 + $0xd0] sm:$0xff] %vm1247, %v4946
        %5029 = vst.msk [vmem:[#allocation3 + $0xe0] sm:$0xff] %vm1247, %v4948
        %5030 = vst.msk [vmem:[#allocation3 + $0xf0] sm:$0xff] %vm1247, %v4950
        %5031 = vst.msk [vmem:[#allocation3 + $0x100] sm:$0xff] %vm1247, %v4952
        %5032 = vst.msk [vmem:[#allocation3 + $0x110] sm:$0xff] %vm1247, %v4954
        %5033 = vst.msk [vmem:[#allocation3 + $0x120] sm:$0xff] %vm1247, %v4956
        %5034 = vst.msk [vmem:[#allocation3 + $0x130] sm:$0xff] %vm1247, %v4958
        %5035 = vst.msk [vmem:[#allocation3 + $0x140] sm:$0xff] %vm1247, %v4960
        %5036 = vst.msk [vmem:[#allocation3 + $0x150] sm:$0xff] %vm1247, %v4962
        %5037 = vst.msk [vmem:[#allocation3 + $0x160] sm:$0xff] %vm1247, %v4964
        %5038 = vst.msk [vmem:[#allocation3 + $0x170] sm:$0xff] %vm1247, %v4966
        %5039 = vst.msk [vmem:[#allocation3 + $0x180] sm:$0xff] %vm1247, %v4968
        %5040 = vst.msk [vmem:[#allocation3 + $0x190] sm:$0xff] %vm1247, %v4970
        %5041 = vst.msk [vmem:[#allocation3 + $0x1a0] sm:$0xff] %vm1247, %v4972
        %5042 = vst.msk [vmem:[#allocation3 + $0x1b0] sm:$0xff] %vm1247, %v4974
        %5043 = vst.msk [vmem:[#allocation3 + $0x1c0] sm:$0xff] %vm1247, %v4976
        %5044 = vst.msk [vmem:[#allocation3 + $0x1d0] sm:$0xff] %vm1247, %v4978
        %5045 = vst.msk [vmem:[#allocation3 + $0x1e0] sm:$0xff] %vm1247, %v4980
        %5046 = vst.msk [vmem:[#allocation3 + $0x1f0] sm:$0xff] %vm1247, %v4982
        %v5047 = vrot.slane %v4281, 2
        %v5048 = vrot.slane %v4282, 2
        %v5049 = vsel %vm804, %v5047, %v5048
        %v5050 = vrot.slane %v4283, 2
        %v5051 = vsel %vm804, %v5048, %v5050
        %5052 = vrot.lane.b32.xlu0 %v4582, 80
        %v5053 = vpop.permute.xlu0 %5052
        %5054 = vrot.lane.b32.xlu0 %v4584, 80
        %v5055 = vpop.permute.xlu0 %5054
        %5056 = vrot.lane.b32.xlu0 %v4587, 80
        %v5057 = vpop.permute.xlu0 %5056
        %5058 = vrot.lane.b32.xlu0 %v4589, 80
        %v5059 = vpop.permute.xlu0 %5058
        %5060 = vrot.lane.b32.xlu0 %v4592, 80
        %v5061 = vpop.permute.xlu0 %5060
        %5062 = vrot.lane.b32.xlu0 %v4594, 80
        %v5063 = vpop.permute.xlu0 %5062
        %5064 = vrot.lane.b32.xlu0 %v4597, 80
        %v5065 = vpop.permute.xlu0 %5064
        %5066 = vrot.lane.b32.xlu0 %v4599, 80
        %v5067 = vpop.permute.xlu0 %5066
        %5068 = vrot.lane.b32.xlu0 %v4602, 80
        %v5069 = vpop.permute.xlu0 %5068
        %5070 = vrot.lane.b32.xlu0 %v4604, 80
        %v5071 = vpop.permute.xlu0 %5070
        %5072 = vrot.lane.b32.xlu0 %v4607, 80
        %v5073 = vpop.permute.xlu0 %5072
        %5074 = vrot.lane.b32.xlu0 %v4609, 80
        %v5075 = vpop.permute.xlu0 %5074
        %5076 = vrot.lane.b32.xlu0 %v4612, 80
        %v5077 = vpop.permute.xlu0 %5076
        %5078 = vrot.lane.b32.xlu0 %v4614, 80
        %v5079 = vpop.permute.xlu0 %5078
        %5080 = vrot.lane.b32.xlu0 %v4617, 80
        %v5081 = vpop.permute.xlu0 %5080
        %5082 = vrot.lane.b32.xlu0 %v4619, 80
        %v5083 = vpop.permute.xlu0 %5082
        %5084 = vrot.lane.b32.xlu0 %v4622, 80
        %v5085 = vpop.permute.xlu0 %5084
        %5086 = vrot.lane.b32.xlu0 %v4624, 80
        %v5087 = vpop.permute.xlu0 %5086
        %5088 = vrot.lane.b32.xlu0 %v4627, 80
        %v5089 = vpop.permute.xlu0 %5088
        %5090 = vrot.lane.b32.xlu0 %v4629, 80
        %v5091 = vpop.permute.xlu0 %5090
        %5092 = vrot.lane.b32.xlu0 %v4632, 80
        %v5093 = vpop.permute.xlu0 %5092
        %5094 = vrot.lane.b32.xlu0 %v4634, 80
        %v5095 = vpop.permute.xlu0 %5094
        %5096 = vrot.lane.b32.xlu0 %v4637, 80
        %v5097 = vpop.permute.xlu0 %5096
        %5098 = vrot.lane.b32.xlu0 %v4639, 80
        %v5099 = vpop.permute.xlu0 %5098
        %5100 = vrot.lane.b32.xlu0 %v4642, 80
        %v5101 = vpop.permute.xlu0 %5100
        %5102 = vrot.lane.b32.xlu0 %v4644, 80
        %v5103 = vpop.permute.xlu0 %5102
        %5104 = vrot.lane.b32.xlu0 %v4647, 80
        %v5105 = vpop.permute.xlu0 %5104
        %5106 = vrot.lane.b32.xlu0 %v4649, 80
        %v5107 = vpop.permute.xlu0 %5106
        %5108 = vrot.lane.b32.xlu0 %v4652, 80
        %v5109 = vpop.permute.xlu0 %5108
        %5110 = vrot.lane.b32.xlu0 %v4654, 80
        %v5111 = vpop.permute.xlu0 %5110
        %5112 = vrot.lane.b32.xlu0 %v5049, 80
        %v5113 = vpop.permute.xlu0 %5112
        %5114 = vrot.lane.b32.xlu0 %v5051, 80
        %v5115 = vpop.permute.xlu0 %5114
        %5148 = vst.msk [vmem:[#allocation3] sm:$0xff] %vm1381, %v5053
        %5149 = vst.msk [vmem:[#allocation3 + $0x10] sm:$0xff] %vm1381, %v5055
        %5150 = vst.msk [vmem:[#allocation3 + $0x20] sm:$0xff] %vm1381, %v5057
        %5151 = vst.msk [vmem:[#allocation3 + $0x30] sm:$0xff] %vm1381, %v5059
        %5152 = vst.msk [vmem:[#allocation3 + $0x40] sm:$0xff] %vm1381, %v5061
        %5153 = vst.msk [vmem:[#allocation3 + $0x50] sm:$0xff] %vm1381, %v5063
        %5154 = vst.msk [vmem:[#allocation3 + $0x60] sm:$0xff] %vm1381, %v5065
        %5155 = vst.msk [vmem:[#allocation3 + $0x70] sm:$0xff] %vm1381, %v5067
        %5156 = vst.msk [vmem:[#allocation3 + $0x80] sm:$0xff] %vm1381, %v5069
        %5157 = vst.msk [vmem:[#allocation3 + $0x90] sm:$0xff] %vm1381, %v5071
        %5158 = vst.msk [vmem:[#allocation3 + $0xa0] sm:$0xff] %vm1381, %v5073
        %5159 = vst.msk [vmem:[#allocation3 + $0xb0] sm:$0xff] %vm1381, %v5075
        %5160 = vst.msk [vmem:[#allocation3 + $0xc0] sm:$0xff] %vm1381, %v5077
        %5161 = vst.msk [vmem:[#allocation3 + $0xd0] sm:$0xff] %vm1381, %v5079
        %5162 = vst.msk [vmem:[#allocation3 + $0xe0] sm:$0xff] %vm1381, %v5081
        %5163 = vst.msk [vmem:[#allocation3 + $0xf0] sm:$0xff] %vm1381, %v5083
        %5164 = vst.msk [vmem:[#allocation3 + $0x100] sm:$0xff] %vm1381, %v5085
        %5165 = vst.msk [vmem:[#allocation3 + $0x110] sm:$0xff] %vm1381, %v5087
        %5166 = vst.msk [vmem:[#allocation3 + $0x120] sm:$0xff] %vm1381, %v5089
        %5167 = vst.msk [vmem:[#allocation3 + $0x130] sm:$0xff] %vm1381, %v5091
        %5168 = vst.msk [vmem:[#allocation3 + $0x140] sm:$0xff] %vm1381, %v5093
        %5169 = vst.msk [vmem:[#allocation3 + $0x150] sm:$0xff] %vm1381, %v5095
        %5170 = vst.msk [vmem:[#allocation3 + $0x160] sm:$0xff] %vm1381, %v5097
        %5171 = vst.msk [vmem:[#allocation3 + $0x170] sm:$0xff] %vm1381, %v5099
        %5172 = vst.msk [vmem:[#allocation3 + $0x180] sm:$0xff] %vm1381, %v5101
        %5173 = vst.msk [vmem:[#allocation3 + $0x190] sm:$0xff] %vm1381, %v5103
        %5174 = vst.msk [vmem:[#allocation3 + $0x1a0] sm:$0xff] %vm1381, %v5105
        %5175 = vst.msk [vmem:[#allocation3 + $0x1b0] sm:$0xff] %vm1381, %v5107
        %5176 = vst.msk [vmem:[#allocation3 + $0x1c0] sm:$0xff] %vm1381, %v5109
        %5177 = vst.msk [vmem:[#allocation3 + $0x1d0] sm:$0xff] %vm1381, %v5111
        %5178 = vst.msk [vmem:[#allocation3 + $0x1e0] sm:$0xff] %vm1381, %v5113
        %5179 = vst.msk [vmem:[#allocation3 + $0x1f0] sm:$0xff] %vm1381, %v5115
        %5182 = vrot.lane.b32.xlu0 %v4239, 96
        %v5183 = vpop.permute.xlu0 %5182
        %5184 = vrot.lane.b32.xlu0 %v4240, 96
        %v5185 = vpop.permute.xlu0 %5184
        %5186 = vrot.lane.b32.xlu0 %v4242, 96
        %v5187 = vpop.permute.xlu0 %5186
        %5188 = vrot.lane.b32.xlu0 %v4243, 96
        %v5189 = vpop.permute.xlu0 %5188
        %5190 = vrot.lane.b32.xlu0 %v4245, 96
        %v5191 = vpop.permute.xlu0 %5190
        %5192 = vrot.lane.b32.xlu0 %v4246, 96
        %v5193 = vpop.permute.xlu0 %5192
        %5194 = vrot.lane.b32.xlu0 %v4248, 96
        %v5195 = vpop.permute.xlu0 %5194
        %5196 = vrot.lane.b32.xlu0 %v4249, 96
        %v5197 = vpop.permute.xlu0 %5196
        %5198 = vrot.lane.b32.xlu0 %v4251, 96
        %v5199 = vpop.permute.xlu0 %5198
        %5200 = vrot.lane.b32.xlu0 %v4252, 96
        %v5201 = vpop.permute.xlu0 %5200
        %5202 = vrot.lane.b32.xlu0 %v4254, 96
        %v5203 = vpop.permute.xlu0 %5202
        %5204 = vrot.lane.b32.xlu0 %v4255, 96
        %v5205 = vpop.permute.xlu0 %5204
        %5206 = vrot.lane.b32.xlu0 %v4257, 96
        %v5207 = vpop.permute.xlu0 %5206
        %5208 = vrot.lane.b32.xlu0 %v4258, 96
        %v5209 = vpop.permute.xlu0 %5208
        %5210 = vrot.lane.b32.xlu0 %v4260, 96
        %v5211 = vpop.permute.xlu0 %5210
        %5212 = vrot.lane.b32.xlu0 %v4261, 96
        %v5213 = vpop.permute.xlu0 %5212
        %5214 = vrot.lane.b32.xlu0 %v4263, 96
        %v5215 = vpop.permute.xlu0 %5214
        %5216 = vrot.lane.b32.xlu0 %v4264, 96
        %v5217 = vpop.permute.xlu0 %5216
        %5218 = vrot.lane.b32.xlu0 %v4266, 96
        %v5219 = vpop.permute.xlu0 %5218
        %5220 = vrot.lane.b32.xlu0 %v4267, 96
        %v5221 = vpop.permute.xlu0 %5220
        %5222 = vrot.lane.b32.xlu0 %v4269, 96
        %v5223 = vpop.permute.xlu0 %5222
        %5224 = vrot.lane.b32.xlu0 %v4270, 96
        %v5225 = vpop.permute.xlu0 %5224
        %5226 = vrot.lane.b32.xlu0 %v4272, 96
        %v5227 = vpop.permute.xlu0 %5226
        %5228 = vrot.lane.b32.xlu0 %v4273, 96
        %v5229 = vpop.permute.xlu0 %5228
        %5230 = vrot.lane.b32.xlu0 %v4275, 96
        %v5231 = vpop.permute.xlu0 %5230
        %5232 = vrot.lane.b32.xlu0 %v4276, 96
        %v5233 = vpop.permute.xlu0 %5232
        %5234 = vrot.lane.b32.xlu0 %v4278, 96
        %v5235 = vpop.permute.xlu0 %5234
        %5236 = vrot.lane.b32.xlu0 %v4279, 96
        %v5237 = vpop.permute.xlu0 %5236
        %5238 = vrot.lane.b32.xlu0 %v4281, 96
        %v5239 = vpop.permute.xlu0 %5238
        %5240 = vrot.lane.b32.xlu0 %v4282, 96
        %v5241 = vpop.permute.xlu0 %5240
        %5242 = vrot.lane.b32.xlu0 %v4284, 96
        %v5243 = vpop.permute.xlu0 %5242
        %5244 = vrot.lane.b32.xlu0 %v4285, 96
        %v5245 = vpop.permute.xlu0 %5244
        %5278 = vst.msk [vmem:[#allocation3] sm:$0xff] %vm1512, %v5183
        %5279 = vst.msk [vmem:[#allocation3 + $0x10] sm:$0xff] %vm1512, %v5185
        %5280 = vst.msk [vmem:[#allocation3 + $0x20] sm:$0xff] %vm1512, %v5187
        %5281 = vst.msk [vmem:[#allocation3 + $0x30] sm:$0xff] %vm1512, %v5189
        %5282 = vst.msk [vmem:[#allocation3 + $0x40] sm:$0xff] %vm1512, %v5191
        %5283 = vst.msk [vmem:[#allocation3 + $0x50] sm:$0xff] %vm1512, %v5193
        %5284 = vst.msk [vmem:[#allocation3 + $0x60] sm:$0xff] %vm1512, %v5195
        %5285 = vst.msk [vmem:[#allocation3 + $0x70] sm:$0xff] %vm1512, %v5197
        %5286 = vst.msk [vmem:[#allocation3 + $0x80] sm:$0xff] %vm1512, %v5199
        %5287 = vst.msk [vmem:[#allocation3 + $0x90] sm:$0xff] %vm1512, %v5201
        %5288 = vst.msk [vmem:[#allocation3 + $0xa0] sm:$0xff] %vm1512, %v5203
        %5289 = vst.msk [vmem:[#allocation3 + $0xb0] sm:$0xff] %vm1512, %v5205
        %5290 = vst.msk [vmem:[#allocation3 + $0xc0] sm:$0xff] %vm1512, %v5207
        %5291 = vst.msk [vmem:[#allocation3 + $0xd0] sm:$0xff] %vm1512, %v5209
        %5292 = vst.msk [vmem:[#allocation3 + $0xe0] sm:$0xff] %vm1512, %v5211
        %5293 = vst.msk [vmem:[#allocation3 + $0xf0] sm:$0xff] %vm1512, %v5213
        %5294 = vst.msk [vmem:[#allocation3 + $0x100] sm:$0xff] %vm1512, %v5215
        %5295 = vst.msk [vmem:[#allocation3 + $0x110] sm:$0xff] %vm1512, %v5217
        %5296 = vst.msk [vmem:[#allocation3 + $0x120] sm:$0xff] %vm1512, %v5219
        %5297 = vst.msk [vmem:[#allocation3 + $0x130] sm:$0xff] %vm1512, %v5221
        %5298 = vst.msk [vmem:[#allocation3 + $0x140] sm:$0xff] %vm1512, %v5223
        %5299 = vst.msk [vmem:[#allocation3 + $0x150] sm:$0xff] %vm1512, %v5225
        %5300 = vst.msk [vmem:[#allocation3 + $0x160] sm:$0xff] %vm1512, %v5227
        %5301 = vst.msk [vmem:[#allocation3 + $0x170] sm:$0xff] %vm1512, %v5229
        %5302 = vst.msk [vmem:[#allocation3 + $0x180] sm:$0xff] %vm1512, %v5231
        %5303 = vst.msk [vmem:[#allocation3 + $0x190] sm:$0xff] %vm1512, %v5233
        %5304 = vst.msk [vmem:[#allocation3 + $0x1a0] sm:$0xff] %vm1512, %v5235
        %5305 = vst.msk [vmem:[#allocation3 + $0x1b0] sm:$0xff] %vm1512, %v5237
        %5306 = vst.msk [vmem:[#allocation3 + $0x1c0] sm:$0xff] %vm1512, %v5239
        %5307 = vst.msk [vmem:[#allocation3 + $0x1d0] sm:$0xff] %vm1512, %v5241
        %5308 = vst.msk [vmem:[#allocation3 + $0x1e0] sm:$0xff] %vm1512, %v5243
        %5309 = vst.msk [vmem:[#allocation3 + $0x1f0] sm:$0xff] %vm1512, %v5245
        %v5311 = vrot.slane %v4284, 1
        %v5312 = vrot.slane %v4285, 1
        %v5313 = vsel %vm594, %v5311, %v5312
        %v5314 = vrot.slane %v4286, 1
        %v5315 = vsel %vm594, %v5312, %v5314
        %5316 = vrot.lane.b32.xlu0 %v4379, 112
        %v5317 = vpop.permute.xlu0 %5316
        %5318 = vrot.lane.b32.xlu0 %v4381, 112
        %v5319 = vpop.permute.xlu0 %5318
        %5320 = vrot.lane.b32.xlu0 %v4384, 112
        %v5321 = vpop.permute.xlu0 %5320
        %5322 = vrot.lane.b32.xlu0 %v4386, 112
        %v5323 = vpop.permute.xlu0 %5322
        %5324 = vrot.lane.b32.xlu0 %v4389, 112
        %v5325 = vpop.permute.xlu0 %5324
        %5326 = vrot.lane.b32.xlu0 %v4391, 112
        %v5327 = vpop.permute.xlu0 %5326
        %5328 = vrot.lane.b32.xlu0 %v4394, 112
        %v5329 = vpop.permute.xlu0 %5328
        %5330 = vrot.lane.b32.xlu0 %v4396, 112
        %v5331 = vpop.permute.xlu0 %5330
        %5332 = vrot.lane.b32.xlu0 %v4399, 112
        %v5333 = vpop.permute.xlu0 %5332
        %5334 = vrot.lane.b32.xlu0 %v4401, 112
        %v5335 = vpop.permute.xlu0 %5334
        %5336 = vrot.lane.b32.xlu0 %v4404, 112
        %v5337 = vpop.permute.xlu0 %5336
        %5338 = vrot.lane.b32.xlu0 %v4406, 112
        %v5339 = vpop.permute.xlu0 %5338
        %5340 = vrot.lane.b32.xlu0 %v4409, 112
        %v5341 = vpop.permute.xlu0 %5340
        %5342 = vrot.lane.b32.xlu0 %v4411, 112
        %v5343 = vpop.permute.xlu0 %5342
        %5344 = vrot.lane.b32.xlu0 %v4414, 112
        %v5345 = vpop.permute.xlu0 %5344
        %5346 = vrot.lane.b32.xlu0 %v4416, 112
        %v5347 = vpop.permute.xlu0 %5346
        %5348 = vrot.lane.b32.xlu0 %v4419, 112
        %v5349 = vpop.permute.xlu0 %5348
        %5350 = vrot.lane.b32.xlu0 %v4421, 112
        %v5351 = vpop.permute.xlu0 %5350
        %5352 = vrot.lane.b32.xlu0 %v4424, 112
        %v5353 = vpop.permute.xlu0 %5352
        %5354 = vrot.lane.b32.xlu0 %v4426, 112
        %v5355 = vpop.permute.xlu0 %5354
        %5356 = vrot.lane.b32.xlu0 %v4429, 112
        %v5357 = vpop.permute.xlu0 %5356
        %5358 = vrot.lane.b32.xlu0 %v4431, 112
        %v5359 = vpop.permute.xlu0 %5358
        %5360 = vrot.lane.b32.xlu0 %v4434, 112
        %v5361 = vpop.permute.xlu0 %5360
        %5362 = vrot.lane.b32.xlu0 %v4436, 112
        %v5363 = vpop.permute.xlu0 %5362
        %5364 = vrot.lane.b32.xlu0 %v4439, 112
        %v5365 = vpop.permute.xlu0 %5364
        %5366 = vrot.lane.b32.xlu0 %v4441, 112
        %v5367 = vpop.permute.xlu0 %5366
        %5368 = vrot.lane.b32.xlu0 %v4444, 112
        %v5369 = vpop.permute.xlu0 %5368
        %5370 = vrot.lane.b32.xlu0 %v4446, 112
        %v5371 = vpop.permute.xlu0 %5370
        %5372 = vrot.lane.b32.xlu0 %v4916, 112
        %v5373 = vpop.permute.xlu0 %5372
        %5374 = vrot.lane.b32.xlu0 %v4918, 112
        %v5375 = vpop.permute.xlu0 %5374
        %5376 = vrot.lane.b32.xlu0 %v5313, 112
        %v5377 = vpop.permute.xlu0 %5376
        %5378 = vrot.lane.b32.xlu0 %v5315, 112
        %v5379 = vpop.permute.xlu0 %5378
        %5412 = vst.msk [vmem:[#allocation3] sm:$0xff] %vm1647, %v5317
        %5413 = vst.msk [vmem:[#allocation3 + $0x10] sm:$0xff] %vm1647, %v5319
        %5414 = vst.msk [vmem:[#allocation3 + $0x20] sm:$0xff] %vm1647, %v5321
        %5415 = vst.msk [vmem:[#allocation3 + $0x30] sm:$0xff] %vm1647, %v5323
        %5416 = vst.msk [vmem:[#allocation3 + $0x40] sm:$0xff] %vm1647, %v5325
        %5417 = vst.msk [vmem:[#allocation3 + $0x50] sm:$0xff] %vm1647, %v5327
        %5418 = vst.msk [vmem:[#allocation3 + $0x60] sm:$0xff] %vm1647, %v5329
        %5419 = vst.msk [vmem:[#allocation3 + $0x70] sm:$0xff] %vm1647, %v5331
        %5420 = vst.msk [vmem:[#allocation3 + $0x80] sm:$0xff] %vm1647, %v5333
        %5421 = vst.msk [vmem:[#allocation3 + $0x90] sm:$0xff] %vm1647, %v5335
        %5422 = vst.msk [vmem:[#allocation3 + $0xa0] sm:$0xff] %vm1647, %v5337
        %5423 = vst.msk [vmem:[#allocation3 + $0xb0] sm:$0xff] %vm1647, %v5339
        %5424 = vst.msk [vmem:[#allocation3 + $0xc0] sm:$0xff] %vm1647, %v5341
        %5425 = vst.msk [vmem:[#allocation3 + $0xd0] sm:$0xff] %vm1647, %v5343
        %5426 = vst.msk [vmem:[#allocation3 + $0xe0] sm:$0xff] %vm1647, %v5345
        %5427 = vst.msk [vmem:[#allocation3 + $0xf0] sm:$0xff] %vm1647, %v5347
        %5428 = vst.msk [vmem:[#allocation3 + $0x100] sm:$0xff] %vm1647, %v5349
        %5429 = vst.msk [vmem:[#allocation3 + $0x110] sm:$0xff] %vm1647, %v5351
        %5430 = vst.msk [vmem:[#allocation3 + $0x120] sm:$0xff] %vm1647, %v5353
        %5431 = vst.msk [vmem:[#allocation3 + $0x130] sm:$0xff] %vm1647, %v5355
        %5432 = vst.msk [vmem:[#allocation3 + $0x140] sm:$0xff] %vm1647, %v5357
        %5433 = vst.msk [vmem:[#allocation3 + $0x150] sm:$0xff] %vm1647, %v5359
        %5434 = vst.msk [vmem:[#allocation3 + $0x160] sm:$0xff] %vm1647, %v5361
        %5435 = vst.msk [vmem:[#allocation3 + $0x170] sm:$0xff] %vm1647, %v5363
        %5436 = vst.msk [vmem:[#allocation3 + $0x180] sm:$0xff] %vm1647, %v5365
        %5437 = vst.msk [vmem:[#allocation3 + $0x190] sm:$0xff] %vm1647, %v5367
        %5438 = vst.msk [vmem:[#allocation3 + $0x1a0] sm:$0xff] %vm1647, %v5369
        %5439 = vst.msk [vmem:[#allocation3 + $0x1b0] sm:$0xff] %vm1647, %v5371
        %5440 = vst.msk [vmem:[#allocation3 + $0x1c0] sm:$0xff] %vm1647, %v5373
        %5441 = vst.msk [vmem:[#allocation3 + $0x1d0] sm:$0xff] %vm1647, %v5375
        %5442 = vst.msk [vmem:[#allocation3 + $0x1e0] sm:$0xff] %vm1647, %v5377
        %5443 = vst.msk [vmem:[#allocation3 + $0x1f0] sm:$0xff] %vm1647, %v5379
        %v5444 = vrot.slane %v4284, 2
        %v5445 = vrot.slane %v4285, 2
        %v5446 = vsel %vm804, %v5444, %v5445
        %v5447 = vrot.slane %v4286, 2
        %v5448 = vsel %vm804, %v5445, %v5447
        %5481 = vst.msk [vmem:[#allocation3 + $0x8] sm:$0xff] %vm277, %v4587
        %5482 = vst.msk [vmem:[#allocation3 + $0x18] sm:$0xff] %vm277, %v4589
        %5483 = vst.msk [vmem:[#allocation3 + $0x28] sm:$0xff] %vm277, %v4592
        %5484 = vst.msk [vmem:[#allocation3 + $0x38] sm:$0xff] %vm277, %v4594
        %5485 = vst.msk [vmem:[#allocation3 + $0x48] sm:$0xff] %vm277, %v4597
        %5486 = vst.msk [vmem:[#allocation3 + $0x58] sm:$0xff] %vm277, %v4599
        %5487 = vst.msk [vmem:[#allocation3 + $0x68] sm:$0xff] %vm277, %v4602
        %5488 = vst.msk [vmem:[#allocation3 + $0x78] sm:$0xff] %vm277, %v4604
        %5489 = vst.msk [vmem:[#allocation3 + $0x88] sm:$0xff] %vm277, %v4607
        %5490 = vst.msk [vmem:[#allocation3 + $0x98] sm:$0xff] %vm277, %v4609
        %5491 = vst.msk [vmem:[#allocation3 + $0xa8] sm:$0xff] %vm277, %v4612
        %5492 = vst.msk [vmem:[#allocation3 + $0xb8] sm:$0xff] %vm277, %v4614
        %5493 = vst.msk [vmem:[#allocation3 + $0xc8] sm:$0xff] %vm277, %v4617
        %5494 = vst.msk [vmem:[#allocation3 + $0xd8] sm:$0xff] %vm277, %v4619
        %5495 = vst.msk [vmem:[#allocation3 + $0xe8] sm:$0xff] %vm277, %v4622
        %5496 = vst.msk [vmem:[#allocation3 + $0xf8] sm:$0xff] %vm277, %v4624
        %5497 = vst.msk [vmem:[#allocation3 + $0x108] sm:$0xff] %vm277, %v4627
        %5498 = vst.msk [vmem:[#allocation3 + $0x118] sm:$0xff] %vm277, %v4629
        %5499 = vst.msk [vmem:[#allocation3 + $0x128] sm:$0xff] %vm277, %v4632
        %5500 = vst.msk [vmem:[#allocation3 + $0x138] sm:$0xff] %vm277, %v4634
        %5501 = vst.msk [vmem:[#allocation3 + $0x148] sm:$0xff] %vm277, %v4637
        %5502 = vst.msk [vmem:[#allocation3 + $0x158] sm:$0xff] %vm277, %v4639
        %5503 = vst.msk [vmem:[#allocation3 + $0x168] sm:$0xff] %vm277, %v4642
        %5504 = vst.msk [vmem:[#allocation3 + $0x178] sm:$0xff] %vm277, %v4644
        %5505 = vst.msk [vmem:[#allocation3 + $0x188] sm:$0xff] %vm277, %v4647
        %5506 = vst.msk [vmem:[#allocation3 + $0x198] sm:$0xff] %vm277, %v4649
        %5507 = vst.msk [vmem:[#allocation3 + $0x1a8] sm:$0xff] %vm277, %v4652
        %5508 = vst.msk [vmem:[#allocation3 + $0x1b8] sm:$0xff] %vm277, %v4654
        %5509 = vst.msk [vmem:[#allocation3 + $0x1c8] sm:$0xff] %vm277, %v5049
        %5510 = vst.msk [vmem:[#allocation3 + $0x1d8] sm:$0xff] %vm277, %v5051
        %5511 = vst.msk [vmem:[#allocation3 + $0x1e8] sm:$0xff] %vm277, %v5446
        %5512 = vst.msk [vmem:[#allocation3 + $0x1f8] sm:$0xff] %vm277, %v5448
        %v5513 = vld [vmem:[#allocation3] sm:$0xff]
        %v5514 = vld [vmem:[#allocation3 + $0x8] sm:$0xff]
        %v5515 = vld [vmem:[#allocation3 + $0x10] sm:$0xff]
        %v5516 = vld [vmem:[#allocation3 + $0x18] sm:$0xff]
        %v5517 = vld [vmem:[#allocation3 + $0x20] sm:$0xff]
        %v5518 = vld [vmem:[#allocation3 + $0x28] sm:$0xff]
        %v5519 = vld [vmem:[#allocation3 + $0x30] sm:$0xff]
        %v5520 = vld [vmem:[#allocation3 + $0x38] sm:$0xff]
        %v5521 = vld [vmem:[#allocation3 + $0x40] sm:$0xff]
        %v5522 = vld [vmem:[#allocation3 + $0x48] sm:$0xff]
        %v5523 = vld [vmem:[#allocation3 + $0x50] sm:$0xff]
        %v5524 = vld [vmem:[#allocation3 + $0x58] sm:$0xff]
        %v5525 = vld [vmem:[#allocation3 + $0x60] sm:$0xff]
        %v5526 = vld [vmem:[#allocation3 + $0x68] sm:$0xff]
        %v5527 = vld [vmem:[#allocation3 + $0x70] sm:$0xff]
        %v5528 = vld [vmem:[#allocation3 + $0x78] sm:$0xff]
        %v5529 = vld [vmem:[#allocation3 + $0x80] sm:$0xff]
        %v5530 = vld [vmem:[#allocation3 + $0x88] sm:$0xff]
        %v5531 = vld [vmem:[#allocation3 + $0x90] sm:$0xff]
        %v5532 = vld [vmem:[#allocation3 + $0x98] sm:$0xff]
        %v5533 = vld [vmem:[#allocation3 + $0xa0] sm:$0xff]
        %v5534 = vld [vmem:[#allocation3 + $0xa8] sm:$0xff]
        %v5535 = vld [vmem:[#allocation3 + $0xb0] sm:$0xff]
        %v5536 = vld [vmem:[#allocation3 + $0xb8] sm:$0xff]
        %v5537 = vld [vmem:[#allocation3 + $0xc0] sm:$0xff]
        %v5538 = vld [vmem:[#allocation3 + $0xc8] sm:$0xff]
        %v5539 = vld [vmem:[#allocation3 + $0xd0] sm:$0xff]
        %v5540 = vld [vmem:[#allocation3 + $0xd8] sm:$0xff]
        %v5541 = vld [vmem:[#allocation3 + $0xe0] sm:$0xff]
        %v5542 = vld [vmem:[#allocation3 + $0xe8] sm:$0xff]
        %v5543 = vld [vmem:[#allocation3 + $0xf0] sm:$0xff]
        %v5544 = vld [vmem:[#allocation3 + $0xf8] sm:$0xff]
        %v5545 = vld [vmem:[#allocation3 + $0x100] sm:$0xff]
        %v5546 = vld [vmem:[#allocation3 + $0x108] sm:$0xff]
        %v5547 = vld [vmem:[#allocation3 + $0x110] sm:$0xff]
        %v5548 = vld [vmem:[#allocation3 + $0x118] sm:$0xff]
        %v5549 = vld [vmem:[#allocation3 + $0x120] sm:$0xff]
        %v5550 = vld [vmem:[#allocation3 + $0x128] sm:$0xff]
        %v5551 = vld [vmem:[#allocation3 + $0x130] sm:$0xff]
        %v5552 = vld [vmem:[#allocation3 + $0x138] sm:$0xff]
        %v5553 = vld [vmem:[#allocation3 + $0x140] sm:$0xff]
        %v5554 = vld [vmem:[#allocation3 + $0x148] sm:$0xff]
        %v5555 = vld [vmem:[#allocation3 + $0x150] sm:$0xff]
        %v5556 = vld [vmem:[#allocation3 + $0x158] sm:$0xff]
        %v5557 = vld [vmem:[#allocation3 + $0x160] sm:$0xff]
        %v5558 = vld [vmem:[#allocation3 + $0x168] sm:$0xff]
        %v5559 = vld [vmem:[#allocation3 + $0x170] sm:$0xff]
        %v5560 = vld [vmem:[#allocation3 + $0x178] sm:$0xff]
        %v5561 = vld [vmem:[#allocation3 + $0x180] sm:$0xff]
        %v5562 = vld [vmem:[#allocation3 + $0x188] sm:$0xff]
        %v5563 = vld [vmem:[#allocation3 + $0x190] sm:$0xff]
        %v5564 = vld [vmem:[#allocation3 + $0x198] sm:$0xff]
        %v5565 = vld [vmem:[#allocation3 + $0x1a0] sm:$0xff]
        %v5566 = vld [vmem:[#allocation3 + $0x1a8] sm:$0xff]
        %v5567 = vld [vmem:[#allocation3 + $0x1b0] sm:$0xff]
        %v5568 = vld [vmem:[#allocation3 + $0x1b8] sm:$0xff]
        %v5569 = vld [vmem:[#allocation3 + $0x1c0] sm:$0xff]
        %v5570 = vld [vmem:[#allocation3 + $0x1c8] sm:$0xff]
        %v5571 = vld [vmem:[#allocation3 + $0x1d0] sm:$0xff]
        %v5572 = vld [vmem:[#allocation3 + $0x1d8] sm:$0xff]
        %v5573 = vld [vmem:[#allocation3 + $0x1e0] sm:$0xff]
        %v5574 = vld [vmem:[#allocation3 + $0x1e8] sm:$0xff]
        %v5575 = vld [vmem:[#allocation3 + $0x1f0] sm:$0xff]
        %v5576 = vld [vmem:[#allocation3 + $0x1f8] sm:$0xff]
        %s5577 = scalar_lea.vmem %s1, 288
        %v5578 = vld [vmem:[%s5577] sm:$0xff]
        %v5579 = vld [vmem:[%s5577 + $0x8] sm:$0xff]
        %v5580 = vld [vmem:[%s5577 + $0x10] sm:$0xff]
        %v5581 = vld [vmem:[%s5577 + $0x18] sm:$0xff]
        %v5582 = vld [vmem:[%s5577 + $0x20] sm:$0xff]
        %v5583 = vld [vmem:[%s5577 + $0x28] sm:$0xff]
        %v5584 = vld [vmem:[%s5577 + $0x30] sm:$0xff]
        %v5585 = vld [vmem:[%s5577 + $0x38] sm:$0xff]
        %v5586 = vld [vmem:[%s5577 + $0x40] sm:$0xff]
        %v5587 = vld [vmem:[%s5577 + $0x48] sm:$0xff]
        %v5588 = vld [vmem:[%s5577 + $0x50] sm:$0xff]
        %v5589 = vld [vmem:[%s5577 + $0x58] sm:$0xff]
        %v5590 = vld [vmem:[%s5577 + $0x60] sm:$0xff]
        %v5591 = vld [vmem:[%s5577 + $0x68] sm:$0xff]
        %v5592 = vld [vmem:[%s5577 + $0x70] sm:$0xff]
        %v5593 = vld [vmem:[%s5577 + $0x78] sm:$0xff]
        %v5594 = vld [vmem:[%s5577 + $0x80] sm:$0xff]
        %v5595 = vld [vmem:[%s5577 + $0x88] sm:$0xff]
        %s5596 = scalar_lea.vmem %s2, 2
        %v5597 = vld [vmem:[%s5596] sm:$0x1]
        %v5599 = vperm.slane %v5597, 0
        %v5602 = vsel %vm277, %v5514, 0
        %v5605 = vsel %vm277, %v5516, 0
        %v5608 = vsel %vm277, %v5518, 0
        %v5611 = vsel %vm277, %v5520, 0
        %v5614 = vsel %vm277, %v5522, 0
        %v5617 = vsel %vm277, %v5524, 0
        %v5620 = vsel %vm277, %v5526, 0
        %v5623 = vsel %vm277, %v5528, 0
        %v5626 = vsel %vm277, %v5530, 0
        %v5629 = vsel %vm277, %v5532, 0
        %v5632 = vsel %vm277, %v5534, 0
        %v5635 = vsel %vm277, %v5536, 0
        %v5638 = vsel %vm277, %v5538, 0
        %v5641 = vsel %vm277, %v5540, 0
        %v5644 = vsel %vm277, %v5542, 0
        %v5647 = vsel %vm277, %v5544, 0
        %v5650 = vsel %vm277, %v5546, 0
        %v5653 = vsel %vm277, %v5548, 0
        %v5656 = vsel %vm277, %v5550, 0
        %v5659 = vsel %vm277, %v5552, 0
        %v5662 = vsel %vm277, %v5554, 0
        %v5665 = vsel %vm277, %v5556, 0
        %v5668 = vsel %vm277, %v5558, 0
        %v5671 = vsel %vm277, %v5560, 0
        %v5674 = vsel %vm277, %v5562, 0
        %v5677 = vsel %vm277, %v5564, 0
        %v5680 = vsel %vm277, %v5566, 0
        %v5683 = vsel %vm277, %v5568, 0
        %v5686 = vsel %vm277, %v5570, 0
        %v5689 = vsel %vm277, %v5572, 0
        %v5692 = vsel %vm277, %v5574, 0
        %v5695 = vsel %vm277, %v5576, 0
        %5697 = vmatpush.msra.mxu0 %v5593
        %5698 = vmatpush.msra.mxu0 %v5592
        %5699 = vmatpush.msra.mxu0 %v5591
        %5700 = vmatpush.msra.mxu0 %v5590
        %5701 = vmatpush.msra.mxu0 %v5589
        %5702 = vmatpush.msra.mxu0 %v5588
        %5703 = vmatpush.msra.mxu0 %v5587
        %5704 = vmatpush.msra.mxu0 %v5586
        %5705 = vmatpush.msra.mxu0 %v5585
        %5706 = vmatpush.msra.mxu0 %v5584
        %5707 = vmatpush.msra.mxu0 %v5583
        %5708 = vmatpush.msra.mxu0 %v5582
        %5709 = vmatpush.msra.mxu0 %v5581
        %5710 = vmatpush.msra.mxu0 %v5580
        %5711 = vmatpush.msra.mxu0 %v5579
        %5712 = vmatpush.msra.mxu0 %v5578
        %5713 = vmatmul.f32.gmra.mxu0 %v5513
        %v5714 = vpop.f32.mrf.mxu0
        %v5715 = vadd.f32 %v5599, %v5714
        %5716 = vmatmul.f32.gmra.mxu0 %v5515
        %v5717 = vpop.f32.mrf.mxu0
        %v5718 = vadd.f32 %v5599, %v5717
        %5719 = vmatmul.f32.gmra.mxu0 %v5517
        %v5720 = vpop.f32.mrf.mxu0
        %v5721 = vadd.f32 %v5599, %v5720
        %5722 = vmatmul.f32.gmra.mxu0 %v5519
        %v5723 = vpop.f32.mrf.mxu0
        %v5724 = vadd.f32 %v5599, %v5723
        %5725 = vmatmul.f32.gmra.mxu0 %v5521
        %v5726 = vpop.f32.mrf.mxu0
        %v5727 = vadd.f32 %v5599, %v5726
        %5728 = vmatmul.f32.gmra.mxu0 %v5523
        %v5729 = vpop.f32.mrf.mxu0
        %v5730 = vadd.f32 %v5599, %v5729
        %5731 = vmatmul.f32.gmra.mxu0 %v5525
        %v5732 = vpop.f32.mrf.mxu0
        %v5733 = vadd.f32 %v5599, %v5732
        %5734 = vmatmul.f32.gmra.mxu0 %v5527
        %v5735 = vpop.f32.mrf.mxu0
        %v5736 = vadd.f32 %v5599, %v5735
        %5737 = vmatmul.f32.gmra.mxu0 %v5529
        %v5738 = vpop.f32.mrf.mxu0
        %v5739 = vadd.f32 %v5599, %v5738
        %5740 = vmatmul.f32.gmra.mxu0 %v5531
        %v5741 = vpop.f32.mrf.mxu0
        %v5742 = vadd.f32 %v5599, %v5741
        %5743 = vmatmul.f32.gmra.mxu0 %v5533
        %v5744 = vpop.f32.mrf.mxu0
        %v5745 = vadd.f32 %v5599, %v5744
        %5746 = vmatmul.f32.gmra.mxu0 %v5535
        %v5747 = vpop.f32.mrf.mxu0
        %v5748 = vadd.f32 %v5599, %v5747
        %5749 = vmatmul.f32.gmra.mxu0 %v5537
        %v5750 = vpop.f32.mrf.mxu0
        %v5751 = vadd.f32 %v5599, %v5750
        %5752 = vmatmul.f32.gmra.mxu0 %v5539
        %v5753 = vpop.f32.mrf.mxu0
        %v5754 = vadd.f32 %v5599, %v5753
        %5755 = vmatmul.f32.gmra.mxu0 %v5541
        %v5756 = vpop.f32.mrf.mxu0
        %v5757 = vadd.f32 %v5599, %v5756
        %5758 = vmatmul.f32.gmra.mxu0 %v5543
        %v5759 = vpop.f32.mrf.mxu0
        %v5760 = vadd.f32 %v5599, %v5759
        %5761 = vmatmul.f32.gmra.mxu0 %v5545
        %v5762 = vpop.f32.mrf.mxu0
        %v5763 = vadd.f32 %v5599, %v5762
        %5764 = vmatmul.f32.gmra.mxu0 %v5547
        %v5765 = vpop.f32.mrf.mxu0
        %v5766 = vadd.f32 %v5599, %v5765
        %5767 = vmatmul.f32.gmra.mxu0 %v5549
        %v5768 = vpop.f32.mrf.mxu0
        %v5769 = vadd.f32 %v5599, %v5768
        %5770 = vmatmul.f32.gmra.mxu0 %v5551
        %v5771 = vpop.f32.mrf.mxu0
        %v5772 = vadd.f32 %v5599, %v5771
        %5773 = vmatmul.f32.gmra.mxu0 %v5553
        %v5774 = vpop.f32.mrf.mxu0
        %v5775 = vadd.f32 %v5599, %v5774
        %5776 = vmatmul.f32.gmra.mxu0 %v5555
        %v5777 = vpop.f32.mrf.mxu0
        %v5778 = vadd.f32 %v5599, %v5777
        %5779 = vmatmul.f32.gmra.mxu0 %v5557
        %v5780 = vpop.f32.mrf.mxu0
        %v5781 = vadd.f32 %v5599, %v5780
        %5782 = vmatmul.f32.gmra.mxu0 %v5559
        %v5783 = vpop.f32.mrf.mxu0
        %v5784 = vadd.f32 %v5599, %v5783
        %5785 = vmatmul.f32.gmra.mxu0 %v5561
        %v5786 = vpop.f32.mrf.mxu0
        %v5787 = vadd.f32 %v5599, %v5786
        %5788 = vmatmul.f32.gmra.mxu0 %v5563
        %v5789 = vpop.f32.mrf.mxu0
        %v5790 = vadd.f32 %v5599, %v5789
        %5791 = vmatmul.f32.gmra.mxu0 %v5565
        %v5792 = vpop.f32.mrf.mxu0
        %v5793 = vadd.f32 %v5599, %v5792
        %5794 = vmatmul.f32.gmra.mxu0 %v5567
        %v5795 = vpop.f32.mrf.mxu0
        %v5796 = vadd.f32 %v5599, %v5795
        %5797 = vmatmul.f32.gmra.mxu0 %v5569
        %v5798 = vpop.f32.mrf.mxu0
        %v5799 = vadd.f32 %v5599, %v5798
        %5800 = vmatmul.f32.gmra.mxu0 %v5571
        %v5801 = vpop.f32.mrf.mxu0
        %v5802 = vadd.f32 %v5599, %v5801
        %5803 = vmatmul.f32.gmra.mxu0 %v5573
        %v5804 = vpop.f32.mrf.mxu0
        %v5805 = vadd.f32 %v5599, %v5804
        %5806 = vmatmul.f32.gmra.mxu0 %v5575
        %v5807 = vpop.f32.mrf.mxu0
        %v5808 = vadd.f32 %v5599, %v5807
        %5809 = vdwg.mxu0
        %5810 = vmatpush.msra.mxu0 0.0
        %5811 = vmatpush.msra.mxu0 0.0
        %5812 = vmatpush.msra.mxu0 0.0
        %5813 = vmatpush.msra.mxu0 0.0
        %5814 = vmatpush.msra.mxu0 0.0
        %5815 = vmatpush.msra.mxu0 0.0
        %5816 = vmatpush.msra.mxu0 0.0
        %5817 = vmatpush.msra.mxu0 0.0
        %5818 = vmatpush.msra.mxu0 0.0
        %5819 = vmatpush.msra.mxu0 0.0
        %5820 = vmatpush.msra.mxu0 0.0
        %5821 = vmatpush.msra.mxu0 0.0
        %5822 = vmatpush.msra.mxu0 0.0
        %5823 = vmatpush.msra.mxu0 0.0
        %5824 = vmatpush.msra.mxu0 %v5595
        %5825 = vmatpush.msra.mxu0 %v5594
        %5826 = vmatmul.f32.gmra.mxu0 %v5602
        %v5827 = vpop.f32.mrf.mxu0
        %v5828 = vadd.f32 %v5715, %v5827
        %5829 = vmatmul.f32.gmra.mxu0 %v5605
        %v5830 = vpop.f32.mrf.mxu0
        %v5831 = vadd.f32 %v5718, %v5830
        %5832 = vmatmul.f32.gmra.mxu0 %v5608
        %v5833 = vpop.f32.mrf.mxu0
        %v5834 = vadd.f32 %v5721, %v5833
        %5835 = vmatmul.f32.gmra.mxu0 %v5611
        %v5836 = vpop.f32.mrf.mxu0
        %v5837 = vadd.f32 %v5724, %v5836
        %5838 = vmatmul.f32.gmra.mxu0 %v5614
        %v5839 = vpop.f32.mrf.mxu0
        %v5840 = vadd.f32 %v5727, %v5839
        %5841 = vmatmul.f32.gmra.mxu0 %v5617
        %v5842 = vpop.f32.mrf.mxu0
        %v5843 = vadd.f32 %v5730, %v5842
        %5844 = vmatmul.f32.gmra.mxu0 %v5620
        %v5845 = vpop.f32.mrf.mxu0
        %v5846 = vadd.f32 %v5733, %v5845
        %5847 = vmatmul.f32.gmra.mxu0 %v5623
        %v5848 = vpop.f32.mrf.mxu0
        %v5849 = vadd.f32 %v5736, %v5848
        %5850 = vmatmul.f32.gmra.mxu0 %v5626
        %v5851 = vpop.f32.mrf.mxu0
        %v5852 = vadd.f32 %v5739, %v5851
        %5853 = vmatmul.f32.gmra.mxu0 %v5629
        %v5854 = vpop.f32.mrf.mxu0
        %v5855 = vadd.f32 %v5742, %v5854
        %5856 = vmatmul.f32.gmra.mxu0 %v5632
        %v5857 = vpop.f32.mrf.mxu0
        %v5858 = vadd.f32 %v5745, %v5857
        %5859 = vmatmul.f32.gmra.mxu0 %v5635
        %v5860 = vpop.f32.mrf.mxu0
        %v5861 = vadd.f32 %v5748, %v5860
        %5862 = vmatmul.f32.gmra.mxu0 %v5638
        %v5863 = vpop.f32.mrf.mxu0
        %v5864 = vadd.f32 %v5751, %v5863
        %5865 = vmatmul.f32.gmra.mxu0 %v5641
        %v5866 = vpop.f32.mrf.mxu0
        %v5867 = vadd.f32 %v5754, %v5866
        %5868 = vmatmul.f32.gmra.mxu0 %v5644
        %v5869 = vpop.f32.mrf.mxu0
        %v5870 = vadd.f32 %v5757, %v5869
        %5871 = vmatmul.f32.gmra.mxu0 %v5647
        %v5872 = vpop.f32.mrf.mxu0
        %v5873 = vadd.f32 %v5760, %v5872
        %5874 = vmatmul.f32.gmra.mxu0 %v5650
        %v5875 = vpop.f32.mrf.mxu0
        %v5876 = vadd.f32 %v5763, %v5875
        %5877 = vmatmul.f32.gmra.mxu0 %v5653
        %v5878 = vpop.f32.mrf.mxu0
        %v5879 = vadd.f32 %v5766, %v5878
        %5880 = vmatmul.f32.gmra.mxu0 %v5656
        %v5881 = vpop.f32.mrf.mxu0
        %v5882 = vadd.f32 %v5769, %v5881
        %5883 = vmatmul.f32.gmra.mxu0 %v5659
        %v5884 = vpop.f32.mrf.mxu0
        %v5885 = vadd.f32 %v5772, %v5884
        %5886 = vmatmul.f32.gmra.mxu0 %v5662
        %v5887 = vpop.f32.mrf.mxu0
        %v5888 = vadd.f32 %v5775, %v5887
        %5889 = vmatmul.f32.gmra.mxu0 %v5665
        %v5890 = vpop.f32.mrf.mxu0
        %v5891 = vadd.f32 %v5778, %v5890
        %5892 = vmatmul.f32.gmra.mxu0 %v5668
        %v5893 = vpop.f32.mrf.mxu0
        %v5894 = vadd.f32 %v5781, %v5893
        %5895 = vmatmul.f32.gmra.mxu0 %v5671
        %v5896 = vpop.f32.mrf.mxu0
        %v5897 = vadd.f32 %v5784, %v5896
        %5898 = vmatmul.f32.gmra.mxu0 %v5674
        %v5899 = vpop.f32.mrf.mxu0
        %v5900 = vadd.f32 %v5787, %v5899
        %5901 = vmatmul.f32.gmra.mxu0 %v5677
        %v5902 = vpop.f32.mrf.mxu0
        %v5903 = vadd.f32 %v5790, %v5902
        %5904 = vmatmul.f32.gmra.mxu0 %v5680
        %v5905 = vpop.f32.mrf.mxu0
        %v5906 = vadd.f32 %v5793, %v5905
        %5907 = vmatmul.f32.gmra.mxu0 %v5683
        %v5908 = vpop.f32.mrf.mxu0
        %v5909 = vadd.f32 %v5796, %v5908
        %5910 = vmatmul.f32.gmra.mxu0 %v5686
        %v5911 = vpop.f32.mrf.mxu0
        %v5912 = vadd.f32 %v5799, %v5911
        %5913 = vmatmul.f32.gmra.mxu0 %v5689
        %v5914 = vpop.f32.mrf.mxu0
        %v5915 = vadd.f32 %v5802, %v5914
        %5916 = vmatmul.f32.gmra.mxu0 %v5692
        %v5917 = vpop.f32.mrf.mxu0
        %v5918 = vadd.f32 %v5805, %v5917
        %5919 = vmatmul.f32.gmra.mxu0 %v5695
        %v5920 = vpop.f32.mrf.mxu0
        %v5921 = vadd.f32 %v5808, %v5920
        %5922 = vdwg.mxu0
        %v5923 = vmax.f32 %v5828, 0.0
        %v5924 = vmax.f32 %v5831, 0.0
        %v5925 = vmax.f32 %v5834, 0.0
        %v5926 = vmax.f32 %v5837, 0.0
        %v5927 = vmax.f32 %v5840, 0.0
        %v5928 = vmax.f32 %v5843, 0.0
        %v5929 = vmax.f32 %v5846, 0.0
        %v5930 = vmax.f32 %v5849, 0.0
        %v5931 = vmax.f32 %v5852, 0.0
        %v5932 = vmax.f32 %v5855, 0.0
        %v5933 = vmax.f32 %v5858, 0.0
        %v5934 = vmax.f32 %v5861, 0.0
        %v5935 = vmax.f32 %v5864, 0.0
        %v5936 = vmax.f32 %v5867, 0.0
        %v5937 = vmax.f32 %v5870, 0.0
        %v5938 = vmax.f32 %v5873, 0.0
        %v5939 = vmax.f32 %v5876, 0.0
        %v5940 = vmax.f32 %v5879, 0.0
        %v5941 = vmax.f32 %v5882, 0.0
        %v5942 = vmax.f32 %v5885, 0.0
        %v5943 = vmax.f32 %v5888, 0.0
        %v5944 = vmax.f32 %v5891, 0.0
        %v5945 = vmax.f32 %v5894, 0.0
        %v5946 = vmax.f32 %v5897, 0.0
        %v5947 = vmax.f32 %v5900, 0.0
        %v5948 = vmax.f32 %v5903, 0.0
        %v5949 = vmax.f32 %v5906, 0.0
        %v5950 = vmax.f32 %v5909, 0.0
        %v5951 = vmax.f32 %v5912, 0.0
        %v5952 = vmax.f32 %v5915, 0.0
        %v5953 = vmax.f32 %v5918, 0.0
        %v5954 = vmax.f32 %v5921, 0.0
        %5987 = vrot.lane.b32.xlu0 %v5923, 12
        %v5988 = vpop.permute.xlu0 %5987
        %5989 = vrot.lane.b32.xlu0 %v5924, 12
        %v5990 = vpop.permute.xlu0 %5989
        %5991 = vrot.lane.b32.xlu0 %v5925, 12
        %v5992 = vpop.permute.xlu0 %5991
        %5993 = vrot.lane.b32.xlu0 %v5926, 12
        %v5994 = vpop.permute.xlu0 %5993
        %5995 = vrot.lane.b32.xlu0 %v5927, 12
        %v5996 = vpop.permute.xlu0 %5995
        %5997 = vrot.lane.b32.xlu0 %v5928, 12
        %v5998 = vpop.permute.xlu0 %5997
        %5999 = vrot.lane.b32.xlu0 %v5929, 12
        %v6000 = vpop.permute.xlu0 %5999
        %6001 = vrot.lane.b32.xlu0 %v5930, 12
        %v6002 = vpop.permute.xlu0 %6001
        %6003 = vrot.lane.b32.xlu0 %v5931, 12
        %v6004 = vpop.permute.xlu0 %6003
        %6005 = vrot.lane.b32.xlu0 %v5932, 12
        %v6006 = vpop.permute.xlu0 %6005
        %6007 = vrot.lane.b32.xlu0 %v5933, 12
        %v6008 = vpop.permute.xlu0 %6007
        %6009 = vrot.lane.b32.xlu0 %v5934, 12
        %v6010 = vpop.permute.xlu0 %6009
        %6011 = vrot.lane.b32.xlu0 %v5935, 12
        %v6012 = vpop.permute.xlu0 %6011
        %6013 = vrot.lane.b32.xlu0 %v5936, 12
        %v6014 = vpop.permute.xlu0 %6013
        %6015 = vrot.lane.b32.xlu0 %v5937, 12
        %v6016 = vpop.permute.xlu0 %6015
        %6017 = vrot.lane.b32.xlu0 %v5938, 12
        %v6018 = vpop.permute.xlu0 %6017
        %6019 = vrot.lane.b32.xlu0 %v5939, 12
        %v6020 = vpop.permute.xlu0 %6019
        %6021 = vrot.lane.b32.xlu0 %v5940, 12
        %v6022 = vpop.permute.xlu0 %6021
        %6023 = vrot.lane.b32.xlu0 %v5941, 12
        %v6024 = vpop.permute.xlu0 %6023
        %6025 = vrot.lane.b32.xlu0 %v5942, 12
        %v6026 = vpop.permute.xlu0 %6025
        %6027 = vrot.lane.b32.xlu0 %v5943, 12
        %v6028 = vpop.permute.xlu0 %6027
        %6029 = vrot.lane.b32.xlu0 %v5944, 12
        %v6030 = vpop.permute.xlu0 %6029
        %6031 = vrot.lane.b32.xlu0 %v5945, 12
        %v6032 = vpop.permute.xlu0 %6031
        %6033 = vrot.lane.b32.xlu0 %v5946, 12
        %v6034 = vpop.permute.xlu0 %6033
        %6035 = vrot.lane.b32.xlu0 %v5947, 12
        %v6036 = vpop.permute.xlu0 %6035
        %6037 = vrot.lane.b32.xlu0 %v5948, 12
        %v6038 = vpop.permute.xlu0 %6037
        %6039 = vrot.lane.b32.xlu0 %v5949, 12
        %v6040 = vpop.permute.xlu0 %6039
        %6041 = vrot.lane.b32.xlu0 %v5950, 12
        %v6042 = vpop.permute.xlu0 %6041
        %6043 = vrot.lane.b32.xlu0 %v5951, 12
        %v6044 = vpop.permute.xlu0 %6043
        %6045 = vrot.lane.b32.xlu0 %v5952, 12
        %v6046 = vpop.permute.xlu0 %6045
        %6047 = vrot.lane.b32.xlu0 %v5953, 12
        %v6048 = vpop.permute.xlu0 %6047
        %6049 = vrot.lane.b32.xlu0 %v5954, 12
        %v6050 = vpop.permute.xlu0 %6049
        %vm6083 = vcmask 130144
        %6084 = vst.msk [vmem:[%s427 + $0x1] sm:$0xff] %vm6083, %v5988
        %6085 = vst.msk [vmem:[%s427 + $0x9] sm:$0xff] %vm6083, %v5990
        %6086 = vst.msk [vmem:[%s427 + $0x19] sm:$0xff] %vm6083, %v5992
        %6087 = vst.msk [vmem:[%s427 + $0x21] sm:$0xff] %vm6083, %v5994
        %6088 = vst.msk [vmem:[%s427 + $0x31] sm:$0xff] %vm6083, %v5996
        %6089 = vst.msk [vmem:[%s427 + $0x39] sm:$0xff] %vm6083, %v5998
        %6090 = vst.msk [vmem:[%s427 + $0x49] sm:$0xff] %vm6083, %v6000
        %6091 = vst.msk [vmem:[%s427 + $0x51] sm:$0xff] %vm6083, %v6002
        %6092 = vst.msk [vmem:[%s427 + $0x61] sm:$0xff] %vm6083, %v6004
        %6093 = vst.msk [vmem:[%s427 + $0x69] sm:$0xff] %vm6083, %v6006
        %6094 = vst.msk [vmem:[%s427 + $0x79] sm:$0xff] %vm6083, %v6008
        %6095 = vst.msk [vmem:[%s427 + $0x81] sm:$0xff] %vm6083, %v6010
        %6096 = vst.msk [vmem:[%s427 + $0x91] sm:$0xff] %vm6083, %v6012
        %6097 = vst.msk [vmem:[%s427 + $0x99] sm:$0xff] %vm6083, %v6014
        %6098 = vst.msk [vmem:[%s427 + $0xa9] sm:$0xff] %vm6083, %v6016
        %6099 = vst.msk [vmem:[%s427 + $0xb1] sm:$0xff] %vm6083, %v6018
        %6100 = vst.msk [vmem:[%s427 + $0xc1] sm:$0xff] %vm6083, %v6020
        %6101 = vst.msk [vmem:[%s427 + $0xc9] sm:$0xff] %vm6083, %v6022
        %6102 = vst.msk [vmem:[%s427 + $0xd9] sm:$0xff] %vm6083, %v6024
        %6103 = vst.msk [vmem:[%s427 + $0xe1] sm:$0xff] %vm6083, %v6026
        %6104 = vst.msk [vmem:[%s427 + $0xf1] sm:$0xff] %vm6083, %v6028
        %6105 = vst.msk [vmem:[%s427 + $0xf9] sm:$0xff] %vm6083, %v6030
        %6106 = vst.msk [vmem:[%s427 + $0x109] sm:$0xff] %vm6083, %v6032
        %6107 = vst.msk [vmem:[%s427 + $0x111] sm:$0xff] %vm6083, %v6034
        %6108 = vst.msk [vmem:[%s427 + $0x121] sm:$0xff] %vm6083, %v6036
        %6109 = vst.msk [vmem:[%s427 + $0x129] sm:$0xff] %vm6083, %v6038
        %6110 = vst.msk [vmem:[%s427 + $0x139] sm:$0xff] %vm6083, %v6040
        %6111 = vst.msk [vmem:[%s427 + $0x141] sm:$0xff] %vm6083, %v6042
        %6112 = vst.msk [vmem:[%s427 + $0x151] sm:$0xff] %vm6083, %v6044
        %6113 = vst.msk [vmem:[%s427 + $0x159] sm:$0xff] %vm6083, %v6046
        %6114 = vst.msk [vmem:[%s427 + $0x169] sm:$0xff] %vm6083, %v6048
        %6115 = vst.msk [vmem:[%s427 + $0x171] sm:$0xff] %vm6083, %v6050
        %v6116 = vld [vmem:[%s427 + $0x1] sm:$0xff]
        %v6117 = vld [vmem:[%s427 + $0x9] sm:$0xff]
        %v6118 = vld [vmem:[%s427 + $0x19] sm:$0xff]
        %v6119 = vld [vmem:[%s427 + $0x21] sm:$0xff]
        %v6120 = vld [vmem:[%s427 + $0x31] sm:$0xff]
        %v6121 = vld [vmem:[%s427 + $0x39] sm:$0xff]
        %v6122 = vld [vmem:[%s427 + $0x49] sm:$0xff]
        %v6123 = vld [vmem:[%s427 + $0x51] sm:$0xff]
        %v6124 = vld [vmem:[%s427 + $0x61] sm:$0xff]
        %v6125 = vld [vmem:[%s427 + $0x69] sm:$0xff]
        %v6126 = vld [vmem:[%s427 + $0x79] sm:$0xff]
        %v6127 = vld [vmem:[%s427 + $0x81] sm:$0xff]
        %v6128 = vld [vmem:[%s427 + $0x91] sm:$0xff]
        %v6129 = vld [vmem:[%s427 + $0x99] sm:$0xff]
        %v6130 = vld [vmem:[%s427 + $0xa9] sm:$0xff]
        %v6131 = vld [vmem:[%s427 + $0xb1] sm:$0xff]
        %v6132 = vld [vmem:[%s427 + $0xc1] sm:$0xff]
        %v6133 = vld [vmem:[%s427 + $0xc9] sm:$0xff]
        %v6134 = vld [vmem:[%s427 + $0xd9] sm:$0xff]
        %v6135 = vld [vmem:[%s427 + $0xe1] sm:$0xff]
        %v6136 = vld [vmem:[%s427 + $0xf1] sm:$0xff]
        %v6137 = vld [vmem:[%s427 + $0xf9] sm:$0xff]
        %v6138 = vld [vmem:[%s427 + $0x109] sm:$0xff]
        %v6139 = vld [vmem:[%s427 + $0x111] sm:$0xff]
        %v6140 = vld [vmem:[%s427 + $0x121] sm:$0xff]
        %v6141 = vld [vmem:[%s427 + $0x129] sm:$0xff]
        %v6142 = vld [vmem:[%s427 + $0x139] sm:$0xff]
        %v6143 = vld [vmem:[%s427 + $0x141] sm:$0xff]
        %v6144 = vld [vmem:[%s427 + $0x151] sm:$0xff]
        %v6145 = vld [vmem:[%s427 + $0x159] sm:$0xff]
        %v6146 = vld [vmem:[%s427 + $0x169] sm:$0xff]
        %v6147 = vld [vmem:[%s427 + $0x171] sm:$0xff]
        %v6148 = vld [vmem:[%s3] sm:$0xff]
        %v6149 = vld [vmem:[%s3 + $0x8] sm:$0xff]
        %v6150 = vld [vmem:[%s4] sm:$0x1]
        %v6152 = vperm.slane %v6150, 0
        %v6155 = vsel %vm277, %v6116, 0
        %v6158 = vsel %vm277, %v6117, 0
        %v6161 = vsel %vm277, %v6118, 0
        %v6164 = vsel %vm277, %v6119, 0
        %v6167 = vsel %vm277, %v6120, 0
        %v6170 = vsel %vm277, %v6121, 0
        %v6173 = vsel %vm277, %v6122, 0
        %v6176 = vsel %vm277, %v6123, 0
        %v6179 = vsel %vm277, %v6124, 0
        %v6182 = vsel %vm277, %v6125, 0
        %v6185 = vsel %vm277, %v6126, 0
        %v6188 = vsel %vm277, %v6127, 0
        %v6191 = vsel %vm277, %v6128, 0
        %v6194 = vsel %vm277, %v6129, 0
        %v6197 = vsel %vm277, %v6130, 0
        %v6200 = vsel %vm277, %v6131, 0
        %v6203 = vsel %vm277, %v6132, 0
        %v6206 = vsel %vm277, %v6133, 0
        %v6209 = vsel %vm277, %v6134, 0
        %v6212 = vsel %vm277, %v6135, 0
        %v6215 = vsel %vm277, %v6136, 0
        %v6218 = vsel %vm277, %v6137, 0
        %v6221 = vsel %vm277, %v6138, 0
        %v6224 = vsel %vm277, %v6139, 0
        %v6227 = vsel %vm277, %v6140, 0
        %v6230 = vsel %vm277, %v6141, 0
        %v6233 = vsel %vm277, %v6142, 0
        %v6236 = vsel %vm277, %v6143, 0
        %v6239 = vsel %vm277, %v6144, 0
        %v6242 = vsel %vm277, %v6145, 0
        %v6245 = vsel %vm277, %v6146, 0
        %v6248 = vsel %vm277, %v6147, 0
        %6250 = vmatpush.msra.mxu0 0.0
        %6251 = vmatpush.msra.mxu0 0.0
        %6252 = vmatpush.msra.mxu0 0.0
        %6253 = vmatpush.msra.mxu0 0.0
        %6254 = vmatpush.msra.mxu0 0.0
        %6255 = vmatpush.msra.mxu0 0.0
        %6256 = vmatpush.msra.mxu0 0.0
        %6257 = vmatpush.msra.mxu0 0.0
        %6258 = vmatpush.msra.mxu0 0.0
        %6259 = vmatpush.msra.mxu0 0.0
        %6260 = vmatpush.msra.mxu0 0.0
        %6261 = vmatpush.msra.mxu0 0.0
        %6262 = vmatpush.msra.mxu0 0.0
        %6263 = vmatpush.msra.mxu0 0.0
        %6264 = vmatpush.msra.mxu0 %v6149
        %6265 = vmatpush.msra.mxu0 %v6148
        %6266 = vmatmul.f32.gmra.mxu0 %v6155
        %v6267 = vpop.f32.mrf.mxu0
        %v6268 = vadd.f32 %v6152, %v6267
        %6269 = vmatmul.f32.gmra.mxu0 %v6158
        %v6270 = vpop.f32.mrf.mxu0
        %v6271 = vadd.f32 %v6152, %v6270
        %6272 = vmatmul.f32.gmra.mxu0 %v6161
        %v6273 = vpop.f32.mrf.mxu0
        %v6274 = vadd.f32 %v6152, %v6273
        %6275 = vmatmul.f32.gmra.mxu0 %v6164
        %v6276 = vpop.f32.mrf.mxu0
        %v6277 = vadd.f32 %v6152, %v6276
        %6278 = vmatmul.f32.gmra.mxu0 %v6167
        %v6279 = vpop.f32.mrf.mxu0
        %v6280 = vadd.f32 %v6152, %v6279
        %6281 = vmatmul.f32.gmra.mxu0 %v6170
        %v6282 = vpop.f32.mrf.mxu0
        %v6283 = vadd.f32 %v6152, %v6282
        %6284 = vmatmul.f32.gmra.mxu0 %v6173
        %v6285 = vpop.f32.mrf.mxu0
        %v6286 = vadd.f32 %v6152, %v6285
        %6287 = vmatmul.f32.gmra.mxu0 %v6176
        %v6288 = vpop.f32.mrf.mxu0
        %v6289 = vadd.f32 %v6152, %v6288
        %6290 = vmatmul.f32.gmra.mxu0 %v6179
        %v6291 = vpop.f32.mrf.mxu0
        %v6292 = vadd.f32 %v6152, %v6291
        %6293 = vmatmul.f32.gmra.mxu0 %v6182
        %v6294 = vpop.f32.mrf.mxu0
        %v6295 = vadd.f32 %v6152, %v6294
        %6296 = vmatmul.f32.gmra.mxu0 %v6185
        %v6297 = vpop.f32.mrf.mxu0
        %v6298 = vadd.f32 %v6152, %v6297
        %6299 = vmatmul.f32.gmra.mxu0 %v6188
        %v6300 = vpop.f32.mrf.mxu0
        %v6301 = vadd.f32 %v6152, %v6300
        %6302 = vmatmul.f32.gmra.mxu0 %v6191
        %v6303 = vpop.f32.mrf.mxu0
        %v6304 = vadd.f32 %v6152, %v6303
        %6305 = vmatmul.f32.gmra.mxu0 %v6194
        %v6306 = vpop.f32.mrf.mxu0
        %v6307 = vadd.f32 %v6152, %v6306
        %6308 = vmatmul.f32.gmra.mxu0 %v6197
        %v6309 = vpop.f32.mrf.mxu0
        %v6310 = vadd.f32 %v6152, %v6309
        %6311 = vmatmul.f32.gmra.mxu0 %v6200
        %v6312 = vpop.f32.mrf.mxu0
        %v6313 = vadd.f32 %v6152, %v6312
        %6314 = vmatmul.f32.gmra.mxu0 %v6203
        %v6315 = vpop.f32.mrf.mxu0
        %v6316 = vadd.f32 %v6152, %v6315
        %6317 = vmatmul.f32.gmra.mxu0 %v6206
        %v6318 = vpop.f32.mrf.mxu0
        %v6319 = vadd.f32 %v6152, %v6318
        %6320 = vmatmul.f32.gmra.mxu0 %v6209
        %v6321 = vpop.f32.mrf.mxu0
        %v6322 = vadd.f32 %v6152, %v6321
        %6323 = vmatmul.f32.gmra.mxu0 %v6212
        %v6324 = vpop.f32.mrf.mxu0
        %v6325 = vadd.f32 %v6152, %v6324
        %6326 = vmatmul.f32.gmra.mxu0 %v6215
        %v6327 = vpop.f32.mrf.mxu0
        %v6328 = vadd.f32 %v6152, %v6327
        %6329 = vmatmul.f32.gmra.mxu0 %v6218
        %v6330 = vpop.f32.mrf.mxu0
        %v6331 = vadd.f32 %v6152, %v6330
        %6332 = vmatmul.f32.gmra.mxu0 %v6221
        %v6333 = vpop.f32.mrf.mxu0
        %v6334 = vadd.f32 %v6152, %v6333
        %6335 = vmatmul.f32.gmra.mxu0 %v6224
        %v6336 = vpop.f32.mrf.mxu0
        %v6337 = vadd.f32 %v6152, %v6336
        %6338 = vmatmul.f32.gmra.mxu0 %v6227
        %v6339 = vpop.f32.mrf.mxu0
        %v6340 = vadd.f32 %v6152, %v6339
        %6341 = vmatmul.f32.gmra.mxu0 %v6230
        %v6342 = vpop.f32.mrf.mxu0
        %v6343 = vadd.f32 %v6152, %v6342
        %6344 = vmatmul.f32.gmra.mxu0 %v6233
        %v6345 = vpop.f32.mrf.mxu0
        %v6346 = vadd.f32 %v6152, %v6345
        %6347 = vmatmul.f32.gmra.mxu0 %v6236
        %v6348 = vpop.f32.mrf.mxu0
        %v6349 = vadd.f32 %v6152, %v6348
        %6350 = vmatmul.f32.gmra.mxu0 %v6239
        %v6351 = vpop.f32.mrf.mxu0
        %v6352 = vadd.f32 %v6152, %v6351
        %6353 = vmatmul.f32.gmra.mxu0 %v6242
        %v6354 = vpop.f32.mrf.mxu0
        %v6355 = vadd.f32 %v6152, %v6354
        %6356 = vmatmul.f32.gmra.mxu0 %v6245
        %v6357 = vpop.f32.mrf.mxu0
        %v6358 = vadd.f32 %v6152, %v6357
        %6359 = vmatmul.f32.gmra.mxu0 %v6248
        %v6360 = vpop.f32.mrf.mxu0
        %v6361 = vadd.f32 %v6152, %v6360
        %6362 = vdwg.mxu0
        %v6363 = vadd.f32 %v6268, %v395
        %v6364 = vadd.f32 %v6271, %v396
        %v6365 = vadd.f32 %v6274, %v397
        %v6366 = vadd.f32 %v6277, %v398
        %v6367 = vadd.f32 %v6280, %v399
        %v6368 = vadd.f32 %v6283, %v400
        %v6369 = vadd.f32 %v6286, %v401
        %v6370 = vadd.f32 %v6289, %v402
        %v6371 = vadd.f32 %v6292, %v403
        %v6372 = vadd.f32 %v6295, %v404
        %v6373 = vadd.f32 %v6298, %v405
        %v6374 = vadd.f32 %v6301, %v406
        %v6375 = vadd.f32 %v6304, %v407
        %v6376 = vadd.f32 %v6307, %v408
        %v6377 = vadd.f32 %v6310, %v409
        %v6378 = vadd.f32 %v6313, %v410
        %v6379 = vadd.f32 %v6316, %v411
        %v6380 = vadd.f32 %v6319, %v412
        %v6381 = vadd.f32 %v6322, %v413
        %v6382 = vadd.f32 %v6325, %v414
        %v6383 = vadd.f32 %v6328, %v415
        %v6384 = vadd.f32 %v6331, %v416
        %v6385 = vadd.f32 %v6334, %v417
        %v6386 = vadd.f32 %v6337, %v418
        %v6387 = vadd.f32 %v6340, %v419
        %v6388 = vadd.f32 %v6343, %v420
        %v6389 = vadd.f32 %v6346, %v421
        %v6390 = vadd.f32 %v6349, %v422
        %v6391 = vadd.f32 %v6352, %v423
        %v6392 = vadd.f32 %v6355, %v424
        %v6393 = vadd.f32 %v6358, %v425
        %v6394 = vadd.f32 %v6361, %v426
        %s6395 = scalar_lea.vmem [#allocation4], 48
        %6396 = vst.msk [vmem:[%s6395 + $0x2] sm:$0xff] %vm333, %v6363
        %6397 = vst.msk [vmem:[%s6395 + $0xa] sm:$0xff] %vm333, %v6364
        %6398 = vst.msk [vmem:[%s6395 + $0x1a] sm:$0xff] %vm333, %v6365
        %6399 = vst.msk [vmem:[%s6395 + $0x22] sm:$0xff] %vm333, %v6366
        %6400 = vst.msk [vmem:[%s6395 + $0x32] sm:$0xff] %vm333, %v6367
        %6401 = vst.msk [vmem:[%s6395 + $0x3a] sm:$0xff] %vm333, %v6368
        %6402 = vst.msk [vmem:[%s6395 + $0x4a] sm:$0xff] %vm333, %v6369
        %6403 = vst.msk [vmem:[%s6395 + $0x52] sm:$0xff] %vm333, %v6370
        %6404 = vst.msk [vmem:[%s6395 + $0x62] sm:$0xff] %vm333, %v6371
        %6405 = vst.msk [vmem:[%s6395 + $0x6a] sm:$0xff] %vm333, %v6372
        %6406 = vst.msk [vmem:[%s6395 + $0x7a] sm:$0xff] %vm333, %v6373
        %6407 = vst.msk [vmem:[%s6395 + $0x82] sm:$0xff] %vm333, %v6374
        %6408 = vst.msk [vmem:[%s6395 + $0x92] sm:$0xff] %vm333, %v6375
        %6409 = vst.msk [vmem:[%s6395 + $0x9a] sm:$0xff] %vm333, %v6376
        %6410 = vst.msk [vmem:[%s6395 + $0xaa] sm:$0xff] %vm333, %v6377
        %6411 = vst.msk [vmem:[%s6395 + $0xb2] sm:$0xff] %vm333, %v6378
        %6412 = vst.msk [vmem:[%s6395 + $0xc2] sm:$0xff] %vm333, %v6379
        %6413 = vst.msk [vmem:[%s6395 + $0xca] sm:$0xff] %vm333, %v6380
        %6414 = vst.msk [vmem:[%s6395 + $0xda] sm:$0xff] %vm333, %v6381
        %6415 = vst.msk [vmem:[%s6395 + $0xe2] sm:$0xff] %vm333, %v6382
        %6416 = vst.msk [vmem:[%s6395 + $0xf2] sm:$0xff] %vm333, %v6383
        %6417 = vst.msk [vmem:[%s6395 + $0xfa] sm:$0xff] %vm333, %v6384
        %6418 = vst.msk [vmem:[%s6395 + $0x10a] sm:$0xff] %vm333, %v6385
        %6419 = vst.msk [vmem:[%s6395 + $0x112] sm:$0xff] %vm333, %v6386
        %6420 = vst.msk [vmem:[%s6395 + $0x122] sm:$0xff] %vm333, %v6387
        %6421 = vst.msk [vmem:[%s6395 + $0x12a] sm:$0xff] %vm333, %v6388
        %6422 = vst.msk [vmem:[%s6395 + $0x13a] sm:$0xff] %vm333, %v6389
        %6423 = vst.msk [vmem:[%s6395 + $0x142] sm:$0xff] %vm333, %v6390
        %6424 = vst.msk [vmem:[%s6395 + $0x152] sm:$0xff] %vm333, %v6391
        %6425 = vst.msk [vmem:[%s6395 + $0x15a] sm:$0xff] %vm333, %v6392
        %6426 = vst.msk [vmem:[%s6395 + $0x16a] sm:$0xff] %vm333, %v6393
        %6427 = vst.msk [vmem:[%s6395 + $0x172] sm:$0xff] %vm333, %v6394
        %v6428 = vld [vmem:[#allocation4] ss:$2 sm:$0xff]
        %s6429 = scalar_lea.vmem [#allocation4], 48
        %v6430 = vld [vmem:[%s6429] ss:$2 sm:$0xff]
        %s6431 = scalar_lea.vmem [#allocation4], 96
        %v6432 = vld [vmem:[%s6431] ss:$2 sm:$0xff]
        %s6433 = scalar_lea.vmem [#allocation4], 144
        %v6434 = vld [vmem:[%s6433] ss:$2 sm:$0xff]
        %s6435 = scalar_lea.vmem [#allocation4], 192
        %v6436 = vld [vmem:[%s6435] ss:$2 sm:$0xff]
        %s6437 = scalar_lea.vmem [#allocation4], 240
        %v6438 = vld [vmem:[%s6437] ss:$2 sm:$0xff]
        %s6439 = scalar_lea.vmem [#allocation4], 288
        %v6440 = vld [vmem:[%s6439] ss:$2 sm:$0xff]
        %s6441 = scalar_lea.vmem [#allocation4], 336
        %v6442 = vld [vmem:[%s6441] ss:$2 sm:$0xff]
        %6443 = vst.msk [vmem:[#allocation5] sm:$0xff] %vm333, %v6428
        %6444 = vst.msk [vmem:[#allocation5 + $0x8] sm:$0xff] %vm333, %v6430
        %6445 = vst.msk [vmem:[#allocation5 + $0x10] sm:$0xff] %vm333, %v6432
        %6446 = vst.msk [vmem:[#allocation5 + $0x18] sm:$0xff] %vm333, %v6434
        %6447 = vst.msk [vmem:[#allocation5 + $0x20] sm:$0xff] %vm333, %v6436
        %6448 = vst.msk [vmem:[#allocation5 + $0x28] sm:$0xff] %vm333, %v6438
        %6449 = vst.msk [vmem:[#allocation5 + $0x30] sm:$0xff] %vm333, %v6440
        %6450 = vst.msk [vmem:[#allocation5 + $0x38] sm:$0xff] %vm333, %v6442
        %s6451 = scalar_lea.vmem [#allocation4], 1
        %v6452 = vld [vmem:[%s6451] ss:$2 sm:$0xff]
        %s6453 = scalar_lea.vmem [#allocation4], 49
        %v6454 = vld [vmem:[%s6453] ss:$2 sm:$0xff]
        %s6455 = scalar_lea.vmem [#allocation4], 97
        %v6456 = vld [vmem:[%s6455] ss:$2 sm:$0xff]
        %s6457 = scalar_lea.vmem [#allocation4], 145
        %v6458 = vld [vmem:[%s6457] ss:$2 sm:$0xff]
        %s6459 = scalar_lea.vmem [#allocation4], 193
        %v6460 = vld [vmem:[%s6459] ss:$2 sm:$0xff]
        %s6461 = scalar_lea.vmem [#allocation4], 241
        %v6462 = vld [vmem:[%s6461] ss:$2 sm:$0xff]
        %s6463 = scalar_lea.vmem [#allocation4], 289
        %v6464 = vld [vmem:[%s6463] ss:$2 sm:$0xff]
        %s6465 = scalar_lea.vmem [#allocation4], 337
        %v6466 = vld [vmem:[%s6465] ss:$2 sm:$0xff]
        %6475 = vrot.lane.b32.xlu0 %v6452, 4
        %v6476 = vpop.permute.xlu0 %6475
        %6477 = vrot.lane.b32.xlu0 %v6454, 4
        %v6478 = vpop.permute.xlu0 %6477
        %6479 = vrot.lane.b32.xlu0 %v6456, 4
        %v6480 = vpop.permute.xlu0 %6479
        %6481 = vrot.lane.b32.xlu0 %v6458, 4
        %v6482 = vpop.permute.xlu0 %6481
        %6483 = vrot.lane.b32.xlu0 %v6460, 4
        %v6484 = vpop.permute.xlu0 %6483
        %6485 = vrot.lane.b32.xlu0 %v6462, 4
        %v6486 = vpop.permute.xlu0 %6485
        %6487 = vrot.lane.b32.xlu0 %v6464, 4
        %v6488 = vpop.permute.xlu0 %6487
        %6489 = vrot.lane.b32.xlu0 %v6466, 4
        %v6490 = vpop.permute.xlu0 %6489
        %6499 = vst.msk [vmem:[#allocation5] sm:$0xff] %vm2317, %v6476
        %6500 = vst.msk [vmem:[#allocation5 + $0x8] sm:$0xff] %vm2317, %v6478
        %6501 = vst.msk [vmem:[#allocation5 + $0x10] sm:$0xff] %vm2317, %v6480
        %6502 = vst.msk [vmem:[#allocation5 + $0x18] sm:$0xff] %vm2317, %v6482
        %6503 = vst.msk [vmem:[#allocation5 + $0x20] sm:$0xff] %vm2317, %v6484
        %6504 = vst.msk [vmem:[#allocation5 + $0x28] sm:$0xff] %vm2317, %v6486
        %6505 = vst.msk [vmem:[#allocation5 + $0x30] sm:$0xff] %vm2317, %v6488
        %6506 = vst.msk [vmem:[#allocation5 + $0x38] sm:$0xff] %vm2317, %v6490
        %s6507 = scalar_lea.vmem [#allocation4], 2
        %v6508 = vld [vmem:[%s6507] ss:$2 sm:$0xff]
        %s6509 = scalar_lea.vmem [#allocation4], 50
        %v6510 = vld [vmem:[%s6509] ss:$2 sm:$0xff]
        %s6511 = scalar_lea.vmem [#allocation4], 98
        %v6512 = vld [vmem:[%s6511] ss:$2 sm:$0xff]
        %s6513 = scalar_lea.vmem [#allocation4], 146
        %v6514 = vld [vmem:[%s6513] ss:$2 sm:$0xff]
        %s6515 = scalar_lea.vmem [#allocation4], 194
        %v6516 = vld [vmem:[%s6515] ss:$2 sm:$0xff]
        %s6517 = scalar_lea.vmem [#allocation4], 242
        %v6518 = vld [vmem:[%s6517] ss:$2 sm:$0xff]
        %s6519 = scalar_lea.vmem [#allocation4], 290
        %v6520 = vld [vmem:[%s6519] ss:$2 sm:$0xff]
        %s6521 = scalar_lea.vmem [#allocation4], 338
        %v6522 = vld [vmem:[%s6521] ss:$2 sm:$0xff]
        %6531 = vrot.lane.b32.xlu0 %v6508, 8
        %v6532 = vpop.permute.xlu0 %6531
        %6533 = vrot.lane.b32.xlu0 %v6510, 8
        %v6534 = vpop.permute.xlu0 %6533
        %6535 = vrot.lane.b32.xlu0 %v6512, 8
        %v6536 = vpop.permute.xlu0 %6535
        %6537 = vrot.lane.b32.xlu0 %v6514, 8
        %v6538 = vpop.permute.xlu0 %6537
        %6539 = vrot.lane.b32.xlu0 %v6516, 8
        %v6540 = vpop.permute.xlu0 %6539
        %6541 = vrot.lane.b32.xlu0 %v6518, 8
        %v6542 = vpop.permute.xlu0 %6541
        %6543 = vrot.lane.b32.xlu0 %v6520, 8
        %v6544 = vpop.permute.xlu0 %6543
        %6545 = vrot.lane.b32.xlu0 %v6522, 8
        %v6546 = vpop.permute.xlu0 %6545
        %6555 = vst.msk [vmem:[#allocation5] sm:$0xff] %vm4200, %v6532
        %6556 = vst.msk [vmem:[#allocation5 + $0x8] sm:$0xff] %vm4200, %v6534
        %6557 = vst.msk [vmem:[#allocation5 + $0x10] sm:$0xff] %vm4200, %v6536
        %6558 = vst.msk [vmem:[#allocation5 + $0x18] sm:$0xff] %vm4200, %v6538
        %6559 = vst.msk [vmem:[#allocation5 + $0x20] sm:$0xff] %vm4200, %v6540
        %6560 = vst.msk [vmem:[#allocation5 + $0x28] sm:$0xff] %vm4200, %v6542
        %6561 = vst.msk [vmem:[#allocation5 + $0x30] sm:$0xff] %vm4200, %v6544
        %6562 = vst.msk [vmem:[#allocation5 + $0x38] sm:$0xff] %vm4200, %v6546
        %s6563 = scalar_lea.vmem [#allocation4], 3
        %v6564 = vld [vmem:[%s6563] ss:$2 sm:$0xff]
        %s6565 = scalar_lea.vmem [#allocation4], 51
        %v6566 = vld [vmem:[%s6565] ss:$2 sm:$0xff]
        %s6567 = scalar_lea.vmem [#allocation4], 99
        %v6568 = vld [vmem:[%s6567] ss:$2 sm:$0xff]
        %s6569 = scalar_lea.vmem [#allocation4], 147
        %v6570 = vld [vmem:[%s6569] ss:$2 sm:$0xff]
        %s6571 = scalar_lea.vmem [#allocation4], 195
        %v6572 = vld [vmem:[%s6571] ss:$2 sm:$0xff]
        %s6573 = scalar_lea.vmem [#allocation4], 243
        %v6574 = vld [vmem:[%s6573] ss:$2 sm:$0xff]
        %s6575 = scalar_lea.vmem [#allocation4], 291
        %v6576 = vld [vmem:[%s6575] ss:$2 sm:$0xff]
        %s6577 = scalar_lea.vmem [#allocation4], 339
        %v6578 = vld [vmem:[%s6577] ss:$2 sm:$0xff]
        %6587 = vrot.lane.b32.xlu0 %v6564, 12
        %v6588 = vpop.permute.xlu0 %6587
        %6589 = vrot.lane.b32.xlu0 %v6566, 12
        %v6590 = vpop.permute.xlu0 %6589
        %6591 = vrot.lane.b32.xlu0 %v6568, 12
        %v6592 = vpop.permute.xlu0 %6591
        %6593 = vrot.lane.b32.xlu0 %v6570, 12
        %v6594 = vpop.permute.xlu0 %6593
        %6595 = vrot.lane.b32.xlu0 %v6572, 12
        %v6596 = vpop.permute.xlu0 %6595
        %6597 = vrot.lane.b32.xlu0 %v6574, 12
        %v6598 = vpop.permute.xlu0 %6597
        %6599 = vrot.lane.b32.xlu0 %v6576, 12
        %v6600 = vpop.permute.xlu0 %6599
        %6601 = vrot.lane.b32.xlu0 %v6578, 12
        %v6602 = vpop.permute.xlu0 %6601
        %6611 = vst.msk [vmem:[#allocation5] sm:$0xff] %vm6083, %v6588
        %6612 = vst.msk [vmem:[#allocation5 + $0x8] sm:$0xff] %vm6083, %v6590
        %6613 = vst.msk [vmem:[#allocation5 + $0x10] sm:$0xff] %vm6083, %v6592
        %6614 = vst.msk [vmem:[#allocation5 + $0x18] sm:$0xff] %vm6083, %v6594
        %6615 = vst.msk [vmem:[#allocation5 + $0x20] sm:$0xff] %vm6083, %v6596
        %6616 = vst.msk [vmem:[#allocation5 + $0x28] sm:$0xff] %vm6083, %v6598
        %6617 = vst.msk [vmem:[#allocation5 + $0x30] sm:$0xff] %vm6083, %v6600
        %6618 = vst.msk [vmem:[#allocation5 + $0x38] sm:$0xff] %vm6083, %v6602
        %s6619 = scalar_lea.vmem [#allocation4], 4
        %v6620 = vld [vmem:[%s6619] ss:$2 sm:$0xff]
        %s6621 = scalar_lea.vmem [#allocation4], 52
        %v6622 = vld [vmem:[%s6621] ss:$2 sm:$0xff]
        %s6623 = scalar_lea.vmem [#allocation4], 100
        %v6624 = vld [vmem:[%s6623] ss:$2 sm:$0xff]
        %s6625 = scalar_lea.vmem [#allocation4], 148
        %v6626 = vld [vmem:[%s6625] ss:$2 sm:$0xff]
        %s6627 = scalar_lea.vmem [#allocation4], 196
        %v6628 = vld [vmem:[%s6627] ss:$2 sm:$0xff]
        %s6629 = scalar_lea.vmem [#allocation4], 244
        %v6630 = vld [vmem:[%s6629] ss:$2 sm:$0xff]
        %s6631 = scalar_lea.vmem [#allocation4], 292
        %v6632 = vld [vmem:[%s6631] ss:$2 sm:$0xff]
        %s6633 = scalar_lea.vmem [#allocation4], 340
        %v6634 = vld [vmem:[%s6633] ss:$2 sm:$0xff]
        %6643 = vrot.lane.b32.xlu0 %v6620, 16
        %v6644 = vpop.permute.xlu0 %6643
        %6645 = vrot.lane.b32.xlu0 %v6622, 16
        %v6646 = vpop.permute.xlu0 %6645
        %6647 = vrot.lane.b32.xlu0 %v6624, 16
        %v6648 = vpop.permute.xlu0 %6647
        %6649 = vrot.lane.b32.xlu0 %v6626, 16
        %v6650 = vpop.permute.xlu0 %6649
        %6651 = vrot.lane.b32.xlu0 %v6628, 16
        %v6652 = vpop.permute.xlu0 %6651
        %6653 = vrot.lane.b32.xlu0 %v6630, 16
        %v6654 = vpop.permute.xlu0 %6653
        %6655 = vrot.lane.b32.xlu0 %v6632, 16
        %v6656 = vpop.permute.xlu0 %6655
        %6657 = vrot.lane.b32.xlu0 %v6634, 16
        %v6658 = vpop.permute.xlu0 %6657
        %vm6667 = vcmask 162944
        %6668 = vst.msk [vmem:[#allocation5] sm:$0xff] %vm6667, %v6644
        %6669 = vst.msk [vmem:[#allocation5 + $0x8] sm:$0xff] %vm6667, %v6646
        %6670 = vst.msk [vmem:[#allocation5 + $0x10] sm:$0xff] %vm6667, %v6648
        %6671 = vst.msk [vmem:[#allocation5 + $0x18] sm:$0xff] %vm6667, %v6650
        %6672 = vst.msk [vmem:[#allocation5 + $0x20] sm:$0xff] %vm6667, %v6652
        %6673 = vst.msk [vmem:[#allocation5 + $0x28] sm:$0xff] %vm6667, %v6654
        %6674 = vst.msk [vmem:[#allocation5 + $0x30] sm:$0xff] %vm6667, %v6656
        %6675 = vst.msk [vmem:[#allocation5 + $0x38] sm:$0xff] %vm6667, %v6658
        %s6676 = scalar_lea.vmem [#allocation4], 24
        %v6677 = vld [vmem:[%s6676] ss:$2 sm:$0xff]
        %s6678 = scalar_lea.vmem %s6676, 48 [#allocation4]
        %v6679 = vld [vmem:[%s6678] ss:$2 sm:$0xff]
        %s6680 = scalar_lea.vmem %s6676, 96 [#allocation4]
        %v6681 = vld [vmem:[%s6680] ss:$2 sm:$0xff]
        %s6682 = scalar_lea.vmem %s6676, 144 [#allocation4]
        %v6683 = vld [vmem:[%s6682] ss:$2 sm:$0xff]
        %s6684 = scalar_lea.vmem %s6676, 192 [#allocation4]
        %v6685 = vld [vmem:[%s6684] ss:$2 sm:$0xff]
        %s6686 = scalar_lea.vmem %s6676, 240 [#allocation4]
        %v6687 = vld [vmem:[%s6686] ss:$2 sm:$0xff]
        %s6688 = scalar_lea.vmem %s6676, 288 [#allocation4]
        %v6689 = vld [vmem:[%s6688] ss:$2 sm:$0xff]
        %s6690 = scalar_lea.vmem %s6676, 336 [#allocation4]
        %v6691 = vld [vmem:[%s6690] ss:$2 sm:$0xff]
        %6700 = vrot.lane.b32.xlu0 %v6677, 20
        %v6701 = vpop.permute.xlu0 %6700
        %6702 = vrot.lane.b32.xlu0 %v6679, 20
        %v6703 = vpop.permute.xlu0 %6702
        %6704 = vrot.lane.b32.xlu0 %v6681, 20
        %v6705 = vpop.permute.xlu0 %6704
        %6706 = vrot.lane.b32.xlu0 %v6683, 20
        %v6707 = vpop.permute.xlu0 %6706
        %6708 = vrot.lane.b32.xlu0 %v6685, 20
        %v6709 = vpop.permute.xlu0 %6708
        %6710 = vrot.lane.b32.xlu0 %v6687, 20
        %v6711 = vpop.permute.xlu0 %6710
        %6712 = vrot.lane.b32.xlu0 %v6689, 20
        %v6713 = vpop.permute.xlu0 %6712
        %6714 = vrot.lane.b32.xlu0 %v6691, 20
        %v6715 = vpop.permute.xlu0 %6714
        %vm6724 = vcmask 195744
        %6725 = vst.msk [vmem:[#allocation5] sm:$0xff] %vm6724, %v6701
        %6726 = vst.msk [vmem:[#allocation5 + $0x8] sm:$0xff] %vm6724, %v6703
        %6727 = vst.msk [vmem:[#allocation5 + $0x10] sm:$0xff] %vm6724, %v6705
        %6728 = vst.msk [vmem:[#allocation5 + $0x18] sm:$0xff] %vm6724, %v6707
        %6729 = vst.msk [vmem:[#allocation5 + $0x20] sm:$0xff] %vm6724, %v6709
        %6730 = vst.msk [vmem:[#allocation5 + $0x28] sm:$0xff] %vm6724, %v6711
        %6731 = vst.msk [vmem:[#allocation5 + $0x30] sm:$0xff] %vm6724, %v6713
        %6732 = vst.msk [vmem:[#allocation5 + $0x38] sm:$0xff] %vm6724, %v6715
        %s6733 = scalar_lea.vmem %s6676, 1 [#allocation4]
        %v6734 = vld [vmem:[%s6733] ss:$2 sm:$0xff]
        %s6735 = scalar_lea.vmem %s6676, 49 [#allocation4]
        %v6736 = vld [vmem:[%s6735] ss:$2 sm:$0xff]
        %s6737 = scalar_lea.vmem %s6676, 97 [#allocation4]
        %v6738 = vld [vmem:[%s6737] ss:$2 sm:$0xff]
        %s6739 = scalar_lea.vmem %s6676, 145 [#allocation4]
        %v6740 = vld [vmem:[%s6739] ss:$2 sm:$0xff]
        %s6741 = scalar_lea.vmem %s6676, 193 [#allocation4]
        %v6742 = vld [vmem:[%s6741] ss:$2 sm:$0xff]
        %s6743 = scalar_lea.vmem %s6676, 241 [#allocation4]
        %v6744 = vld [vmem:[%s6743] ss:$2 sm:$0xff]
        %s6745 = scalar_lea.vmem %s6676, 289 [#allocation4]
        %v6746 = vld [vmem:[%s6745] ss:$2 sm:$0xff]
        %s6747 = scalar_lea.vmem %s6676, 337 [#allocation4]
        %v6748 = vld [vmem:[%s6747] ss:$2 sm:$0xff]
        %6757 = vrot.lane.b32.xlu0 %v6734, 24
        %v6758 = vpop.permute.xlu0 %6757
        %6759 = vrot.lane.b32.xlu0 %v6736, 24
        %v6760 = vpop.permute.xlu0 %6759
        %6761 = vrot.lane.b32.xlu0 %v6738, 24
        %v6762 = vpop.permute.xlu0 %6761
        %6763 = vrot.lane.b32.xlu0 %v6740, 24
        %v6764 = vpop.permute.xlu0 %6763
        %6765 = vrot.lane.b32.xlu0 %v6742, 24
        %v6766 = vpop.permute.xlu0 %6765
        %6767 = vrot.lane.b32.xlu0 %v6744, 24
        %v6768 = vpop.permute.xlu0 %6767
        %6769 = vrot.lane.b32.xlu0 %v6746, 24
        %v6770 = vpop.permute.xlu0 %6769
        %6771 = vrot.lane.b32.xlu0 %v6748, 24
        %v6772 = vpop.permute.xlu0 %6771
        %vm6781 = vcmask 228544
        %6782 = vst.msk [vmem:[#allocation5] sm:$0xff] %vm6781, %v6758
        %6783 = vst.msk [vmem:[#allocation5 + $0x8] sm:$0xff] %vm6781, %v6760
        %6784 = vst.msk [vmem:[#allocation5 + $0x10] sm:$0xff] %vm6781, %v6762
        %6785 = vst.msk [vmem:[#allocation5 + $0x18] sm:$0xff] %vm6781, %v6764
        %6786 = vst.msk [vmem:[#allocation5 + $0x20] sm:$0xff] %vm6781, %v6766
        %6787 = vst.msk [vmem:[#allocation5 + $0x28] sm:$0xff] %vm6781, %v6768
        %6788 = vst.msk [vmem:[#allocation5 + $0x30] sm:$0xff] %vm6781, %v6770
        %6789 = vst.msk [vmem:[#allocation5 + $0x38] sm:$0xff] %vm6781, %v6772
        %s6790 = scalar_lea.vmem %s6676, 2 [#allocation4]
        %v6791 = vld [vmem:[%s6790] ss:$2 sm:$0xff]
        %s6792 = scalar_lea.vmem %s6676, 50 [#allocation4]
        %v6793 = vld [vmem:[%s6792] ss:$2 sm:$0xff]
        %s6794 = scalar_lea.vmem %s6676, 98 [#allocation4]
        %v6795 = vld [vmem:[%s6794] ss:$2 sm:$0xff]
        %s6796 = scalar_lea.vmem %s6676, 146 [#allocation4]
        %v6797 = vld [vmem:[%s6796] ss:$2 sm:$0xff]
        %s6798 = scalar_lea.vmem %s6676, 194 [#allocation4]
        %v6799 = vld [vmem:[%s6798] ss:$2 sm:$0xff]
        %s6800 = scalar_lea.vmem %s6676, 242 [#allocation4]
        %v6801 = vld [vmem:[%s6800] ss:$2 sm:$0xff]
        %s6802 = scalar_lea.vmem %s6676, 290 [#allocation4]
        %v6803 = vld [vmem:[%s6802] ss:$2 sm:$0xff]
        %s6804 = scalar_lea.vmem %s6676, 338 [#allocation4]
        %v6805 = vld [vmem:[%s6804] ss:$2 sm:$0xff]
        %6814 = vrot.lane.b32.xlu0 %v6791, 28
        %v6815 = vpop.permute.xlu0 %6814
        %6816 = vrot.lane.b32.xlu0 %v6793, 28
        %v6817 = vpop.permute.xlu0 %6816
        %6818 = vrot.lane.b32.xlu0 %v6795, 28
        %v6819 = vpop.permute.xlu0 %6818
        %6820 = vrot.lane.b32.xlu0 %v6797, 28
        %v6821 = vpop.permute.xlu0 %6820
        %6822 = vrot.lane.b32.xlu0 %v6799, 28
        %v6823 = vpop.permute.xlu0 %6822
        %6824 = vrot.lane.b32.xlu0 %v6801, 28
        %v6825 = vpop.permute.xlu0 %6824
        %6826 = vrot.lane.b32.xlu0 %v6803, 28
        %v6827 = vpop.permute.xlu0 %6826
        %6828 = vrot.lane.b32.xlu0 %v6805, 28
        %v6829 = vpop.permute.xlu0 %6828
        %vm6838 = vcmask 261344
        %6839 = vst.msk [vmem:[#allocation5] sm:$0xff] %vm6838, %v6815
        %6840 = vst.msk [vmem:[#allocation5 + $0x8] sm:$0xff] %vm6838, %v6817
        %6841 = vst.msk [vmem:[#allocation5 + $0x10] sm:$0xff] %vm6838, %v6819
        %6842 = vst.msk [vmem:[#allocation5 + $0x18] sm:$0xff] %vm6838, %v6821
        %6843 = vst.msk [vmem:[#allocation5 + $0x20] sm:$0xff] %vm6838, %v6823
        %6844 = vst.msk [vmem:[#allocation5 + $0x28] sm:$0xff] %vm6838, %v6825
        %6845 = vst.msk [vmem:[#allocation5 + $0x30] sm:$0xff] %vm6838, %v6827
        %6846 = vst.msk [vmem:[#allocation5 + $0x38] sm:$0xff] %vm6838, %v6829
        %s6847 = scalar_lea.vmem %s6676, 3 [#allocation4]
        %v6848 = vld [vmem:[%s6847] ss:$2 sm:$0xff]
        %s6849 = scalar_lea.vmem %s6676, 51 [#allocation4]
        %v6850 = vld [vmem:[%s6849] ss:$2 sm:$0xff]
        %s6851 = scalar_lea.vmem %s6676, 99 [#allocation4]
        %v6852 = vld [vmem:[%s6851] ss:$2 sm:$0xff]
        %s6853 = scalar_lea.vmem %s6676, 147 [#allocation4]
        %v6854 = vld [vmem:[%s6853] ss:$2 sm:$0xff]
        %s6855 = scalar_lea.vmem %s6676, 195 [#allocation4]
        %v6856 = vld [vmem:[%s6855] ss:$2 sm:$0xff]
        %s6857 = scalar_lea.vmem %s6676, 243 [#allocation4]
        %v6858 = vld [vmem:[%s6857] ss:$2 sm:$0xff]
        %s6859 = scalar_lea.vmem %s6676, 291 [#allocation4]
        %v6860 = vld [vmem:[%s6859] ss:$2 sm:$0xff]
        %s6861 = scalar_lea.vmem %s6676, 339 [#allocation4]
        %v6862 = vld [vmem:[%s6861] ss:$2 sm:$0xff]
        %6871 = vrot.lane.b32.xlu0 %v6848, 32
        %v6872 = vpop.permute.xlu0 %6871
        %6873 = vrot.lane.b32.xlu0 %v6850, 32
        %v6874 = vpop.permute.xlu0 %6873
        %6875 = vrot.lane.b32.xlu0 %v6852, 32
        %v6876 = vpop.permute.xlu0 %6875
        %6877 = vrot.lane.b32.xlu0 %v6854, 32
        %v6878 = vpop.permute.xlu0 %6877
        %6879 = vrot.lane.b32.xlu0 %v6856, 32
        %v6880 = vpop.permute.xlu0 %6879
        %6881 = vrot.lane.b32.xlu0 %v6858, 32
        %v6882 = vpop.permute.xlu0 %6881
        %6883 = vrot.lane.b32.xlu0 %v6860, 32
        %v6884 = vpop.permute.xlu0 %6883
        %6885 = vrot.lane.b32.xlu0 %v6862, 32
        %v6886 = vpop.permute.xlu0 %6885
        %vm6895 = vcmask 294144
        %6896 = vst.msk [vmem:[#allocation5] sm:$0xff] %vm6895, %v6872
        %6897 = vst.msk [vmem:[#allocation5 + $0x8] sm:$0xff] %vm6895, %v6874
        %6898 = vst.msk [vmem:[#allocation5 + $0x10] sm:$0xff] %vm6895, %v6876
        %6899 = vst.msk [vmem:[#allocation5 + $0x18] sm:$0xff] %vm6895, %v6878
        %6900 = vst.msk [vmem:[#allocation5 + $0x20] sm:$0xff] %vm6895, %v6880
        %6901 = vst.msk [vmem:[#allocation5 + $0x28] sm:$0xff] %vm6895, %v6882
        %6902 = vst.msk [vmem:[#allocation5 + $0x30] sm:$0xff] %vm6895, %v6884
        %6903 = vst.msk [vmem:[#allocation5 + $0x38] sm:$0xff] %vm6895, %v6886
        %s6904 = scalar_lea.vmem %s6676, 4 [#allocation4]
        %v6905 = vld [vmem:[%s6904] ss:$2 sm:$0xff]
        %s6906 = scalar_lea.vmem %s6676, 52 [#allocation4]
        %v6907 = vld [vmem:[%s6906] ss:$2 sm:$0xff]
        %s6908 = scalar_lea.vmem %s6676, 100 [#allocation4]
        %v6909 = vld [vmem:[%s6908] ss:$2 sm:$0xff]
        %s6910 = scalar_lea.vmem %s6676, 148 [#allocation4]
        %v6911 = vld [vmem:[%s6910] ss:$2 sm:$0xff]
        %s6912 = scalar_lea.vmem %s6676, 196 [#allocation4]
        %v6913 = vld [vmem:[%s6912] ss:$2 sm:$0xff]
        %s6914 = scalar_lea.vmem %s6676, 244 [#allocation4]
        %v6915 = vld [vmem:[%s6914] ss:$2 sm:$0xff]
        %s6916 = scalar_lea.vmem %s6676, 292 [#allocation4]
        %v6917 = vld [vmem:[%s6916] ss:$2 sm:$0xff]
        %s6918 = scalar_lea.vmem %s6676, 340 [#allocation4]
        %v6919 = vld [vmem:[%s6918] ss:$2 sm:$0xff]
        %6928 = vrot.lane.b32.xlu0 %v6905, 36
        %v6929 = vpop.permute.xlu0 %6928
        %6930 = vrot.lane.b32.xlu0 %v6907, 36
        %v6931 = vpop.permute.xlu0 %6930
        %6932 = vrot.lane.b32.xlu0 %v6909, 36
        %v6933 = vpop.permute.xlu0 %6932
        %6934 = vrot.lane.b32.xlu0 %v6911, 36
        %v6935 = vpop.permute.xlu0 %6934
        %6936 = vrot.lane.b32.xlu0 %v6913, 36
        %v6937 = vpop.permute.xlu0 %6936
        %6938 = vrot.lane.b32.xlu0 %v6915, 36
        %v6939 = vpop.permute.xlu0 %6938
        %6940 = vrot.lane.b32.xlu0 %v6917, 36
        %v6941 = vpop.permute.xlu0 %6940
        %6942 = vrot.lane.b32.xlu0 %v6919, 36
        %v6943 = vpop.permute.xlu0 %6942
        %vm6952 = vcmask 326944
        %6953 = vst.msk [vmem:[#allocation5] sm:$0xff] %vm6952, %v6929
        %6954 = vst.msk [vmem:[#allocation5 + $0x8] sm:$0xff] %vm6952, %v6931
        %6955 = vst.msk [vmem:[#allocation5 + $0x10] sm:$0xff] %vm6952, %v6933
        %6956 = vst.msk [vmem:[#allocation5 + $0x18] sm:$0xff] %vm6952, %v6935
        %6957 = vst.msk [vmem:[#allocation5 + $0x20] sm:$0xff] %vm6952, %v6937
        %6958 = vst.msk [vmem:[#allocation5 + $0x28] sm:$0xff] %vm6952, %v6939
        %6959 = vst.msk [vmem:[#allocation5 + $0x30] sm:$0xff] %vm6952, %v6941
        %6960 = vst.msk [vmem:[#allocation5 + $0x38] sm:$0xff] %vm6952, %v6943
        %v6961 = vld [vmem:[%s6395] ss:$2 sm:$0xff]
        %s6962 = scalar_lea.vmem %s6395, 48 [#allocation4]
        %v6963 = vld [vmem:[%s6962] ss:$2 sm:$0xff]
        %s6964 = scalar_lea.vmem %s6395, 96 [#allocation4]
        %v6965 = vld [vmem:[%s6964] ss:$2 sm:$0xff]
        %s6966 = scalar_lea.vmem %s6395, 144 [#allocation4]
        %v6967 = vld [vmem:[%s6966] ss:$2 sm:$0xff]
        %s6968 = scalar_lea.vmem %s6395, 192 [#allocation4]
        %v6969 = vld [vmem:[%s6968] ss:$2 sm:$0xff]
        %s6970 = scalar_lea.vmem %s6395, 240 [#allocation4]
        %v6971 = vld [vmem:[%s6970] ss:$2 sm:$0xff]
        %s6972 = scalar_lea.vmem %s6395, 288 [#allocation4]
        %v6973 = vld [vmem:[%s6972] ss:$2 sm:$0xff]
        %s6974 = scalar_lea.vmem %s6395, 336 [#allocation4]
        %v6975 = vld [vmem:[%s6974] ss:$2 sm:$0xff]
        %6984 = vrot.lane.b32.xlu0 %v6961, 40
        %v6985 = vpop.permute.xlu0 %6984
        %6986 = vrot.lane.b32.xlu0 %v6963, 40
        %v6987 = vpop.permute.xlu0 %6986
        %6988 = vrot.lane.b32.xlu0 %v6965, 40
        %v6989 = vpop.permute.xlu0 %6988
        %6990 = vrot.lane.b32.xlu0 %v6967, 40
        %v6991 = vpop.permute.xlu0 %6990
        %6992 = vrot.lane.b32.xlu0 %v6969, 40
        %v6993 = vpop.permute.xlu0 %6992
        %6994 = vrot.lane.b32.xlu0 %v6971, 40
        %v6995 = vpop.permute.xlu0 %6994
        %6996 = vrot.lane.b32.xlu0 %v6973, 40
        %v6997 = vpop.permute.xlu0 %6996
        %6998 = vrot.lane.b32.xlu0 %v6975, 40
        %v6999 = vpop.permute.xlu0 %6998
        %vm7008 = vcmask 359744
        %7009 = vst.msk [vmem:[#allocation5] sm:$0xff] %vm7008, %v6985
        %7010 = vst.msk [vmem:[#allocation5 + $0x8] sm:$0xff] %vm7008, %v6987
        %7011 = vst.msk [vmem:[#allocation5 + $0x10] sm:$0xff] %vm7008, %v6989
        %7012 = vst.msk [vmem:[#allocation5 + $0x18] sm:$0xff] %vm7008, %v6991
        %7013 = vst.msk [vmem:[#allocation5 + $0x20] sm:$0xff] %vm7008, %v6993
        %7014 = vst.msk [vmem:[#allocation5 + $0x28] sm:$0xff] %vm7008, %v6995
        %7015 = vst.msk [vmem:[#allocation5 + $0x30] sm:$0xff] %vm7008, %v6997
        %7016 = vst.msk [vmem:[#allocation5 + $0x38] sm:$0xff] %vm7008, %v6999
        %s7017 = scalar_lea.vmem %s6395, 1 [#allocation4]
        %v7018 = vld [vmem:[%s7017] ss:$2 sm:$0xff]
        %s7019 = scalar_lea.vmem %s6395, 49 [#allocation4]
        %v7020 = vld [vmem:[%s7019] ss:$2 sm:$0xff]
        %s7021 = scalar_lea.vmem %s6395, 97 [#allocation4]
        %v7022 = vld [vmem:[%s7021] ss:$2 sm:$0xff]
        %s7023 = scalar_lea.vmem %s6395, 145 [#allocation4]
        %v7024 = vld [vmem:[%s7023] ss:$2 sm:$0xff]
        %s7025 = scalar_lea.vmem %s6395, 193 [#allocation4]
        %v7026 = vld [vmem:[%s7025] ss:$2 sm:$0xff]
        %s7027 = scalar_lea.vmem %s6395, 241 [#allocation4]
        %v7028 = vld [vmem:[%s7027] ss:$2 sm:$0xff]
        %s7029 = scalar_lea.vmem %s6395, 289 [#allocation4]
        %v7030 = vld [vmem:[%s7029] ss:$2 sm:$0xff]
        %s7031 = scalar_lea.vmem %s6395, 337 [#allocation4]
        %v7032 = vld [vmem:[%s7031] ss:$2 sm:$0xff]
        %7041 = vrot.lane.b32.xlu0 %v7018, 44
        %v7042 = vpop.permute.xlu0 %7041
        %7043 = vrot.lane.b32.xlu0 %v7020, 44
        %v7044 = vpop.permute.xlu0 %7043
        %7045 = vrot.lane.b32.xlu0 %v7022, 44
        %v7046 = vpop.permute.xlu0 %7045
        %7047 = vrot.lane.b32.xlu0 %v7024, 44
        %v7048 = vpop.permute.xlu0 %7047
        %7049 = vrot.lane.b32.xlu0 %v7026, 44
        %v7050 = vpop.permute.xlu0 %7049
        %7051 = vrot.lane.b32.xlu0 %v7028, 44
        %v7052 = vpop.permute.xlu0 %7051
        %7053 = vrot.lane.b32.xlu0 %v7030, 44
        %v7054 = vpop.permute.xlu0 %7053
        %7055 = vrot.lane.b32.xlu0 %v7032, 44
        %v7056 = vpop.permute.xlu0 %7055
        %vm7065 = vcmask 392544
        %7066 = vst.msk [vmem:[#allocation5] sm:$0xff] %vm7065, %v7042
        %7067 = vst.msk [vmem:[#allocation5 + $0x8] sm:$0xff] %vm7065, %v7044
        %7068 = vst.msk [vmem:[#allocation5 + $0x10] sm:$0xff] %vm7065, %v7046
        %7069 = vst.msk [vmem:[#allocation5 + $0x18] sm:$0xff] %vm7065, %v7048
        %7070 = vst.msk [vmem:[#allocation5 + $0x20] sm:$0xff] %vm7065, %v7050
        %7071 = vst.msk [vmem:[#allocation5 + $0x28] sm:$0xff] %vm7065, %v7052
        %7072 = vst.msk [vmem:[#allocation5 + $0x30] sm:$0xff] %vm7065, %v7054
        %7073 = vst.msk [vmem:[#allocation5 + $0x38] sm:$0xff] %vm7065, %v7056
        %s7074 = scalar_lea.vmem %s6395, 2 [#allocation4]
        %v7075 = vld [vmem:[%s7074] ss:$2 sm:$0xff]
        %s7076 = scalar_lea.vmem %s6395, 50 [#allocation4]
        %v7077 = vld [vmem:[%s7076] ss:$2 sm:$0xff]
        %s7078 = scalar_lea.vmem %s6395, 98 [#allocation4]
        %v7079 = vld [vmem:[%s7078] ss:$2 sm:$0xff]
        %s7080 = scalar_lea.vmem %s6395, 146 [#allocation4]
        %v7081 = vld [vmem:[%s7080] ss:$2 sm:$0xff]
        %s7082 = scalar_lea.vmem %s6395, 194 [#allocation4]
        %v7083 = vld [vmem:[%s7082] ss:$2 sm:$0xff]
        %s7084 = scalar_lea.vmem %s6395, 242 [#allocation4]
        %v7085 = vld [vmem:[%s7084] ss:$2 sm:$0xff]
        %s7086 = scalar_lea.vmem %s6395, 290 [#allocation4]
        %v7087 = vld [vmem:[%s7086] ss:$2 sm:$0xff]
        %s7088 = scalar_lea.vmem %s6395, 338 [#allocation4]
        %v7089 = vld [vmem:[%s7088] ss:$2 sm:$0xff]
        %7098 = vrot.lane.b32.xlu0 %v7075, 48
        %v7099 = vpop.permute.xlu0 %7098
        %7100 = vrot.lane.b32.xlu0 %v7077, 48
        %v7101 = vpop.permute.xlu0 %7100
        %7102 = vrot.lane.b32.xlu0 %v7079, 48
        %v7103 = vpop.permute.xlu0 %7102
        %7104 = vrot.lane.b32.xlu0 %v7081, 48
        %v7105 = vpop.permute.xlu0 %7104
        %7106 = vrot.lane.b32.xlu0 %v7083, 48
        %v7107 = vpop.permute.xlu0 %7106
        %7108 = vrot.lane.b32.xlu0 %v7085, 48
        %v7109 = vpop.permute.xlu0 %7108
        %7110 = vrot.lane.b32.xlu0 %v7087, 48
        %v7111 = vpop.permute.xlu0 %7110
        %7112 = vrot.lane.b32.xlu0 %v7089, 48
        %v7113 = vpop.permute.xlu0 %7112
        %vm7122 = vcmask 425344
        %7123 = vst.msk [vmem:[#allocation5] sm:$0xff] %vm7122, %v7099
        %7124 = vst.msk [vmem:[#allocation5 + $0x8] sm:$0xff] %vm7122, %v7101
        %7125 = vst.msk [vmem:[#allocation5 + $0x10] sm:$0xff] %vm7122, %v7103
        %7126 = vst.msk [vmem:[#allocation5 + $0x18] sm:$0xff] %vm7122, %v7105
        %7127 = vst.msk [vmem:[#allocation5 + $0x20] sm:$0xff] %vm7122, %v7107
        %7128 = vst.msk [vmem:[#allocation5 + $0x28] sm:$0xff] %vm7122, %v7109
        %7129 = vst.msk [vmem:[#allocation5 + $0x30] sm:$0xff] %vm7122, %v7111
        %7130 = vst.msk [vmem:[#allocation5 + $0x38] sm:$0xff] %vm7122, %v7113
        %s7131 = scalar_lea.vmem %s6395, 3 [#allocation4]
        %v7132 = vld [vmem:[%s7131] ss:$2 sm:$0xff]
        %s7133 = scalar_lea.vmem %s6395, 51 [#allocation4]
        %v7134 = vld [vmem:[%s7133] ss:$2 sm:$0xff]
        %s7135 = scalar_lea.vmem %s6395, 99 [#allocation4]
        %v7136 = vld [vmem:[%s7135] ss:$2 sm:$0xff]
        %s7137 = scalar_lea.vmem %s6395, 147 [#allocation4]
        %v7138 = vld [vmem:[%s7137] ss:$2 sm:$0xff]
        %s7139 = scalar_lea.vmem %s6395, 195 [#allocation4]
        %v7140 = vld [vmem:[%s7139] ss:$2 sm:$0xff]
        %s7141 = scalar_lea.vmem %s6395, 243 [#allocation4]
        %v7142 = vld [vmem:[%s7141] ss:$2 sm:$0xff]
        %s7143 = scalar_lea.vmem %s6395, 291 [#allocation4]
        %v7144 = vld [vmem:[%s7143] ss:$2 sm:$0xff]
        %s7145 = scalar_lea.vmem %s6395, 339 [#allocation4]
        %v7146 = vld [vmem:[%s7145] ss:$2 sm:$0xff]
        %7155 = vrot.lane.b32.xlu0 %v7132, 52
        %v7156 = vpop.permute.xlu0 %7155
        %7157 = vrot.lane.b32.xlu0 %v7134, 52
        %v7158 = vpop.permute.xlu0 %7157
        %7159 = vrot.lane.b32.xlu0 %v7136, 52
        %v7160 = vpop.permute.xlu0 %7159
        %7161 = vrot.lane.b32.xlu0 %v7138, 52
        %v7162 = vpop.permute.xlu0 %7161
        %7163 = vrot.lane.b32.xlu0 %v7140, 52
        %v7164 = vpop.permute.xlu0 %7163
        %7165 = vrot.lane.b32.xlu0 %v7142, 52
        %v7166 = vpop.permute.xlu0 %7165
        %7167 = vrot.lane.b32.xlu0 %v7144, 52
        %v7168 = vpop.permute.xlu0 %7167
        %7169 = vrot.lane.b32.xlu0 %v7146, 52
        %v7170 = vpop.permute.xlu0 %7169
        %vm7179 = vcmask 458144
        %7180 = vst.msk [vmem:[#allocation5] sm:$0xff] %vm7179, %v7156
        %7181 = vst.msk [vmem:[#allocation5 + $0x8] sm:$0xff] %vm7179, %v7158
        %7182 = vst.msk [vmem:[#allocation5 + $0x10] sm:$0xff] %vm7179, %v7160
        %7183 = vst.msk [vmem:[#allocation5 + $0x18] sm:$0xff] %vm7179, %v7162
        %7184 = vst.msk [vmem:[#allocation5 + $0x20] sm:$0xff] %vm7179, %v7164
        %7185 = vst.msk [vmem:[#allocation5 + $0x28] sm:$0xff] %vm7179, %v7166
        %7186 = vst.msk [vmem:[#allocation5 + $0x30] sm:$0xff] %vm7179, %v7168
        %7187 = vst.msk [vmem:[#allocation5 + $0x38] sm:$0xff] %vm7179, %v7170
        %s7188 = scalar_lea.vmem %s6395, 4 [#allocation4]
        %v7189 = vld [vmem:[%s7188] ss:$2 sm:$0xff]
        %s7190 = scalar_lea.vmem %s6395, 52 [#allocation4]
        %v7191 = vld [vmem:[%s7190] ss:$2 sm:$0xff]
        %s7192 = scalar_lea.vmem %s6395, 100 [#allocation4]
        %v7193 = vld [vmem:[%s7192] ss:$2 sm:$0xff]
        %s7194 = scalar_lea.vmem %s6395, 148 [#allocation4]
        %v7195 = vld [vmem:[%s7194] ss:$2 sm:$0xff]
        %s7196 = scalar_lea.vmem %s6395, 196 [#allocation4]
        %v7197 = vld [vmem:[%s7196] ss:$2 sm:$0xff]
        %s7198 = scalar_lea.vmem %s6395, 244 [#allocation4]
        %v7199 = vld [vmem:[%s7198] ss:$2 sm:$0xff]
        %s7200 = scalar_lea.vmem %s6395, 292 [#allocation4]
        %v7201 = vld [vmem:[%s7200] ss:$2 sm:$0xff]
        %s7202 = scalar_lea.vmem %s6395, 340 [#allocation4]
        %v7203 = vld [vmem:[%s7202] ss:$2 sm:$0xff]
        %7212 = vrot.lane.b32.xlu0 %v7189, 56
        %v7213 = vpop.permute.xlu0 %7212
        %7214 = vrot.lane.b32.xlu0 %v7191, 56
        %v7215 = vpop.permute.xlu0 %7214
        %7216 = vrot.lane.b32.xlu0 %v7193, 56
        %v7217 = vpop.permute.xlu0 %7216
        %7218 = vrot.lane.b32.xlu0 %v7195, 56
        %v7219 = vpop.permute.xlu0 %7218
        %7220 = vrot.lane.b32.xlu0 %v7197, 56
        %v7221 = vpop.permute.xlu0 %7220
        %7222 = vrot.lane.b32.xlu0 %v7199, 56
        %v7223 = vpop.permute.xlu0 %7222
        %7224 = vrot.lane.b32.xlu0 %v7201, 56
        %v7225 = vpop.permute.xlu0 %7224
        %7226 = vrot.lane.b32.xlu0 %v7203, 56
        %v7227 = vpop.permute.xlu0 %7226
        %vm7236 = vcmask 490944
        %7237 = vst.msk [vmem:[#allocation5] sm:$0xff] %vm7236, %v7213
        %7238 = vst.msk [vmem:[#allocation5 + $0x8] sm:$0xff] %vm7236, %v7215
        %7239 = vst.msk [vmem:[#allocation5 + $0x10] sm:$0xff] %vm7236, %v7217
        %7240 = vst.msk [vmem:[#allocation5 + $0x18] sm:$0xff] %vm7236, %v7219
        %7241 = vst.msk [vmem:[#allocation5 + $0x20] sm:$0xff] %vm7236, %v7221
        %7242 = vst.msk [vmem:[#allocation5 + $0x28] sm:$0xff] %vm7236, %v7223
        %7243 = vst.msk [vmem:[#allocation5 + $0x30] sm:$0xff] %vm7236, %v7225
        %7244 = vst.msk [vmem:[#allocation5 + $0x38] sm:$0xff] %vm7236, %v7227
        %s7245 = scalar_lea.vmem [#allocation4], 72
        %v7246 = vld [vmem:[%s7245] ss:$2 sm:$0xff]
        %s7247 = scalar_lea.vmem %s7245, 48 [#allocation4]
        %v7248 = vld [vmem:[%s7247] ss:$2 sm:$0xff]
        %s7249 = scalar_lea.vmem %s7245, 96 [#allocation4]
        %v7250 = vld [vmem:[%s7249] ss:$2 sm:$0xff]
        %s7251 = scalar_lea.vmem %s7245, 144 [#allocation4]
        %v7252 = vld [vmem:[%s7251] ss:$2 sm:$0xff]
        %s7253 = scalar_lea.vmem %s7245, 192 [#allocation4]
        %v7254 = vld [vmem:[%s7253] ss:$2 sm:$0xff]
        %s7255 = scalar_lea.vmem %s7245, 240 [#allocation4]
        %v7256 = vld [vmem:[%s7255] ss:$2 sm:$0xff]
        %s7257 = scalar_lea.vmem %s7245, 288 [#allocation4]
        %v7258 = vld [vmem:[%s7257] ss:$2 sm:$0xff]
        %s7259 = scalar_lea.vmem %s7245, 336 [#allocation4]
        %v7260 = vld [vmem:[%s7259] ss:$2 sm:$0xff]
        %7269 = vrot.lane.b32.xlu0 %v7246, 60
        %v7270 = vpop.permute.xlu0 %7269
        %7271 = vrot.lane.b32.xlu0 %v7248, 60
        %v7272 = vpop.permute.xlu0 %7271
        %7273 = vrot.lane.b32.xlu0 %v7250, 60
        %v7274 = vpop.permute.xlu0 %7273
        %7275 = vrot.lane.b32.xlu0 %v7252, 60
        %v7276 = vpop.permute.xlu0 %7275
        %7277 = vrot.lane.b32.xlu0 %v7254, 60
        %v7278 = vpop.permute.xlu0 %7277
        %7279 = vrot.lane.b32.xlu0 %v7256, 60
        %v7280 = vpop.permute.xlu0 %7279
        %7281 = vrot.lane.b32.xlu0 %v7258, 60
        %v7282 = vpop.permute.xlu0 %7281
        %7283 = vrot.lane.b32.xlu0 %v7260, 60
        %v7284 = vpop.permute.xlu0 %7283
        %vm7293 = vcmask 523744
        %7294 = vst.msk [vmem:[#allocation5] sm:$0xff] %vm7293, %v7270
        %7295 = vst.msk [vmem:[#allocation5 + $0x8] sm:$0xff] %vm7293, %v7272
        %7296 = vst.msk [vmem:[#allocation5 + $0x10] sm:$0xff] %vm7293, %v7274
        %7297 = vst.msk [vmem:[#allocation5 + $0x18] sm:$0xff] %vm7293, %v7276
        %7298 = vst.msk [vmem:[#allocation5 + $0x20] sm:$0xff] %vm7293, %v7278
        %7299 = vst.msk [vmem:[#allocation5 + $0x28] sm:$0xff] %vm7293, %v7280
        %7300 = vst.msk [vmem:[#allocation5 + $0x30] sm:$0xff] %vm7293, %v7282
        %7301 = vst.msk [vmem:[#allocation5 + $0x38] sm:$0xff] %vm7293, %v7284
        %s7302 = scalar_lea.vmem %s7245, 1 [#allocation4]
        %v7303 = vld [vmem:[%s7302] ss:$2 sm:$0xff]
        %s7304 = scalar_lea.vmem %s7245, 49 [#allocation4]
        %v7305 = vld [vmem:[%s7304] ss:$2 sm:$0xff]
        %s7306 = scalar_lea.vmem %s7245, 97 [#allocation4]
        %v7307 = vld [vmem:[%s7306] ss:$2 sm:$0xff]
        %s7308 = scalar_lea.vmem %s7245, 145 [#allocation4]
        %v7309 = vld [vmem:[%s7308] ss:$2 sm:$0xff]
        %s7310 = scalar_lea.vmem %s7245, 193 [#allocation4]
        %v7311 = vld [vmem:[%s7310] ss:$2 sm:$0xff]
        %s7312 = scalar_lea.vmem %s7245, 241 [#allocation4]
        %v7313 = vld [vmem:[%s7312] ss:$2 sm:$0xff]
        %s7314 = scalar_lea.vmem %s7245, 289 [#allocation4]
        %v7315 = vld [vmem:[%s7314] ss:$2 sm:$0xff]
        %s7316 = scalar_lea.vmem %s7245, 337 [#allocation4]
        %v7317 = vld [vmem:[%s7316] ss:$2 sm:$0xff]
        %7326 = vrot.lane.b32.xlu0 %v7303, 64
        %v7327 = vpop.permute.xlu0 %7326
        %7328 = vrot.lane.b32.xlu0 %v7305, 64
        %v7329 = vpop.permute.xlu0 %7328
        %7330 = vrot.lane.b32.xlu0 %v7307, 64
        %v7331 = vpop.permute.xlu0 %7330
        %7332 = vrot.lane.b32.xlu0 %v7309, 64
        %v7333 = vpop.permute.xlu0 %7332
        %7334 = vrot.lane.b32.xlu0 %v7311, 64
        %v7335 = vpop.permute.xlu0 %7334
        %7336 = vrot.lane.b32.xlu0 %v7313, 64
        %v7337 = vpop.permute.xlu0 %7336
        %7338 = vrot.lane.b32.xlu0 %v7315, 64
        %v7339 = vpop.permute.xlu0 %7338
        %7340 = vrot.lane.b32.xlu0 %v7317, 64
        %v7341 = vpop.permute.xlu0 %7340
        %vm7350 = vcmask 556544
        %7351 = vst.msk [vmem:[#allocation5] sm:$0xff] %vm7350, %v7327
        %7352 = vst.msk [vmem:[#allocation5 + $0x8] sm:$0xff] %vm7350, %v7329
        %7353 = vst.msk [vmem:[#allocation5 + $0x10] sm:$0xff] %vm7350, %v7331
        %7354 = vst.msk [vmem:[#allocation5 + $0x18] sm:$0xff] %vm7350, %v7333
        %7355 = vst.msk [vmem:[#allocation5 + $0x20] sm:$0xff] %vm7350, %v7335
        %7356 = vst.msk [vmem:[#allocation5 + $0x28] sm:$0xff] %vm7350, %v7337
        %7357 = vst.msk [vmem:[#allocation5 + $0x30] sm:$0xff] %vm7350, %v7339
        %7358 = vst.msk [vmem:[#allocation5 + $0x38] sm:$0xff] %vm7350, %v7341
        %s7359 = scalar_lea.vmem %s7245, 2 [#allocation4]
        %v7360 = vld [vmem:[%s7359] ss:$2 sm:$0xff]
        %s7361 = scalar_lea.vmem %s7245, 50 [#allocation4]
        %v7362 = vld [vmem:[%s7361] ss:$2 sm:$0xff]
        %s7363 = scalar_lea.vmem %s7245, 98 [#allocation4]
        %v7364 = vld [vmem:[%s7363] ss:$2 sm:$0xff]
        %s7365 = scalar_lea.vmem %s7245, 146 [#allocation4]
        %v7366 = vld [vmem:[%s7365] ss:$2 sm:$0xff]
        %s7367 = scalar_lea.vmem %s7245, 194 [#allocation4]
        %v7368 = vld [vmem:[%s7367] ss:$2 sm:$0xff]
        %s7369 = scalar_lea.vmem %s7245, 242 [#allocation4]
        %v7370 = vld [vmem:[%s7369] ss:$2 sm:$0xff]
        %s7371 = scalar_lea.vmem %s7245, 290 [#allocation4]
        %v7372 = vld [vmem:[%s7371] ss:$2 sm:$0xff]
        %s7373 = scalar_lea.vmem %s7245, 338 [#allocation4]
        %v7374 = vld [vmem:[%s7373] ss:$2 sm:$0xff]
        %7383 = vrot.lane.b32.xlu0 %v7360, 68
        %v7384 = vpop.permute.xlu0 %7383
        %7385 = vrot.lane.b32.xlu0 %v7362, 68
        %v7386 = vpop.permute.xlu0 %7385
        %7387 = vrot.lane.b32.xlu0 %v7364, 68
        %v7388 = vpop.permute.xlu0 %7387
        %7389 = vrot.lane.b32.xlu0 %v7366, 68
        %v7390 = vpop.permute.xlu0 %7389
        %7391 = vrot.lane.b32.xlu0 %v7368, 68
        %v7392 = vpop.permute.xlu0 %7391
        %7393 = vrot.lane.b32.xlu0 %v7370, 68
        %v7394 = vpop.permute.xlu0 %7393
        %7395 = vrot.lane.b32.xlu0 %v7372, 68
        %v7396 = vpop.permute.xlu0 %7395
        %7397 = vrot.lane.b32.xlu0 %v7374, 68
        %v7398 = vpop.permute.xlu0 %7397
        %vm7407 = vcmask 589344
        %7408 = vst.msk [vmem:[#allocation5] sm:$0xff] %vm7407, %v7384
        %7409 = vst.msk [vmem:[#allocation5 + $0x8] sm:$0xff] %vm7407, %v7386
        %7410 = vst.msk [vmem:[#allocation5 + $0x10] sm:$0xff] %vm7407, %v7388
        %7411 = vst.msk [vmem:[#allocation5 + $0x18] sm:$0xff] %vm7407, %v7390
        %7412 = vst.msk [vmem:[#allocation5 + $0x20] sm:$0xff] %vm7407, %v7392
        %7413 = vst.msk [vmem:[#allocation5 + $0x28] sm:$0xff] %vm7407, %v7394
        %7414 = vst.msk [vmem:[#allocation5 + $0x30] sm:$0xff] %vm7407, %v7396
        %7415 = vst.msk [vmem:[#allocation5 + $0x38] sm:$0xff] %vm7407, %v7398
        %s7416 = scalar_lea.vmem %s7245, 3 [#allocation4]
        %v7417 = vld [vmem:[%s7416] ss:$2 sm:$0xff]
        %s7418 = scalar_lea.vmem %s7245, 51 [#allocation4]
        %v7419 = vld [vmem:[%s7418] ss:$2 sm:$0xff]
        %s7420 = scalar_lea.vmem %s7245, 99 [#allocation4]
        %v7421 = vld [vmem:[%s7420] ss:$2 sm:$0xff]
        %s7422 = scalar_lea.vmem %s7245, 147 [#allocation4]
        %v7423 = vld [vmem:[%s7422] ss:$2 sm:$0xff]
        %s7424 = scalar_lea.vmem %s7245, 195 [#allocation4]
        %v7425 = vld [vmem:[%s7424] ss:$2 sm:$0xff]
        %s7426 = scalar_lea.vmem %s7245, 243 [#allocation4]
        %v7427 = vld [vmem:[%s7426] ss:$2 sm:$0xff]
        %s7428 = scalar_lea.vmem %s7245, 291 [#allocation4]
        %v7429 = vld [vmem:[%s7428] ss:$2 sm:$0xff]
        %s7430 = scalar_lea.vmem %s7245, 339 [#allocation4]
        %v7431 = vld [vmem:[%s7430] ss:$2 sm:$0xff]
        %7440 = vrot.lane.b32.xlu0 %v7417, 72
        %v7441 = vpop.permute.xlu0 %7440
        %7442 = vrot.lane.b32.xlu0 %v7419, 72
        %v7443 = vpop.permute.xlu0 %7442
        %7444 = vrot.lane.b32.xlu0 %v7421, 72
        %v7445 = vpop.permute.xlu0 %7444
        %7446 = vrot.lane.b32.xlu0 %v7423, 72
        %v7447 = vpop.permute.xlu0 %7446
        %7448 = vrot.lane.b32.xlu0 %v7425, 72
        %v7449 = vpop.permute.xlu0 %7448
        %7450 = vrot.lane.b32.xlu0 %v7427, 72
        %v7451 = vpop.permute.xlu0 %7450
        %7452 = vrot.lane.b32.xlu0 %v7429, 72
        %v7453 = vpop.permute.xlu0 %7452
        %7454 = vrot.lane.b32.xlu0 %v7431, 72
        %v7455 = vpop.permute.xlu0 %7454
        %vm7464 = vcmask 622144
        %7465 = vst.msk [vmem:[#allocation5] sm:$0xff] %vm7464, %v7441
        %7466 = vst.msk [vmem:[#allocation5 + $0x8] sm:$0xff] %vm7464, %v7443
        %7467 = vst.msk [vmem:[#allocation5 + $0x10] sm:$0xff] %vm7464, %v7445
        %7468 = vst.msk [vmem:[#allocation5 + $0x18] sm:$0xff] %vm7464, %v7447
        %7469 = vst.msk [vmem:[#allocation5 + $0x20] sm:$0xff] %vm7464, %v7449
        %7470 = vst.msk [vmem:[#allocation5 + $0x28] sm:$0xff] %vm7464, %v7451
        %7471 = vst.msk [vmem:[#allocation5 + $0x30] sm:$0xff] %vm7464, %v7453
        %7472 = vst.msk [vmem:[#allocation5 + $0x38] sm:$0xff] %vm7464, %v7455
        %s7473 = scalar_lea.vmem %s7245, 4 [#allocation4]
        %v7474 = vld [vmem:[%s7473] ss:$2 sm:$0xff]
        %s7475 = scalar_lea.vmem %s7245, 52 [#allocation4]
        %v7476 = vld [vmem:[%s7475] ss:$2 sm:$0xff]
        %s7477 = scalar_lea.vmem %s7245, 100 [#allocation4]
        %v7478 = vld [vmem:[%s7477] ss:$2 sm:$0xff]
        %s7479 = scalar_lea.vmem %s7245, 148 [#allocation4]
        %v7480 = vld [vmem:[%s7479] ss:$2 sm:$0xff]
        %s7481 = scalar_lea.vmem %s7245, 196 [#allocation4]
        %v7482 = vld [vmem:[%s7481] ss:$2 sm:$0xff]
        %s7483 = scalar_lea.vmem %s7245, 244 [#allocation4]
        %v7484 = vld [vmem:[%s7483] ss:$2 sm:$0xff]
        %s7485 = scalar_lea.vmem %s7245, 292 [#allocation4]
        %v7486 = vld [vmem:[%s7485] ss:$2 sm:$0xff]
        %s7487 = scalar_lea.vmem %s7245, 340 [#allocation4]
        %v7488 = vld [vmem:[%s7487] ss:$2 sm:$0xff]
        %7497 = vrot.lane.b32.xlu0 %v7474, 76
        %v7498 = vpop.permute.xlu0 %7497
        %7499 = vrot.lane.b32.xlu0 %v7476, 76
        %v7500 = vpop.permute.xlu0 %7499
        %7501 = vrot.lane.b32.xlu0 %v7478, 76
        %v7502 = vpop.permute.xlu0 %7501
        %7503 = vrot.lane.b32.xlu0 %v7480, 76
        %v7504 = vpop.permute.xlu0 %7503
        %7505 = vrot.lane.b32.xlu0 %v7482, 76
        %v7506 = vpop.permute.xlu0 %7505
        %7507 = vrot.lane.b32.xlu0 %v7484, 76
        %v7508 = vpop.permute.xlu0 %7507
        %7509 = vrot.lane.b32.xlu0 %v7486, 76
        %v7510 = vpop.permute.xlu0 %7509
        %7511 = vrot.lane.b32.xlu0 %v7488, 76
        %v7512 = vpop.permute.xlu0 %7511
        %vm7521 = vcmask 654944
        %7522 = vst.msk [vmem:[#allocation5] sm:$0xff] %vm7521, %v7498
        %7523 = vst.msk [vmem:[#allocation5 + $0x8] sm:$0xff] %vm7521, %v7500
        %7524 = vst.msk [vmem:[#allocation5 + $0x10] sm:$0xff] %vm7521, %v7502
        %7525 = vst.msk [vmem:[#allocation5 + $0x18] sm:$0xff] %vm7521, %v7504
        %7526 = vst.msk [vmem:[#allocation5 + $0x20] sm:$0xff] %vm7521, %v7506
        %7527 = vst.msk [vmem:[#allocation5 + $0x28] sm:$0xff] %vm7521, %v7508
        %7528 = vst.msk [vmem:[#allocation5 + $0x30] sm:$0xff] %vm7521, %v7510
        %7529 = vst.msk [vmem:[#allocation5 + $0x38] sm:$0xff] %vm7521, %v7512
        %s7530 = scalar_lea.vmem [#allocation4], 96
        %v7531 = vld [vmem:[%s7530] ss:$2 sm:$0xff]
        %s7532 = scalar_lea.vmem %s7530, 48 [#allocation4]
        %v7533 = vld [vmem:[%s7532] ss:$2 sm:$0xff]
        %s7534 = scalar_lea.vmem %s7530, 96 [#allocation4]
        %v7535 = vld [vmem:[%s7534] ss:$2 sm:$0xff]
        %s7536 = scalar_lea.vmem %s7530, 144 [#allocation4]
        %v7537 = vld [vmem:[%s7536] ss:$2 sm:$0xff]
        %s7538 = scalar_lea.vmem %s7530, 192 [#allocation4]
        %v7539 = vld [vmem:[%s7538] ss:$2 sm:$0xff]
        %s7540 = scalar_lea.vmem %s7530, 240 [#allocation4]
        %v7541 = vld [vmem:[%s7540] ss:$2 sm:$0xff]
        %s7542 = scalar_lea.vmem %s7530, 288 [#allocation4]
        %v7543 = vld [vmem:[%s7542] ss:$2 sm:$0xff]
        %s7544 = scalar_lea.vmem %s7530, 336 [#allocation4]
        %v7545 = vld [vmem:[%s7544] ss:$2 sm:$0xff]
        %7554 = vrot.lane.b32.xlu0 %v7531, 80
        %v7555 = vpop.permute.xlu0 %7554
        %7556 = vrot.lane.b32.xlu0 %v7533, 80
        %v7557 = vpop.permute.xlu0 %7556
        %7558 = vrot.lane.b32.xlu0 %v7535, 80
        %v7559 = vpop.permute.xlu0 %7558
        %7560 = vrot.lane.b32.xlu0 %v7537, 80
        %v7561 = vpop.permute.xlu0 %7560
        %7562 = vrot.lane.b32.xlu0 %v7539, 80
        %v7563 = vpop.permute.xlu0 %7562
        %7564 = vrot.lane.b32.xlu0 %v7541, 80
        %v7565 = vpop.permute.xlu0 %7564
        %7566 = vrot.lane.b32.xlu0 %v7543, 80
        %v7567 = vpop.permute.xlu0 %7566
        %7568 = vrot.lane.b32.xlu0 %v7545, 80
        %v7569 = vpop.permute.xlu0 %7568
        %vm7578 = vcmask 687744
        %7579 = vst.msk [vmem:[#allocation5] sm:$0xff] %vm7578, %v7555
        %7580 = vst.msk [vmem:[#allocation5 + $0x8] sm:$0xff] %vm7578, %v7557
        %7581 = vst.msk [vmem:[#allocation5 + $0x10] sm:$0xff] %vm7578, %v7559
        %7582 = vst.msk [vmem:[#allocation5 + $0x18] sm:$0xff] %vm7578, %v7561
        %7583 = vst.msk [vmem:[#allocation5 + $0x20] sm:$0xff] %vm7578, %v7563
        %7584 = vst.msk [vmem:[#allocation5 + $0x28] sm:$0xff] %vm7578, %v7565
        %7585 = vst.msk [vmem:[#allocation5 + $0x30] sm:$0xff] %vm7578, %v7567
        %7586 = vst.msk [vmem:[#allocation5 + $0x38] sm:$0xff] %vm7578, %v7569
        %s7587 = scalar_lea.vmem %s7530, 1 [#allocation4]
        %v7588 = vld [vmem:[%s7587] ss:$2 sm:$0xff]
        %s7589 = scalar_lea.vmem %s7530, 49 [#allocation4]
        %v7590 = vld [vmem:[%s7589] ss:$2 sm:$0xff]
        %s7591 = scalar_lea.vmem %s7530, 97 [#allocation4]
        %v7592 = vld [vmem:[%s7591] ss:$2 sm:$0xff]
        %s7593 = scalar_lea.vmem %s7530, 145 [#allocation4]
        %v7594 = vld [vmem:[%s7593] ss:$2 sm:$0xff]
        %s7595 = scalar_lea.vmem %s7530, 193 [#allocation4]
        %v7596 = vld [vmem:[%s7595] ss:$2 sm:$0xff]
        %s7597 = scalar_lea.vmem %s7530, 241 [#allocation4]
        %v7598 = vld [vmem:[%s7597] ss:$2 sm:$0xff]
        %s7599 = scalar_lea.vmem %s7530, 289 [#allocation4]
        %v7600 = vld [vmem:[%s7599] ss:$2 sm:$0xff]
        %s7601 = scalar_lea.vmem %s7530, 337 [#allocation4]
        %v7602 = vld [vmem:[%s7601] ss:$2 sm:$0xff]
        %7611 = vrot.lane.b32.xlu0 %v7588, 84
        %v7612 = vpop.permute.xlu0 %7611
        %7613 = vrot.lane.b32.xlu0 %v7590, 84
        %v7614 = vpop.permute.xlu0 %7613
        %7615 = vrot.lane.b32.xlu0 %v7592, 84
        %v7616 = vpop.permute.xlu0 %7615
        %7617 = vrot.lane.b32.xlu0 %v7594, 84
        %v7618 = vpop.permute.xlu0 %7617
        %7619 = vrot.lane.b32.xlu0 %v7596, 84
        %v7620 = vpop.permute.xlu0 %7619
        %7621 = vrot.lane.b32.xlu0 %v7598, 84
        %v7622 = vpop.permute.xlu0 %7621
        %7623 = vrot.lane.b32.xlu0 %v7600, 84
        %v7624 = vpop.permute.xlu0 %7623
        %7625 = vrot.lane.b32.xlu0 %v7602, 84
        %v7626 = vpop.permute.xlu0 %7625
        %vm7635 = vcmask 720544
        %7636 = vst.msk [vmem:[#allocation5] sm:$0xff] %vm7635, %v7612
        %7637 = vst.msk [vmem:[#allocation5 + $0x8] sm:$0xff] %vm7635, %v7614
        %7638 = vst.msk [vmem:[#allocation5 + $0x10] sm:$0xff] %vm7635, %v7616
        %7639 = vst.msk [vmem:[#allocation5 + $0x18] sm:$0xff] %vm7635, %v7618
        %7640 = vst.msk [vmem:[#allocation5 + $0x20] sm:$0xff] %vm7635, %v7620
        %7641 = vst.msk [vmem:[#allocation5 + $0x28] sm:$0xff] %vm7635, %v7622
        %7642 = vst.msk [vmem:[#allocation5 + $0x30] sm:$0xff] %vm7635, %v7624
        %7643 = vst.msk [vmem:[#allocation5 + $0x38] sm:$0xff] %vm7635, %v7626
        %s7644 = scalar_lea.vmem %s7530, 2 [#allocation4]
        %v7645 = vld [vmem:[%s7644] ss:$2 sm:$0xff]
        %s7646 = scalar_lea.vmem %s7530, 50 [#allocation4]
        %v7647 = vld [vmem:[%s7646] ss:$2 sm:$0xff]
        %s7648 = scalar_lea.vmem %s7530, 98 [#allocation4]
        %v7649 = vld [vmem:[%s7648] ss:$2 sm:$0xff]
        %s7650 = scalar_lea.vmem %s7530, 146 [#allocation4]
        %v7651 = vld [vmem:[%s7650] ss:$2 sm:$0xff]
        %s7652 = scalar_lea.vmem %s7530, 194 [#allocation4]
        %v7653 = vld [vmem:[%s7652] ss:$2 sm:$0xff]
        %s7654 = scalar_lea.vmem %s7530, 242 [#allocation4]
        %v7655 = vld [vmem:[%s7654] ss:$2 sm:$0xff]
        %s7656 = scalar_lea.vmem %s7530, 290 [#allocation4]
        %v7657 = vld [vmem:[%s7656] ss:$2 sm:$0xff]
        %s7658 = scalar_lea.vmem %s7530, 338 [#allocation4]
        %v7659 = vld [vmem:[%s7658] ss:$2 sm:$0xff]
        %7668 = vrot.lane.b32.xlu0 %v7645, 88
        %v7669 = vpop.permute.xlu0 %7668
        %7670 = vrot.lane.b32.xlu0 %v7647, 88
        %v7671 = vpop.permute.xlu0 %7670
        %7672 = vrot.lane.b32.xlu0 %v7649, 88
        %v7673 = vpop.permute.xlu0 %7672
        %7674 = vrot.lane.b32.xlu0 %v7651, 88
        %v7675 = vpop.permute.xlu0 %7674
        %7676 = vrot.lane.b32.xlu0 %v7653, 88
        %v7677 = vpop.permute.xlu0 %7676
        %7678 = vrot.lane.b32.xlu0 %v7655, 88
        %v7679 = vpop.permute.xlu0 %7678
        %7680 = vrot.lane.b32.xlu0 %v7657, 88
        %v7681 = vpop.permute.xlu0 %7680
        %7682 = vrot.lane.b32.xlu0 %v7659, 88
        %v7683 = vpop.permute.xlu0 %7682
        %vm7692 = vcmask 753344
        %7693 = vst.msk [vmem:[#allocation5] sm:$0xff] %vm7692, %v7669
        %7694 = vst.msk [vmem:[#allocation5 + $0x8] sm:$0xff] %vm7692, %v7671
        %7695 = vst.msk [vmem:[#allocation5 + $0x10] sm:$0xff] %vm7692, %v7673
        %7696 = vst.msk [vmem:[#allocation5 + $0x18] sm:$0xff] %vm7692, %v7675
        %7697 = vst.msk [vmem:[#allocation5 + $0x20] sm:$0xff] %vm7692, %v7677
        %7698 = vst.msk [vmem:[#allocation5 + $0x28] sm:$0xff] %vm7692, %v7679
        %7699 = vst.msk [vmem:[#allocation5 + $0x30] sm:$0xff] %vm7692, %v7681
        %7700 = vst.msk [vmem:[#allocation5 + $0x38] sm:$0xff] %vm7692, %v7683
        %s7701 = scalar_lea.vmem %s7530, 3 [#allocation4]
        %v7702 = vld [vmem:[%s7701] ss:$2 sm:$0xff]
        %s7703 = scalar_lea.vmem %s7530, 51 [#allocation4]
        %v7704 = vld [vmem:[%s7703] ss:$2 sm:$0xff]
        %s7705 = scalar_lea.vmem %s7530, 99 [#allocation4]
        %v7706 = vld [vmem:[%s7705] ss:$2 sm:$0xff]
        %s7707 = scalar_lea.vmem %s7530, 147 [#allocation4]
        %v7708 = vld [vmem:[%s7707] ss:$2 sm:$0xff]
        %s7709 = scalar_lea.vmem %s7530, 195 [#allocation4]
        %v7710 = vld [vmem:[%s7709] ss:$2 sm:$0xff]
        %s7711 = scalar_lea.vmem %s7530, 243 [#allocation4]
        %v7712 = vld [vmem:[%s7711] ss:$2 sm:$0xff]
        %s7713 = scalar_lea.vmem %s7530, 291 [#allocation4]
        %v7714 = vld [vmem:[%s7713] ss:$2 sm:$0xff]
        %s7715 = scalar_lea.vmem %s7530, 339 [#allocation4]
        %v7716 = vld [vmem:[%s7715] ss:$2 sm:$0xff]
        %7725 = vrot.lane.b32.xlu0 %v7702, 92
        %v7726 = vpop.permute.xlu0 %7725
        %7727 = vrot.lane.b32.xlu0 %v7704, 92
        %v7728 = vpop.permute.xlu0 %7727
        %7729 = vrot.lane.b32.xlu0 %v7706, 92
        %v7730 = vpop.permute.xlu0 %7729
        %7731 = vrot.lane.b32.xlu0 %v7708, 92
        %v7732 = vpop.permute.xlu0 %7731
        %7733 = vrot.lane.b32.xlu0 %v7710, 92
        %v7734 = vpop.permute.xlu0 %7733
        %7735 = vrot.lane.b32.xlu0 %v7712, 92
        %v7736 = vpop.permute.xlu0 %7735
        %7737 = vrot.lane.b32.xlu0 %v7714, 92
        %v7738 = vpop.permute.xlu0 %7737
        %7739 = vrot.lane.b32.xlu0 %v7716, 92
        %v7740 = vpop.permute.xlu0 %7739
        %vm7749 = vcmask 786144
        %7750 = vst.msk [vmem:[#allocation5] sm:$0xff] %vm7749, %v7726
        %7751 = vst.msk [vmem:[#allocation5 + $0x8] sm:$0xff] %vm7749, %v7728
        %7752 = vst.msk [vmem:[#allocation5 + $0x10] sm:$0xff] %vm7749, %v7730
        %7753 = vst.msk [vmem:[#allocation5 + $0x18] sm:$0xff] %vm7749, %v7732
        %7754 = vst.msk [vmem:[#allocation5 + $0x20] sm:$0xff] %vm7749, %v7734
        %7755 = vst.msk [vmem:[#allocation5 + $0x28] sm:$0xff] %vm7749, %v7736
        %7756 = vst.msk [vmem:[#allocation5 + $0x30] sm:$0xff] %vm7749, %v7738
        %7757 = vst.msk [vmem:[#allocation5 + $0x38] sm:$0xff] %vm7749, %v7740
        %s7758 = scalar_lea.vmem %s7530, 4 [#allocation4]
        %v7759 = vld [vmem:[%s7758] ss:$2 sm:$0xff]
        %s7760 = scalar_lea.vmem %s7530, 52 [#allocation4]
        %v7761 = vld [vmem:[%s7760] ss:$2 sm:$0xff]
        %s7762 = scalar_lea.vmem %s7530, 100 [#allocation4]
        %v7763 = vld [vmem:[%s7762] ss:$2 sm:$0xff]
        %s7764 = scalar_lea.vmem %s7530, 148 [#allocation4]
        %v7765 = vld [vmem:[%s7764] ss:$2 sm:$0xff]
        %s7766 = scalar_lea.vmem %s7530, 196 [#allocation4]
        %v7767 = vld [vmem:[%s7766] ss:$2 sm:$0xff]
        %s7768 = scalar_lea.vmem %s7530, 244 [#allocation4]
        %v7769 = vld [vmem:[%s7768] ss:$2 sm:$0xff]
        %s7770 = scalar_lea.vmem %s7530, 292 [#allocation4]
        %v7771 = vld [vmem:[%s7770] ss:$2 sm:$0xff]
        %s7772 = scalar_lea.vmem %s7530, 340 [#allocation4]
        %v7773 = vld [vmem:[%s7772] ss:$2 sm:$0xff]
        %7782 = vrot.lane.b32.xlu0 %v7759, 96
        %v7783 = vpop.permute.xlu0 %7782
        %7784 = vrot.lane.b32.xlu0 %v7761, 96
        %v7785 = vpop.permute.xlu0 %7784
        %7786 = vrot.lane.b32.xlu0 %v7763, 96
        %v7787 = vpop.permute.xlu0 %7786
        %7788 = vrot.lane.b32.xlu0 %v7765, 96
        %v7789 = vpop.permute.xlu0 %7788
        %7790 = vrot.lane.b32.xlu0 %v7767, 96
        %v7791 = vpop.permute.xlu0 %7790
        %7792 = vrot.lane.b32.xlu0 %v7769, 96
        %v7793 = vpop.permute.xlu0 %7792
        %7794 = vrot.lane.b32.xlu0 %v7771, 96
        %v7795 = vpop.permute.xlu0 %7794
        %7796 = vrot.lane.b32.xlu0 %v7773, 96
        %v7797 = vpop.permute.xlu0 %7796
        %vm7806 = vcmask 818944
        %7807 = vst.msk [vmem:[#allocation5] sm:$0xff] %vm7806, %v7783
        %7808 = vst.msk [vmem:[#allocation5 + $0x8] sm:$0xff] %vm7806, %v7785
        %7809 = vst.msk [vmem:[#allocation5 + $0x10] sm:$0xff] %vm7806, %v7787
        %7810 = vst.msk [vmem:[#allocation5 + $0x18] sm:$0xff] %vm7806, %v7789
        %7811 = vst.msk [vmem:[#allocation5 + $0x20] sm:$0xff] %vm7806, %v7791
        %7812 = vst.msk [vmem:[#allocation5 + $0x28] sm:$0xff] %vm7806, %v7793
        %7813 = vst.msk [vmem:[#allocation5 + $0x30] sm:$0xff] %vm7806, %v7795
        %7814 = vst.msk [vmem:[#allocation5 + $0x38] sm:$0xff] %vm7806, %v7797
        %v7815 = vld [vmem:[#allocation5] sm:$0xff]
        %v7816 = vld [vmem:[#allocation5 + $0x8] sm:$0xff]
        %v7817 = vld [vmem:[#allocation5 + $0x10] sm:$0xff]
        %v7818 = vld [vmem:[#allocation5 + $0x18] sm:$0xff]
        %v7819 = vld [vmem:[#allocation5 + $0x20] sm:$0xff]
        %v7820 = vld [vmem:[#allocation5 + $0x28] sm:$0xff]
        %v7821 = vld [vmem:[#allocation5 + $0x30] sm:$0xff]
        %v7822 = vld [vmem:[#allocation5 + $0x38] sm:$0xff]
        %v7823 = vld [vmem:[%s5] sm:$0xff]
        %v7824 = vld [vmem:[%s5 + $0x8] sm:$0xff]
        %v7825 = vld [vmem:[%s5 + $0x10] sm:$0xff]
        %v7826 = vld [vmem:[%s5 + $0x18] sm:$0xff]
        %v7827 = vld [vmem:[%s5 + $0x20] sm:$0xff]
        %v7828 = vld [vmem:[%s5 + $0x28] sm:$0xff]
        %v7829 = vld [vmem:[%s5 + $0x30] sm:$0xff]
        %v7830 = vld [vmem:[%s5 + $0x38] sm:$0xff]
        %v7831 = vld [vmem:[%s5 + $0x40] sm:$0xff]
        %v7832 = vld [vmem:[%s5 + $0x48] sm:$0xff]
        %v7833 = vld [vmem:[%s5 + $0x50] sm:$0xff]
        %v7834 = vld [vmem:[%s5 + $0x58] sm:$0xff]
        %v7835 = vld [vmem:[%s5 + $0x60] sm:$0xf]
        %v7836 = vld [vmem:[%s6] sm:$0x1]
        %v7838 = vperm.slane %v7836, 0
        %vm7840 = vcmask 818176
        %v7842 = vsel %vm7840, %v7815, 0
        %v7845 = vsel %vm7840, %v7816, 0
        %v7848 = vsel %vm7840, %v7817, 0
        %v7851 = vsel %vm7840, %v7818, 0
        %v7854 = vsel %vm7840, %v7819, 0
        %v7857 = vsel %vm7840, %v7820, 0
        %v7860 = vsel %vm7840, %v7821, 0
        %v7863 = vsel %vm7840, %v7822, 0
        %vm7865 = vcmask 1043456
        %v7867 = vsel %vm7865, %v7835, 0
        %7869 = vmatpush.msra.mxu0 0.0
        %7870 = vmatpush.msra.mxu0 0.0
        %7871 = vmatpush.msra.mxu0 0.0
        %7872 = vmatpush.msra.mxu0 %v7867
        %7873 = vmatpush.msra.mxu0 %v7834
        %7874 = vmatpush.msra.mxu0 %v7833
        %7875 = vmatpush.msra.mxu0 %v7832
        %7876 = vmatpush.msra.mxu0 %v7831
        %7877 = vmatpush.msra.mxu0 %v7830
        %7878 = vmatpush.msra.mxu0 %v7829
        %7879 = vmatpush.msra.mxu0 %v7828
        %7880 = vmatpush.msra.mxu0 %v7827
        %7881 = vmatpush.msra.mxu0 %v7826
        %7882 = vmatpush.msra.mxu0 %v7825
        %7883 = vmatpush.msra.mxu0 %v7824
        %7884 = vmatpush.msra.mxu0 %v7823
        %7885 = vmatmul.f32.gmra.mxu0 %v7842
        %v7886 = vpop.f32.mrf.mxu0
        %v7887 = vadd.f32 %v7838, %v7886
        %7888 = vmatmul.f32.gmra.mxu0 %v7845
        %v7889 = vpop.f32.mrf.mxu0
        %v7890 = vadd.f32 %v7838, %v7889
        %7891 = vmatmul.f32.gmra.mxu0 %v7848
        %v7892 = vpop.f32.mrf.mxu0
        %v7893 = vadd.f32 %v7838, %v7892
        %7894 = vmatmul.f32.gmra.mxu0 %v7851
        %v7895 = vpop.f32.mrf.mxu0
        %v7896 = vadd.f32 %v7838, %v7895
        %7897 = vmatmul.f32.gmra.mxu0 %v7854
        %v7898 = vpop.f32.mrf.mxu0
        %v7899 = vadd.f32 %v7838, %v7898
        %7900 = vmatmul.f32.gmra.mxu0 %v7857
        %v7901 = vpop.f32.mrf.mxu0
        %v7902 = vadd.f32 %v7838, %v7901
        %7903 = vmatmul.f32.gmra.mxu0 %v7860
        %v7904 = vpop.f32.mrf.mxu0
        %v7905 = vadd.f32 %v7838, %v7904
        %7906 = vmatmul.f32.gmra.mxu0 %v7863
        %v7907 = vpop.f32.mrf.mxu0
        %v7908 = vadd.f32 %v7838, %v7907
        %7909 = vdwg.mxu0
        %vm7910 = vcmask 64512
        %7911 = vst.msk [vmem:[%s271] sm:$0xff] %vm7910, %v7887
        %7912 = vst.msk [vmem:[%s271 + $0x8] sm:$0xff] %vm7910, %v7890
        %7913 = vst.msk [vmem:[%s271 + $0x10] sm:$0xff] %vm7910, %v7893
        %7914 = vst.msk [vmem:[%s271 + $0x18] sm:$0xff] %vm7910, %v7896
        %7915 = vst.msk [vmem:[%s271 + $0x20] sm:$0xff] %vm7910, %v7899
        %7916 = vst.msk [vmem:[%s271 + $0x28] sm:$0xff] %vm7910, %v7902
        %7917 = vst.msk [vmem:[%s271 + $0x30] sm:$0xff] %vm7910, %v7905
        %7918 = vst.msk [vmem:[%s271 + $0x38] sm:$0xff] %vm7910, %v7908
        %s7919 = sand.u32 %s181, 1
        %s7920 = scalar_lea.sflag [#allocation7], %s7919
        %s7921 = sand.u32 %s181, 1
        %s7922 = smul.addr %s7921, 64
        %s7923 = scalar_lea.vmem [#allocation6], %s7922
        // Predicated region
        $region49: #{rdb_ds_forward.1} parent=47 // pred_check
          %p7924 = pneg %p191
        $region50: #{rdb_ds_forward.1} parent=47 // pred_check_branch
          %7926 = sbr.rel (%p7924) target = $region52
        $region51: #{rdb_ds_forward.1} parent=47 // pred_region
          %7928 = vsyncadd %s7920, 0
          %s7929 = smul.addr %s21, 8
          %s7930 = smul.addr %s7929, 8
          %s7931 = scalar_lea.hbm %s7, %s7930
          %s7932 = sshll.u32 %s7923, 4
          %s7933 = int_to_ptr.vmem [resolvable:$true] %s7932
          %s7934 = sshll.u32 %s7931, 4
          %s7935 = int_to_ptr.hbm [resolvable:$true] %s7934
          %7940 = dma.vmem_to_hbm [thread:$0]  %s7933, 1024, %s7935, %s7920, 128, 128, 8
        $region52: #{rdb_ds_forward.1} parent=47 // pred_fallthru
          _
      $region48: #{rdb_ds_forward.1} parent=5 // pred_fallthru
        _
      %p7941 = scmp.le.s32.totalorder 2, %s16
      // Predicated region
      $region53: #{rdb_ds_forward.1} parent=5 // pred_check
        %p7942 = pneg %p7941
      $region54: #{rdb_ds_forward.1} parent=5 // pred_check_branch
        %7944 = sbr.rel (%p7942) target = $region56
      $region55: #{rdb_ds_forward.1} parent=5 // pred_region
        %s7945 = ssub.s32 %s16, 2
        // Predicated region
        $region57: #{rdb_ds_forward.1} parent=55 // pred_check
          %p7946 = pneg %p197
        $region58: #{rdb_ds_forward.1} parent=55 // pred_check_branch
          %7948 = sbr.rel (%p7946) target = $region60
        $region59: #{rdb_ds_forward.1} parent=55 // pred_region
          %s7949 = sand.u32 %s182, 1
          %s7950 = scalar_lea.sflag [#allocation7], %s7949
          %s7951 = sand.u32 %s182, 1
          %s7952 = smul.addr %s7951, 64
          %s7953 = scalar_lea.vmem [#allocation6], %s7952
          %7955 = dma.done %s7950, 1024
        $region60: #{rdb_ds_forward.1} parent=55 // pred_fallthru
          _
      $region56: #{rdb_ds_forward.1} parent=5 // pred_fallthru
        _
    $region6: #{rdb_ds_forward.1} parent=1 // loop_footer
      %s20 = sadd.s32 1, %s16
    $region7: #{rdb_ds_forward.1} parent=1 // loop_footer_branch
      %15 = sbr.rel target = $region3
    $region8: #{rdb_ds_forward.1} parent=1 // loop_exit
      _
    %7956 = vsyncpa [#allocation7], 1
    %s7957 = scalar_lea.sflag [#allocation7], 1
    %7958 = vsyncpa %s7957, 1

</llo_original>
